<compile_context>
chip_gen: v7x
topology: tpu7x:2x2x1
jax: 0.10.0
libtpu: 0.0.40
codegen_flags: <defaults>
</compile_context>

<pallas_src>
import functools

import jax
import jax.numpy as jnp
from jax.experimental import pallas as pl
from jax.experimental.pallas import tpu as pltpu  # noqa: F401  (VMEM budget documented above)


def _round_up(x, m):
    return (x + m - 1) // m * m


# ----------------------------------------------------------------------------
# Pallas kernels
# ----------------------------------------------------------------------------
def _gemm_bias_kernel(x_ref, w_ref, b_ref, o_ref, *, relu):
    """Single-block GEMM + bias (+ optional ReLU); whole operands live in VMEM."""
    r = jnp.dot(x_ref[...], w_ref[...], preferred_element_type=jnp.float32)
    r = r + b_ref[...]                                   # (M, N) + (1, N)
    if relu:
        r = jnp.maximum(r, 0.0)
    o_ref[...] = r.astype(o_ref.dtype)


def _mlp_head_kernel(x_ref, w1_ref, b1_ref, w2_ref, b2_ref, o_ref):
    """Fused fc1 + ReLU + fc2: hidden activation stays in registers/VMEM."""
    h = jnp.dot(x_ref[...], w1_ref[...], preferred_element_type=jnp.float32)
    h = jnp.maximum(h + b1_ref[...], 0.0)
    o = jnp.dot(h, w2_ref[...], preferred_element_type=jnp.float32) + b2_ref[...]
    o_ref[...] = o.astype(o_ref.dtype)


def _maxpool_kernel(a_ref, b_ref, c_ref, d_ref, o_ref):
    """Elementwise max over the four shifted views of a 2x2/stride-2 window."""
    o_ref[...] = jnp.maximum(jnp.maximum(a_ref[...], b_ref[...]),
                             jnp.maximum(c_ref[...], d_ref[...]))


# ----------------------------------------------------------------------------
# Pallas wrappers (single-block launches, full-array BlockSpecs)
# ----------------------------------------------------------------------------
def matmul_bias(x, w, b, *, relu=False):
    """out = x @ w + b (optionally ReLU). One Pallas block; no K/M/N grid."""
    M, K = x.shape
    K2, N = w.shape
    assert K == K2
    kernel = functools.partial(_gemm_bias_kernel, relu=relu)
    return pl.pallas_call(
        kernel,
        out_shape=jax.ShapeDtypeStruct((M, N), jnp.float32),
        grid=(1,),
        in_specs=[pl.BlockSpec((M, K), lambda i: (0, 0)),
                  pl.BlockSpec((K, N), lambda i: (0, 0)),
                  pl.BlockSpec((1, N), lambda i: (0, 0))],
        out_specs=pl.BlockSpec((M, N), lambda i: (0, 0)),
    )(x, w, b.reshape(1, N))


def mlp_head(x, fc1_w, fc1_b, fc2_w, fc2_b):
    """Fused fc1 -> ReLU -> fc2 (PyTorch Linear weights are (out, in))."""
    M, K = x.shape
    w1 = fc1_w.T                                    # (K, H)
    w2 = fc2_w.T                                    # (H, NC)
    H = w1.shape[1]
    NC = w2.shape[1]
    # Sublane-align the tiny batch (2 -> 8) and lane-align the contraction dim.
    Mp = _round_up(M, 8)
    Kp = _round_up(K, 128)
    xp = jnp.pad(x, ((0, Mp - M), (0, Kp - K)))
    w1p = jnp.pad(w1, ((0, Kp - K), (0, 0)))
    out = pl.pallas_call(
        _mlp_head_kernel,
        out_shape=jax.ShapeDtypeStruct((Mp, NC), jnp.float32),
        grid=(1,),
        in_specs=[pl.BlockSpec((Mp, Kp), lambda i: (0, 0)),
                  pl.BlockSpec((Kp, H), lambda i: (0, 0)),
                  pl.BlockSpec((1, H), lambda i: (0, 0)),
                  pl.BlockSpec((H, NC), lambda i: (0, 0)),
                  pl.BlockSpec((1, NC), lambda i: (0, 0))],
        out_specs=pl.BlockSpec((Mp, NC), lambda i: (0, 0)),
    )(xp, w1p, fc1_b.reshape(1, H), w2, fc2_b.reshape(1, NC))
    return out[:M]


def maxpool2x2(x_nhwc):
    """2x2 max pool, stride 2 (H, W even for this config), NHWC layout."""
    N, H, W, C = x_nhwc.shape
    a = x_nhwc[:, 0::2, 0::2, :]
    b = x_nhwc[:, 0::2, 1::2, :]
    c = x_nhwc[:, 1::2, 0::2, :]
    d = x_nhwc[:, 1::2, 1::2, :]
    shp = a.shape                                   # (N, H//2, W//2, C)
    return pl.pallas_call(
        _maxpool_kernel,
        out_shape=jax.ShapeDtypeStruct(shp, x_nhwc.dtype),
        grid=(1,),
        in_specs=[pl.BlockSpec(shp, lambda i: (0, 0, 0, 0))] * 4,
        out_specs=pl.BlockSpec(shp, lambda i: (0, 0, 0, 0)),
    )(a, b, c, d)


# ----------------------------------------------------------------------------
# Conv as im2col (plain-JAX glue) + single-block Pallas GEMM
# ----------------------------------------------------------------------------
def _im2col(x_nhwc, kh, kw, ph, pw):
    """Returns (patches (M, Kp) with K zero-padded to a multiple of 128, OH, OW)."""
    N, H, W, C = x_nhwc.shape
    xp = jnp.pad(x_nhwc, ((0, 0), (ph, ph), (pw, pw), (0, 0)))
    OH = H + 2 * ph - kh + 1
    OW = W + 2 * pw - kw + 1
    patches = []
    for i in range(kh):
        for j in range(kw):
            patches.append(xp[:, i:i + OH, j:j + OW, :])
    p = jnp.stack(patches, axis=3)                  # (N, OH, OW, kh*kw, C)
    p = p.reshape(N * OH * OW, kh * kw * C)
    K = p.shape[1]
    Kp = _round_up(K, 128)
    if Kp != K:                                     # pad K once, here (no per-call pad/slice pairs)
        p = jnp.pad(p, ((0, 0), (0, Kp - K)))
    return p, OH, OW


def conv2d(x_nhwc, w_pt, b_pt, padding):
    """w_pt: PyTorch conv weight (Cout, Cin, KH, KW); b_pt: (Cout,)."""
    cout, cin, kh, kw = w_pt.shape
    patches, OH, OW = _im2col(x_nhwc, kh, kw, padding, padding)
    # (KH, KW, Cin, Cout) flattened to (KH*KW*Cin, Cout) matches patch ordering.
    w_mat = jnp.transpose(w_pt, (2, 3, 1, 0)).reshape(kh * kw * cin, cout)
    Kp = patches.shape[1]
    if Kp != w_mat.shape[0]:
        w_mat = jnp.pad(w_mat, ((0, Kp - w_mat.shape[0]), (0, 0)))
    out = matmul_bias(patches, w_mat, b_pt)
    N = x_nhwc.shape[0]
    return out.reshape(N, OH, OW, cout)


# ----------------------------------------------------------------------------
# Parameter init (deterministic, PyTorch-default-style uniform bounds)
# ----------------------------------------------------------------------------
def _uniform(key, shape, fan_in):
    bound = 1.0 / jnp.sqrt(jnp.float32(fan_in))
    return jax.random.uniform(key, shape, jnp.float32, -bound, bound)


def init_params(key, num_classes, img_size):
    ks = jax.random.split(key, 12)
    conv_cfg = [  # (cin, cout, k)
        (1, 32, 3), (32, 32, 5), (32, 64, 7), (64, 64, 11)]
    params = {}
    for n, (cin, cout, k) in enumerate(conv_cfg, start=1):
        fan = cin * k * k
        params[f"conv{n}_w"] = _uniform(ks[2 * (n - 1)], (cout, cin, k, k), fan)
        params[f"conv{n}_b"] = _uniform(ks[2 * (n - 1) + 1], (cout,), fan)
    # spatial trace: convs 1,2 same; pool/2; conv3 same; conv4 shrinks by 2; pool/2
    h = img_size // 2
    h = (h - 2) // 2
    fc_in = 64 * h * h
    params["fc1_w"] = _uniform(ks[8], (128, fc_in), fc_in)
    params["fc1_b"] = _uniform(ks[9], (128,), fc_in)
    params["fc2_w"] = _uniform(ks[10], (num_classes, 128), 128)
    params["fc2_b"] = _uniform(ks[11], (num_classes,), 128)
    return params


# ----------------------------------------------------------------------------
# Forward pass (matches PyTorch ConvNeuralNetwork.forward)
# ----------------------------------------------------------------------------
def conv_neural_network_forward(params, x_nchw):
    x = jnp.transpose(x_nchw, (0, 2, 3, 1))                    # NCHW -> NHWC
    x = conv2d(x, params["conv1_w"], params["conv1_b"], padding=1)
    x = conv2d(x, params["conv2_w"], params["conv2_b"], padding=2)
    x = maxpool2x2(x)
    x = conv2d(x, params["conv3_w"], params["conv3_b"], padding=3)
    x = conv2d(x, params["conv4_w"], params["conv4_b"], padding=4)
    x = maxpool2x2(x)
    # PyTorch flattens NCHW order: transpose back before reshape(N, -1).
    x = jnp.transpose(x, (0, 3, 1, 2)).reshape(x.shape[0], -1)
    x = mlp_head(x, params["fc1_w"], params["fc1_b"],
                 params["fc2_w"], params["fc2_b"])             # fc1+ReLU+fc2 fused
    return x


# ----------------------------------------------------------------------------
if __name__ == "__main__":
    num_classes = 10
    img_size = 16
    batch = 2

    key = jax.random.PRNGKey(0)
    k_params, k_x = jax.random.split(key)
    params = init_params(k_params, num_classes, img_size)
    x = jax.random.normal(k_x, (batch, 1, img_size, img_size), jnp.float32)

    out = jax.jit(conv_neural_network_forward)(params, x)
    out = jax.block_until_ready(out)
    assert out.shape == (batch, num_classes), out.shape
    assert out.dtype == jnp.float32
    print("KERNEL_OK")
</pallas_src>

<mosaic_0001>
module attributes {stable_mosaic.version = 11 : i64} {
  func.func @_gemm_bias_kernel(%arg0: i32, %arg1: memref<512x128xf32, #tpu.memory_space<vmem>>, %arg2: memref<128x32xf32, #tpu.memory_space<vmem>>, %arg3: memref<1x32xf32, #tpu.memory_space<vmem>>, %arg4: memref<512x32xf32, #tpu.memory_space<vmem>>) attributes {dimension_semantics = [#tpu.dimension_semantics<arbitrary>], iteration_bounds = array<i64: 1>, scalar_prefetch = 0 : i64, scratch_operands = 0 : i64, tpu.core_type = #tpu.core_type<tc>, window_params = [{pipeline_mode = #tpu.pipeline_mode<synchronous>, transform_indices = @transform_0, window_bounds = array<i64: 512, 128>}, {pipeline_mode = #tpu.pipeline_mode<synchronous>, transform_indices = @transform_1, window_bounds = array<i64: 128, 32>}, {pipeline_mode = #tpu.pipeline_mode<synchronous>, transform_indices = @transform_2, window_bounds = array<i64: 1, 32>}, {pipeline_mode = #tpu.pipeline_mode<synchronous>, transform_indices = @transform_3, window_bounds = array<i64: 512, 32>}]} {
    %c0 = arith.constant 0 : index
    %c0_0 = arith.constant 0 : index
    %0 = vector.load %arg1[%c0, %c0_0] : memref<512x128xf32, #tpu.memory_space<vmem>>, vector<512x128xf32>
    %c0_1 = arith.constant 0 : index
    %c0_2 = arith.constant 0 : index
    %1 = vector.load %arg2[%c0_1, %c0_2] : memref<128x32xf32, #tpu.memory_space<vmem>>, vector<128x32xf32>
    %cst = arith.constant dense<0.000000e+00> : vector<512x32xf32>
    %2 = tpu.matmul %0, %1, %cst {dimension_numbers = #tpu.dot_dimension_numbers<[1], [0], [0], [1], [0, 0, 1, 1], [], []>} : vector<512x128xf32>, vector<128x32xf32>, vector<512x32xf32> -> vector<512x32xf32>
    %c0_3 = arith.constant 0 : index
    %c0_4 = arith.constant 0 : index
    %3 = vector.load %arg3[%c0_3, %c0_4] : memref<1x32xf32, #tpu.memory_space<vmem>>, vector<1x32xf32>
    %4 = vector.broadcast %3 : vector<1x32xf32> to vector<512x32xf32>
    %5 = arith.addf %2, %4 : vector<512x32xf32>
    %c0_5 = arith.constant 0 : index
    %c0_6 = arith.constant 0 : index
    %6 = vector.load %arg4[%c0_5, %c0_6] : memref<512x32xf32, #tpu.memory_space<vmem>>, vector<512x32xf32>
    tpu.vector_store %arg4[%c0_5, %c0_6], %5 {strides = array<i32>} : memref<512x32xf32, #tpu.memory_space<vmem>>, vector<512x32xf32>,
    return
  }
  func.func @transform_0(%arg0: i32) -> (i32, i32) {
    %c0_i32 = arith.constant 0 : i32
    %c0_i32_0 = arith.constant 0 : i32
    %c0_i32_1 = arith.constant 0 : i32
    return %c0_i32, %c0_i32_0 : i32, i32
  }
  func.func @transform_1(%arg0: i32) -> (i32, i32) {
    %c0_i32 = arith.constant 0 : i32
    %c0_i32_0 = arith.constant 0 : i32
    %c0_i32_1 = arith.constant 0 : i32
    return %c0_i32, %c0_i32_0 : i32, i32
  }
  func.func @transform_2(%arg0: i32) -> (i32, i32) {
    %c0_i32 = arith.constant 0 : i32
    %c0_i32_0 = arith.constant 0 : i32
    %c0_i32_1 = arith.constant 0 : i32
    return %c0_i32, %c0_i32_0 : i32, i32
  }
  func.func @transform_3(%arg0: i32) -> (i32, i32) {
    %c0_i32 = arith.constant 0 : i32
    %c0_i32_0 = arith.constant 0 : i32
    %c0_i32_1 = arith.constant 0 : i32
    return %c0_i32, %c0_i32_0 : i32, i32
  }
}

module attributes {stable_mosaic.version = 11 : i64} {
  func.func @_gemm_bias_kernel(%arg0: i32, %arg1: memref<512x896xf32, #tpu.memory_space<vmem>>, %arg2: memref<896x32xf32, #tpu.memory_space<vmem>>, %arg3: memref<1x32xf32, #tpu.memory_space<vmem>>, %arg4: memref<512x32xf32, #tpu.memory_space<vmem>>) attributes {dimension_semantics = [#tpu.dimension_semantics<arbitrary>], iteration_bounds = array<i64: 1>, scalar_prefetch = 0 : i64, scratch_operands = 0 : i64, tpu.core_type = #tpu.core_type<tc>, window_params = [{pipeline_mode = #tpu.pipeline_mode<synchronous>, transform_indices = @transform_0, window_bounds = array<i64: 512, 896>}, {pipeline_mode = #tpu.pipeline_mode<synchronous>, transform_indices = @transform_1, window_bounds = array<i64: 896, 32>}, {pipeline_mode = #tpu.pipeline_mode<synchronous>, transform_indices = @transform_2, window_bounds = array<i64: 1, 32>}, {pipeline_mode = #tpu.pipeline_mode<synchronous>, transform_indices = @transform_3, window_bounds = array<i64: 512, 32>}]} {
    %c0 = arith.constant 0 : index
    %c0_0 = arith.constant 0 : index
    %0 = vector.load %arg1[%c0, %c0_0] : memref<512x896xf32, #tpu.memory_space<vmem>>, vector<512x896xf32>
    %c0_1 = arith.constant 0 : index
    %c0_2 = arith.constant 0 : index
    %1 = vector.load %arg2[%c0_1, %c0_2] : memref<896x32xf32, #tpu.memory_space<vmem>>, vector<896x32xf32>
    %cst = arith.constant dense<0.000000e+00> : vector<512x32xf32>
    %2 = tpu.matmul %0, %1, %cst {dimension_numbers = #tpu.dot_dimension_numbers<[1], [0], [0], [1], [0, 0, 1, 1], [], []>} : vector<512x896xf32>, vector<896x32xf32>, vector<512x32xf32> -> vector<512x32xf32>
    %c0_3 = arith.constant 0 : index
    %c0_4 = arith.constant 0 : index
    %3 = vector.load %arg3[%c0_3, %c0_4] : memref<1x32xf32, #tpu.memory_space<vmem>>, vector<1x32xf32>
    %4 = vector.broadcast %3 : vector<1x32xf32> to vector<512x32xf32>
    %5 = arith.addf %2, %4 : vector<512x32xf32>
    %c0_5 = arith.constant 0 : index
    %c0_6 = arith.constant 0 : index
    %6 = vector.load %arg4[%c0_5, %c0_6] : memref<512x32xf32, #tpu.memory_space<vmem>>, vector<512x32xf32>
    tpu.vector_store %arg4[%c0_5, %c0_6], %5 {strides = array<i32>} : memref<512x32xf32, #tpu.memory_space<vmem>>, vector<512x32xf32>,
    return
  }
  func.func @transform_0(%arg0: i32) -> (i32, i32) {
    %c0_i32 = arith.constant 0 : i32
    %c0_i32_0 = arith.constant 0 : i32
    %c0_i32_1 = arith.constant 0 : i32
    return %c0_i32, %c0_i32_0 : i32, i32
  }
  func.func @transform_1(%arg0: i32) -> (i32, i32) {
    %c0_i32 = arith.constant 0 : i32
    %c0_i32_0 = arith.constant 0 : i32
    %c0_i32_1 = arith.constant 0 : i32
    return %c0_i32, %c0_i32_0 : i32, i32
  }
  func.func @transform_2(%arg0: i32) -> (i32, i32) {
    %c0_i32 = arith.constant 0 : i32
    %c0_i32_0 = arith.constant 0 : i32
    %c0_i32_1 = arith.constant 0 : i32
    return %c0_i32, %c0_i32_0 : i32, i32
  }
  func.func @transform_3(%arg0: i32) -> (i32, i32) {
    %c0_i32 = arith.constant 0 : i32
    %c0_i32_0 = arith.constant 0 : i32
    %c0_i32_1 = arith.constant 0 : i32
    return %c0_i32, %c0_i32_0 : i32, i32
  }
}

module attributes {stable_mosaic.version = 11 : i64} {
  func.func @_maxpool_kernel(%arg0: i32, %arg1: memref<2x8x8x32xf32, #tpu.memory_space<vmem>>, %arg2: memref<2x8x8x32xf32, #tpu.memory_space<vmem>>, %arg3: memref<2x8x8x32xf32, #tpu.memory_space<vmem>>, %arg4: memref<2x8x8x32xf32, #tpu.memory_space<vmem>>, %arg5: memref<2x8x8x32xf32, #tpu.memory_space<vmem>>) attributes {dimension_semantics = [#tpu.dimension_semantics<arbitrary>], iteration_bounds = array<i64: 1>, scalar_prefetch = 0 : i64, scratch_operands = 0 : i64, tpu.core_type = #tpu.core_type<tc>, window_params = [{pipeline_mode = #tpu.pipeline_mode<synchronous>, transform_indices = @transform_0, window_bounds = array<i64: 2, 8, 8, 32>}, {pipeline_mode = #tpu.pipeline_mode<synchronous>, transform_indices = @transform_1, window_bounds = array<i64: 2, 8, 8, 32>}, {pipeline_mode = #tpu.pipeline_mode<synchronous>, transform_indices = @transform_2, window_bounds = array<i64: 2, 8, 8, 32>}, {pipeline_mode = #tpu.pipeline_mode<synchronous>, transform_indices = @transform_3, window_bounds = array<i64: 2, 8, 8, 32>}, {pipeline_mode = #tpu.pipeline_mode<synchronous>, transform_indices = @transform_4, window_bounds = array<i64: 2, 8, 8, 32>}]} {
    %c0 = arith.constant 0 : index
    %c0_0 = arith.constant 0 : index
    %c0_1 = arith.constant 0 : index
    %c0_2 = arith.constant 0 : index
    %0 = vector.load %arg1[%c0, %c0_0, %c0_1, %c0_2] : memref<2x8x8x32xf32, #tpu.memory_space<vmem>>, vector<2x8x8x32xf32>
    %c0_3 = arith.constant 0 : index
    %c0_4 = arith.constant 0 : index
    %c0_5 = arith.constant 0 : index
    %c0_6 = arith.constant 0 : index
    %1 = vector.load %arg2[%c0_3, %c0_4, %c0_5, %c0_6] : memref<2x8x8x32xf32, #tpu.memory_space<vmem>>, vector<2x8x8x32xf32>
    %2 = arith.maximumf %0, %1 : vector<2x8x8x32xf32>
    %c0_7 = arith.constant 0 : index
    %c0_8 = arith.constant 0 : index
    %c0_9 = arith.constant 0 : index
    %c0_10 = arith.constant 0 : index
    %3 = vector.load %arg3[%c0_7, %c0_8, %c0_9, %c0_10] : memref<2x8x8x32xf32, #tpu.memory_space<vmem>>, vector<2x8x8x32xf32>
    %c0_11 = arith.constant 0 : index
    %c0_12 = arith.constant 0 : index
    %c0_13 = arith.constant 0 : index
    %c0_14 = arith.constant 0 : index
    %4 = vector.load %arg4[%c0_11, %c0_12, %c0_13, %c0_14] : memref<2x8x8x32xf32, #tpu.memory_space<vmem>>, vector<2x8x8x32xf32>
    %5 = arith.maximumf %3, %4 : vector<2x8x8x32xf32>
    %6 = arith.maximumf %2, %5 : vector<2x8x8x32xf32>
    %c0_15 = arith.constant 0 : index
    %c0_16 = arith.constant 0 : index
    %c0_17 = arith.constant 0 : index
    %c0_18 = arith.constant 0 : index
    %7 = vector.load %arg5[%c0_15, %c0_16, %c0_17, %c0_18] : memref<2x8x8x32xf32, #tpu.memory_space<vmem>>, vector<2x8x8x32xf32>
    tpu.vector_store %arg5[%c0_15, %c0_16, %c0_17, %c0_18], %6 {strides = array<i32>} : memref<2x8x8x32xf32, #tpu.memory_space<vmem>>, vector<2x8x8x32xf32>,
    return
  }
  func.func @transform_0(%arg0: i32) -> (i32, i32, i32, i32) {
    %c0_i32 = arith.constant 0 : i32
    %c0_i32_0 = arith.constant 0 : i32
    %c0_i32_1 = arith.constant 0 : i32
    %c0_i32_2 = arith.constant 0 : i32
    %c0_i32_3 = arith.constant 0 : i32
    return %c0_i32, %c0_i32_0, %c0_i32_1, %c0_i32_2 : i32, i32, i32, i32
  }
  func.func @transform_1(%arg0: i32) -> (i32, i32, i32, i32) {
    %c0_i32 = arith.constant 0 : i32
    %c0_i32_0 = arith.constant 0 : i32
    %c0_i32_1 = arith.constant 0 : i32
    %c0_i32_2 = arith.constant 0 : i32
    %c0_i32_3 = arith.constant 0 : i32
    return %c0_i32, %c0_i32_0, %c0_i32_1, %c0_i32_2 : i32, i32, i32, i32
  }
  func.func @transform_2(%arg0: i32) -> (i32, i32, i32, i32) {
    %c0_i32 = arith.constant 0 : i32
    %c0_i32_0 = arith.constant 0 : i32
    %c0_i32_1 = arith.constant 0 : i32
    %c0_i32_2 = arith.constant 0 : i32
    %c0_i32_3 = arith.constant 0 : i32
    return %c0_i32, %c0_i32_0, %c0_i32_1, %c0_i32_2 : i32, i32, i32, i32
  }
  func.func @transform_3(%arg0: i32) -> (i32, i32, i32, i32) {
    %c0_i32 = arith.constant 0 : i32
    %c0_i32_0 = arith.constant 0 : i32
    %c0_i32_1 = arith.constant 0 : i32
    %c0_i32_2 = arith.constant 0 : i32
    %c0_i32_3 = arith.constant 0 : i32
    return %c0_i32, %c0_i32_0, %c0_i32_1, %c0_i32_2 : i32, i32, i32, i32
  }
  func.func @transform_4(%arg0: i32) -> (i32, i32, i32, i32) {
    %c0_i32 = arith.constant 0 : i32
    %c0_i32_0 = arith.constant 0 : i32
    %c0_i32_1 = arith.constant 0 : i32
    %c0_i32_2 = arith.constant 0 : i32
    %c0_i32_3 = arith.constant 0 : i32
    return %c0_i32, %c0_i32_0, %c0_i32_1, %c0_i32_2 : i32, i32, i32, i32
  }
}

module attributes {stable_mosaic.version = 11 : i64} {
  func.func @_gemm_bias_kernel(%arg0: i32, %arg1: memref<128x1664xf32, #tpu.memory_space<vmem>>, %arg2: memref<1664x64xf32, #tpu.memory_space<vmem>>, %arg3: memref<1x64xf32, #tpu.memory_space<vmem>>, %arg4: memref<128x64xf32, #tpu.memory_space<vmem>>) attributes {dimension_semantics = [#tpu.dimension_semantics<arbitrary>], iteration_bounds = array<i64: 1>, scalar_prefetch = 0 : i64, scratch_operands = 0 : i64, tpu.core_type = #tpu.core_type<tc>, window_params = [{pipeline_mode = #tpu.pipeline_mode<synchronous>, transform_indices = @transform_0, window_bounds = array<i64: 128, 1664>}, {pipeline_mode = #tpu.pipeline_mode<synchronous>, transform_indices = @transform_1, window_bounds = array<i64: 1664, 64>}, {pipeline_mode = #tpu.pipeline_mode<synchronous>, transform_indices = @transform_2, window_bounds = array<i64: 1, 64>}, {pipeline_mode = #tpu.pipeline_mode<synchronous>, transform_indices = @transform_3, window_bounds = array<i64: 128, 64>}]} {
    %c0 = arith.constant 0 : index
    %c0_0 = arith.constant 0 : index
    %0 = vector.load %arg1[%c0, %c0_0] : memref<128x1664xf32, #tpu.memory_space<vmem>>, vector<128x1664xf32>
    %c0_1 = arith.constant 0 : index
    %c0_2 = arith.constant 0 : index
    %1 = vector.load %arg2[%c0_1, %c0_2] : memref<1664x64xf32, #tpu.memory_space<vmem>>, vector<1664x64xf32>
    %cst = arith.constant dense<0.000000e+00> : vector<128x64xf32>
    %2 = tpu.matmul %0, %1, %cst {dimension_numbers = #tpu.dot_dimension_numbers<[1], [0], [0], [1], [0, 0, 1, 1], [], []>} : vector<128x1664xf32>, vector<1664x64xf32>, vector<128x64xf32> -> vector<128x64xf32>
    %c0_3 = arith.constant 0 : index
    %c0_4 = arith.constant 0 : index
    %3 = vector.load %arg3[%c0_3, %c0_4] : memref<1x64xf32, #tpu.memory_space<vmem>>, vector<1x64xf32>
    %4 = vector.broadcast %3 : vector<1x64xf32> to vector<128x64xf32>
    %5 = arith.addf %2, %4 : vector<128x64xf32>
    %c0_5 = arith.constant 0 : index
    %c0_6 = arith.constant 0 : index
    %6 = vector.load %arg4[%c0_5, %c0_6] : memref<128x64xf32, #tpu.memory_space<vmem>>, vector<128x64xf32>
    tpu.vector_store %arg4[%c0_5, %c0_6], %5 {strides = array<i32>} : memref<128x64xf32, #tpu.memory_space<vmem>>, vector<128x64xf32>,
    return
  }
  func.func @transform_0(%arg0: i32) -> (i32, i32) {
    %c0_i32 = arith.constant 0 : i32
    %c0_i32_0 = arith.constant 0 : i32
    %c0_i32_1 = arith.constant 0 : i32
    return %c0_i32, %c0_i32_0 : i32, i32
  }
  func.func @transform_1(%arg0: i32) -> (i32, i32) {
    %c0_i32 = arith.constant 0 : i32
    %c0_i32_0 = arith.constant 0 : i32
    %c0_i32_1 = arith.constant 0 : i32
    return %c0_i32, %c0_i32_0 : i32, i32
  }
  func.func @transform_2(%arg0: i32) -> (i32, i32) {
    %c0_i32 = arith.constant 0 : i32
    %c0_i32_0 = arith.constant 0 : i32
    %c0_i32_1 = arith.constant 0 : i32
    return %c0_i32, %c0_i32_0 : i32, i32
  }
  func.func @transform_3(%arg0: i32) -> (i32, i32) {
    %c0_i32 = arith.constant 0 : i32
    %c0_i32_0 = arith.constant 0 : i32
    %c0_i32_1 = arith.constant 0 : i32
    return %c0_i32, %c0_i32_0 : i32, i32
  }
}

module attributes {stable_mosaic.version = 11 : i64} {
  func.func @_gemm_bias_kernel(%arg0: i32, %arg1: memref<72x7808xf32, #tpu.memory_space<vmem>>, %arg2: memref<7808x64xf32, #tpu.memory_space<vmem>>, %arg3: memref<1x64xf32, #tpu.memory_space<vmem>>, %arg4: memref<72x64xf32, #tpu.memory_space<vmem>>) attributes {dimension_semantics = [#tpu.dimension_semantics<arbitrary>], iteration_bounds = array<i64: 1>, scalar_prefetch = 0 : i64, scratch_operands = 0 : i64, tpu.core_type = #tpu.core_type<tc>, window_params = [{pipeline_mode = #tpu.pipeline_mode<synchronous>, transform_indices = @transform_0, window_bounds = array<i64: 72, 7808>}, {pipeline_mode = #tpu.pipeline_mode<synchronous>, transform_indices = @transform_1, window_bounds = array<i64: 7808, 64>}, {pipeline_mode = #tpu.pipeline_mode<synchronous>, transform_indices = @transform_2, window_bounds = array<i64: 1, 64>}, {pipeline_mode = #tpu.pipeline_mode<synchronous>, transform_indices = @transform_3, window_bounds = array<i64: 72, 64>}]} {
    %c0 = arith.constant 0 : index
    %c0_0 = arith.constant 0 : index
    %0 = vector.load %arg1[%c0, %c0_0] : memref<72x7808xf32, #tpu.memory_space<vmem>>, vector<72x7808xf32>
    %c0_1 = arith.constant 0 : index
    %c0_2 = arith.constant 0 : index
    %1 = vector.load %arg2[%c0_1, %c0_2] : memref<7808x64xf32, #tpu.memory_space<vmem>>, vector<7808x64xf32>
    %cst = arith.constant dense<0.000000e+00> : vector<72x64xf32>
    %2 = tpu.matmul %0, %1, %cst {dimension_numbers = #tpu.dot_dimension_numbers<[1], [0], [0], [1], [0, 0, 1, 1], [], []>} : vector<72x7808xf32>, vector<7808x64xf32>, vector<72x64xf32> -> vector<72x64xf32>
    %c0_3 = arith.constant 0 : index
    %c0_4 = arith.constant 0 : index
    %3 = vector.load %arg3[%c0_3, %c0_4] : memref<1x64xf32, #tpu.memory_space<vmem>>, vector<1x64xf32>
    %4 = vector.broadcast %3 : vector<1x64xf32> to vector<72x64xf32>
    %5 = arith.addf %2, %4 : vector<72x64xf32>
    %c0_5 = arith.constant 0 : index
    %c0_6 = arith.constant 0 : index
    %6 = vector.load %arg4[%c0_5, %c0_6] : memref<72x64xf32, #tpu.memory_space<vmem>>, vector<72x64xf32>
    tpu.vector_store %arg4[%c0_5, %c0_6], %5 {strides = array<i32>} : memref<72x64xf32, #tpu.memory_space<vmem>>, vector<72x64xf32>,
    return
  }
  func.func @transform_0(%arg0: i32) -> (i32, i32) {
    %c0_i32 = arith.constant 0 : i32
    %c0_i32_0 = arith.constant 0 : i32
    %c0_i32_1 = arith.constant 0 : i32
    return %c0_i32, %c0_i32_0 : i32, i32
  }
  func.func @transform_1(%arg0: i32) -> (i32, i32) {
    %c0_i32 = arith.constant 0 : i32
    %c0_i32_0 = arith.constant 0 : i32
    %c0_i32_1 = arith.constant 0 : i32
    return %c0_i32, %c0_i32_0 : i32, i32
  }
  func.func @transform_2(%arg0: i32) -> (i32, i32) {
    %c0_i32 = arith.constant 0 : i32
    %c0_i32_0 = arith.constant 0 : i32
    %c0_i32_1 = arith.constant 0 : i32
    return %c0_i32, %c0_i32_0 : i32, i32
  }
  func.func @transform_3(%arg0: i32) -> (i32, i32) {
    %c0_i32 = arith.constant 0 : i32
    %c0_i32_0 = arith.constant 0 : i32
    %c0_i32_1 = arith.constant 0 : i32
    return %c0_i32, %c0_i32_0 : i32, i32
  }
}

module attributes {stable_mosaic.version = 11 : i64} {
  func.func @_maxpool_kernel(%arg0: i32, %arg1: memref<2x3x3x64xf32, #tpu.memory_space<vmem>>, %arg2: memref<2x3x3x64xf32, #tpu.memory_space<vmem>>, %arg3: memref<2x3x3x64xf32, #tpu.memory_space<vmem>>, %arg4: memref<2x3x3x64xf32, #tpu.memory_space<vmem>>, %arg5: memref<2x3x3x64xf32, #tpu.memory_space<vmem>>) attributes {dimension_semantics = [#tpu.dimension_semantics<arbitrary>], iteration_bounds = array<i64: 1>, scalar_prefetch = 0 : i64, scratch_operands = 0 : i64, tpu.core_type = #tpu.core_type<tc>, window_params = [{pipeline_mode = #tpu.pipeline_mode<synchronous>, transform_indices = @transform_0, window_bounds = array<i64: 2, 3, 3, 64>}, {pipeline_mode = #tpu.pipeline_mode<synchronous>, transform_indices = @transform_1, window_bounds = array<i64: 2, 3, 3, 64>}, {pipeline_mode = #tpu.pipeline_mode<synchronous>, transform_indices = @transform_2, window_bounds = array<i64: 2, 3, 3, 64>}, {pipeline_mode = #tpu.pipeline_mode<synchronous>, transform_indices = @transform_3, window_bounds = array<i64: 2, 3, 3, 64>}, {pipeline_mode = #tpu.pipeline_mode<synchronous>, transform_indices = @transform_4, window_bounds = array<i64: 2, 3, 3, 64>}]} {
    %c0 = arith.constant 0 : index
    %c0_0 = arith.constant 0 : index
    %c0_1 = arith.constant 0 : index
    %c0_2 = arith.constant 0 : index
    %0 = vector.load %arg1[%c0, %c0_0, %c0_1, %c0_2] : memref<2x3x3x64xf32, #tpu.memory_space<vmem>>, vector<2x3x3x64xf32>
    %c0_3 = arith.constant 0 : index
    %c0_4 = arith.constant 0 : index
    %c0_5 = arith.constant 0 : index
    %c0_6 = arith.constant 0 : index
    %1 = vector.load %arg2[%c0_3, %c0_4, %c0_5, %c0_6] : memref<2x3x3x64xf32, #tpu.memory_space<vmem>>, vector<2x3x3x64xf32>
    %2 = arith.maximumf %0, %1 : vector<2x3x3x64xf32>
    %c0_7 = arith.constant 0 : index
    %c0_8 = arith.constant 0 : index
    %c0_9 = arith.constant 0 : index
    %c0_10 = arith.constant 0 : index
    %3 = vector.load %arg3[%c0_7, %c0_8, %c0_9, %c0_10] : memref<2x3x3x64xf32, #tpu.memory_space<vmem>>, vector<2x3x3x64xf32>
    %c0_11 = arith.constant 0 : index
    %c0_12 = arith.constant 0 : index
    %c0_13 = arith.constant 0 : index
    %c0_14 = arith.constant 0 : index
    %4 = vector.load %arg4[%c0_11, %c0_12, %c0_13, %c0_14] : memref<2x3x3x64xf32, #tpu.memory_space<vmem>>, vector<2x3x3x64xf32>
    %5 = arith.maximumf %3, %4 : vector<2x3x3x64xf32>
    %6 = arith.maximumf %2, %5 : vector<2x3x3x64xf32>
    %c0_15 = arith.constant 0 : index
    %c0_16 = arith.constant 0 : index
    %c0_17 = arith.constant 0 : index
    %c0_18 = arith.constant 0 : index
    %7 = vector.load %arg5[%c0_15, %c0_16, %c0_17, %c0_18] : memref<2x3x3x64xf32, #tpu.memory_space<vmem>>, vector<2x3x3x64xf32>
    tpu.vector_store %arg5[%c0_15, %c0_16, %c0_17, %c0_18], %6 {strides = array<i32>} : memref<2x3x3x64xf32, #tpu.memory_space<vmem>>, vector<2x3x3x64xf32>,
    return
  }
  func.func @transform_0(%arg0: i32) -> (i32, i32, i32, i32) {
    %c0_i32 = arith.constant 0 : i32
    %c0_i32_0 = arith.constant 0 : i32
    %c0_i32_1 = arith.constant 0 : i32
    %c0_i32_2 = arith.constant 0 : i32
    %c0_i32_3 = arith.constant 0 : i32
    return %c0_i32, %c0_i32_0, %c0_i32_1, %c0_i32_2 : i32, i32, i32, i32
  }
  func.func @transform_1(%arg0: i32) -> (i32, i32, i32, i32) {
    %c0_i32 = arith.constant 0 : i32
    %c0_i32_0 = arith.constant 0 : i32
    %c0_i32_1 = arith.constant 0 : i32
    %c0_i32_2 = arith.constant 0 : i32
    %c0_i32_3 = arith.constant 0 : i32
    return %c0_i32, %c0_i32_0, %c0_i32_1, %c0_i32_2 : i32, i32, i32, i32
  }
  func.func @transform_2(%arg0: i32) -> (i32, i32, i32, i32) {
    %c0_i32 = arith.constant 0 : i32
    %c0_i32_0 = arith.constant 0 : i32
    %c0_i32_1 = arith.constant 0 : i32
    %c0_i32_2 = arith.constant 0 : i32
    %c0_i32_3 = arith.constant 0 : i32
    return %c0_i32, %c0_i32_0, %c0_i32_1, %c0_i32_2 : i32, i32, i32, i32
  }
  func.func @transform_3(%arg0: i32) -> (i32, i32, i32, i32) {
    %c0_i32 = arith.constant 0 : i32
    %c0_i32_0 = arith.constant 0 : i32
    %c0_i32_1 = arith.constant 0 : i32
    %c0_i32_2 = arith.constant 0 : i32
    %c0_i32_3 = arith.constant 0 : i32
    return %c0_i32, %c0_i32_0, %c0_i32_1, %c0_i32_2 : i32, i32, i32, i32
  }
  func.func @transform_4(%arg0: i32) -> (i32, i32, i32, i32) {
    %c0_i32 = arith.constant 0 : i32
    %c0_i32_0 = arith.constant 0 : i32
    %c0_i32_1 = arith.constant 0 : i32
    %c0_i32_2 = arith.constant 0 : i32
    %c0_i32_3 = arith.constant 0 : i32
    return %c0_i32, %c0_i32_0, %c0_i32_1, %c0_i32_2 : i32, i32, i32, i32
  }
}

module attributes {stable_mosaic.version = 11 : i64} {
  func.func @_mlp_head_kernel(%arg0: i32, %arg1: memref<8x640xf32, #tpu.memory_space<vmem>>, %arg2: memref<640x128xf32, #tpu.memory_space<vmem>>, %arg3: memref<1x128xf32, #tpu.memory_space<vmem>>, %arg4: memref<128x10xf32, #tpu.memory_space<vmem>>, %arg5: memref<1x10xf32, #tpu.memory_space<vmem>>, %arg6: memref<8x10xf32, #tpu.memory_space<vmem>>) attributes {dimension_semantics = [#tpu.dimension_semantics<arbitrary>], iteration_bounds = array<i64: 1>, scalar_prefetch = 0 : i64, scratch_operands = 0 : i64, tpu.core_type = #tpu.core_type<tc>, window_params = [{pipeline_mode = #tpu.pipeline_mode<synchronous>, transform_indices = @transform_0, window_bounds = array<i64: 8, 640>}, {pipeline_mode = #tpu.pipeline_mode<synchronous>, transform_indices = @transform_1, window_bounds = array<i64: 640, 128>}, {pipeline_mode = #tpu.pipeline_mode<synchronous>, transform_indices = @transform_2, window_bounds = array<i64: 1, 128>}, {pipeline_mode = #tpu.pipeline_mode<synchronous>, transform_indices = @transform_3, window_bounds = array<i64: 128, 10>}, {pipeline_mode = #tpu.pipeline_mode<synchronous>, transform_indices = @transform_4, window_bounds = array<i64: 1, 10>}, {pipeline_mode = #tpu.pipeline_mode<synchronous>, transform_indices = @transform_5, window_bounds = array<i64: 8, 10>}]} {
    %c0 = arith.constant 0 : index
    %c0_0 = arith.constant 0 : index
    %0 = vector.load %arg1[%c0, %c0_0] : memref<8x640xf32, #tpu.memory_space<vmem>>, vector<8x640xf32>
    %c0_1 = arith.constant 0 : index
    %c0_2 = arith.constant 0 : index
    %1 = vector.load %arg2[%c0_1, %c0_2] : memref<640x128xf32, #tpu.memory_space<vmem>>, vector<640x128xf32>
    %cst = arith.constant dense<0.000000e+00> : vector<8x128xf32>
    %2 = tpu.matmul %0, %1, %cst {dimension_numbers = #tpu.dot_dimension_numbers<[1], [0], [0], [1], [0, 0, 1, 1], [], []>} : vector<8x640xf32>, vector<640x128xf32>, vector<8x128xf32> -> vector<8x128xf32>
    %c0_3 = arith.constant 0 : index
    %c0_4 = arith.constant 0 : index
    %3 = vector.load %arg3[%c0_3, %c0_4] : memref<1x128xf32, #tpu.memory_space<vmem>>, vector<1x128xf32>
    %4 = vector.broadcast %3 : vector<1x128xf32> to vector<8x128xf32>
    %5 = arith.addf %2, %4 : vector<8x128xf32>
    %cst_5 = arith.constant 0.000000e+00 : f32
    %6 = vector.broadcast %cst_5 : f32 to vector<8x128xf32>
    %7 = arith.maximumf %5, %6 : vector<8x128xf32>
    %c0_6 = arith.constant 0 : index
    %c0_7 = arith.constant 0 : index
    %8 = vector.load %arg4[%c0_6, %c0_7] : memref<128x10xf32, #tpu.memory_space<vmem>>, vector<128x10xf32>
    %cst_8 = arith.constant dense<0.000000e+00> : vector<8x10xf32>
    %9 = tpu.matmul %7, %8, %cst_8 {dimension_numbers = #tpu.dot_dimension_numbers<[1], [0], [0], [1], [0, 0, 1, 1], [], []>} : vector<8x128xf32>, vector<128x10xf32>, vector<8x10xf32> -> vector<8x10xf32>
    %c0_9 = arith.constant 0 : index
    %c0_10 = arith.constant 0 : index
    %10 = vector.load %arg5[%c0_9, %c0_10] : memref<1x10xf32, #tpu.memory_space<vmem>>, vector<1x10xf32>
    %11 = vector.broadcast %10 : vector<1x10xf32> to vector<8x10xf32>
    %12 = arith.addf %9, %11 : vector<8x10xf32>
    %c0_11 = arith.constant 0 : index
    %c0_12 = arith.constant 0 : index
    %13 = vector.load %arg6[%c0_11, %c0_12] : memref<8x10xf32, #tpu.memory_space<vmem>>, vector<8x10xf32>
    tpu.vector_store %arg6[%c0_11, %c0_12], %12 {strides = array<i32>} : memref<8x10xf32, #tpu.memory_space<vmem>>, vector<8x10xf32>,
    return
  }
  func.func @transform_0(%arg0: i32) -> (i32, i32) {
    %c0_i32 = arith.constant 0 : i32
    %c0_i32_0 = arith.constant 0 : i32
    %c0_i32_1 = arith.constant 0 : i32
    return %c0_i32, %c0_i32_0 : i32, i32
  }
  func.func @transform_1(%arg0: i32) -> (i32, i32) {
    %c0_i32 = arith.constant 0 : i32
    %c0_i32_0 = arith.constant 0 : i32
    %c0_i32_1 = arith.constant 0 : i32
    return %c0_i32, %c0_i32_0 : i32, i32
  }
  func.func @transform_2(%arg0: i32) -> (i32, i32) {
    %c0_i32 = arith.constant 0 : i32
    %c0_i32_0 = arith.constant 0 : i32
    %c0_i32_1 = arith.constant 0 : i32
    return %c0_i32, %c0_i32_0 : i32, i32
  }
  func.func @transform_3(%arg0: i32) -> (i32, i32) {
    %c0_i32 = arith.constant 0 : i32
    %c0_i32_0 = arith.constant 0 : i32
    %c0_i32_1 = arith.constant 0 : i32
    return %c0_i32, %c0_i32_0 : i32, i32
  }
  func.func @transform_4(%arg0: i32) -> (i32, i32) {
    %c0_i32 = arith.constant 0 : i32
    %c0_i32_0 = arith.constant 0 : i32
    %c0_i32_1 = arith.constant 0 : i32
    return %c0_i32, %c0_i32_0 : i32, i32
  }
  func.func @transform_5(%arg0: i32) -> (i32, i32) {
    %c0_i32 = arith.constant 0 : i32
    %c0_i32_0 = arith.constant 0 : i32
    %c0_i32_1 = arith.constant 0 : i32
    return %c0_i32, %c0_i32_0 : i32, i32
  }
}

</mosaic_0001>

<llo_original>
// kernel: conv_neural_network_forward.7
$region0: #{conv_neural_network_forward.7}
  #allocation0 [shape = 'u32[]', space=smem, size = 0x4, offset = 0x4, fixed_abs, tag = 'smem constant byte address 0x4 - core index']
  #allocation1 [shape = 'u32[144,128]{1,0:T(1,128)}', space=vmem, size = 0x12000, scoped, tag = 'internal scratch']
  %s0 = inlined_call_operand.vmem [shape: f32[512,128], index: 0, kind: input, shape index: {}]
  %s1 = inlined_call_operand.vmem [shape: f32[128,32], index: 1, kind: input, shape index: {}]
  %s2 = inlined_call_operand.hbm [shape: f32[1,32], index: 2, kind: input, shape index: {}]
  %s3 = inlined_call_operand.vmem [shape: f32[512,32], index: 3, kind: output, shape index: {}]
  %s4 = sld [smem:[#allocation0]]
  $region26: #{conv_neural_network_forward.7} parent=0
    _
  %s6 = ssub.s32 1, %s4
  %s7 = scalar_select 0, %s6, %s4
  $region1: #{conv_neural_network_forward.7} parent=0
    #allocation2 [shape = 'u8[512]{0}', space=vmem, size = 0x400, scoped, tag = 'input window, operand 2, single buffered']
    #allocation3 [shape = 's32[1]{0}', space=sflag, size = 0x4, scoped, tag = 'scoped memory for conv_neural_network_forward.7']
    %8 = vsyncpa [#allocation3], 0
    // Predicated region
    $region2: #{conv_neural_network_forward.7} parent=1 // pred_check
      _
    $region3: #{conv_neural_network_forward.7} parent=1 // pred_check_branch
      %10 = sbr.rel (0) target = $region5
    $region4: #{conv_neural_network_forward.7} parent=1 // pred_region
      _
    $region5: #{conv_neural_network_forward.7} parent=1 // pred_fallthru
      _
    // Predicated region
    $region6: #{conv_neural_network_forward.7} parent=1 // pred_check
      _
    $region7: #{conv_neural_network_forward.7} parent=1 // pred_check_branch
      %12 = sbr.rel (0) target = $region9
    $region8: #{conv_neural_network_forward.7} parent=1 // pred_region
      _
    $region9: #{conv_neural_network_forward.7} parent=1 // pred_fallthru
      _
    // Predicated region
    $region10: #{conv_neural_network_forward.7} parent=1 // pred_check
      _
    $region11: #{conv_neural_network_forward.7} parent=1 // pred_check_branch
      %14 = sbr.rel (0) target = $region13
    $region12: #{conv_neural_network_forward.7} parent=1 // pred_region
      %s16 = ssub.s32 16, 16
      %17 = vsyncadd [#allocation3], %s16
      %s19 = sshll.u32 [#allocation2], 4
      %s20 = int_to_ptr.vmem [resolvable:$true] %s19
      %22 = dma.hbm_to_vmem [thread:$0]  %s2, 16, %s20, [#allocation3]
    $region13: #{conv_neural_network_forward.7} parent=1 // pred_fallthru
      _
    // Predicated region
    $region14: #{conv_neural_network_forward.7} parent=1 // pred_check
      _
    $region15: #{conv_neural_network_forward.7} parent=1 // pred_check_branch
      %24 = sbr.rel (0) target = $region17
    $region16: #{conv_neural_network_forward.7} parent=1 // pred_region
      %25 = dma.done [#allocation3], 16
    $region17: #{conv_neural_network_forward.7} parent=1 // pred_fallthru
      _
    %v26 = vld [vmem:[%s0] sm:$0xff]
    %v27 = vld [vmem:[%s0 + $0x8] sm:$0xff]
    %v28 = vld [vmem:[%s0 + $0x10] sm:$0xff]
    %v29 = vld [vmem:[%s0 + $0x18] sm:$0xff]
    %v30 = vld [vmem:[%s0 + $0x20] sm:$0xff]
    %v31 = vld [vmem:[%s0 + $0x28] sm:$0xff]
    %v32 = vld [vmem:[%s0 + $0x30] sm:$0xff]
    %v33 = vld [vmem:[%s0 + $0x38] sm:$0xff]
    %v34 = vld [vmem:[%s0 + $0x40] sm:$0xff]
    %v35 = vld [vmem:[%s0 + $0x48] sm:$0xff]
    %v36 = vld [vmem:[%s0 + $0x50] sm:$0xff]
    %v37 = vld [vmem:[%s0 + $0x58] sm:$0xff]
    %v38 = vld [vmem:[%s0 + $0x60] sm:$0xff]
    %v39 = vld [vmem:[%s0 + $0x68] sm:$0xff]
    %v40 = vld [vmem:[%s0 + $0x70] sm:$0xff]
    %v41 = vld [vmem:[%s0 + $0x78] sm:$0xff]
    %v42 = vld [vmem:[%s0 + $0x80] sm:$0xff]
    %v43 = vld [vmem:[%s0 + $0x88] sm:$0xff]
    %v44 = vld [vmem:[%s0 + $0x90] sm:$0xff]
    %v45 = vld [vmem:[%s0 + $0x98] sm:$0xff]
    %v46 = vld [vmem:[%s0 + $0xa0] sm:$0xff]
    %v47 = vld [vmem:[%s0 + $0xa8] sm:$0xff]
    %v48 = vld [vmem:[%s0 + $0xb0] sm:$0xff]
    %v49 = vld [vmem:[%s0 + $0xb8] sm:$0xff]
    %v50 = vld [vmem:[%s0 + $0xc0] sm:$0xff]
    %v51 = vld [vmem:[%s0 + $0xc8] sm:$0xff]
    %v52 = vld [vmem:[%s0 + $0xd0] sm:$0xff]
    %v53 = vld [vmem:[%s0 + $0xd8] sm:$0xff]
    %v54 = vld [vmem:[%s0 + $0xe0] sm:$0xff]
    %v55 = vld [vmem:[%s0 + $0xe8] sm:$0xff]
    %v56 = vld [vmem:[%s0 + $0xf0] sm:$0xff]
    %v57 = vld [vmem:[%s0 + $0xf8] sm:$0xff]
    %v58 = vld [vmem:[%s0 + $0x100] sm:$0xff]
    %v59 = vld [vmem:[%s0 + $0x108] sm:$0xff]
    %v60 = vld [vmem:[%s0 + $0x110] sm:$0xff]
    %v61 = vld [vmem:[%s0 + $0x118] sm:$0xff]
    %v62 = vld [vmem:[%s0 + $0x120] sm:$0xff]
    %v63 = vld [vmem:[%s0 + $0x128] sm:$0xff]
    %v64 = vld [vmem:[%s0 + $0x130] sm:$0xff]
    %v65 = vld [vmem:[%s0 + $0x138] sm:$0xff]
    %v66 = vld [vmem:[%s0 + $0x140] sm:$0xff]
    %v67 = vld [vmem:[%s0 + $0x148] sm:$0xff]
    %v68 = vld [vmem:[%s0 + $0x150] sm:$0xff]
    %v69 = vld [vmem:[%s0 + $0x158] sm:$0xff]
    %v70 = vld [vmem:[%s0 + $0x160] sm:$0xff]
    %v71 = vld [vmem:[%s0 + $0x168] sm:$0xff]
    %v72 = vld [vmem:[%s0 + $0x170] sm:$0xff]
    %v73 = vld [vmem:[%s0 + $0x178] sm:$0xff]
    %v74 = vld [vmem:[%s0 + $0x180] sm:$0xff]
    %v75 = vld [vmem:[%s0 + $0x188] sm:$0xff]
    %v76 = vld [vmem:[%s0 + $0x190] sm:$0xff]
    %v77 = vld [vmem:[%s0 + $0x198] sm:$0xff]
    %v78 = vld [vmem:[%s0 + $0x1a0] sm:$0xff]
    %v79 = vld [vmem:[%s0 + $0x1a8] sm:$0xff]
    %v80 = vld [vmem:[%s0 + $0x1b0] sm:$0xff]
    %v81 = vld [vmem:[%s0 + $0x1b8] sm:$0xff]
    %v82 = vld [vmem:[%s0 + $0x1c0] sm:$0xff]
    %v83 = vld [vmem:[%s0 + $0x1c8] sm:$0xff]
    %v84 = vld [vmem:[%s0 + $0x1d0] sm:$0xff]
    %v85 = vld [vmem:[%s0 + $0x1d8] sm:$0xff]
    %v86 = vld [vmem:[%s0 + $0x1e0] sm:$0xff]
    %v87 = vld [vmem:[%s0 + $0x1e8] sm:$0xff]
    %v88 = vld [vmem:[%s0 + $0x1f0] sm:$0xff]
    %v89 = vld [vmem:[%s0 + $0x1f8] sm:$0xff]
    %v90 = vld [vmem:[%s1] sm:$0xff]
    %v91 = vld [vmem:[%s1 + $0x8] sm:$0xff]
    %v92 = vld [vmem:[%s1 + $0x10] sm:$0xff]
    %v93 = vld [vmem:[%s1 + $0x18] sm:$0xff]
    %v94 = vld [vmem:[%s1 + $0x20] sm:$0xff]
    %v95 = vld [vmem:[%s1 + $0x28] sm:$0xff]
    %v96 = vld [vmem:[%s1 + $0x30] sm:$0xff]
    %v97 = vld [vmem:[%s1 + $0x38] sm:$0xff]
    %v98 = vld [vmem:[%s1 + $0x40] sm:$0xff]
    %v99 = vld [vmem:[%s1 + $0x48] sm:$0xff]
    %v100 = vld [vmem:[%s1 + $0x50] sm:$0xff]
    %v101 = vld [vmem:[%s1 + $0x58] sm:$0xff]
    %v102 = vld [vmem:[%s1 + $0x60] sm:$0xff]
    %v103 = vld [vmem:[%s1 + $0x68] sm:$0xff]
    %v104 = vld [vmem:[%s1 + $0x70] sm:$0xff]
    %v105 = vld [vmem:[%s1 + $0x78] sm:$0xff]
    %v106 = vld [vmem:[#allocation2] sm:$0x1]
    %v108 = vlaneseq
    %v109 = vshrl.u32 %v108, 7
    %v110 = vsub.s32 0, %v109
    %v111 = vrot.slane %v106, %v110
    %113 = vmatprep.subr.mxu0 0.0
    %114 = vmatpush1.msra.mxu0 %v90
    %115 = vmatprep.subr.mxu0 0.0
    %116 = vmatpush1.msra.mxu0 %v91
    %117 = vmatprep.subr.mxu0 0.0
    %118 = vmatpush1.msra.mxu0 %v92
    %119 = vmatprep.subr.mxu0 0.0
    %120 = vmatpush1.msra.mxu0 %v93
    %121 = vmatprep.subr.mxu0 0.0
    %122 = vmatpush1.msra.mxu0 %v94
    %123 = vmatprep.subr.mxu0 0.0
    %124 = vmatpush1.msra.mxu0 %v95
    %125 = vmatprep.subr.mxu0 0.0
    %126 = vmatpush1.msra.mxu0 %v96
    %127 = vmatprep.subr.mxu0 0.0
    %128 = vmatpush1.msra.mxu0 %v97
    %129 = vmatprep.subr.mxu0 0.0
    %130 = vmatpush1.msra.mxu0 %v98
    %131 = vmatprep.subr.mxu0 0.0
    %132 = vmatpush1.msra.mxu0 %v99
    %133 = vmatprep.subr.mxu0 0.0
    %134 = vmatpush1.msra.mxu0 %v100
    %135 = vmatprep.subr.mxu0 0.0
    %136 = vmatpush1.msra.mxu0 %v101
    %137 = vmatprep.subr.mxu0 0.0
    %138 = vmatpush1.msra.mxu0 %v102
    %139 = vmatprep.subr.mxu0 0.0
    %140 = vmatpush1.msra.mxu0 %v103
    %141 = vmatprep.subr.mxu0 0.0
    %142 = vmatpush1.msra.mxu0 %v104
    %143 = vmatprep.subr.mxu0 0.0
    %144 = vmatpush1.msra.mxu0 %v105
    %145 = vmatprep.subr.mxu0 0.0
    %146 = vmatpush1.msra.mxu0 0.0
    %147 = vmatprep.subr.mxu0 0.0
    %148 = vmatpush1.msra.mxu0 0.0
    %149 = vmatprep.subr.mxu0 0.0
    %150 = vmatpush1.msra.mxu0 0.0
    %151 = vmatprep.subr.mxu0 0.0
    %152 = vmatpush1.msra.mxu0 0.0
    %153 = vmatprep.subr.mxu0 0.0
    %154 = vmatpush1.msra.mxu0 0.0
    %155 = vmatprep.subr.mxu0 0.0
    %156 = vmatpush1.msra.mxu0 0.0
    %157 = vmatprep.subr.mxu0 0.0
    %158 = vmatpush1.msra.mxu0 0.0
    %159 = vmatprep.subr.mxu0 0.0
    %160 = vmatpush1.msra.mxu0 0.0
    %161 = vmatprep.subr.mxu0 0.0
    %162 = vmatpush1.msra.mxu0 0.0
    %163 = vmatprep.subr.mxu0 0.0
    %164 = vmatpush1.msra.mxu0 0.0
    %165 = vmatprep.subr.mxu0 0.0
    %166 = vmatpush1.msra.mxu0 0.0
    %167 = vmatprep.subr.mxu0 0.0
    %168 = vmatpush1.msra.mxu0 0.0
    %169 = vmatprep.subr.mxu0 0.0
    %170 = vmatpush1.msra.mxu0 0.0
    %171 = vmatprep.subr.mxu0 0.0
    %172 = vmatpush1.msra.mxu0 0.0
    %173 = vmatprep.subr.mxu0 0.0
    %174 = vmatpush1.msra.mxu0 0.0
    %175 = vmatprep.subr.mxu0 0.0
    %176 = vmatpush1.msra.mxu0 0.0
    %177 = vmatprep.mubr.f32.mxu0 0.0
    %178 = vmatmul.mubr.f32.gmra.mrb[0].mxu0 %v26
    %v179 = vpop.f32.mrb[0].mxu0
    %v180 = vadd.f32 %v111, %v179
    %v181 = vpop.f32.mrb[0].mxu0
    %182 = vmatprep.mubr.f32.mxu0 0.0
    %183 = vmatmul.mubr.f32.gmra.mrb[0].mxu0 %v27
    %v184 = vpop.f32.mrb[0].mxu0
    %v185 = vadd.f32 %v111, %v184
    %v186 = vpop.f32.mrb[0].mxu0
    %187 = vmatprep.mubr.f32.mxu0 0.0
    %188 = vmatmul.mubr.f32.gmra.mrb[0].mxu0 %v28
    %v189 = vpop.f32.mrb[0].mxu0
    %v190 = vadd.f32 %v111, %v189
    %v191 = vpop.f32.mrb[0].mxu0
    %192 = vmatprep.mubr.f32.mxu0 0.0
    %193 = vmatmul.mubr.f32.gmra.mrb[0].mxu0 %v29
    %v194 = vpop.f32.mrb[0].mxu0
    %v195 = vadd.f32 %v111, %v194
    %v196 = vpop.f32.mrb[0].mxu0
    %197 = vmatprep.mubr.f32.mxu0 0.0
    %198 = vmatmul.mubr.f32.gmra.mrb[0].mxu0 %v30
    %v199 = vpop.f32.mrb[0].mxu0
    %v200 = vadd.f32 %v111, %v199
    %v201 = vpop.f32.mrb[0].mxu0
    %202 = vmatprep.mubr.f32.mxu0 0.0
    %203 = vmatmul.mubr.f32.gmra.mrb[0].mxu0 %v31
    %v204 = vpop.f32.mrb[0].mxu0
    %v205 = vadd.f32 %v111, %v204
    %v206 = vpop.f32.mrb[0].mxu0
    %207 = vmatprep.mubr.f32.mxu0 0.0
    %208 = vmatmul.mubr.f32.gmra.mrb[0].mxu0 %v32
    %v209 = vpop.f32.mrb[0].mxu0
    %v210 = vadd.f32 %v111, %v209
    %v211 = vpop.f32.mrb[0].mxu0
    %212 = vmatprep.mubr.f32.mxu0 0.0
    %213 = vmatmul.mubr.f32.gmra.mrb[0].mxu0 %v33
    %v214 = vpop.f32.mrb[0].mxu0
    %v215 = vadd.f32 %v111, %v214
    %v216 = vpop.f32.mrb[0].mxu0
    %217 = vmatprep.mubr.f32.mxu0 0.0
    %218 = vmatmul.mubr.f32.gmra.mrb[0].mxu0 %v34
    %v219 = vpop.f32.mrb[0].mxu0
    %v220 = vadd.f32 %v111, %v219
    %v221 = vpop.f32.mrb[0].mxu0
    %222 = vmatprep.mubr.f32.mxu0 0.0
    %223 = vmatmul.mubr.f32.gmra.mrb[0].mxu0 %v35
    %v224 = vpop.f32.mrb[0].mxu0
    %v225 = vadd.f32 %v111, %v224
    %v226 = vpop.f32.mrb[0].mxu0
    %227 = vmatprep.mubr.f32.mxu0 0.0
    %228 = vmatmul.mubr.f32.gmra.mrb[0].mxu0 %v36
    %v229 = vpop.f32.mrb[0].mxu0
    %v230 = vadd.f32 %v111, %v229
    %v231 = vpop.f32.mrb[0].mxu0
    %232 = vmatprep.mubr.f32.mxu0 0.0
    %233 = vmatmul.mubr.f32.gmra.mrb[0].mxu0 %v37
    %v234 = vpop.f32.mrb[0].mxu0
    %v235 = vadd.f32 %v111, %v234
    %v236 = vpop.f32.mrb[0].mxu0
    %237 = vmatprep.mubr.f32.mxu0 0.0
    %238 = vmatmul.mubr.f32.gmra.mrb[0].mxu0 %v38
    %v239 = vpop.f32.mrb[0].mxu0
    %v240 = vadd.f32 %v111, %v239
    %v241 = vpop.f32.mrb[0].mxu0
    %242 = vmatprep.mubr.f32.mxu0 0.0
    %243 = vmatmul.mubr.f32.gmra.mrb[0].mxu0 %v39
    %v244 = vpop.f32.mrb[0].mxu0
    %v245 = vadd.f32 %v111, %v244
    %v246 = vpop.f32.mrb[0].mxu0
    %247 = vmatprep.mubr.f32.mxu0 0.0
    %248 = vmatmul.mubr.f32.gmra.mrb[0].mxu0 %v40
    %v249 = vpop.f32.mrb[0].mxu0
    %v250 = vadd.f32 %v111, %v249
    %v251 = vpop.f32.mrb[0].mxu0
    %252 = vmatprep.mubr.f32.mxu0 0.0
    %253 = vmatmul.mubr.f32.gmra.mrb[0].mxu0 %v41
    %v254 = vpop.f32.mrb[0].mxu0
    %v255 = vadd.f32 %v111, %v254
    %v256 = vpop.f32.mrb[0].mxu0
    %257 = vmatprep.mubr.f32.mxu0 0.0
    %258 = vmatmul.mubr.f32.gmra.mrb[0].mxu0 %v42
    %v259 = vpop.f32.mrb[0].mxu0
    %v260 = vadd.f32 %v111, %v259
    %v261 = vpop.f32.mrb[0].mxu0
    %262 = vmatprep.mubr.f32.mxu0 0.0
    %263 = vmatmul.mubr.f32.gmra.mrb[0].mxu0 %v43
    %v264 = vpop.f32.mrb[0].mxu0
    %v265 = vadd.f32 %v111, %v264
    %v266 = vpop.f32.mrb[0].mxu0
    %267 = vmatprep.mubr.f32.mxu0 0.0
    %268 = vmatmul.mubr.f32.gmra.mrb[0].mxu0 %v44
    %v269 = vpop.f32.mrb[0].mxu0
    %v270 = vadd.f32 %v111, %v269
    %v271 = vpop.f32.mrb[0].mxu0
    %272 = vmatprep.mubr.f32.mxu0 0.0
    %273 = vmatmul.mubr.f32.gmra.mrb[0].mxu0 %v45
    %v274 = vpop.f32.mrb[0].mxu0
    %v275 = vadd.f32 %v111, %v274
    %v276 = vpop.f32.mrb[0].mxu0
    %277 = vmatprep.mubr.f32.mxu0 0.0
    %278 = vmatmul.mubr.f32.gmra.mrb[0].mxu0 %v46
    %v279 = vpop.f32.mrb[0].mxu0
    %v280 = vadd.f32 %v111, %v279
    %v281 = vpop.f32.mrb[0].mxu0
    %282 = vmatprep.mubr.f32.mxu0 0.0
    %283 = vmatmul.mubr.f32.gmra.mrb[0].mxu0 %v47
    %v284 = vpop.f32.mrb[0].mxu0
    %v285 = vadd.f32 %v111, %v284
    %v286 = vpop.f32.mrb[0].mxu0
    %287 = vmatprep.mubr.f32.mxu0 0.0
    %288 = vmatmul.mubr.f32.gmra.mrb[0].mxu0 %v48
    %v289 = vpop.f32.mrb[0].mxu0
    %v290 = vadd.f32 %v111, %v289
    %v291 = vpop.f32.mrb[0].mxu0
    %292 = vmatprep.mubr.f32.mxu0 0.0
    %293 = vmatmul.mubr.f32.gmra.mrb[0].mxu0 %v49
    %v294 = vpop.f32.mrb[0].mxu0
    %v295 = vadd.f32 %v111, %v294
    %v296 = vpop.f32.mrb[0].mxu0
    %297 = vmatprep.mubr.f32.mxu0 0.0
    %298 = vmatmul.mubr.f32.gmra.mrb[0].mxu0 %v50
    %v299 = vpop.f32.mrb[0].mxu0
    %v300 = vadd.f32 %v111, %v299
    %v301 = vpop.f32.mrb[0].mxu0
    %302 = vmatprep.mubr.f32.mxu0 0.0
    %303 = vmatmul.mubr.f32.gmra.mrb[0].mxu0 %v51
    %v304 = vpop.f32.mrb[0].mxu0
    %v305 = vadd.f32 %v111, %v304
    %v306 = vpop.f32.mrb[0].mxu0
    %307 = vmatprep.mubr.f32.mxu0 0.0
    %308 = vmatmul.mubr.f32.gmra.mrb[0].mxu0 %v52
    %v309 = vpop.f32.mrb[0].mxu0
    %v310 = vadd.f32 %v111, %v309
    %v311 = vpop.f32.mrb[0].mxu0
    %312 = vmatprep.mubr.f32.mxu0 0.0
    %313 = vmatmul.mubr.f32.gmra.mrb[0].mxu0 %v53
    %v314 = vpop.f32.mrb[0].mxu0
    %v315 = vadd.f32 %v111, %v314
    %v316 = vpop.f32.mrb[0].mxu0
    %317 = vmatprep.mubr.f32.mxu0 0.0
    %318 = vmatmul.mubr.f32.gmra.mrb[0].mxu0 %v54
    %v319 = vpop.f32.mrb[0].mxu0
    %v320 = vadd.f32 %v111, %v319
    %v321 = vpop.f32.mrb[0].mxu0
    %322 = vmatprep.mubr.f32.mxu0 0.0
    %323 = vmatmul.mubr.f32.gmra.mrb[0].mxu0 %v55
    %v324 = vpop.f32.mrb[0].mxu0
    %v325 = vadd.f32 %v111, %v324
    %v326 = vpop.f32.mrb[0].mxu0
    %327 = vmatprep.mubr.f32.mxu0 0.0
    %328 = vmatmul.mubr.f32.gmra.mrb[0].mxu0 %v56
    %v329 = vpop.f32.mrb[0].mxu0
    %v330 = vadd.f32 %v111, %v329
    %v331 = vpop.f32.mrb[0].mxu0
    %332 = vmatprep.mubr.f32.mxu0 0.0
    %333 = vmatmul.mubr.f32.gmra.mrb[0].mxu0 %v57
    %v334 = vpop.f32.mrb[0].mxu0
    %v335 = vadd.f32 %v111, %v334
    %v336 = vpop.f32.mrb[0].mxu0
    %337 = vmatprep.mubr.f32.mxu0 0.0
    %338 = vmatmul.mubr.f32.gmra.mrb[0].mxu0 %v58
    %v339 = vpop.f32.mrb[0].mxu0
    %v340 = vadd.f32 %v111, %v339
    %v341 = vpop.f32.mrb[0].mxu0
    %342 = vmatprep.mubr.f32.mxu0 0.0
    %343 = vmatmul.mubr.f32.gmra.mrb[0].mxu0 %v59
    %v344 = vpop.f32.mrb[0].mxu0
    %v345 = vadd.f32 %v111, %v344
    %v346 = vpop.f32.mrb[0].mxu0
    %347 = vmatprep.mubr.f32.mxu0 0.0
    %348 = vmatmul.mubr.f32.gmra.mrb[0].mxu0 %v60
    %v349 = vpop.f32.mrb[0].mxu0
    %v350 = vadd.f32 %v111, %v349
    %v351 = vpop.f32.mrb[0].mxu0
    %352 = vmatprep.mubr.f32.mxu0 0.0
    %353 = vmatmul.mubr.f32.gmra.mrb[0].mxu0 %v61
    %v354 = vpop.f32.mrb[0].mxu0
    %v355 = vadd.f32 %v111, %v354
    %v356 = vpop.f32.mrb[0].mxu0
    %357 = vmatprep.mubr.f32.mxu0 0.0
    %358 = vmatmul.mubr.f32.gmra.mrb[0].mxu0 %v62
    %v359 = vpop.f32.mrb[0].mxu0
    %v360 = vadd.f32 %v111, %v359
    %v361 = vpop.f32.mrb[0].mxu0
    %362 = vmatprep.mubr.f32.mxu0 0.0
    %363 = vmatmul.mubr.f32.gmra.mrb[0].mxu0 %v63
    %v364 = vpop.f32.mrb[0].mxu0
    %v365 = vadd.f32 %v111, %v364
    %v366 = vpop.f32.mrb[0].mxu0
    %367 = vmatprep.mubr.f32.mxu0 0.0
    %368 = vmatmul.mubr.f32.gmra.mrb[0].mxu0 %v64
    %v369 = vpop.f32.mrb[0].mxu0
    %v370 = vadd.f32 %v111, %v369
    %v371 = vpop.f32.mrb[0].mxu0
    %372 = vmatprep.mubr.f32.mxu0 0.0
    %373 = vmatmul.mubr.f32.gmra.mrb[0].mxu0 %v65
    %v374 = vpop.f32.mrb[0].mxu0
    %v375 = vadd.f32 %v111, %v374
    %v376 = vpop.f32.mrb[0].mxu0
    %377 = vmatprep.mubr.f32.mxu0 0.0
    %378 = vmatmul.mubr.f32.gmra.mrb[0].mxu0 %v66
    %v379 = vpop.f32.mrb[0].mxu0
    %v380 = vadd.f32 %v111, %v379
    %v381 = vpop.f32.mrb[0].mxu0
    %382 = vmatprep.mubr.f32.mxu0 0.0
    %383 = vmatmul.mubr.f32.gmra.mrb[0].mxu0 %v67
    %v384 = vpop.f32.mrb[0].mxu0
    %v385 = vadd.f32 %v111, %v384
    %v386 = vpop.f32.mrb[0].mxu0
    %387 = vmatprep.mubr.f32.mxu0 0.0
    %388 = vmatmul.mubr.f32.gmra.mrb[0].mxu0 %v68
    %v389 = vpop.f32.mrb[0].mxu0
    %v390 = vadd.f32 %v111, %v389
    %v391 = vpop.f32.mrb[0].mxu0
    %392 = vmatprep.mubr.f32.mxu0 0.0
    %393 = vmatmul.mubr.f32.gmra.mrb[0].mxu0 %v69
    %v394 = vpop.f32.mrb[0].mxu0
    %v395 = vadd.f32 %v111, %v394
    %v396 = vpop.f32.mrb[0].mxu0
    %397 = vmatprep.mubr.f32.mxu0 0.0
    %398 = vmatmul.mubr.f32.gmra.mrb[0].mxu0 %v70
    %v399 = vpop.f32.mrb[0].mxu0
    %v400 = vadd.f32 %v111, %v399
    %v401 = vpop.f32.mrb[0].mxu0
    %402 = vmatprep.mubr.f32.mxu0 0.0
    %403 = vmatmul.mubr.f32.gmra.mrb[0].mxu0 %v71
    %v404 = vpop.f32.mrb[0].mxu0
    %v405 = vadd.f32 %v111, %v404
    %v406 = vpop.f32.mrb[0].mxu0
    %407 = vmatprep.mubr.f32.mxu0 0.0
    %408 = vmatmul.mubr.f32.gmra.mrb[0].mxu0 %v72
    %v409 = vpop.f32.mrb[0].mxu0
    %v410 = vadd.f32 %v111, %v409
    %v411 = vpop.f32.mrb[0].mxu0
    %412 = vmatprep.mubr.f32.mxu0 0.0
    %413 = vmatmul.mubr.f32.gmra.mrb[0].mxu0 %v73
    %v414 = vpop.f32.mrb[0].mxu0
    %v415 = vadd.f32 %v111, %v414
    %v416 = vpop.f32.mrb[0].mxu0
    %417 = vmatprep.mubr.f32.mxu0 0.0
    %418 = vmatmul.mubr.f32.gmra.mrb[0].mxu0 %v74
    %v419 = vpop.f32.mrb[0].mxu0
    %v420 = vadd.f32 %v111, %v419
    %v421 = vpop.f32.mrb[0].mxu0
    %422 = vmatprep.mubr.f32.mxu0 0.0
    %423 = vmatmul.mubr.f32.gmra.mrb[0].mxu0 %v75
    %v424 = vpop.f32.mrb[0].mxu0
    %v425 = vadd.f32 %v111, %v424
    %v426 = vpop.f32.mrb[0].mxu0
    %427 = vmatprep.mubr.f32.mxu0 0.0
    %428 = vmatmul.mubr.f32.gmra.mrb[0].mxu0 %v76
    %v429 = vpop.f32.mrb[0].mxu0
    %v430 = vadd.f32 %v111, %v429
    %v431 = vpop.f32.mrb[0].mxu0
    %432 = vmatprep.mubr.f32.mxu0 0.0
    %433 = vmatmul.mubr.f32.gmra.mrb[0].mxu0 %v77
    %v434 = vpop.f32.mrb[0].mxu0
    %v435 = vadd.f32 %v111, %v434
    %v436 = vpop.f32.mrb[0].mxu0
    %437 = vmatprep.mubr.f32.mxu0 0.0
    %438 = vmatmul.mubr.f32.gmra.mrb[0].mxu0 %v78
    %v439 = vpop.f32.mrb[0].mxu0
    %v440 = vadd.f32 %v111, %v439
    %v441 = vpop.f32.mrb[0].mxu0
    %442 = vmatprep.mubr.f32.mxu0 0.0
    %443 = vmatmul.mubr.f32.gmra.mrb[0].mxu0 %v79
    %v444 = vpop.f32.mrb[0].mxu0
    %v445 = vadd.f32 %v111, %v444
    %v446 = vpop.f32.mrb[0].mxu0
    %447 = vmatprep.mubr.f32.mxu0 0.0
    %448 = vmatmul.mubr.f32.gmra.mrb[0].mxu0 %v80
    %v449 = vpop.f32.mrb[0].mxu0
    %v450 = vadd.f32 %v111, %v449
    %v451 = vpop.f32.mrb[0].mxu0
    %452 = vmatprep.mubr.f32.mxu0 0.0
    %453 = vmatmul.mubr.f32.gmra.mrb[0].mxu0 %v81
    %v454 = vpop.f32.mrb[0].mxu0
    %v455 = vadd.f32 %v111, %v454
    %v456 = vpop.f32.mrb[0].mxu0
    %457 = vmatprep.mubr.f32.mxu0 0.0
    %458 = vmatmul.mubr.f32.gmra.mrb[0].mxu0 %v82
    %v459 = vpop.f32.mrb[0].mxu0
    %v460 = vadd.f32 %v111, %v459
    %v461 = vpop.f32.mrb[0].mxu0
    %462 = vmatprep.mubr.f32.mxu0 0.0
    %463 = vmatmul.mubr.f32.gmra.mrb[0].mxu0 %v83
    %v464 = vpop.f32.mrb[0].mxu0
    %v465 = vadd.f32 %v111, %v464
    %v466 = vpop.f32.mrb[0].mxu0
    %467 = vmatprep.mubr.f32.mxu0 0.0
    %468 = vmatmul.mubr.f32.gmra.mrb[0].mxu0 %v84
    %v469 = vpop.f32.mrb[0].mxu0
    %v470 = vadd.f32 %v111, %v469
    %v471 = vpop.f32.mrb[0].mxu0
    %472 = vmatprep.mubr.f32.mxu0 0.0
    %473 = vmatmul.mubr.f32.gmra.mrb[0].mxu0 %v85
    %v474 = vpop.f32.mrb[0].mxu0
    %v475 = vadd.f32 %v111, %v474
    %v476 = vpop.f32.mrb[0].mxu0
    %477 = vmatprep.mubr.f32.mxu0 0.0
    %478 = vmatmul.mubr.f32.gmra.mrb[0].mxu0 %v86
    %v479 = vpop.f32.mrb[0].mxu0
    %v480 = vadd.f32 %v111, %v479
    %v481 = vpop.f32.mrb[0].mxu0
    %482 = vmatprep.mubr.f32.mxu0 0.0
    %483 = vmatmul.mubr.f32.gmra.mrb[0].mxu0 %v87
    %v484 = vpop.f32.mrb[0].mxu0
    %v485 = vadd.f32 %v111, %v484
    %v486 = vpop.f32.mrb[0].mxu0
    %487 = vmatprep.mubr.f32.mxu0 0.0
    %488 = vmatmul.mubr.f32.gmra.mrb[0].mxu0 %v88
    %v489 = vpop.f32.mrb[0].mxu0
    %v490 = vadd.f32 %v111, %v489
    %v491 = vpop.f32.mrb[0].mxu0
    %492 = vmatprep.mubr.f32.mxu0 0.0
    %493 = vmatmul.mubr.f32.gmra.mrb[0].mxu0 %v89
    %v494 = vpop.f32.mrb[0].mxu0
    %v495 = vadd.f32 %v111, %v494
    %v496 = vpop.f32.mrb[0].mxu0
    %497 = vdwg.mxu0
    %vm498 = vcmask 261120
    %499 = vst.msk [vmem:[%s3] sm:$0xff] %vm498, %v180
    %500 = vst.msk [vmem:[%s3 + $0x8] sm:$0xff] %vm498, %v185
    %501 = vst.msk [vmem:[%s3 + $0x10] sm:$0xff] %vm498, %v190
    %502 = vst.msk [vmem:[%s3 + $0x18] sm:$0xff] %vm498, %v195
    %503 = vst.msk [vmem:[%s3 + $0x20] sm:$0xff] %vm498, %v200
    %504 = vst.msk [vmem:[%s3 + $0x28] sm:$0xff] %vm498, %v205
    %505 = vst.msk [vmem:[%s3 + $0x30] sm:$0xff] %vm498, %v210
    %506 = vst.msk [vmem:[%s3 + $0x38] sm:$0xff] %vm498, %v215
    %507 = vst.msk [vmem:[%s3 + $0x40] sm:$0xff] %vm498, %v220
    %508 = vst.msk [vmem:[%s3 + $0x48] sm:$0xff] %vm498, %v225
    %509 = vst.msk [vmem:[%s3 + $0x50] sm:$0xff] %vm498, %v230
    %510 = vst.msk [vmem:[%s3 + $0x58] sm:$0xff] %vm498, %v235
    %511 = vst.msk [vmem:[%s3 + $0x60] sm:$0xff] %vm498, %v240
    %512 = vst.msk [vmem:[%s3 + $0x68] sm:$0xff] %vm498, %v245
    %513 = vst.msk [vmem:[%s3 + $0x70] sm:$0xff] %vm498, %v250
    %514 = vst.msk [vmem:[%s3 + $0x78] sm:$0xff] %vm498, %v255
    %515 = vst.msk [vmem:[%s3 + $0x80] sm:$0xff] %vm498, %v260
    %516 = vst.msk [vmem:[%s3 + $0x88] sm:$0xff] %vm498, %v265
    %517 = vst.msk [vmem:[%s3 + $0x90] sm:$0xff] %vm498, %v270
    %518 = vst.msk [vmem:[%s3 + $0x98] sm:$0xff] %vm498, %v275
    %519 = vst.msk [vmem:[%s3 + $0xa0] sm:$0xff] %vm498, %v280
    %520 = vst.msk [vmem:[%s3 + $0xa8] sm:$0xff] %vm498, %v285
    %521 = vst.msk [vmem:[%s3 + $0xb0] sm:$0xff] %vm498, %v290
    %522 = vst.msk [vmem:[%s3 + $0xb8] sm:$0xff] %vm498, %v295
    %523 = vst.msk [vmem:[%s3 + $0xc0] sm:$0xff] %vm498, %v300
    %524 = vst.msk [vmem:[%s3 + $0xc8] sm:$0xff] %vm498, %v305
    %525 = vst.msk [vmem:[%s3 + $0xd0] sm:$0xff] %vm498, %v310
    %526 = vst.msk [vmem:[%s3 + $0xd8] sm:$0xff] %vm498, %v315
    %527 = vst.msk [vmem:[%s3 + $0xe0] sm:$0xff] %vm498, %v320
    %528 = vst.msk [vmem:[%s3 + $0xe8] sm:$0xff] %vm498, %v325
    %529 = vst.msk [vmem:[%s3 + $0xf0] sm:$0xff] %vm498, %v330
    %530 = vst.msk [vmem:[%s3 + $0xf8] sm:$0xff] %vm498, %v335
    %531 = vst.msk [vmem:[%s3 + $0x100] sm:$0xff] %vm498, %v340
    %532 = vst.msk [vmem:[%s3 + $0x108] sm:$0xff] %vm498, %v345
    %533 = vst.msk [vmem:[%s3 + $0x110] sm:$0xff] %vm498, %v350
    %534 = vst.msk [vmem:[%s3 + $0x118] sm:$0xff] %vm498, %v355
    %535 = vst.msk [vmem:[%s3 + $0x120] sm:$0xff] %vm498, %v360
    %536 = vst.msk [vmem:[%s3 + $0x128] sm:$0xff] %vm498, %v365
    %537 = vst.msk [vmem:[%s3 + $0x130] sm:$0xff] %vm498, %v370
    %538 = vst.msk [vmem:[%s3 + $0x138] sm:$0xff] %vm498, %v375
    %539 = vst.msk [vmem:[%s3 + $0x140] sm:$0xff] %vm498, %v380
    %540 = vst.msk [vmem:[%s3 + $0x148] sm:$0xff] %vm498, %v385
    %541 = vst.msk [vmem:[%s3 + $0x150] sm:$0xff] %vm498, %v390
    %542 = vst.msk [vmem:[%s3 + $0x158] sm:$0xff] %vm498, %v395
    %543 = vst.msk [vmem:[%s3 + $0x160] sm:$0xff] %vm498, %v400
    %544 = vst.msk [vmem:[%s3 + $0x168] sm:$0xff] %vm498, %v405
    %545 = vst.msk [vmem:[%s3 + $0x170] sm:$0xff] %vm498, %v410
    %546 = vst.msk [vmem:[%s3 + $0x178] sm:$0xff] %vm498, %v415
    %547 = vst.msk [vmem:[%s3 + $0x180] sm:$0xff] %vm498, %v420
    %548 = vst.msk [vmem:[%s3 + $0x188] sm:$0xff] %vm498, %v425
    %549 = vst.msk [vmem:[%s3 + $0x190] sm:$0xff] %vm498, %v430
    %550 = vst.msk [vmem:[%s3 + $0x198] sm:$0xff] %vm498, %v435
    %551 = vst.msk [vmem:[%s3 + $0x1a0] sm:$0xff] %vm498, %v440
    %552 = vst.msk [vmem:[%s3 + $0x1a8] sm:$0xff] %vm498, %v445
    %553 = vst.msk [vmem:[%s3 + $0x1b0] sm:$0xff] %vm498, %v450
    %554 = vst.msk [vmem:[%s3 + $0x1b8] sm:$0xff] %vm498, %v455
    %555 = vst.msk [vmem:[%s3 + $0x1c0] sm:$0xff] %vm498, %v460
    %556 = vst.msk [vmem:[%s3 + $0x1c8] sm:$0xff] %vm498, %v465
    %557 = vst.msk [vmem:[%s3 + $0x1d0] sm:$0xff] %vm498, %v470
    %558 = vst.msk [vmem:[%s3 + $0x1d8] sm:$0xff] %vm498, %v475
    %559 = vst.msk [vmem:[%s3 + $0x1e0] sm:$0xff] %vm498, %v480
    %560 = vst.msk [vmem:[%s3 + $0x1e8] sm:$0xff] %vm498, %v485
    %561 = vst.msk [vmem:[%s3 + $0x1f0] sm:$0xff] %vm498, %v490
    %562 = vst.msk [vmem:[%s3 + $0x1f8] sm:$0xff] %vm498, %v495
    // Predicated region
    $region18: #{conv_neural_network_forward.7} parent=1 // pred_check
      _
    $region19: #{conv_neural_network_forward.7} parent=1 // pred_check_branch
      %564 = sbr.rel (0) target = $region21
    $region20: #{conv_neural_network_forward.7} parent=1 // pred_region
      _
    $region21: #{conv_neural_network_forward.7} parent=1 // pred_fallthru
      _
    // Predicated region
    $region22: #{conv_neural_network_forward.7} parent=1 // pred_check
      _
    $region23: #{conv_neural_network_forward.7} parent=1 // pred_check_branch
      %566 = sbr.rel (0) target = $region25
    $region24: #{conv_neural_network_forward.7} parent=1 // pred_region
      _
    $region25: #{conv_neural_network_forward.7} parent=1 // pred_fallthru
      _
    %567 = vsyncpa [#allocation3], 1

// kernel: conv_neural_network_forward.8
$region0: #{conv_neural_network_forward.8}
  #allocation0 [shape = 'u32[]', space=smem, size = 0x4, offset = 0x4, fixed_abs, tag = 'smem constant byte address 0x4 - core index']
  #allocation1 [shape = 'u32[144,128]{1,0:T(1,128)}', space=vmem, size = 0x12000, scoped, tag = 'internal scratch']
  %s0 = inlined_call_operand.vmem [shape: f32[512,896], index: 0, kind: input, shape index: {}]
  %s1 = inlined_call_operand.vmem [shape: f32[896,32], index: 1, kind: input, shape index: {}]
  %s2 = inlined_call_operand.vmem [shape: f32[1,32], index: 2, kind: input, shape index: {}]
  %s3 = inlined_call_operand.vmem [shape: f32[512,32], index: 3, kind: output, shape index: {}]
  %s4 = sld [smem:[#allocation0]]
  $region22: #{conv_neural_network_forward.8} parent=0
    _
  %s6 = ssub.s32 1, %s4
  %s7 = scalar_select 0, %s6, %s4
  // Predicated region
  $region2: #{conv_neural_network_forward.8} parent=0 // pred_check
    _
  $region3: #{conv_neural_network_forward.8} parent=0 // pred_check_branch
    %9 = sbr.rel (0) target = $region5
  $region4: #{conv_neural_network_forward.8} parent=0 // pred_region
    _
  $region5: #{conv_neural_network_forward.8} parent=0 // pred_fallthru
    _
  // Predicated region
  $region6: #{conv_neural_network_forward.8} parent=0 // pred_check
    _
  $region7: #{conv_neural_network_forward.8} parent=0 // pred_check_branch
    %11 = sbr.rel (0) target = $region9
  $region8: #{conv_neural_network_forward.8} parent=0 // pred_region
    _
  $region9: #{conv_neural_network_forward.8} parent=0 // pred_fallthru
    _
  // Predicated region
  $region10: #{conv_neural_network_forward.8} parent=0 // pred_check
    _
  $region11: #{conv_neural_network_forward.8} parent=0 // pred_check_branch
    %13 = sbr.rel (0) target = $region13
  $region12: #{conv_neural_network_forward.8} parent=0 // pred_region
    _
  $region13: #{conv_neural_network_forward.8} parent=0 // pred_fallthru
    _
  %v14 = vld [vmem:[%s0] sm:$0xff]
  %v15 = vld [vmem:[%s0 + $0x8] sm:$0xff]
  %v16 = vld [vmem:[%s0 + $0x10] sm:$0xff]
  %v17 = vld [vmem:[%s0 + $0x18] sm:$0xff]
  %v18 = vld [vmem:[%s0 + $0x20] sm:$0xff]
  %v19 = vld [vmem:[%s0 + $0x28] sm:$0xff]
  %v20 = vld [vmem:[%s0 + $0x30] sm:$0xff]
  %v21 = vld [vmem:[%s0 + $0x38] sm:$0xff]
  %v22 = vld [vmem:[%s0 + $0x40] sm:$0xff]
  %v23 = vld [vmem:[%s0 + $0x48] sm:$0xff]
  %v24 = vld [vmem:[%s0 + $0x50] sm:$0xff]
  %v25 = vld [vmem:[%s0 + $0x58] sm:$0xff]
  %v26 = vld [vmem:[%s0 + $0x60] sm:$0xff]
  %v27 = vld [vmem:[%s0 + $0x68] sm:$0xff]
  %v28 = vld [vmem:[%s0 + $0x70] sm:$0xff]
  %v29 = vld [vmem:[%s0 + $0x78] sm:$0xff]
  %v30 = vld [vmem:[%s0 + $0x80] sm:$0xff]
  %v31 = vld [vmem:[%s0 + $0x88] sm:$0xff]
  %v32 = vld [vmem:[%s0 + $0x90] sm:$0xff]
  %v33 = vld [vmem:[%s0 + $0x98] sm:$0xff]
  %v34 = vld [vmem:[%s0 + $0xa0] sm:$0xff]
  %v35 = vld [vmem:[%s0 + $0xa8] sm:$0xff]
  %v36 = vld [vmem:[%s0 + $0xb0] sm:$0xff]
  %v37 = vld [vmem:[%s0 + $0xb8] sm:$0xff]
  %v38 = vld [vmem:[%s0 + $0xc0] sm:$0xff]
  %v39 = vld [vmem:[%s0 + $0xc8] sm:$0xff]
  %v40 = vld [vmem:[%s0 + $0xd0] sm:$0xff]
  %v41 = vld [vmem:[%s0 + $0xd8] sm:$0xff]
  %v42 = vld [vmem:[%s0 + $0xe0] sm:$0xff]
  %v43 = vld [vmem:[%s0 + $0xe8] sm:$0xff]
  %v44 = vld [vmem:[%s0 + $0xf0] sm:$0xff]
  %v45 = vld [vmem:[%s0 + $0xf8] sm:$0xff]
  %v46 = vld [vmem:[%s0 + $0x100] sm:$0xff]
  %v47 = vld [vmem:[%s0 + $0x108] sm:$0xff]
  %v48 = vld [vmem:[%s0 + $0x110] sm:$0xff]
  %v49 = vld [vmem:[%s0 + $0x118] sm:$0xff]
  %v50 = vld [vmem:[%s0 + $0x120] sm:$0xff]
  %v51 = vld [vmem:[%s0 + $0x128] sm:$0xff]
  %v52 = vld [vmem:[%s0 + $0x130] sm:$0xff]
  %v53 = vld [vmem:[%s0 + $0x138] sm:$0xff]
  %v54 = vld [vmem:[%s0 + $0x140] sm:$0xff]
  %v55 = vld [vmem:[%s0 + $0x148] sm:$0xff]
  %v56 = vld [vmem:[%s0 + $0x150] sm:$0xff]
  %v57 = vld [vmem:[%s0 + $0x158] sm:$0xff]
  %v58 = vld [vmem:[%s0 + $0x160] sm:$0xff]
  %v59 = vld [vmem:[%s0 + $0x168] sm:$0xff]
  %v60 = vld [vmem:[%s0 + $0x170] sm:$0xff]
  %v61 = vld [vmem:[%s0 + $0x178] sm:$0xff]
  %v62 = vld [vmem:[%s0 + $0x180] sm:$0xff]
  %v63 = vld [vmem:[%s0 + $0x188] sm:$0xff]
  %v64 = vld [vmem:[%s0 + $0x190] sm:$0xff]
  %v65 = vld [vmem:[%s0 + $0x198] sm:$0xff]
  %v66 = vld [vmem:[%s0 + $0x1a0] sm:$0xff]
  %v67 = vld [vmem:[%s0 + $0x1a8] sm:$0xff]
  %v68 = vld [vmem:[%s0 + $0x1b0] sm:$0xff]
  %v69 = vld [vmem:[%s0 + $0x1b8] sm:$0xff]
  %v70 = vld [vmem:[%s0 + $0x1c0] sm:$0xff]
  %v71 = vld [vmem:[%s0 + $0x1c8] sm:$0xff]
  %v72 = vld [vmem:[%s0 + $0x1d0] sm:$0xff]
  %v73 = vld [vmem:[%s0 + $0x1d8] sm:$0xff]
  %v74 = vld [vmem:[%s0 + $0x1e0] sm:$0xff]
  %v75 = vld [vmem:[%s0 + $0x1e8] sm:$0xff]
  %v76 = vld [vmem:[%s0 + $0x1f0] sm:$0xff]
  %v77 = vld [vmem:[%s0 + $0x1f8] sm:$0xff]
  %v78 = vld [vmem:[%s0 + $0x200] sm:$0xff]
  %v79 = vld [vmem:[%s0 + $0x208] sm:$0xff]
  %v80 = vld [vmem:[%s0 + $0x210] sm:$0xff]
  %v81 = vld [vmem:[%s0 + $0x218] sm:$0xff]
  %v82 = vld [vmem:[%s0 + $0x220] sm:$0xff]
  %v83 = vld [vmem:[%s0 + $0x228] sm:$0xff]
  %v84 = vld [vmem:[%s0 + $0x230] sm:$0xff]
  %v85 = vld [vmem:[%s0 + $0x238] sm:$0xff]
  %v86 = vld [vmem:[%s0 + $0x240] sm:$0xff]
  %v87 = vld [vmem:[%s0 + $0x248] sm:$0xff]
  %v88 = vld [vmem:[%s0 + $0x250] sm:$0xff]
  %v89 = vld [vmem:[%s0 + $0x258] sm:$0xff]
  %v90 = vld [vmem:[%s0 + $0x260] sm:$0xff]
  %v91 = vld [vmem:[%s0 + $0x268] sm:$0xff]
  %v92 = vld [vmem:[%s0 + $0x270] sm:$0xff]
  %v93 = vld [vmem:[%s0 + $0x278] sm:$0xff]
  %v94 = vld [vmem:[%s0 + $0x280] sm:$0xff]
  %v95 = vld [vmem:[%s0 + $0x288] sm:$0xff]
  %v96 = vld [vmem:[%s0 + $0x290] sm:$0xff]
  %v97 = vld [vmem:[%s0 + $0x298] sm:$0xff]
  %v98 = vld [vmem:[%s0 + $0x2a0] sm:$0xff]
  %v99 = vld [vmem:[%s0 + $0x2a8] sm:$0xff]
  %v100 = vld [vmem:[%s0 + $0x2b0] sm:$0xff]
  %v101 = vld [vmem:[%s0 + $0x2b8] sm:$0xff]
  %v102 = vld [vmem:[%s0 + $0x2c0] sm:$0xff]
  %v103 = vld [vmem:[%s0 + $0x2c8] sm:$0xff]
  %v104 = vld [vmem:[%s0 + $0x2d0] sm:$0xff]
  %v105 = vld [vmem:[%s0 + $0x2d8] sm:$0xff]
  %v106 = vld [vmem:[%s0 + $0x2e0] sm:$0xff]
  %v107 = vld [vmem:[%s0 + $0x2e8] sm:$0xff]
  %v108 = vld [vmem:[%s0 + $0x2f0] sm:$0xff]
  %v109 = vld [vmem:[%s0 + $0x2f8] sm:$0xff]
  %v110 = vld [vmem:[%s0 + $0x300] sm:$0xff]
  %v111 = vld [vmem:[%s0 + $0x308] sm:$0xff]
  %v112 = vld [vmem:[%s0 + $0x310] sm:$0xff]
  %v113 = vld [vmem:[%s0 + $0x318] sm:$0xff]
  %v114 = vld [vmem:[%s0 + $0x320] sm:$0xff]
  %v115 = vld [vmem:[%s0 + $0x328] sm:$0xff]
  %v116 = vld [vmem:[%s0 + $0x330] sm:$0xff]
  %v117 = vld [vmem:[%s0 + $0x338] sm:$0xff]
  %v118 = vld [vmem:[%s0 + $0x340] sm:$0xff]
  %v119 = vld [vmem:[%s0 + $0x348] sm:$0xff]
  %v120 = vld [vmem:[%s0 + $0x350] sm:$0xff]
  %v121 = vld [vmem:[%s0 + $0x358] sm:$0xff]
  %v122 = vld [vmem:[%s0 + $0x360] sm:$0xff]
  %v123 = vld [vmem:[%s0 + $0x368] sm:$0xff]
  %v124 = vld [vmem:[%s0 + $0x370] sm:$0xff]
  %v125 = vld [vmem:[%s0 + $0x378] sm:$0xff]
  %v126 = vld [vmem:[%s0 + $0x380] sm:$0xff]
  %v127 = vld [vmem:[%s0 + $0x388] sm:$0xff]
  %v128 = vld [vmem:[%s0 + $0x390] sm:$0xff]
  %v129 = vld [vmem:[%s0 + $0x398] sm:$0xff]
  %v130 = vld [vmem:[%s0 + $0x3a0] sm:$0xff]
  %v131 = vld [vmem:[%s0 + $0x3a8] sm:$0xff]
  %v132 = vld [vmem:[%s0 + $0x3b0] sm:$0xff]
  %v133 = vld [vmem:[%s0 + $0x3b8] sm:$0xff]
  %v134 = vld [vmem:[%s0 + $0x3c0] sm:$0xff]
  %v135 = vld [vmem:[%s0 + $0x3c8] sm:$0xff]
  %v136 = vld [vmem:[%s0 + $0x3d0] sm:$0xff]
  %v137 = vld [vmem:[%s0 + $0x3d8] sm:$0xff]
  %v138 = vld [vmem:[%s0 + $0x3e0] sm:$0xff]
  %v139 = vld [vmem:[%s0 + $0x3e8] sm:$0xff]
  %v140 = vld [vmem:[%s0 + $0x3f0] sm:$0xff]
  %v141 = vld [vmem:[%s0 + $0x3f8] sm:$0xff]
  %v142 = vld [vmem:[%s0 + $0x400] sm:$0xff]
  %v143 = vld [vmem:[%s0 + $0x408] sm:$0xff]
  %v144 = vld [vmem:[%s0 + $0x410] sm:$0xff]
  %v145 = vld [vmem:[%s0 + $0x418] sm:$0xff]
  %v146 = vld [vmem:[%s0 + $0x420] sm:$0xff]
  %v147 = vld [vmem:[%s0 + $0x428] sm:$0xff]
  %v148 = vld [vmem:[%s0 + $0x430] sm:$0xff]
  %v149 = vld [vmem:[%s0 + $0x438] sm:$0xff]
  %v150 = vld [vmem:[%s0 + $0x440] sm:$0xff]
  %v151 = vld [vmem:[%s0 + $0x448] sm:$0xff]
  %v152 = vld [vmem:[%s0 + $0x450] sm:$0xff]
  %v153 = vld [vmem:[%s0 + $0x458] sm:$0xff]
  %v154 = vld [vmem:[%s0 + $0x460] sm:$0xff]
  %v155 = vld [vmem:[%s0 + $0x468] sm:$0xff]
  %v156 = vld [vmem:[%s0 + $0x470] sm:$0xff]
  %v157 = vld [vmem:[%s0 + $0x478] sm:$0xff]
  %v158 = vld [vmem:[%s0 + $0x480] sm:$0xff]
  %v159 = vld [vmem:[%s0 + $0x488] sm:$0xff]
  %v160 = vld [vmem:[%s0 + $0x490] sm:$0xff]
  %v161 = vld [vmem:[%s0 + $0x498] sm:$0xff]
  %v162 = vld [vmem:[%s0 + $0x4a0] sm:$0xff]
  %v163 = vld [vmem:[%s0 + $0x4a8] sm:$0xff]
  %v164 = vld [vmem:[%s0 + $0x4b0] sm:$0xff]
  %v165 = vld [vmem:[%s0 + $0x4b8] sm:$0xff]
  %v166 = vld [vmem:[%s0 + $0x4c0] sm:$0xff]
  %v167 = vld [vmem:[%s0 + $0x4c8] sm:$0xff]
  %v168 = vld [vmem:[%s0 + $0x4d0] sm:$0xff]
  %v169 = vld [vmem:[%s0 + $0x4d8] sm:$0xff]
  %v170 = vld [vmem:[%s0 + $0x4e0] sm:$0xff]
  %v171 = vld [vmem:[%s0 + $0x4e8] sm:$0xff]
  %v172 = vld [vmem:[%s0 + $0x4f0] sm:$0xff]
  %v173 = vld [vmem:[%s0 + $0x4f8] sm:$0xff]
  %v174 = vld [vmem:[%s0 + $0x500] sm:$0xff]
  %v175 = vld [vmem:[%s0 + $0x508] sm:$0xff]
  %v176 = vld [vmem:[%s0 + $0x510] sm:$0xff]
  %v177 = vld [vmem:[%s0 + $0x518] sm:$0xff]
  %v178 = vld [vmem:[%s0 + $0x520] sm:$0xff]
  %v179 = vld [vmem:[%s0 + $0x528] sm:$0xff]
  %v180 = vld [vmem:[%s0 + $0x530] sm:$0xff]
  %v181 = vld [vmem:[%s0 + $0x538] sm:$0xff]
  %v182 = vld [vmem:[%s0 + $0x540] sm:$0xff]
  %v183 = vld [vmem:[%s0 + $0x548] sm:$0xff]
  %v184 = vld [vmem:[%s0 + $0x550] sm:$0xff]
  %v185 = vld [vmem:[%s0 + $0x558] sm:$0xff]
  %v186 = vld [vmem:[%s0 + $0x560] sm:$0xff]
  %v187 = vld [vmem:[%s0 + $0x568] sm:$0xff]
  %v188 = vld [vmem:[%s0 + $0x570] sm:$0xff]
  %v189 = vld [vmem:[%s0 + $0x578] sm:$0xff]
  %v190 = vld [vmem:[%s0 + $0x580] sm:$0xff]
  %v191 = vld [vmem:[%s0 + $0x588] sm:$0xff]
  %v192 = vld [vmem:[%s0 + $0x590] sm:$0xff]
  %v193 = vld [vmem:[%s0 + $0x598] sm:$0xff]
  %v194 = vld [vmem:[%s0 + $0x5a0] sm:$0xff]
  %v195 = vld [vmem:[%s0 + $0x5a8] sm:$0xff]
  %v196 = vld [vmem:[%s0 + $0x5b0] sm:$0xff]
  %v197 = vld [vmem:[%s0 + $0x5b8] sm:$0xff]
  %v198 = vld [vmem:[%s0 + $0x5c0] sm:$0xff]
  %v199 = vld [vmem:[%s0 + $0x5c8] sm:$0xff]
  %v200 = vld [vmem:[%s0 + $0x5d0] sm:$0xff]
  %v201 = vld [vmem:[%s0 + $0x5d8] sm:$0xff]
  %v202 = vld [vmem:[%s0 + $0x5e0] sm:$0xff]
  %v203 = vld [vmem:[%s0 + $0x5e8] sm:$0xff]
  %v204 = vld [vmem:[%s0 + $0x5f0] sm:$0xff]
  %v205 = vld [vmem:[%s0 + $0x5f8] sm:$0xff]
  %v206 = vld [vmem:[%s0 + $0x600] sm:$0xff]
  %v207 = vld [vmem:[%s0 + $0x608] sm:$0xff]
  %v208 = vld [vmem:[%s0 + $0x610] sm:$0xff]
  %v209 = vld [vmem:[%s0 + $0x618] sm:$0xff]
  %v210 = vld [vmem:[%s0 + $0x620] sm:$0xff]
  %v211 = vld [vmem:[%s0 + $0x628] sm:$0xff]
  %v212 = vld [vmem:[%s0 + $0x630] sm:$0xff]
  %v213 = vld [vmem:[%s0 + $0x638] sm:$0xff]
  %v214 = vld [vmem:[%s0 + $0x640] sm:$0xff]
  %v215 = vld [vmem:[%s0 + $0x648] sm:$0xff]
  %v216 = vld [vmem:[%s0 + $0x650] sm:$0xff]
  %v217 = vld [vmem:[%s0 + $0x658] sm:$0xff]
  %v218 = vld [vmem:[%s0 + $0x660] sm:$0xff]
  %v219 = vld [vmem:[%s0 + $0x668] sm:$0xff]
  %v220 = vld [vmem:[%s0 + $0x670] sm:$0xff]
  %v221 = vld [vmem:[%s0 + $0x678] sm:$0xff]
  %v222 = vld [vmem:[%s0 + $0x680] sm:$0xff]
  %v223 = vld [vmem:[%s0 + $0x688] sm:$0xff]
  %v224 = vld [vmem:[%s0 + $0x690] sm:$0xff]
  %v225 = vld [vmem:[%s0 + $0x698] sm:$0xff]
  %v226 = vld [vmem:[%s0 + $0x6a0] sm:$0xff]
  %v227 = vld [vmem:[%s0 + $0x6a8] sm:$0xff]
  %v228 = vld [vmem:[%s0 + $0x6b0] sm:$0xff]
  %v229 = vld [vmem:[%s0 + $0x6b8] sm:$0xff]
  %v230 = vld [vmem:[%s0 + $0x6c0] sm:$0xff]
  %v231 = vld [vmem:[%s0 + $0x6c8] sm:$0xff]
  %v232 = vld [vmem:[%s0 + $0x6d0] sm:$0xff]
  %v233 = vld [vmem:[%s0 + $0x6d8] sm:$0xff]
  %v234 = vld [vmem:[%s0 + $0x6e0] sm:$0xff]
  %v235 = vld [vmem:[%s0 + $0x6e8] sm:$0xff]
  %v236 = vld [vmem:[%s0 + $0x6f0] sm:$0xff]
  %v237 = vld [vmem:[%s0 + $0x6f8] sm:$0xff]
  %v238 = vld [vmem:[%s0 + $0x700] sm:$0xff]
  %v239 = vld [vmem:[%s0 + $0x708] sm:$0xff]
  %v240 = vld [vmem:[%s0 + $0x710] sm:$0xff]
  %v241 = vld [vmem:[%s0 + $0x718] sm:$0xff]
  %v242 = vld [vmem:[%s0 + $0x720] sm:$0xff]
  %v243 = vld [vmem:[%s0 + $0x728] sm:$0xff]
  %v244 = vld [vmem:[%s0 + $0x730] sm:$0xff]
  %v245 = vld [vmem:[%s0 + $0x738] sm:$0xff]
  %v246 = vld [vmem:[%s0 + $0x740] sm:$0xff]
  %v247 = vld [vmem:[%s0 + $0x748] sm:$0xff]
  %v248 = vld [vmem:[%s0 + $0x750] sm:$0xff]
  %v249 = vld [vmem:[%s0 + $0x758] sm:$0xff]
  %v250 = vld [vmem:[%s0 + $0x760] sm:$0xff]
  %v251 = vld [vmem:[%s0 + $0x768] sm:$0xff]
  %v252 = vld [vmem:[%s0 + $0x770] sm:$0xff]
  %v253 = vld [vmem:[%s0 + $0x778] sm:$0xff]
  %v254 = vld [vmem:[%s0 + $0x780] sm:$0xff]
  %v255 = vld [vmem:[%s0 + $0x788] sm:$0xff]
  %v256 = vld [vmem:[%s0 + $0x790] sm:$0xff]
  %v257 = vld [vmem:[%s0 + $0x798] sm:$0xff]
  %v258 = vld [vmem:[%s0 + $0x7a0] sm:$0xff]
  %v259 = vld [vmem:[%s0 + $0x7a8] sm:$0xff]
  %v260 = vld [vmem:[%s0 + $0x7b0] sm:$0xff]
  %v261 = vld [vmem:[%s0 + $0x7b8] sm:$0xff]
  %v262 = vld [vmem:[%s0 + $0x7c0] sm:$0xff]
  %v263 = vld [vmem:[%s0 + $0x7c8] sm:$0xff]
  %v264 = vld [vmem:[%s0 + $0x7d0] sm:$0xff]
  %v265 = vld [vmem:[%s0 + $0x7d8] sm:$0xff]
  %v266 = vld [vmem:[%s0 + $0x7e0] sm:$0xff]
  %v267 = vld [vmem:[%s0 + $0x7e8] sm:$0xff]
  %v268 = vld [vmem:[%s0 + $0x7f0] sm:$0xff]
  %v269 = vld [vmem:[%s0 + $0x7f8] sm:$0xff]
  %v270 = vld [vmem:[%s0 + $0x800] sm:$0xff]
  %v271 = vld [vmem:[%s0 + $0x808] sm:$0xff]
  %v272 = vld [vmem:[%s0 + $0x810] sm:$0xff]
  %v273 = vld [vmem:[%s0 + $0x818] sm:$0xff]
  %v274 = vld [vmem:[%s0 + $0x820] sm:$0xff]
  %v275 = vld [vmem:[%s0 + $0x828] sm:$0xff]
  %v276 = vld [vmem:[%s0 + $0x830] sm:$0xff]
  %v277 = vld [vmem:[%s0 + $0x838] sm:$0xff]
  %v278 = vld [vmem:[%s0 + $0x840] sm:$0xff]
  %v279 = vld [vmem:[%s0 + $0x848] sm:$0xff]
  %v280 = vld [vmem:[%s0 + $0x850] sm:$0xff]
  %v281 = vld [vmem:[%s0 + $0x858] sm:$0xff]
  %v282 = vld [vmem:[%s0 + $0x860] sm:$0xff]
  %v283 = vld [vmem:[%s0 + $0x868] sm:$0xff]
  %v284 = vld [vmem:[%s0 + $0x870] sm:$0xff]
  %v285 = vld [vmem:[%s0 + $0x878] sm:$0xff]
  %v286 = vld [vmem:[%s0 + $0x880] sm:$0xff]
  %v287 = vld [vmem:[%s0 + $0x888] sm:$0xff]
  %v288 = vld [vmem:[%s0 + $0x890] sm:$0xff]
  %v289 = vld [vmem:[%s0 + $0x898] sm:$0xff]
  %v290 = vld [vmem:[%s0 + $0x8a0] sm:$0xff]
  %v291 = vld [vmem:[%s0 + $0x8a8] sm:$0xff]
  %v292 = vld [vmem:[%s0 + $0x8b0] sm:$0xff]
  %v293 = vld [vmem:[%s0 + $0x8b8] sm:$0xff]
  %v294 = vld [vmem:[%s0 + $0x8c0] sm:$0xff]
  %v295 = vld [vmem:[%s0 + $0x8c8] sm:$0xff]
  %v296 = vld [vmem:[%s0 + $0x8d0] sm:$0xff]
  %v297 = vld [vmem:[%s0 + $0x8d8] sm:$0xff]
  %v298 = vld [vmem:[%s0 + $0x8e0] sm:$0xff]
  %v299 = vld [vmem:[%s0 + $0x8e8] sm:$0xff]
  %v300 = vld [vmem:[%s0 + $0x8f0] sm:$0xff]
  %v301 = vld [vmem:[%s0 + $0x8f8] sm:$0xff]
  %v302 = vld [vmem:[%s0 + $0x900] sm:$0xff]
  %v303 = vld [vmem:[%s0 + $0x908] sm:$0xff]
  %v304 = vld [vmem:[%s0 + $0x910] sm:$0xff]
  %v305 = vld [vmem:[%s0 + $0x918] sm:$0xff]
  %v306 = vld [vmem:[%s0 + $0x920] sm:$0xff]
  %v307 = vld [vmem:[%s0 + $0x928] sm:$0xff]
  %v308 = vld [vmem:[%s0 + $0x930] sm:$0xff]
  %v309 = vld [vmem:[%s0 + $0x938] sm:$0xff]
  %v310 = vld [vmem:[%s0 + $0x940] sm:$0xff]
  %v311 = vld [vmem:[%s0 + $0x948] sm:$0xff]
  %v312 = vld [vmem:[%s0 + $0x950] sm:$0xff]
  %v313 = vld [vmem:[%s0 + $0x958] sm:$0xff]
  %v314 = vld [vmem:[%s0 + $0x960] sm:$0xff]
  %v315 = vld [vmem:[%s0 + $0x968] sm:$0xff]
  %v316 = vld [vmem:[%s0 + $0x970] sm:$0xff]
  %v317 = vld [vmem:[%s0 + $0x978] sm:$0xff]
  %v318 = vld [vmem:[%s0 + $0x980] sm:$0xff]
  %v319 = vld [vmem:[%s0 + $0x988] sm:$0xff]
  %v320 = vld [vmem:[%s0 + $0x990] sm:$0xff]
  %v321 = vld [vmem:[%s0 + $0x998] sm:$0xff]
  %v322 = vld [vmem:[%s0 + $0x9a0] sm:$0xff]
  %v323 = vld [vmem:[%s0 + $0x9a8] sm:$0xff]
  %v324 = vld [vmem:[%s0 + $0x9b0] sm:$0xff]
  %v325 = vld [vmem:[%s0 + $0x9b8] sm:$0xff]
  %v326 = vld [vmem:[%s0 + $0x9c0] sm:$0xff]
  %v327 = vld [vmem:[%s0 + $0x9c8] sm:$0xff]
  %v328 = vld [vmem:[%s0 + $0x9d0] sm:$0xff]
  %v329 = vld [vmem:[%s0 + $0x9d8] sm:$0xff]
  %v330 = vld [vmem:[%s0 + $0x9e0] sm:$0xff]
  %v331 = vld [vmem:[%s0 + $0x9e8] sm:$0xff]
  %v332 = vld [vmem:[%s0 + $0x9f0] sm:$0xff]
  %v333 = vld [vmem:[%s0 + $0x9f8] sm:$0xff]
  %v334 = vld [vmem:[%s0 + $0xa00] sm:$0xff]
  %v335 = vld [vmem:[%s0 + $0xa08] sm:$0xff]
  %v336 = vld [vmem:[%s0 + $0xa10] sm:$0xff]
  %v337 = vld [vmem:[%s0 + $0xa18] sm:$0xff]
  %v338 = vld [vmem:[%s0 + $0xa20] sm:$0xff]
  %v339 = vld [vmem:[%s0 + $0xa28] sm:$0xff]
  %v340 = vld [vmem:[%s0 + $0xa30] sm:$0xff]
  %v341 = vld [vmem:[%s0 + $0xa38] sm:$0xff]
  %v342 = vld [vmem:[%s0 + $0xa40] sm:$0xff]
  %v343 = vld [vmem:[%s0 + $0xa48] sm:$0xff]
  %v344 = vld [vmem:[%s0 + $0xa50] sm:$0xff]
  %v345 = vld [vmem:[%s0 + $0xa58] sm:$0xff]
  %v346 = vld [vmem:[%s0 + $0xa60] sm:$0xff]
  %v347 = vld [vmem:[%s0 + $0xa68] sm:$0xff]
  %v348 = vld [vmem:[%s0 + $0xa70] sm:$0xff]
  %v349 = vld [vmem:[%s0 + $0xa78] sm:$0xff]
  %v350 = vld [vmem:[%s0 + $0xa80] sm:$0xff]
  %v351 = vld [vmem:[%s0 + $0xa88] sm:$0xff]
  %v352 = vld [vmem:[%s0 + $0xa90] sm:$0xff]
  %v353 = vld [vmem:[%s0 + $0xa98] sm:$0xff]
  %v354 = vld [vmem:[%s0 + $0xaa0] sm:$0xff]
  %v355 = vld [vmem:[%s0 + $0xaa8] sm:$0xff]
  %v356 = vld [vmem:[%s0 + $0xab0] sm:$0xff]
  %v357 = vld [vmem:[%s0 + $0xab8] sm:$0xff]
  %v358 = vld [vmem:[%s0 + $0xac0] sm:$0xff]
  %v359 = vld [vmem:[%s0 + $0xac8] sm:$0xff]
  %v360 = vld [vmem:[%s0 + $0xad0] sm:$0xff]
  %v361 = vld [vmem:[%s0 + $0xad8] sm:$0xff]
  %v362 = vld [vmem:[%s0 + $0xae0] sm:$0xff]
  %v363 = vld [vmem:[%s0 + $0xae8] sm:$0xff]
  %v364 = vld [vmem:[%s0 + $0xaf0] sm:$0xff]
  %v365 = vld [vmem:[%s0 + $0xaf8] sm:$0xff]
  %v366 = vld [vmem:[%s0 + $0xb00] sm:$0xff]
  %v367 = vld [vmem:[%s0 + $0xb08] sm:$0xff]
  %v368 = vld [vmem:[%s0 + $0xb10] sm:$0xff]
  %v369 = vld [vmem:[%s0 + $0xb18] sm:$0xff]
  %v370 = vld [vmem:[%s0 + $0xb20] sm:$0xff]
  %v371 = vld [vmem:[%s0 + $0xb28] sm:$0xff]
  %v372 = vld [vmem:[%s0 + $0xb30] sm:$0xff]
  %v373 = vld [vmem:[%s0 + $0xb38] sm:$0xff]
  %v374 = vld [vmem:[%s0 + $0xb40] sm:$0xff]
  %v375 = vld [vmem:[%s0 + $0xb48] sm:$0xff]
  %v376 = vld [vmem:[%s0 + $0xb50] sm:$0xff]
  %v377 = vld [vmem:[%s0 + $0xb58] sm:$0xff]
  %v378 = vld [vmem:[%s0 + $0xb60] sm:$0xff]
  %v379 = vld [vmem:[%s0 + $0xb68] sm:$0xff]
  %v380 = vld [vmem:[%s0 + $0xb70] sm:$0xff]
  %v381 = vld [vmem:[%s0 + $0xb78] sm:$0xff]
  %v382 = vld [vmem:[%s0 + $0xb80] sm:$0xff]
  %v383 = vld [vmem:[%s0 + $0xb88] sm:$0xff]
  %v384 = vld [vmem:[%s0 + $0xb90] sm:$0xff]
  %v385 = vld [vmem:[%s0 + $0xb98] sm:$0xff]
  %v386 = vld [vmem:[%s0 + $0xba0] sm:$0xff]
  %v387 = vld [vmem:[%s0 + $0xba8] sm:$0xff]
  %v388 = vld [vmem:[%s0 + $0xbb0] sm:$0xff]
  %v389 = vld [vmem:[%s0 + $0xbb8] sm:$0xff]
  %v390 = vld [vmem:[%s0 + $0xbc0] sm:$0xff]
  %v391 = vld [vmem:[%s0 + $0xbc8] sm:$0xff]
  %v392 = vld [vmem:[%s0 + $0xbd0] sm:$0xff]
  %v393 = vld [vmem:[%s0 + $0xbd8] sm:$0xff]
  %v394 = vld [vmem:[%s0 + $0xbe0] sm:$0xff]
  %v395 = vld [vmem:[%s0 + $0xbe8] sm:$0xff]
  %v396 = vld [vmem:[%s0 + $0xbf0] sm:$0xff]
  %v397 = vld [vmem:[%s0 + $0xbf8] sm:$0xff]
  %v398 = vld [vmem:[%s0 + $0xc00] sm:$0xff]
  %v399 = vld [vmem:[%s0 + $0xc08] sm:$0xff]
  %v400 = vld [vmem:[%s0 + $0xc10] sm:$0xff]
  %v401 = vld [vmem:[%s0 + $0xc18] sm:$0xff]
  %v402 = vld [vmem:[%s0 + $0xc20] sm:$0xff]
  %v403 = vld [vmem:[%s0 + $0xc28] sm:$0xff]
  %v404 = vld [vmem:[%s0 + $0xc30] sm:$0xff]
  %v405 = vld [vmem:[%s0 + $0xc38] sm:$0xff]
  %v406 = vld [vmem:[%s0 + $0xc40] sm:$0xff]
  %v407 = vld [vmem:[%s0 + $0xc48] sm:$0xff]
  %v408 = vld [vmem:[%s0 + $0xc50] sm:$0xff]
  %v409 = vld [vmem:[%s0 + $0xc58] sm:$0xff]
  %v410 = vld [vmem:[%s0 + $0xc60] sm:$0xff]
  %v411 = vld [vmem:[%s0 + $0xc68] sm:$0xff]
  %v412 = vld [vmem:[%s0 + $0xc70] sm:$0xff]
  %v413 = vld [vmem:[%s0 + $0xc78] sm:$0xff]
  %v414 = vld [vmem:[%s0 + $0xc80] sm:$0xff]
  %v415 = vld [vmem:[%s0 + $0xc88] sm:$0xff]
  %v416 = vld [vmem:[%s0 + $0xc90] sm:$0xff]
  %v417 = vld [vmem:[%s0 + $0xc98] sm:$0xff]
  %v418 = vld [vmem:[%s0 + $0xca0] sm:$0xff]
  %v419 = vld [vmem:[%s0 + $0xca8] sm:$0xff]
  %v420 = vld [vmem:[%s0 + $0xcb0] sm:$0xff]
  %v421 = vld [vmem:[%s0 + $0xcb8] sm:$0xff]
  %v422 = vld [vmem:[%s0 + $0xcc0] sm:$0xff]
  %v423 = vld [vmem:[%s0 + $0xcc8] sm:$0xff]
  %v424 = vld [vmem:[%s0 + $0xcd0] sm:$0xff]
  %v425 = vld [vmem:[%s0 + $0xcd8] sm:$0xff]
  %v426 = vld [vmem:[%s0 + $0xce0] sm:$0xff]
  %v427 = vld [vmem:[%s0 + $0xce8] sm:$0xff]
  %v428 = vld [vmem:[%s0 + $0xcf0] sm:$0xff]
  %v429 = vld [vmem:[%s0 + $0xcf8] sm:$0xff]
  %v430 = vld [vmem:[%s0 + $0xd00] sm:$0xff]
  %v431 = vld [vmem:[%s0 + $0xd08] sm:$0xff]
  %v432 = vld [vmem:[%s0 + $0xd10] sm:$0xff]
  %v433 = vld [vmem:[%s0 + $0xd18] sm:$0xff]
  %v434 = vld [vmem:[%s0 + $0xd20] sm:$0xff]
  %v435 = vld [vmem:[%s0 + $0xd28] sm:$0xff]
  %v436 = vld [vmem:[%s0 + $0xd30] sm:$0xff]
  %v437 = vld [vmem:[%s0 + $0xd38] sm:$0xff]
  %v438 = vld [vmem:[%s0 + $0xd40] sm:$0xff]
  %v439 = vld [vmem:[%s0 + $0xd48] sm:$0xff]
  %v440 = vld [vmem:[%s0 + $0xd50] sm:$0xff]
  %v441 = vld [vmem:[%s0 + $0xd58] sm:$0xff]
  %v442 = vld [vmem:[%s0 + $0xd60] sm:$0xff]
  %v443 = vld [vmem:[%s0 + $0xd68] sm:$0xff]
  %v444 = vld [vmem:[%s0 + $0xd70] sm:$0xff]
  %v445 = vld [vmem:[%s0 + $0xd78] sm:$0xff]
  %v446 = vld [vmem:[%s0 + $0xd80] sm:$0xff]
  %v447 = vld [vmem:[%s0 + $0xd88] sm:$0xff]
  %v448 = vld [vmem:[%s0 + $0xd90] sm:$0xff]
  %v449 = vld [vmem:[%s0 + $0xd98] sm:$0xff]
  %v450 = vld [vmem:[%s0 + $0xda0] sm:$0xff]
  %v451 = vld [vmem:[%s0 + $0xda8] sm:$0xff]
  %v452 = vld [vmem:[%s0 + $0xdb0] sm:$0xff]
  %v453 = vld [vmem:[%s0 + $0xdb8] sm:$0xff]
  %v454 = vld [vmem:[%s0 + $0xdc0] sm:$0xff]
  %v455 = vld [vmem:[%s0 + $0xdc8] sm:$0xff]
  %v456 = vld [vmem:[%s0 + $0xdd0] sm:$0xff]
  %v457 = vld [vmem:[%s0 + $0xdd8] sm:$0xff]
  %v458 = vld [vmem:[%s0 + $0xde0] sm:$0xff]
  %v459 = vld [vmem:[%s0 + $0xde8] sm:$0xff]
  %v460 = vld [vmem:[%s0 + $0xdf0] sm:$0xff]
  %v461 = vld [vmem:[%s0 + $0xdf8] sm:$0xff]
  %v462 = vld [vmem:[%s1] sm:$0xff]
  %v463 = vld [vmem:[%s1 + $0x8] sm:$0xff]
  %v464 = vld [vmem:[%s1 + $0x10] sm:$0xff]
  %v465 = vld [vmem:[%s1 + $0x18] sm:$0xff]
  %v466 = vld [vmem:[%s1 + $0x20] sm:$0xff]
  %v467 = vld [vmem:[%s1 + $0x28] sm:$0xff]
  %v468 = vld [vmem:[%s1 + $0x30] sm:$0xff]
  %v469 = vld [vmem:[%s1 + $0x38] sm:$0xff]
  %v470 = vld [vmem:[%s1 + $0x40] sm:$0xff]
  %v471 = vld [vmem:[%s1 + $0x48] sm:$0xff]
  %v472 = vld [vmem:[%s1 + $0x50] sm:$0xff]
  %v473 = vld [vmem:[%s1 + $0x58] sm:$0xff]
  %v474 = vld [vmem:[%s1 + $0x60] sm:$0xff]
  %v475 = vld [vmem:[%s1 + $0x68] sm:$0xff]
  %v476 = vld [vmem:[%s1 + $0x70] sm:$0xff]
  %v477 = vld [vmem:[%s1 + $0x78] sm:$0xff]
  %v478 = vld [vmem:[%s1 + $0x80] sm:$0xff]
  %v479 = vld [vmem:[%s1 + $0x88] sm:$0xff]
  %v480 = vld [vmem:[%s1 + $0x90] sm:$0xff]
  %v481 = vld [vmem:[%s1 + $0x98] sm:$0xff]
  %v482 = vld [vmem:[%s1 + $0xa0] sm:$0xff]
  %v483 = vld [vmem:[%s1 + $0xa8] sm:$0xff]
  %v484 = vld [vmem:[%s1 + $0xb0] sm:$0xff]
  %v485 = vld [vmem:[%s1 + $0xb8] sm:$0xff]
  %v486 = vld [vmem:[%s1 + $0xc0] sm:$0xff]
  %v487 = vld [vmem:[%s1 + $0xc8] sm:$0xff]
  %v488 = vld [vmem:[%s1 + $0xd0] sm:$0xff]
  %v489 = vld [vmem:[%s1 + $0xd8] sm:$0xff]
  %v490 = vld [vmem:[%s1 + $0xe0] sm:$0xff]
  %v491 = vld [vmem:[%s1 + $0xe8] sm:$0xff]
  %v492 = vld [vmem:[%s1 + $0xf0] sm:$0xff]
  %v493 = vld [vmem:[%s1 + $0xf8] sm:$0xff]
  %v494 = vld [vmem:[%s1 + $0x100] sm:$0xff]
  %v495 = vld [vmem:[%s1 + $0x108] sm:$0xff]
  %v496 = vld [vmem:[%s1 + $0x110] sm:$0xff]
  %v497 = vld [vmem:[%s1 + $0x118] sm:$0xff]
  %v498 = vld [vmem:[%s1 + $0x120] sm:$0xff]
  %v499 = vld [vmem:[%s1 + $0x128] sm:$0xff]
  %v500 = vld [vmem:[%s1 + $0x130] sm:$0xff]
  %v501 = vld [vmem:[%s1 + $0x138] sm:$0xff]
  %v502 = vld [vmem:[%s1 + $0x140] sm:$0xff]
  %v503 = vld [vmem:[%s1 + $0x148] sm:$0xff]
  %v504 = vld [vmem:[%s1 + $0x150] sm:$0xff]
  %v505 = vld [vmem:[%s1 + $0x158] sm:$0xff]
  %v506 = vld [vmem:[%s1 + $0x160] sm:$0xff]
  %v507 = vld [vmem:[%s1 + $0x168] sm:$0xff]
  %v508 = vld [vmem:[%s1 + $0x170] sm:$0xff]
  %v509 = vld [vmem:[%s1 + $0x178] sm:$0xff]
  %v510 = vld [vmem:[%s1 + $0x180] sm:$0xff]
  %v511 = vld [vmem:[%s1 + $0x188] sm:$0xff]
  %v512 = vld [vmem:[%s1 + $0x190] sm:$0xff]
  %v513 = vld [vmem:[%s1 + $0x198] sm:$0xff]
  %v514 = vld [vmem:[%s1 + $0x1a0] sm:$0xff]
  %v515 = vld [vmem:[%s1 + $0x1a8] sm:$0xff]
  %v516 = vld [vmem:[%s1 + $0x1b0] sm:$0xff]
  %v517 = vld [vmem:[%s1 + $0x1b8] sm:$0xff]
  %v518 = vld [vmem:[%s1 + $0x1c0] sm:$0xff]
  %v519 = vld [vmem:[%s1 + $0x1c8] sm:$0xff]
  %v520 = vld [vmem:[%s1 + $0x1d0] sm:$0xff]
  %v521 = vld [vmem:[%s1 + $0x1d8] sm:$0xff]
  %v522 = vld [vmem:[%s1 + $0x1e0] sm:$0xff]
  %v523 = vld [vmem:[%s1 + $0x1e8] sm:$0xff]
  %v524 = vld [vmem:[%s1 + $0x1f0] sm:$0xff]
  %v525 = vld [vmem:[%s1 + $0x1f8] sm:$0xff]
  %v526 = vld [vmem:[%s1 + $0x200] sm:$0xff]
  %v527 = vld [vmem:[%s1 + $0x208] sm:$0xff]
  %v528 = vld [vmem:[%s1 + $0x210] sm:$0xff]
  %v529 = vld [vmem:[%s1 + $0x218] sm:$0xff]
  %v530 = vld [vmem:[%s1 + $0x220] sm:$0xff]
  %v531 = vld [vmem:[%s1 + $0x228] sm:$0xff]
  %v532 = vld [vmem:[%s1 + $0x230] sm:$0xff]
  %v533 = vld [vmem:[%s1 + $0x238] sm:$0xff]
  %v534 = vld [vmem:[%s1 + $0x240] sm:$0xff]
  %v535 = vld [vmem:[%s1 + $0x248] sm:$0xff]
  %v536 = vld [vmem:[%s1 + $0x250] sm:$0xff]
  %v537 = vld [vmem:[%s1 + $0x258] sm:$0xff]
  %v538 = vld [vmem:[%s1 + $0x260] sm:$0xff]
  %v539 = vld [vmem:[%s1 + $0x268] sm:$0xff]
  %v540 = vld [vmem:[%s1 + $0x270] sm:$0xff]
  %v541 = vld [vmem:[%s1 + $0x278] sm:$0xff]
  %v542 = vld [vmem:[%s1 + $0x280] sm:$0xff]
  %v543 = vld [vmem:[%s1 + $0x288] sm:$0xff]
  %v544 = vld [vmem:[%s1 + $0x290] sm:$0xff]
  %v545 = vld [vmem:[%s1 + $0x298] sm:$0xff]
  %v546 = vld [vmem:[%s1 + $0x2a0] sm:$0xff]
  %v547 = vld [vmem:[%s1 + $0x2a8] sm:$0xff]
  %v548 = vld [vmem:[%s1 + $0x2b0] sm:$0xff]
  %v549 = vld [vmem:[%s1 + $0x2b8] sm:$0xff]
  %v550 = vld [vmem:[%s1 + $0x2c0] sm:$0xff]
  %v551 = vld [vmem:[%s1 + $0x2c8] sm:$0xff]
  %v552 = vld [vmem:[%s1 + $0x2d0] sm:$0xff]
  %v553 = vld [vmem:[%s1 + $0x2d8] sm:$0xff]
  %v554 = vld [vmem:[%s1 + $0x2e0] sm:$0xff]
  %v555 = vld [vmem:[%s1 + $0x2e8] sm:$0xff]
  %v556 = vld [vmem:[%s1 + $0x2f0] sm:$0xff]
  %v557 = vld [vmem:[%s1 + $0x2f8] sm:$0xff]
  %v558 = vld [vmem:[%s1 + $0x300] sm:$0xff]
  %v559 = vld [vmem:[%s1 + $0x308] sm:$0xff]
  %v560 = vld [vmem:[%s1 + $0x310] sm:$0xff]
  %v561 = vld [vmem:[%s1 + $0x318] sm:$0xff]
  %v562 = vld [vmem:[%s1 + $0x320] sm:$0xff]
  %v563 = vld [vmem:[%s1 + $0x328] sm:$0xff]
  %v564 = vld [vmem:[%s1 + $0x330] sm:$0xff]
  %v565 = vld [vmem:[%s1 + $0x338] sm:$0xff]
  %v566 = vld [vmem:[%s1 + $0x340] sm:$0xff]
  %v567 = vld [vmem:[%s1 + $0x348] sm:$0xff]
  %v568 = vld [vmem:[%s1 + $0x350] sm:$0xff]
  %v569 = vld [vmem:[%s1 + $0x358] sm:$0xff]
  %v570 = vld [vmem:[%s1 + $0x360] sm:$0xff]
  %v571 = vld [vmem:[%s1 + $0x368] sm:$0xff]
  %v572 = vld [vmem:[%s1 + $0x370] sm:$0xff]
  %v573 = vld [vmem:[%s1 + $0x378] sm:$0xff]
  %v574 = vld [vmem:[%s2] sm:$0x1]
  %v576 = vlaneseq
  %v577 = vshrl.u32 %v576, 7
  %v578 = vsub.s32 0, %v577
  %v579 = vrot.slane %v574, %v578
  %581 = vmatprep.subr.mxu0 0.0
  %582 = vmatpush1.msra.mxu0 %v462
  %583 = vmatprep.subr.mxu0 0.0
  %584 = vmatpush1.msra.mxu0 %v463
  %585 = vmatprep.subr.mxu0 0.0
  %586 = vmatpush1.msra.mxu0 %v464
  %587 = vmatprep.subr.mxu0 0.0
  %588 = vmatpush1.msra.mxu0 %v465
  %589 = vmatprep.subr.mxu0 0.0
  %590 = vmatpush1.msra.mxu0 %v466
  %591 = vmatprep.subr.mxu0 0.0
  %592 = vmatpush1.msra.mxu0 %v467
  %593 = vmatprep.subr.mxu0 0.0
  %594 = vmatpush1.msra.mxu0 %v468
  %595 = vmatprep.subr.mxu0 0.0
  %596 = vmatpush1.msra.mxu0 %v469
  %597 = vmatprep.subr.mxu0 0.0
  %598 = vmatpush1.msra.mxu0 %v470
  %599 = vmatprep.subr.mxu0 0.0
  %600 = vmatpush1.msra.mxu0 %v471
  %601 = vmatprep.subr.mxu0 0.0
  %602 = vmatpush1.msra.mxu0 %v472
  %603 = vmatprep.subr.mxu0 0.0
  %604 = vmatpush1.msra.mxu0 %v473
  %605 = vmatprep.subr.mxu0 0.0
  %606 = vmatpush1.msra.mxu0 %v474
  %607 = vmatprep.subr.mxu0 0.0
  %608 = vmatpush1.msra.mxu0 %v475
  %609 = vmatprep.subr.mxu0 0.0
  %610 = vmatpush1.msra.mxu0 %v476
  %611 = vmatprep.subr.mxu0 0.0
  %612 = vmatpush1.msra.mxu0 %v477
  %613 = vmatprep.subr.mxu0 0.0
  %614 = vmatpush1.msra.mxu0 %v478
  %615 = vmatprep.subr.mxu0 0.0
  %616 = vmatpush1.msra.mxu0 %v479
  %617 = vmatprep.subr.mxu0 0.0
  %618 = vmatpush1.msra.mxu0 %v480
  %619 = vmatprep.subr.mxu0 0.0
  %620 = vmatpush1.msra.mxu0 %v481
  %621 = vmatprep.subr.mxu0 0.0
  %622 = vmatpush1.msra.mxu0 %v482
  %623 = vmatprep.subr.mxu0 0.0
  %624 = vmatpush1.msra.mxu0 %v483
  %625 = vmatprep.subr.mxu0 0.0
  %626 = vmatpush1.msra.mxu0 %v484
  %627 = vmatprep.subr.mxu0 0.0
  %628 = vmatpush1.msra.mxu0 %v485
  %629 = vmatprep.subr.mxu0 0.0
  %630 = vmatpush1.msra.mxu0 %v486
  %631 = vmatprep.subr.mxu0 0.0
  %632 = vmatpush1.msra.mxu0 %v487
  %633 = vmatprep.subr.mxu0 0.0
  %634 = vmatpush1.msra.mxu0 %v488
  %635 = vmatprep.subr.mxu0 0.0
  %636 = vmatpush1.msra.mxu0 %v489
  %637 = vmatprep.subr.mxu0 0.0
  %638 = vmatpush1.msra.mxu0 %v490
  %639 = vmatprep.subr.mxu0 0.0
  %640 = vmatpush1.msra.mxu0 %v491
  %641 = vmatprep.subr.mxu0 0.0
  %642 = vmatpush1.msra.mxu0 %v492
  %643 = vmatprep.subr.mxu0 0.0
  %644 = vmatpush1.msra.mxu0 %v493
  %645 = vmatprep.mubr.f32.mxu0 %v15
  %646 = vmatmul.mubr.f32.gmra.mrb[0].mxu0 %v14
  %v647 = vpop.f32.mrb[0].mxu0
  %v648 = vadd.f32 %v579, %v647
  %v649 = vpop.f32.mrb[0].mxu0
  %650 = vmatprep.mubr.f32.mxu0 %v22
  %651 = vmatmul.mubr.f32.gmra.mrb[0].mxu0 %v21
  %v652 = vpop.f32.mrb[0].mxu0
  %v653 = vadd.f32 %v579, %v652
  %v654 = vpop.f32.mrb[0].mxu0
  %655 = vmatprep.mubr.f32.mxu0 %v29
  %656 = vmatmul.mubr.f32.gmra.mrb[0].mxu0 %v28
  %v657 = vpop.f32.mrb[0].mxu0
  %v658 = vadd.f32 %v579, %v657
  %v659 = vpop.f32.mrb[0].mxu0
  %660 = vmatprep.mubr.f32.mxu0 %v36
  %661 = vmatmul.mubr.f32.gmra.mrb[0].mxu0 %v35
  %v662 = vpop.f32.mrb[0].mxu0
  %v663 = vadd.f32 %v579, %v662
  %v664 = vpop.f32.mrb[0].mxu0
  %665 = vmatprep.mubr.f32.mxu0 %v43
  %666 = vmatmul.mubr.f32.gmra.mrb[0].mxu0 %v42
  %v667 = vpop.f32.mrb[0].mxu0
  %v668 = vadd.f32 %v579, %v667
  %v669 = vpop.f32.mrb[0].mxu0
  %670 = vmatprep.mubr.f32.mxu0 %v50
  %671 = vmatmul.mubr.f32.gmra.mrb[0].mxu0 %v49
  %v672 = vpop.f32.mrb[0].mxu0
  %v673 = vadd.f32 %v579, %v672
  %v674 = vpop.f32.mrb[0].mxu0
  %675 = vmatprep.mubr.f32.mxu0 %v57
  %676 = vmatmul.mubr.f32.gmra.mrb[0].mxu0 %v56
  %v677 = vpop.f32.mrb[0].mxu0
  %v678 = vadd.f32 %v579, %v677
  %v679 = vpop.f32.mrb[0].mxu0
  %680 = vmatprep.mubr.f32.mxu0 %v64
  %681 = vmatmul.mubr.f32.gmra.mrb[0].mxu0 %v63
  %v682 = vpop.f32.mrb[0].mxu0
  %v683 = vadd.f32 %v579, %v682
  %v684 = vpop.f32.mrb[0].mxu0
  %685 = vmatprep.mubr.f32.mxu0 %v71
  %686 = vmatmul.mubr.f32.gmra.mrb[0].mxu0 %v70
  %v687 = vpop.f32.mrb[0].mxu0
  %v688 = vadd.f32 %v579, %v687
  %v689 = vpop.f32.mrb[0].mxu0
  %690 = vmatprep.mubr.f32.mxu0 %v78
  %691 = vmatmul.mubr.f32.gmra.mrb[0].mxu0 %v77
  %v692 = vpop.f32.mrb[0].mxu0
  %v693 = vadd.f32 %v579, %v692
  %v694 = vpop.f32.mrb[0].mxu0
  %695 = vmatprep.mubr.f32.mxu0 %v85
  %696 = vmatmul.mubr.f32.gmra.mrb[0].mxu0 %v84
  %v697 = vpop.f32.mrb[0].mxu0
  %v698 = vadd.f32 %v579, %v697
  %v699 = vpop.f32.mrb[0].mxu0
  %700 = vmatprep.mubr.f32.mxu0 %v92
  %701 = vmatmul.mubr.f32.gmra.mrb[0].mxu0 %v91
  %v702 = vpop.f32.mrb[0].mxu0
  %v703 = vadd.f32 %v579, %v702
  %v704 = vpop.f32.mrb[0].mxu0
  %705 = vmatprep.mubr.f32.mxu0 %v99
  %706 = vmatmul.mubr.f32.gmra.mrb[0].mxu0 %v98
  %v707 = vpop.f32.mrb[0].mxu0
  %v708 = vadd.f32 %v579, %v707
  %v709 = vpop.f32.mrb[0].mxu0
  %710 = vmatprep.mubr.f32.mxu0 %v106
  %711 = vmatmul.mubr.f32.gmra.mrb[0].mxu0 %v105
  %v712 = vpop.f32.mrb[0].mxu0
  %v713 = vadd.f32 %v579, %v712
  %v714 = vpop.f32.mrb[0].mxu0
  %715 = vmatprep.mubr.f32.mxu0 %v113
  %716 = vmatmul.mubr.f32.gmra.mrb[0].mxu0 %v112
  %v717 = vpop.f32.mrb[0].mxu0
  %v718 = vadd.f32 %v579, %v717
  %v719 = vpop.f32.mrb[0].mxu0
  %720 = vmatprep.mubr.f32.mxu0 %v120
  %721 = vmatmul.mubr.f32.gmra.mrb[0].mxu0 %v119
  %v722 = vpop.f32.mrb[0].mxu0
  %v723 = vadd.f32 %v579, %v722
  %v724 = vpop.f32.mrb[0].mxu0
  %725 = vmatprep.mubr.f32.mxu0 %v127
  %726 = vmatmul.mubr.f32.gmra.mrb[0].mxu0 %v126
  %v727 = vpop.f32.mrb[0].mxu0
  %v728 = vadd.f32 %v579, %v727
  %v729 = vpop.f32.mrb[0].mxu0
  %730 = vmatprep.mubr.f32.mxu0 %v134
  %731 = vmatmul.mubr.f32.gmra.mrb[0].mxu0 %v133
  %v732 = vpop.f32.mrb[0].mxu0
  %v733 = vadd.f32 %v579, %v732
  %v734 = vpop.f32.mrb[0].mxu0
  %735 = vmatprep.mubr.f32.mxu0 %v141
  %736 = vmatmul.mubr.f32.gmra.mrb[0].mxu0 %v140
  %v737 = vpop.f32.mrb[0].mxu0
  %v738 = vadd.f32 %v579, %v737
  %v739 = vpop.f32.mrb[0].mxu0
  %740 = vmatprep.mubr.f32.mxu0 %v148
  %741 = vmatmul.mubr.f32.gmra.mrb[0].mxu0 %v147
  %v742 = vpop.f32.mrb[0].mxu0
  %v743 = vadd.f32 %v579, %v742
  %v744 = vpop.f32.mrb[0].mxu0
  %745 = vmatprep.mubr.f32.mxu0 %v155
  %746 = vmatmul.mubr.f32.gmra.mrb[0].mxu0 %v154
  %v747 = vpop.f32.mrb[0].mxu0
  %v748 = vadd.f32 %v579, %v747
  %v749 = vpop.f32.mrb[0].mxu0
  %750 = vmatprep.mubr.f32.mxu0 %v162
  %751 = vmatmul.mubr.f32.gmra.mrb[0].mxu0 %v161
  %v752 = vpop.f32.mrb[0].mxu0
  %v753 = vadd.f32 %v579, %v752
  %v754 = vpop.f32.mrb[0].mxu0
  %755 = vmatprep.mubr.f32.mxu0 %v169
  %756 = vmatmul.mubr.f32.gmra.mrb[0].mxu0 %v168
  %v757 = vpop.f32.mrb[0].mxu0
  %v758 = vadd.f32 %v579, %v757
  %v759 = vpop.f32.mrb[0].mxu0
  %760 = vmatprep.mubr.f32.mxu0 %v176
  %761 = vmatmul.mubr.f32.gmra.mrb[0].mxu0 %v175
  %v762 = vpop.f32.mrb[0].mxu0
  %v763 = vadd.f32 %v579, %v762
  %v764 = vpop.f32.mrb[0].mxu0
  %765 = vmatprep.mubr.f32.mxu0 %v183
  %766 = vmatmul.mubr.f32.gmra.mrb[0].mxu0 %v182
  %v767 = vpop.f32.mrb[0].mxu0
  %v768 = vadd.f32 %v579, %v767
  %v769 = vpop.f32.mrb[0].mxu0
  %770 = vmatprep.mubr.f32.mxu0 %v190
  %771 = vmatmul.mubr.f32.gmra.mrb[0].mxu0 %v189
  %v772 = vpop.f32.mrb[0].mxu0
  %v773 = vadd.f32 %v579, %v772
  %v774 = vpop.f32.mrb[0].mxu0
  %775 = vmatprep.mubr.f32.mxu0 %v197
  %776 = vmatmul.mubr.f32.gmra.mrb[0].mxu0 %v196
  %v777 = vpop.f32.mrb[0].mxu0
  %v778 = vadd.f32 %v579, %v777
  %v779 = vpop.f32.mrb[0].mxu0
  %780 = vmatprep.mubr.f32.mxu0 %v204
  %781 = vmatmul.mubr.f32.gmra.mrb[0].mxu0 %v203
  %v782 = vpop.f32.mrb[0].mxu0
  %v783 = vadd.f32 %v579, %v782
  %v784 = vpop.f32.mrb[0].mxu0
  %785 = vmatprep.mubr.f32.mxu0 %v211
  %786 = vmatmul.mubr.f32.gmra.mrb[0].mxu0 %v210
  %v787 = vpop.f32.mrb[0].mxu0
  %v788 = vadd.f32 %v579, %v787
  %v789 = vpop.f32.mrb[0].mxu0
  %790 = vmatprep.mubr.f32.mxu0 %v218
  %791 = vmatmul.mubr.f32.gmra.mrb[0].mxu0 %v217
  %v792 = vpop.f32.mrb[0].mxu0
  %v793 = vadd.f32 %v579, %v792
  %v794 = vpop.f32.mrb[0].mxu0
  %795 = vmatprep.mubr.f32.mxu0 %v225
  %796 = vmatmul.mubr.f32.gmra.mrb[0].mxu0 %v224
  %v797 = vpop.f32.mrb[0].mxu0
  %v798 = vadd.f32 %v579, %v797
  %v799 = vpop.f32.mrb[0].mxu0
  %800 = vmatprep.mubr.f32.mxu0 %v232
  %801 = vmatmul.mubr.f32.gmra.mrb[0].mxu0 %v231
  %v802 = vpop.f32.mrb[0].mxu0
  %v803 = vadd.f32 %v579, %v802
  %v804 = vpop.f32.mrb[0].mxu0
  %805 = vmatprep.mubr.f32.mxu0 %v239
  %806 = vmatmul.mubr.f32.gmra.mrb[0].mxu0 %v238
  %v807 = vpop.f32.mrb[0].mxu0
  %v808 = vadd.f32 %v579, %v807
  %v809 = vpop.f32.mrb[0].mxu0
  %810 = vmatprep.mubr.f32.mxu0 %v246
  %811 = vmatmul.mubr.f32.gmra.mrb[0].mxu0 %v245
  %v812 = vpop.f32.mrb[0].mxu0
  %v813 = vadd.f32 %v579, %v812
  %v814 = vpop.f32.mrb[0].mxu0
  %815 = vmatprep.mubr.f32.mxu0 %v253
  %816 = vmatmul.mubr.f32.gmra.mrb[0].mxu0 %v252
  %v817 = vpop.f32.mrb[0].mxu0
  %v818 = vadd.f32 %v579, %v817
  %v819 = vpop.f32.mrb[0].mxu0
  %820 = vmatprep.mubr.f32.mxu0 %v260
  %821 = vmatmul.mubr.f32.gmra.mrb[0].mxu0 %v259
  %v822 = vpop.f32.mrb[0].mxu0
  %v823 = vadd.f32 %v579, %v822
  %v824 = vpop.f32.mrb[0].mxu0
  %825 = vmatprep.mubr.f32.mxu0 %v267
  %826 = vmatmul.mubr.f32.gmra.mrb[0].mxu0 %v266
  %v827 = vpop.f32.mrb[0].mxu0
  %v828 = vadd.f32 %v579, %v827
  %v829 = vpop.f32.mrb[0].mxu0
  %830 = vmatprep.mubr.f32.mxu0 %v274
  %831 = vmatmul.mubr.f32.gmra.mrb[0].mxu0 %v273
  %v832 = vpop.f32.mrb[0].mxu0
  %v833 = vadd.f32 %v579, %v832
  %v834 = vpop.f32.mrb[0].mxu0
  %835 = vmatprep.mubr.f32.mxu0 %v281
  %836 = vmatmul.mubr.f32.gmra.mrb[0].mxu0 %v280
  %v837 = vpop.f32.mrb[0].mxu0
  %v838 = vadd.f32 %v579, %v837
  %v839 = vpop.f32.mrb[0].mxu0
  %840 = vmatprep.mubr.f32.mxu0 %v288
  %841 = vmatmul.mubr.f32.gmra.mrb[0].mxu0 %v287
  %v842 = vpop.f32.mrb[0].mxu0
  %v843 = vadd.f32 %v579, %v842
  %v844 = vpop.f32.mrb[0].mxu0
  %845 = vmatprep.mubr.f32.mxu0 %v295
  %846 = vmatmul.mubr.f32.gmra.mrb[0].mxu0 %v294
  %v847 = vpop.f32.mrb[0].mxu0
  %v848 = vadd.f32 %v579, %v847
  %v849 = vpop.f32.mrb[0].mxu0
  %850 = vmatprep.mubr.f32.mxu0 %v302
  %851 = vmatmul.mubr.f32.gmra.mrb[0].mxu0 %v301
  %v852 = vpop.f32.mrb[0].mxu0
  %v853 = vadd.f32 %v579, %v852
  %v854 = vpop.f32.mrb[0].mxu0
  %855 = vmatprep.mubr.f32.mxu0 %v309
  %856 = vmatmul.mubr.f32.gmra.mrb[0].mxu0 %v308
  %v857 = vpop.f32.mrb[0].mxu0
  %v858 = vadd.f32 %v579, %v857
  %v859 = vpop.f32.mrb[0].mxu0
  %860 = vmatprep.mubr.f32.mxu0 %v316
  %861 = vmatmul.mubr.f32.gmra.mrb[0].mxu0 %v315
  %v862 = vpop.f32.mrb[0].mxu0
  %v863 = vadd.f32 %v579, %v862
  %v864 = vpop.f32.mrb[0].mxu0
  %865 = vmatprep.mubr.f32.mxu0 %v323
  %866 = vmatmul.mubr.f32.gmra.mrb[0].mxu0 %v322
  %v867 = vpop.f32.mrb[0].mxu0
  %v868 = vadd.f32 %v579, %v867
  %v869 = vpop.f32.mrb[0].mxu0
  %870 = vmatprep.mubr.f32.mxu0 %v330
  %871 = vmatmul.mubr.f32.gmra.mrb[0].mxu0 %v329
  %v872 = vpop.f32.mrb[0].mxu0
  %v873 = vadd.f32 %v579, %v872
  %v874 = vpop.f32.mrb[0].mxu0
  %875 = vmatprep.mubr.f32.mxu0 %v337
  %876 = vmatmul.mubr.f32.gmra.mrb[0].mxu0 %v336
  %v877 = vpop.f32.mrb[0].mxu0
  %v878 = vadd.f32 %v579, %v877
  %v879 = vpop.f32.mrb[0].mxu0
  %880 = vmatprep.mubr.f32.mxu0 %v344
  %881 = vmatmul.mubr.f32.gmra.mrb[0].mxu0 %v343
  %v882 = vpop.f32.mrb[0].mxu0
  %v883 = vadd.f32 %v579, %v882
  %v884 = vpop.f32.mrb[0].mxu0
  %885 = vmatprep.mubr.f32.mxu0 %v351
  %886 = vmatmul.mubr.f32.gmra.mrb[0].mxu0 %v350
  %v887 = vpop.f32.mrb[0].mxu0
  %v888 = vadd.f32 %v579, %v887
  %v889 = vpop.f32.mrb[0].mxu0
  %890 = vmatprep.mubr.f32.mxu0 %v358
  %891 = vmatmul.mubr.f32.gmra.mrb[0].mxu0 %v357
  %v892 = vpop.f32.mrb[0].mxu0
  %v893 = vadd.f32 %v579, %v892
  %v894 = vpop.f32.mrb[0].mxu0
  %895 = vmatprep.mubr.f32.mxu0 %v365
  %896 = vmatmul.mubr.f32.gmra.mrb[0].mxu0 %v364
  %v897 = vpop.f32.mrb[0].mxu0
  %v898 = vadd.f32 %v579, %v897
  %v899 = vpop.f32.mrb[0].mxu0
  %900 = vmatprep.mubr.f32.mxu0 %v372
  %901 = vmatmul.mubr.f32.gmra.mrb[0].mxu0 %v371
  %v902 = vpop.f32.mrb[0].mxu0
  %v903 = vadd.f32 %v579, %v902
  %v904 = vpop.f32.mrb[0].mxu0
  %905 = vmatprep.mubr.f32.mxu0 %v379
  %906 = vmatmul.mubr.f32.gmra.mrb[0].mxu0 %v378
  %v907 = vpop.f32.mrb[0].mxu0
  %v908 = vadd.f32 %v579, %v907
  %v909 = vpop.f32.mrb[0].mxu0
  %910 = vmatprep.mubr.f32.mxu0 %v386
  %911 = vmatmul.mubr.f32.gmra.mrb[0].mxu0 %v385
  %v912 = vpop.f32.mrb[0].mxu0
  %v913 = vadd.f32 %v579, %v912
  %v914 = vpop.f32.mrb[0].mxu0
  %915 = vmatprep.mubr.f32.mxu0 %v393
  %916 = vmatmul.mubr.f32.gmra.mrb[0].mxu0 %v392
  %v917 = vpop.f32.mrb[0].mxu0
  %v918 = vadd.f32 %v579, %v917
  %v919 = vpop.f32.mrb[0].mxu0
  %920 = vmatprep.mubr.f32.mxu0 %v400
  %921 = vmatmul.mubr.f32.gmra.mrb[0].mxu0 %v399
  %v922 = vpop.f32.mrb[0].mxu0
  %v923 = vadd.f32 %v579, %v922
  %v924 = vpop.f32.mrb[0].mxu0
  %925 = vmatprep.mubr.f32.mxu0 %v407
  %926 = vmatmul.mubr.f32.gmra.mrb[0].mxu0 %v406
  %v927 = vpop.f32.mrb[0].mxu0
  %v928 = vadd.f32 %v579, %v927
  %v929 = vpop.f32.mrb[0].mxu0
  %930 = vmatprep.mubr.f32.mxu0 %v414
  %931 = vmatmul.mubr.f32.gmra.mrb[0].mxu0 %v413
  %v932 = vpop.f32.mrb[0].mxu0
  %v933 = vadd.f32 %v579, %v932
  %v934 = vpop.f32.mrb[0].mxu0
  %935 = vmatprep.mubr.f32.mxu0 %v421
  %936 = vmatmul.mubr.f32.gmra.mrb[0].mxu0 %v420
  %v937 = vpop.f32.mrb[0].mxu0
  %v938 = vadd.f32 %v579, %v937
  %v939 = vpop.f32.mrb[0].mxu0
  %940 = vmatprep.mubr.f32.mxu0 %v428
  %941 = vmatmul.mubr.f32.gmra.mrb[0].mxu0 %v427
  %v942 = vpop.f32.mrb[0].mxu0
  %v943 = vadd.f32 %v579, %v942
  %v944 = vpop.f32.mrb[0].mxu0
  %945 = vmatprep.mubr.f32.mxu0 %v435
  %946 = vmatmul.mubr.f32.gmra.mrb[0].mxu0 %v434
  %v947 = vpop.f32.mrb[0].mxu0
  %v948 = vadd.f32 %v579, %v947
  %v949 = vpop.f32.mrb[0].mxu0
  %950 = vmatprep.mubr.f32.mxu0 %v442
  %951 = vmatmul.mubr.f32.gmra.mrb[0].mxu0 %v441
  %v952 = vpop.f32.mrb[0].mxu0
  %v953 = vadd.f32 %v579, %v952
  %v954 = vpop.f32.mrb[0].mxu0
  %955 = vmatprep.mubr.f32.mxu0 %v449
  %956 = vmatmul.mubr.f32.gmra.mrb[0].mxu0 %v448
  %v957 = vpop.f32.mrb[0].mxu0
  %v958 = vadd.f32 %v579, %v957
  %v959 = vpop.f32.mrb[0].mxu0
  %960 = vmatprep.mubr.f32.mxu0 %v456
  %961 = vmatmul.mubr.f32.gmra.mrb[0].mxu0 %v455
  %v962 = vpop.f32.mrb[0].mxu0
  %v963 = vadd.f32 %v579, %v962
  %v964 = vpop.f32.mrb[0].mxu0
  %965 = vdwg.mxu0
  %966 = vmatprep.subr.mxu0 0.0
  %967 = vmatpush1.msra.mxu0 %v494
  %968 = vmatprep.subr.mxu0 0.0
  %969 = vmatpush1.msra.mxu0 %v495
  %970 = vmatprep.subr.mxu0 0.0
  %971 = vmatpush1.msra.mxu0 %v496
  %972 = vmatprep.subr.mxu0 0.0
  %973 = vmatpush1.msra.mxu0 %v497
  %974 = vmatprep.subr.mxu0 0.0
  %975 = vmatpush1.msra.mxu0 %v498
  %976 = vmatprep.subr.mxu0 0.0
  %977 = vmatpush1.msra.mxu0 %v499
  %978 = vmatprep.subr.mxu0 0.0
  %979 = vmatpush1.msra.mxu0 %v500
  %980 = vmatprep.subr.mxu0 0.0
  %981 = vmatpush1.msra.mxu0 %v501
  %982 = vmatprep.subr.mxu0 0.0
  %983 = vmatpush1.msra.mxu0 %v502
  %984 = vmatprep.subr.mxu0 0.0
  %985 = vmatpush1.msra.mxu0 %v503
  %986 = vmatprep.subr.mxu0 0.0
  %987 = vmatpush1.msra.mxu0 %v504
  %988 = vmatprep.subr.mxu0 0.0
  %989 = vmatpush1.msra.mxu0 %v505
  %990 = vmatprep.subr.mxu0 0.0
  %991 = vmatpush1.msra.mxu0 %v506
  %992 = vmatprep.subr.mxu0 0.0
  %993 = vmatpush1.msra.mxu0 %v507
  %994 = vmatprep.subr.mxu0 0.0
  %995 = vmatpush1.msra.mxu0 %v508
  %996 = vmatprep.subr.mxu0 0.0
  %997 = vmatpush1.msra.mxu0 %v509
  %998 = vmatprep.subr.mxu0 0.0
  %999 = vmatpush1.msra.mxu0 %v510
  %1000 = vmatprep.subr.mxu0 0.0
  %1001 = vmatpush1.msra.mxu0 %v511
  %1002 = vmatprep.subr.mxu0 0.0
  %1003 = vmatpush1.msra.mxu0 %v512
  %1004 = vmatprep.subr.mxu0 0.0
  %1005 = vmatpush1.msra.mxu0 %v513
  %1006 = vmatprep.subr.mxu0 0.0
  %1007 = vmatpush1.msra.mxu0 %v514
  %1008 = vmatprep.subr.mxu0 0.0
  %1009 = vmatpush1.msra.mxu0 %v515
  %1010 = vmatprep.subr.mxu0 0.0
  %1011 = vmatpush1.msra.mxu0 %v516
  %1012 = vmatprep.subr.mxu0 0.0
  %1013 = vmatpush1.msra.mxu0 %v517
  %1014 = vmatprep.subr.mxu0 0.0
  %1015 = vmatpush1.msra.mxu0 %v518
  %1016 = vmatprep.subr.mxu0 0.0
  %1017 = vmatpush1.msra.mxu0 %v519
  %1018 = vmatprep.subr.mxu0 0.0
  %1019 = vmatpush1.msra.mxu0 %v520
  %1020 = vmatprep.subr.mxu0 0.0
  %1021 = vmatpush1.msra.mxu0 %v521
  %1022 = vmatprep.subr.mxu0 0.0
  %1023 = vmatpush1.msra.mxu0 %v522
  %1024 = vmatprep.subr.mxu0 0.0
  %1025 = vmatpush1.msra.mxu0 %v523
  %1026 = vmatprep.subr.mxu0 0.0
  %1027 = vmatpush1.msra.mxu0 %v524
  %1028 = vmatprep.subr.mxu0 0.0
  %1029 = vmatpush1.msra.mxu0 %v525
  %1030 = vmatprep.mubr.f32.mxu0 %v17
  %1031 = vmatmul.mubr.f32.gmra.mrb[0].mxu0 %v16
  %v1032 = vpop.f32.mrb[0].mxu0
  %v1033 = vadd.f32 %v648, %v1032
  %v1034 = vpop.f32.mrb[0].mxu0
  %1035 = vmatprep.mubr.f32.mxu0 %v24
  %1036 = vmatmul.mubr.f32.gmra.mrb[0].mxu0 %v23
  %v1037 = vpop.f32.mrb[0].mxu0
  %v1038 = vadd.f32 %v653, %v1037
  %v1039 = vpop.f32.mrb[0].mxu0
  %1040 = vmatprep.mubr.f32.mxu0 %v31
  %1041 = vmatmul.mubr.f32.gmra.mrb[0].mxu0 %v30
  %v1042 = vpop.f32.mrb[0].mxu0
  %v1043 = vadd.f32 %v658, %v1042
  %v1044 = vpop.f32.mrb[0].mxu0
  %1045 = vmatprep.mubr.f32.mxu0 %v38
  %1046 = vmatmul.mubr.f32.gmra.mrb[0].mxu0 %v37
  %v1047 = vpop.f32.mrb[0].mxu0
  %v1048 = vadd.f32 %v663, %v1047
  %v1049 = vpop.f32.mrb[0].mxu0
  %1050 = vmatprep.mubr.f32.mxu0 %v45
  %1051 = vmatmul.mubr.f32.gmra.mrb[0].mxu0 %v44
  %v1052 = vpop.f32.mrb[0].mxu0
  %v1053 = vadd.f32 %v668, %v1052
  %v1054 = vpop.f32.mrb[0].mxu0
  %1055 = vmatprep.mubr.f32.mxu0 %v52
  %1056 = vmatmul.mubr.f32.gmra.mrb[0].mxu0 %v51
  %v1057 = vpop.f32.mrb[0].mxu0
  %v1058 = vadd.f32 %v673, %v1057
  %v1059 = vpop.f32.mrb[0].mxu0
  %1060 = vmatprep.mubr.f32.mxu0 %v59
  %1061 = vmatmul.mubr.f32.gmra.mrb[0].mxu0 %v58
  %v1062 = vpop.f32.mrb[0].mxu0
  %v1063 = vadd.f32 %v678, %v1062
  %v1064 = vpop.f32.mrb[0].mxu0
  %1065 = vmatprep.mubr.f32.mxu0 %v66
  %1066 = vmatmul.mubr.f32.gmra.mrb[0].mxu0 %v65
  %v1067 = vpop.f32.mrb[0].mxu0
  %v1068 = vadd.f32 %v683, %v1067
  %v1069 = vpop.f32.mrb[0].mxu0
  %1070 = vmatprep.mubr.f32.mxu0 %v73
  %1071 = vmatmul.mubr.f32.gmra.mrb[0].mxu0 %v72
  %v1072 = vpop.f32.mrb[0].mxu0
  %v1073 = vadd.f32 %v688, %v1072
  %v1074 = vpop.f32.mrb[0].mxu0
  %1075 = vmatprep.mubr.f32.mxu0 %v80
  %1076 = vmatmul.mubr.f32.gmra.mrb[0].mxu0 %v79
  %v1077 = vpop.f32.mrb[0].mxu0
  %v1078 = vadd.f32 %v693, %v1077
  %v1079 = vpop.f32.mrb[0].mxu0
  %1080 = vmatprep.mubr.f32.mxu0 %v87
  %1081 = vmatmul.mubr.f32.gmra.mrb[0].mxu0 %v86
  %v1082 = vpop.f32.mrb[0].mxu0
  %v1083 = vadd.f32 %v698, %v1082
  %v1084 = vpop.f32.mrb[0].mxu0
  %1085 = vmatprep.mubr.f32.mxu0 %v94
  %1086 = vmatmul.mubr.f32.gmra.mrb[0].mxu0 %v93
  %v1087 = vpop.f32.mrb[0].mxu0
  %v1088 = vadd.f32 %v703, %v1087
  %v1089 = vpop.f32.mrb[0].mxu0
  %1090 = vmatprep.mubr.f32.mxu0 %v101
  %1091 = vmatmul.mubr.f32.gmra.mrb[0].mxu0 %v100
  %v1092 = vpop.f32.mrb[0].mxu0
  %v1093 = vadd.f32 %v708, %v1092
  %v1094 = vpop.f32.mrb[0].mxu0
  %1095 = vmatprep.mubr.f32.mxu0 %v108
  %1096 = vmatmul.mubr.f32.gmra.mrb[0].mxu0 %v107
  %v1097 = vpop.f32.mrb[0].mxu0
  %v1098 = vadd.f32 %v713, %v1097
  %v1099 = vpop.f32.mrb[0].mxu0
  %1100 = vmatprep.mubr.f32.mxu0 %v115
  %1101 = vmatmul.mubr.f32.gmra.mrb[0].mxu0 %v114
  %v1102 = vpop.f32.mrb[0].mxu0
  %v1103 = vadd.f32 %v718, %v1102
  %v1104 = vpop.f32.mrb[0].mxu0
  %1105 = vmatprep.mubr.f32.mxu0 %v122
  %1106 = vmatmul.mubr.f32.gmra.mrb[0].mxu0 %v121
  %v1107 = vpop.f32.mrb[0].mxu0
  %v1108 = vadd.f32 %v723, %v1107
  %v1109 = vpop.f32.mrb[0].mxu0
  %1110 = vmatprep.mubr.f32.mxu0 %v129
  %1111 = vmatmul.mubr.f32.gmra.mrb[0].mxu0 %v128
  %v1112 = vpop.f32.mrb[0].mxu0
  %v1113 = vadd.f32 %v728, %v1112
  %v1114 = vpop.f32.mrb[0].mxu0
  %1115 = vmatprep.mubr.f32.mxu0 %v136
  %1116 = vmatmul.mubr.f32.gmra.mrb[0].mxu0 %v135
  %v1117 = vpop.f32.mrb[0].mxu0
  %v1118 = vadd.f32 %v733, %v1117
  %v1119 = vpop.f32.mrb[0].mxu0
  %1120 = vmatprep.mubr.f32.mxu0 %v143
  %1121 = vmatmul.mubr.f32.gmra.mrb[0].mxu0 %v142
  %v1122 = vpop.f32.mrb[0].mxu0
  %v1123 = vadd.f32 %v738, %v1122
  %v1124 = vpop.f32.mrb[0].mxu0
  %1125 = vmatprep.mubr.f32.mxu0 %v150
  %1126 = vmatmul.mubr.f32.gmra.mrb[0].mxu0 %v149
  %v1127 = vpop.f32.mrb[0].mxu0
  %v1128 = vadd.f32 %v743, %v1127
  %v1129 = vpop.f32.mrb[0].mxu0
  %1130 = vmatprep.mubr.f32.mxu0 %v157
  %1131 = vmatmul.mubr.f32.gmra.mrb[0].mxu0 %v156
  %v1132 = vpop.f32.mrb[0].mxu0
  %v1133 = vadd.f32 %v748, %v1132
  %v1134 = vpop.f32.mrb[0].mxu0
  %1135 = vmatprep.mubr.f32.mxu0 %v164
  %1136 = vmatmul.mubr.f32.gmra.mrb[0].mxu0 %v163
  %v1137 = vpop.f32.mrb[0].mxu0
  %v1138 = vadd.f32 %v753, %v1137
  %v1139 = vpop.f32.mrb[0].mxu0
  %1140 = vmatprep.mubr.f32.mxu0 %v171
  %1141 = vmatmul.mubr.f32.gmra.mrb[0].mxu0 %v170
  %v1142 = vpop.f32.mrb[0].mxu0
  %v1143 = vadd.f32 %v758, %v1142
  %v1144 = vpop.f32.mrb[0].mxu0
  %1145 = vmatprep.mubr.f32.mxu0 %v178
  %1146 = vmatmul.mubr.f32.gmra.mrb[0].mxu0 %v177
  %v1147 = vpop.f32.mrb[0].mxu0
  %v1148 = vadd.f32 %v763, %v1147
  %v1149 = vpop.f32.mrb[0].mxu0
  %1150 = vmatprep.mubr.f32.mxu0 %v185
  %1151 = vmatmul.mubr.f32.gmra.mrb[0].mxu0 %v184
  %v1152 = vpop.f32.mrb[0].mxu0
  %v1153 = vadd.f32 %v768, %v1152
  %v1154 = vpop.f32.mrb[0].mxu0
  %1155 = vmatprep.mubr.f32.mxu0 %v192
  %1156 = vmatmul.mubr.f32.gmra.mrb[0].mxu0 %v191
  %v1157 = vpop.f32.mrb[0].mxu0
  %v1158 = vadd.f32 %v773, %v1157
  %v1159 = vpop.f32.mrb[0].mxu0
  %1160 = vmatprep.mubr.f32.mxu0 %v199
  %1161 = vmatmul.mubr.f32.gmra.mrb[0].mxu0 %v198
  %v1162 = vpop.f32.mrb[0].mxu0
  %v1163 = vadd.f32 %v778, %v1162
  %v1164 = vpop.f32.mrb[0].mxu0
  %1165 = vmatprep.mubr.f32.mxu0 %v206
  %1166 = vmatmul.mubr.f32.gmra.mrb[0].mxu0 %v205
  %v1167 = vpop.f32.mrb[0].mxu0
  %v1168 = vadd.f32 %v783, %v1167
  %v1169 = vpop.f32.mrb[0].mxu0
  %1170 = vmatprep.mubr.f32.mxu0 %v213
  %1171 = vmatmul.mubr.f32.gmra.mrb[0].mxu0 %v212
  %v1172 = vpop.f32.mrb[0].mxu0
  %v1173 = vadd.f32 %v788, %v1172
  %v1174 = vpop.f32.mrb[0].mxu0
  %1175 = vmatprep.mubr.f32.mxu0 %v220
  %1176 = vmatmul.mubr.f32.gmra.mrb[0].mxu0 %v219
  %v1177 = vpop.f32.mrb[0].mxu0
  %v1178 = vadd.f32 %v793, %v1177
  %v1179 = vpop.f32.mrb[0].mxu0
  %1180 = vmatprep.mubr.f32.mxu0 %v227
  %1181 = vmatmul.mubr.f32.gmra.mrb[0].mxu0 %v226
  %v1182 = vpop.f32.mrb[0].mxu0
  %v1183 = vadd.f32 %v798, %v1182
  %v1184 = vpop.f32.mrb[0].mxu0
  %1185 = vmatprep.mubr.f32.mxu0 %v234
  %1186 = vmatmul.mubr.f32.gmra.mrb[0].mxu0 %v233
  %v1187 = vpop.f32.mrb[0].mxu0
  %v1188 = vadd.f32 %v803, %v1187
  %v1189 = vpop.f32.mrb[0].mxu0
  %1190 = vmatprep.mubr.f32.mxu0 %v241
  %1191 = vmatmul.mubr.f32.gmra.mrb[0].mxu0 %v240
  %v1192 = vpop.f32.mrb[0].mxu0
  %v1193 = vadd.f32 %v808, %v1192
  %v1194 = vpop.f32.mrb[0].mxu0
  %1195 = vmatprep.mubr.f32.mxu0 %v248
  %1196 = vmatmul.mubr.f32.gmra.mrb[0].mxu0 %v247
  %v1197 = vpop.f32.mrb[0].mxu0
  %v1198 = vadd.f32 %v813, %v1197
  %v1199 = vpop.f32.mrb[0].mxu0
  %1200 = vmatprep.mubr.f32.mxu0 %v255
  %1201 = vmatmul.mubr.f32.gmra.mrb[0].mxu0 %v254
  %v1202 = vpop.f32.mrb[0].mxu0
  %v1203 = vadd.f32 %v818, %v1202
  %v1204 = vpop.f32.mrb[0].mxu0
  %1205 = vmatprep.mubr.f32.mxu0 %v262
  %1206 = vmatmul.mubr.f32.gmra.mrb[0].mxu0 %v261
  %v1207 = vpop.f32.mrb[0].mxu0
  %v1208 = vadd.f32 %v823, %v1207
  %v1209 = vpop.f32.mrb[0].mxu0
  %1210 = vmatprep.mubr.f32.mxu0 %v269
  %1211 = vmatmul.mubr.f32.gmra.mrb[0].mxu0 %v268
  %v1212 = vpop.f32.mrb[0].mxu0
  %v1213 = vadd.f32 %v828, %v1212
  %v1214 = vpop.f32.mrb[0].mxu0
  %1215 = vmatprep.mubr.f32.mxu0 %v276
  %1216 = vmatmul.mubr.f32.gmra.mrb[0].mxu0 %v275
  %v1217 = vpop.f32.mrb[0].mxu0
  %v1218 = vadd.f32 %v833, %v1217
  %v1219 = vpop.f32.mrb[0].mxu0
  %1220 = vmatprep.mubr.f32.mxu0 %v283
  %1221 = vmatmul.mubr.f32.gmra.mrb[0].mxu0 %v282
  %v1222 = vpop.f32.mrb[0].mxu0
  %v1223 = vadd.f32 %v838, %v1222
  %v1224 = vpop.f32.mrb[0].mxu0
  %1225 = vmatprep.mubr.f32.mxu0 %v290
  %1226 = vmatmul.mubr.f32.gmra.mrb[0].mxu0 %v289
  %v1227 = vpop.f32.mrb[0].mxu0
  %v1228 = vadd.f32 %v843, %v1227
  %v1229 = vpop.f32.mrb[0].mxu0
  %1230 = vmatprep.mubr.f32.mxu0 %v297
  %1231 = vmatmul.mubr.f32.gmra.mrb[0].mxu0 %v296
  %v1232 = vpop.f32.mrb[0].mxu0
  %v1233 = vadd.f32 %v848, %v1232
  %v1234 = vpop.f32.mrb[0].mxu0
  %1235 = vmatprep.mubr.f32.mxu0 %v304
  %1236 = vmatmul.mubr.f32.gmra.mrb[0].mxu0 %v303
  %v1237 = vpop.f32.mrb[0].mxu0
  %v1238 = vadd.f32 %v853, %v1237
  %v1239 = vpop.f32.mrb[0].mxu0
  %1240 = vmatprep.mubr.f32.mxu0 %v311
  %1241 = vmatmul.mubr.f32.gmra.mrb[0].mxu0 %v310
  %v1242 = vpop.f32.mrb[0].mxu0
  %v1243 = vadd.f32 %v858, %v1242
  %v1244 = vpop.f32.mrb[0].mxu0
  %1245 = vmatprep.mubr.f32.mxu0 %v318
  %1246 = vmatmul.mubr.f32.gmra.mrb[0].mxu0 %v317
  %v1247 = vpop.f32.mrb[0].mxu0
  %v1248 = vadd.f32 %v863, %v1247
  %v1249 = vpop.f32.mrb[0].mxu0
  %1250 = vmatprep.mubr.f32.mxu0 %v325
  %1251 = vmatmul.mubr.f32.gmra.mrb[0].mxu0 %v324
  %v1252 = vpop.f32.mrb[0].mxu0
  %v1253 = vadd.f32 %v868, %v1252
  %v1254 = vpop.f32.mrb[0].mxu0
  %1255 = vmatprep.mubr.f32.mxu0 %v332
  %1256 = vmatmul.mubr.f32.gmra.mrb[0].mxu0 %v331
  %v1257 = vpop.f32.mrb[0].mxu0
  %v1258 = vadd.f32 %v873, %v1257
  %v1259 = vpop.f32.mrb[0].mxu0
  %1260 = vmatprep.mubr.f32.mxu0 %v339
  %1261 = vmatmul.mubr.f32.gmra.mrb[0].mxu0 %v338
  %v1262 = vpop.f32.mrb[0].mxu0
  %v1263 = vadd.f32 %v878, %v1262
  %v1264 = vpop.f32.mrb[0].mxu0
  %1265 = vmatprep.mubr.f32.mxu0 %v346
  %1266 = vmatmul.mubr.f32.gmra.mrb[0].mxu0 %v345
  %v1267 = vpop.f32.mrb[0].mxu0
  %v1268 = vadd.f32 %v883, %v1267
  %v1269 = vpop.f32.mrb[0].mxu0
  %1270 = vmatprep.mubr.f32.mxu0 %v353
  %1271 = vmatmul.mubr.f32.gmra.mrb[0].mxu0 %v352
  %v1272 = vpop.f32.mrb[0].mxu0
  %v1273 = vadd.f32 %v888, %v1272
  %v1274 = vpop.f32.mrb[0].mxu0
  %1275 = vmatprep.mubr.f32.mxu0 %v360
  %1276 = vmatmul.mubr.f32.gmra.mrb[0].mxu0 %v359
  %v1277 = vpop.f32.mrb[0].mxu0
  %v1278 = vadd.f32 %v893, %v1277
  %v1279 = vpop.f32.mrb[0].mxu0
  %1280 = vmatprep.mubr.f32.mxu0 %v367
  %1281 = vmatmul.mubr.f32.gmra.mrb[0].mxu0 %v366
  %v1282 = vpop.f32.mrb[0].mxu0
  %v1283 = vadd.f32 %v898, %v1282
  %v1284 = vpop.f32.mrb[0].mxu0
  %1285 = vmatprep.mubr.f32.mxu0 %v374
  %1286 = vmatmul.mubr.f32.gmra.mrb[0].mxu0 %v373
  %v1287 = vpop.f32.mrb[0].mxu0
  %v1288 = vadd.f32 %v903, %v1287
  %v1289 = vpop.f32.mrb[0].mxu0
  %1290 = vmatprep.mubr.f32.mxu0 %v381
  %1291 = vmatmul.mubr.f32.gmra.mrb[0].mxu0 %v380
  %v1292 = vpop.f32.mrb[0].mxu0
  %v1293 = vadd.f32 %v908, %v1292
  %v1294 = vpop.f32.mrb[0].mxu0
  %1295 = vmatprep.mubr.f32.mxu0 %v388
  %1296 = vmatmul.mubr.f32.gmra.mrb[0].mxu0 %v387
  %v1297 = vpop.f32.mrb[0].mxu0
  %v1298 = vadd.f32 %v913, %v1297
  %v1299 = vpop.f32.mrb[0].mxu0
  %1300 = vmatprep.mubr.f32.mxu0 %v395
  %1301 = vmatmul.mubr.f32.gmra.mrb[0].mxu0 %v394
  %v1302 = vpop.f32.mrb[0].mxu0
  %v1303 = vadd.f32 %v918, %v1302
  %v1304 = vpop.f32.mrb[0].mxu0
  %1305 = vmatprep.mubr.f32.mxu0 %v402
  %1306 = vmatmul.mubr.f32.gmra.mrb[0].mxu0 %v401
  %v1307 = vpop.f32.mrb[0].mxu0
  %v1308 = vadd.f32 %v923, %v1307
  %v1309 = vpop.f32.mrb[0].mxu0
  %1310 = vmatprep.mubr.f32.mxu0 %v409
  %1311 = vmatmul.mubr.f32.gmra.mrb[0].mxu0 %v408
  %v1312 = vpop.f32.mrb[0].mxu0
  %v1313 = vadd.f32 %v928, %v1312
  %v1314 = vpop.f32.mrb[0].mxu0
  %1315 = vmatprep.mubr.f32.mxu0 %v416
  %1316 = vmatmul.mubr.f32.gmra.mrb[0].mxu0 %v415
  %v1317 = vpop.f32.mrb[0].mxu0
  %v1318 = vadd.f32 %v933, %v1317
  %v1319 = vpop.f32.mrb[0].mxu0
  %1320 = vmatprep.mubr.f32.mxu0 %v423
  %1321 = vmatmul.mubr.f32.gmra.mrb[0].mxu0 %v422
  %v1322 = vpop.f32.mrb[0].mxu0
  %v1323 = vadd.f32 %v938, %v1322
  %v1324 = vpop.f32.mrb[0].mxu0
  %1325 = vmatprep.mubr.f32.mxu0 %v430
  %1326 = vmatmul.mubr.f32.gmra.mrb[0].mxu0 %v429
  %v1327 = vpop.f32.mrb[0].mxu0
  %v1328 = vadd.f32 %v943, %v1327
  %v1329 = vpop.f32.mrb[0].mxu0
  %1330 = vmatprep.mubr.f32.mxu0 %v437
  %1331 = vmatmul.mubr.f32.gmra.mrb[0].mxu0 %v436
  %v1332 = vpop.f32.mrb[0].mxu0
  %v1333 = vadd.f32 %v948, %v1332
  %v1334 = vpop.f32.mrb[0].mxu0
  %1335 = vmatprep.mubr.f32.mxu0 %v444
  %1336 = vmatmul.mubr.f32.gmra.mrb[0].mxu0 %v443
  %v1337 = vpop.f32.mrb[0].mxu0
  %v1338 = vadd.f32 %v953, %v1337
  %v1339 = vpop.f32.mrb[0].mxu0
  %1340 = vmatprep.mubr.f32.mxu0 %v451
  %1341 = vmatmul.mubr.f32.gmra.mrb[0].mxu0 %v450
  %v1342 = vpop.f32.mrb[0].mxu0
  %v1343 = vadd.f32 %v958, %v1342
  %v1344 = vpop.f32.mrb[0].mxu0
  %1345 = vmatprep.mubr.f32.mxu0 %v458
  %1346 = vmatmul.mubr.f32.gmra.mrb[0].mxu0 %v457
  %v1347 = vpop.f32.mrb[0].mxu0
  %v1348 = vadd.f32 %v963, %v1347
  %v1349 = vpop.f32.mrb[0].mxu0
  %1350 = vdwg.mxu0
  %1351 = vmatprep.subr.mxu0 0.0
  %1352 = vmatpush1.msra.mxu0 %v526
  %1353 = vmatprep.subr.mxu0 0.0
  %1354 = vmatpush1.msra.mxu0 %v527
  %1355 = vmatprep.subr.mxu0 0.0
  %1356 = vmatpush1.msra.mxu0 %v528
  %1357 = vmatprep.subr.mxu0 0.0
  %1358 = vmatpush1.msra.mxu0 %v529
  %1359 = vmatprep.subr.mxu0 0.0
  %1360 = vmatpush1.msra.mxu0 %v530
  %1361 = vmatprep.subr.mxu0 0.0
  %1362 = vmatpush1.msra.mxu0 %v531
  %1363 = vmatprep.subr.mxu0 0.0
  %1364 = vmatpush1.msra.mxu0 %v532
  %1365 = vmatprep.subr.mxu0 0.0
  %1366 = vmatpush1.msra.mxu0 %v533
  %1367 = vmatprep.subr.mxu0 0.0
  %1368 = vmatpush1.msra.mxu0 %v534
  %1369 = vmatprep.subr.mxu0 0.0
  %1370 = vmatpush1.msra.mxu0 %v535
  %1371 = vmatprep.subr.mxu0 0.0
  %1372 = vmatpush1.msra.mxu0 %v536
  %1373 = vmatprep.subr.mxu0 0.0
  %1374 = vmatpush1.msra.mxu0 %v537
  %1375 = vmatprep.subr.mxu0 0.0
  %1376 = vmatpush1.msra.mxu0 %v538
  %1377 = vmatprep.subr.mxu0 0.0
  %1378 = vmatpush1.msra.mxu0 %v539
  %1379 = vmatprep.subr.mxu0 0.0
  %1380 = vmatpush1.msra.mxu0 %v540
  %1381 = vmatprep.subr.mxu0 0.0
  %1382 = vmatpush1.msra.mxu0 %v541
  %1383 = vmatprep.subr.mxu0 0.0
  %1384 = vmatpush1.msra.mxu0 %v542
  %1385 = vmatprep.subr.mxu0 0.0
  %1386 = vmatpush1.msra.mxu0 %v543
  %1387 = vmatprep.subr.mxu0 0.0
  %1388 = vmatpush1.msra.mxu0 %v544
  %1389 = vmatprep.subr.mxu0 0.0
  %1390 = vmatpush1.msra.mxu0 %v545
  %1391 = vmatprep.subr.mxu0 0.0
  %1392 = vmatpush1.msra.mxu0 %v546
  %1393 = vmatprep.subr.mxu0 0.0
  %1394 = vmatpush1.msra.mxu0 %v547
  %1395 = vmatprep.subr.mxu0 0.0
  %1396 = vmatpush1.msra.mxu0 %v548
  %1397 = vmatprep.subr.mxu0 0.0
  %1398 = vmatpush1.msra.mxu0 %v549
  %1399 = vmatprep.subr.mxu0 0.0
  %1400 = vmatpush1.msra.mxu0 %v550
  %1401 = vmatprep.subr.mxu0 0.0
  %1402 = vmatpush1.msra.mxu0 %v551
  %1403 = vmatprep.subr.mxu0 0.0
  %1404 = vmatpush1.msra.mxu0 %v552
  %1405 = vmatprep.subr.mxu0 0.0
  %1406 = vmatpush1.msra.mxu0 %v553
  %1407 = vmatprep.subr.mxu0 0.0
  %1408 = vmatpush1.msra.mxu0 %v554
  %1409 = vmatprep.subr.mxu0 0.0
  %1410 = vmatpush1.msra.mxu0 %v555
  %1411 = vmatprep.subr.mxu0 0.0
  %1412 = vmatpush1.msra.mxu0 %v556
  %1413 = vmatprep.subr.mxu0 0.0
  %1414 = vmatpush1.msra.mxu0 %v557
  %1415 = vmatprep.mubr.f32.mxu0 %v19
  %1416 = vmatmul.mubr.f32.gmra.mrb[0].mxu0 %v18
  %v1417 = vpop.f32.mrb[0].mxu0
  %v1418 = vadd.f32 %v1033, %v1417
  %v1419 = vpop.f32.mrb[0].mxu0
  %1420 = vmatprep.mubr.f32.mxu0 %v26
  %1421 = vmatmul.mubr.f32.gmra.mrb[0].mxu0 %v25
  %v1422 = vpop.f32.mrb[0].mxu0
  %v1423 = vadd.f32 %v1038, %v1422
  %v1424 = vpop.f32.mrb[0].mxu0
  %1425 = vmatprep.mubr.f32.mxu0 %v33
  %1426 = vmatmul.mubr.f32.gmra.mrb[0].mxu0 %v32
  %v1427 = vpop.f32.mrb[0].mxu0
  %v1428 = vadd.f32 %v1043, %v1427
  %v1429 = vpop.f32.mrb[0].mxu0
  %1430 = vmatprep.mubr.f32.mxu0 %v40
  %1431 = vmatmul.mubr.f32.gmra.mrb[0].mxu0 %v39
  %v1432 = vpop.f32.mrb[0].mxu0
  %v1433 = vadd.f32 %v1048, %v1432
  %v1434 = vpop.f32.mrb[0].mxu0
  %1435 = vmatprep.mubr.f32.mxu0 %v47
  %1436 = vmatmul.mubr.f32.gmra.mrb[0].mxu0 %v46
  %v1437 = vpop.f32.mrb[0].mxu0
  %v1438 = vadd.f32 %v1053, %v1437
  %v1439 = vpop.f32.mrb[0].mxu0
  %1440 = vmatprep.mubr.f32.mxu0 %v54
  %1441 = vmatmul.mubr.f32.gmra.mrb[0].mxu0 %v53
  %v1442 = vpop.f32.mrb[0].mxu0
  %v1443 = vadd.f32 %v1058, %v1442
  %v1444 = vpop.f32.mrb[0].mxu0
  %1445 = vmatprep.mubr.f32.mxu0 %v61
  %1446 = vmatmul.mubr.f32.gmra.mrb[0].mxu0 %v60
  %v1447 = vpop.f32.mrb[0].mxu0
  %v1448 = vadd.f32 %v1063, %v1447
  %v1449 = vpop.f32.mrb[0].mxu0
  %1450 = vmatprep.mubr.f32.mxu0 %v68
  %1451 = vmatmul.mubr.f32.gmra.mrb[0].mxu0 %v67
  %v1452 = vpop.f32.mrb[0].mxu0
  %v1453 = vadd.f32 %v1068, %v1452
  %v1454 = vpop.f32.mrb[0].mxu0
  %1455 = vmatprep.mubr.f32.mxu0 %v75
  %1456 = vmatmul.mubr.f32.gmra.mrb[0].mxu0 %v74
  %v1457 = vpop.f32.mrb[0].mxu0
  %v1458 = vadd.f32 %v1073, %v1457
  %v1459 = vpop.f32.mrb[0].mxu0
  %1460 = vmatprep.mubr.f32.mxu0 %v82
  %1461 = vmatmul.mubr.f32.gmra.mrb[0].mxu0 %v81
  %v1462 = vpop.f32.mrb[0].mxu0
  %v1463 = vadd.f32 %v1078, %v1462
  %v1464 = vpop.f32.mrb[0].mxu0
  %1465 = vmatprep.mubr.f32.mxu0 %v89
  %1466 = vmatmul.mubr.f32.gmra.mrb[0].mxu0 %v88
  %v1467 = vpop.f32.mrb[0].mxu0
  %v1468 = vadd.f32 %v1083, %v1467
  %v1469 = vpop.f32.mrb[0].mxu0
  %1470 = vmatprep.mubr.f32.mxu0 %v96
  %1471 = vmatmul.mubr.f32.gmra.mrb[0].mxu0 %v95
  %v1472 = vpop.f32.mrb[0].mxu0
  %v1473 = vadd.f32 %v1088, %v1472
  %v1474 = vpop.f32.mrb[0].mxu0
  %1475 = vmatprep.mubr.f32.mxu0 %v103
  %1476 = vmatmul.mubr.f32.gmra.mrb[0].mxu0 %v102
  %v1477 = vpop.f32.mrb[0].mxu0
  %v1478 = vadd.f32 %v1093, %v1477
  %v1479 = vpop.f32.mrb[0].mxu0
  %1480 = vmatprep.mubr.f32.mxu0 %v110
  %1481 = vmatmul.mubr.f32.gmra.mrb[0].mxu0 %v109
  %v1482 = vpop.f32.mrb[0].mxu0
  %v1483 = vadd.f32 %v1098, %v1482
  %v1484 = vpop.f32.mrb[0].mxu0
  %1485 = vmatprep.mubr.f32.mxu0 %v117
  %1486 = vmatmul.mubr.f32.gmra.mrb[0].mxu0 %v116
  %v1487 = vpop.f32.mrb[0].mxu0
  %v1488 = vadd.f32 %v1103, %v1487
  %v1489 = vpop.f32.mrb[0].mxu0
  %1490 = vmatprep.mubr.f32.mxu0 %v124
  %1491 = vmatmul.mubr.f32.gmra.mrb[0].mxu0 %v123
  %v1492 = vpop.f32.mrb[0].mxu0
  %v1493 = vadd.f32 %v1108, %v1492
  %v1494 = vpop.f32.mrb[0].mxu0
  %1495 = vmatprep.mubr.f32.mxu0 %v131
  %1496 = vmatmul.mubr.f32.gmra.mrb[0].mxu0 %v130
  %v1497 = vpop.f32.mrb[0].mxu0
  %v1498 = vadd.f32 %v1113, %v1497
  %v1499 = vpop.f32.mrb[0].mxu0
  %1500 = vmatprep.mubr.f32.mxu0 %v138
  %1501 = vmatmul.mubr.f32.gmra.mrb[0].mxu0 %v137
  %v1502 = vpop.f32.mrb[0].mxu0
  %v1503 = vadd.f32 %v1118, %v1502
  %v1504 = vpop.f32.mrb[0].mxu0
  %1505 = vmatprep.mubr.f32.mxu0 %v145
  %1506 = vmatmul.mubr.f32.gmra.mrb[0].mxu0 %v144
  %v1507 = vpop.f32.mrb[0].mxu0
  %v1508 = vadd.f32 %v1123, %v1507
  %v1509 = vpop.f32.mrb[0].mxu0
  %1510 = vmatprep.mubr.f32.mxu0 %v152
  %1511 = vmatmul.mubr.f32.gmra.mrb[0].mxu0 %v151
  %v1512 = vpop.f32.mrb[0].mxu0
  %v1513 = vadd.f32 %v1128, %v1512
  %v1514 = vpop.f32.mrb[0].mxu0
  %1515 = vmatprep.mubr.f32.mxu0 %v159
  %1516 = vmatmul.mubr.f32.gmra.mrb[0].mxu0 %v158
  %v1517 = vpop.f32.mrb[0].mxu0
  %v1518 = vadd.f32 %v1133, %v1517
  %v1519 = vpop.f32.mrb[0].mxu0
  %1520 = vmatprep.mubr.f32.mxu0 %v166
  %1521 = vmatmul.mubr.f32.gmra.mrb[0].mxu0 %v165
  %v1522 = vpop.f32.mrb[0].mxu0
  %v1523 = vadd.f32 %v1138, %v1522
  %v1524 = vpop.f32.mrb[0].mxu0
  %1525 = vmatprep.mubr.f32.mxu0 %v173
  %1526 = vmatmul.mubr.f32.gmra.mrb[0].mxu0 %v172
  %v1527 = vpop.f32.mrb[0].mxu0
  %v1528 = vadd.f32 %v1143, %v1527
  %v1529 = vpop.f32.mrb[0].mxu0
  %1530 = vmatprep.mubr.f32.mxu0 %v180
  %1531 = vmatmul.mubr.f32.gmra.mrb[0].mxu0 %v179
  %v1532 = vpop.f32.mrb[0].mxu0
  %v1533 = vadd.f32 %v1148, %v1532
  %v1534 = vpop.f32.mrb[0].mxu0
  %1535 = vmatprep.mubr.f32.mxu0 %v187
  %1536 = vmatmul.mubr.f32.gmra.mrb[0].mxu0 %v186
  %v1537 = vpop.f32.mrb[0].mxu0
  %v1538 = vadd.f32 %v1153, %v1537
  %v1539 = vpop.f32.mrb[0].mxu0
  %1540 = vmatprep.mubr.f32.mxu0 %v194
  %1541 = vmatmul.mubr.f32.gmra.mrb[0].mxu0 %v193
  %v1542 = vpop.f32.mrb[0].mxu0
  %v1543 = vadd.f32 %v1158, %v1542
  %v1544 = vpop.f32.mrb[0].mxu0
  %1545 = vmatprep.mubr.f32.mxu0 %v201
  %1546 = vmatmul.mubr.f32.gmra.mrb[0].mxu0 %v200
  %v1547 = vpop.f32.mrb[0].mxu0
  %v1548 = vadd.f32 %v1163, %v1547
  %v1549 = vpop.f32.mrb[0].mxu0
  %1550 = vmatprep.mubr.f32.mxu0 %v208
  %1551 = vmatmul.mubr.f32.gmra.mrb[0].mxu0 %v207
  %v1552 = vpop.f32.mrb[0].mxu0
  %v1553 = vadd.f32 %v1168, %v1552
  %v1554 = vpop.f32.mrb[0].mxu0
  %1555 = vmatprep.mubr.f32.mxu0 %v215
  %1556 = vmatmul.mubr.f32.gmra.mrb[0].mxu0 %v214
  %v1557 = vpop.f32.mrb[0].mxu0
  %v1558 = vadd.f32 %v1173, %v1557
  %v1559 = vpop.f32.mrb[0].mxu0
  %1560 = vmatprep.mubr.f32.mxu0 %v222
  %1561 = vmatmul.mubr.f32.gmra.mrb[0].mxu0 %v221
  %v1562 = vpop.f32.mrb[0].mxu0
  %v1563 = vadd.f32 %v1178, %v1562
  %v1564 = vpop.f32.mrb[0].mxu0
  %1565 = vmatprep.mubr.f32.mxu0 %v229
  %1566 = vmatmul.mubr.f32.gmra.mrb[0].mxu0 %v228
  %v1567 = vpop.f32.mrb[0].mxu0
  %v1568 = vadd.f32 %v1183, %v1567
  %v1569 = vpop.f32.mrb[0].mxu0
  %1570 = vmatprep.mubr.f32.mxu0 %v236
  %1571 = vmatmul.mubr.f32.gmra.mrb[0].mxu0 %v235
  %v1572 = vpop.f32.mrb[0].mxu0
  %v1573 = vadd.f32 %v1188, %v1572
  %v1574 = vpop.f32.mrb[0].mxu0
  %1575 = vmatprep.mubr.f32.mxu0 %v243
  %1576 = vmatmul.mubr.f32.gmra.mrb[0].mxu0 %v242
  %v1577 = vpop.f32.mrb[0].mxu0
  %v1578 = vadd.f32 %v1193, %v1577
  %v1579 = vpop.f32.mrb[0].mxu0
  %1580 = vmatprep.mubr.f32.mxu0 %v250
  %1581 = vmatmul.mubr.f32.gmra.mrb[0].mxu0 %v249
  %v1582 = vpop.f32.mrb[0].mxu0
  %v1583 = vadd.f32 %v1198, %v1582
  %v1584 = vpop.f32.mrb[0].mxu0
  %1585 = vmatprep.mubr.f32.mxu0 %v257
  %1586 = vmatmul.mubr.f32.gmra.mrb[0].mxu0 %v256
  %v1587 = vpop.f32.mrb[0].mxu0
  %v1588 = vadd.f32 %v1203, %v1587
  %v1589 = vpop.f32.mrb[0].mxu0
  %1590 = vmatprep.mubr.f32.mxu0 %v264
  %1591 = vmatmul.mubr.f32.gmra.mrb[0].mxu0 %v263
  %v1592 = vpop.f32.mrb[0].mxu0
  %v1593 = vadd.f32 %v1208, %v1592
  %v1594 = vpop.f32.mrb[0].mxu0
  %1595 = vmatprep.mubr.f32.mxu0 %v271
  %1596 = vmatmul.mubr.f32.gmra.mrb[0].mxu0 %v270
  %v1597 = vpop.f32.mrb[0].mxu0
  %v1598 = vadd.f32 %v1213, %v1597
  %v1599 = vpop.f32.mrb[0].mxu0
  %1600 = vmatprep.mubr.f32.mxu0 %v278
  %1601 = vmatmul.mubr.f32.gmra.mrb[0].mxu0 %v277
  %v1602 = vpop.f32.mrb[0].mxu0
  %v1603 = vadd.f32 %v1218, %v1602
  %v1604 = vpop.f32.mrb[0].mxu0
  %1605 = vmatprep.mubr.f32.mxu0 %v285
  %1606 = vmatmul.mubr.f32.gmra.mrb[0].mxu0 %v284
  %v1607 = vpop.f32.mrb[0].mxu0
  %v1608 = vadd.f32 %v1223, %v1607
  %v1609 = vpop.f32.mrb[0].mxu0
  %1610 = vmatprep.mubr.f32.mxu0 %v292
  %1611 = vmatmul.mubr.f32.gmra.mrb[0].mxu0 %v291
  %v1612 = vpop.f32.mrb[0].mxu0
  %v1613 = vadd.f32 %v1228, %v1612
  %v1614 = vpop.f32.mrb[0].mxu0
  %1615 = vmatprep.mubr.f32.mxu0 %v299
  %1616 = vmatmul.mubr.f32.gmra.mrb[0].mxu0 %v298
  %v1617 = vpop.f32.mrb[0].mxu0
  %v1618 = vadd.f32 %v1233, %v1617
  %v1619 = vpop.f32.mrb[0].mxu0
  %1620 = vmatprep.mubr.f32.mxu0 %v306
  %1621 = vmatmul.mubr.f32.gmra.mrb[0].mxu0 %v305
  %v1622 = vpop.f32.mrb[0].mxu0
  %v1623 = vadd.f32 %v1238, %v1622
  %v1624 = vpop.f32.mrb[0].mxu0
  %1625 = vmatprep.mubr.f32.mxu0 %v313
  %1626 = vmatmul.mubr.f32.gmra.mrb[0].mxu0 %v312
  %v1627 = vpop.f32.mrb[0].mxu0
  %v1628 = vadd.f32 %v1243, %v1627
  %v1629 = vpop.f32.mrb[0].mxu0
  %1630 = vmatprep.mubr.f32.mxu0 %v320
  %1631 = vmatmul.mubr.f32.gmra.mrb[0].mxu0 %v319
  %v1632 = vpop.f32.mrb[0].mxu0
  %v1633 = vadd.f32 %v1248, %v1632
  %v1634 = vpop.f32.mrb[0].mxu0
  %1635 = vmatprep.mubr.f32.mxu0 %v327
  %1636 = vmatmul.mubr.f32.gmra.mrb[0].mxu0 %v326
  %v1637 = vpop.f32.mrb[0].mxu0
  %v1638 = vadd.f32 %v1253, %v1637
  %v1639 = vpop.f32.mrb[0].mxu0
  %1640 = vmatprep.mubr.f32.mxu0 %v334
  %1641 = vmatmul.mubr.f32.gmra.mrb[0].mxu0 %v333
  %v1642 = vpop.f32.mrb[0].mxu0
  %v1643 = vadd.f32 %v1258, %v1642
  %v1644 = vpop.f32.mrb[0].mxu0
  %1645 = vmatprep.mubr.f32.mxu0 %v341
  %1646 = vmatmul.mubr.f32.gmra.mrb[0].mxu0 %v340
  %v1647 = vpop.f32.mrb[0].mxu0
  %v1648 = vadd.f32 %v1263, %v1647
  %v1649 = vpop.f32.mrb[0].mxu0
  %1650 = vmatprep.mubr.f32.mxu0 %v348
  %1651 = vmatmul.mubr.f32.gmra.mrb[0].mxu0 %v347
  %v1652 = vpop.f32.mrb[0].mxu0
  %v1653 = vadd.f32 %v1268, %v1652
  %v1654 = vpop.f32.mrb[0].mxu0
  %1655 = vmatprep.mubr.f32.mxu0 %v355
  %1656 = vmatmul.mubr.f32.gmra.mrb[0].mxu0 %v354
  %v1657 = vpop.f32.mrb[0].mxu0
  %v1658 = vadd.f32 %v1273, %v1657
  %v1659 = vpop.f32.mrb[0].mxu0
  %1660 = vmatprep.mubr.f32.mxu0 %v362
  %1661 = vmatmul.mubr.f32.gmra.mrb[0].mxu0 %v361
  %v1662 = vpop.f32.mrb[0].mxu0
  %v1663 = vadd.f32 %v1278, %v1662
  %v1664 = vpop.f32.mrb[0].mxu0
  %1665 = vmatprep.mubr.f32.mxu0 %v369
  %1666 = vmatmul.mubr.f32.gmra.mrb[0].mxu0 %v368
  %v1667 = vpop.f32.mrb[0].mxu0
  %v1668 = vadd.f32 %v1283, %v1667
  %v1669 = vpop.f32.mrb[0].mxu0
  %1670 = vmatprep.mubr.f32.mxu0 %v376
  %1671 = vmatmul.mubr.f32.gmra.mrb[0].mxu0 %v375
  %v1672 = vpop.f32.mrb[0].mxu0
  %v1673 = vadd.f32 %v1288, %v1672
  %v1674 = vpop.f32.mrb[0].mxu0
  %1675 = vmatprep.mubr.f32.mxu0 %v383
  %1676 = vmatmul.mubr.f32.gmra.mrb[0].mxu0 %v382
  %v1677 = vpop.f32.mrb[0].mxu0
  %v1678 = vadd.f32 %v1293, %v1677
  %v1679 = vpop.f32.mrb[0].mxu0
  %1680 = vmatprep.mubr.f32.mxu0 %v390
  %1681 = vmatmul.mubr.f32.gmra.mrb[0].mxu0 %v389
  %v1682 = vpop.f32.mrb[0].mxu0
  %v1683 = vadd.f32 %v1298, %v1682
  %v1684 = vpop.f32.mrb[0].mxu0
  %1685 = vmatprep.mubr.f32.mxu0 %v397
  %1686 = vmatmul.mubr.f32.gmra.mrb[0].mxu0 %v396
  %v1687 = vpop.f32.mrb[0].mxu0
  %v1688 = vadd.f32 %v1303, %v1687
  %v1689 = vpop.f32.mrb[0].mxu0
  %1690 = vmatprep.mubr.f32.mxu0 %v404
  %1691 = vmatmul.mubr.f32.gmra.mrb[0].mxu0 %v403
  %v1692 = vpop.f32.mrb[0].mxu0
  %v1693 = vadd.f32 %v1308, %v1692
  %v1694 = vpop.f32.mrb[0].mxu0
  %1695 = vmatprep.mubr.f32.mxu0 %v411
  %1696 = vmatmul.mubr.f32.gmra.mrb[0].mxu0 %v410
  %v1697 = vpop.f32.mrb[0].mxu0
  %v1698 = vadd.f32 %v1313, %v1697
  %v1699 = vpop.f32.mrb[0].mxu0
  %1700 = vmatprep.mubr.f32.mxu0 %v418
  %1701 = vmatmul.mubr.f32.gmra.mrb[0].mxu0 %v417
  %v1702 = vpop.f32.mrb[0].mxu0
  %v1703 = vadd.f32 %v1318, %v1702
  %v1704 = vpop.f32.mrb[0].mxu0
  %1705 = vmatprep.mubr.f32.mxu0 %v425
  %1706 = vmatmul.mubr.f32.gmra.mrb[0].mxu0 %v424
  %v1707 = vpop.f32.mrb[0].mxu0
  %v1708 = vadd.f32 %v1323, %v1707
  %v1709 = vpop.f32.mrb[0].mxu0
  %1710 = vmatprep.mubr.f32.mxu0 %v432
  %1711 = vmatmul.mubr.f32.gmra.mrb[0].mxu0 %v431
  %v1712 = vpop.f32.mrb[0].mxu0
  %v1713 = vadd.f32 %v1328, %v1712
  %v1714 = vpop.f32.mrb[0].mxu0
  %1715 = vmatprep.mubr.f32.mxu0 %v439
  %1716 = vmatmul.mubr.f32.gmra.mrb[0].mxu0 %v438
  %v1717 = vpop.f32.mrb[0].mxu0
  %v1718 = vadd.f32 %v1333, %v1717
  %v1719 = vpop.f32.mrb[0].mxu0
  %1720 = vmatprep.mubr.f32.mxu0 %v446
  %1721 = vmatmul.mubr.f32.gmra.mrb[0].mxu0 %v445
  %v1722 = vpop.f32.mrb[0].mxu0
  %v1723 = vadd.f32 %v1338, %v1722
  %v1724 = vpop.f32.mrb[0].mxu0
  %1725 = vmatprep.mubr.f32.mxu0 %v453
  %1726 = vmatmul.mubr.f32.gmra.mrb[0].mxu0 %v452
  %v1727 = vpop.f32.mrb[0].mxu0
  %v1728 = vadd.f32 %v1343, %v1727
  %v1729 = vpop.f32.mrb[0].mxu0
  %1730 = vmatprep.mubr.f32.mxu0 %v460
  %1731 = vmatmul.mubr.f32.gmra.mrb[0].mxu0 %v459
  %v1732 = vpop.f32.mrb[0].mxu0
  %v1733 = vadd.f32 %v1348, %v1732
  %v1734 = vpop.f32.mrb[0].mxu0
  %1735 = vdwg.mxu0
  %1736 = vmatprep.subr.mxu0 0.0
  %1737 = vmatpush1.msra.mxu0 %v558
  %1738 = vmatprep.subr.mxu0 0.0
  %1739 = vmatpush1.msra.mxu0 %v559
  %1740 = vmatprep.subr.mxu0 0.0
  %1741 = vmatpush1.msra.mxu0 %v560
  %1742 = vmatprep.subr.mxu0 0.0
  %1743 = vmatpush1.msra.mxu0 %v561
  %1744 = vmatprep.subr.mxu0 0.0
  %1745 = vmatpush1.msra.mxu0 %v562
  %1746 = vmatprep.subr.mxu0 0.0
  %1747 = vmatpush1.msra.mxu0 %v563
  %1748 = vmatprep.subr.mxu0 0.0
  %1749 = vmatpush1.msra.mxu0 %v564
  %1750 = vmatprep.subr.mxu0 0.0
  %1751 = vmatpush1.msra.mxu0 %v565
  %1752 = vmatprep.subr.mxu0 0.0
  %1753 = vmatpush1.msra.mxu0 %v566
  %1754 = vmatprep.subr.mxu0 0.0
  %1755 = vmatpush1.msra.mxu0 %v567
  %1756 = vmatprep.subr.mxu0 0.0
  %1757 = vmatpush1.msra.mxu0 %v568
  %1758 = vmatprep.subr.mxu0 0.0
  %1759 = vmatpush1.msra.mxu0 %v569
  %1760 = vmatprep.subr.mxu0 0.0
  %1761 = vmatpush1.msra.mxu0 %v570
  %1762 = vmatprep.subr.mxu0 0.0
  %1763 = vmatpush1.msra.mxu0 %v571
  %1764 = vmatprep.subr.mxu0 0.0
  %1765 = vmatpush1.msra.mxu0 %v572
  %1766 = vmatprep.subr.mxu0 0.0
  %1767 = vmatpush1.msra.mxu0 %v573
  %1768 = vmatprep.subr.mxu0 0.0
  %1769 = vmatpush1.msra.mxu0 0.0
  %1770 = vmatprep.subr.mxu0 0.0
  %1771 = vmatpush1.msra.mxu0 0.0
  %1772 = vmatprep.subr.mxu0 0.0
  %1773 = vmatpush1.msra.mxu0 0.0
  %1774 = vmatprep.subr.mxu0 0.0
  %1775 = vmatpush1.msra.mxu0 0.0
  %1776 = vmatprep.subr.mxu0 0.0
  %1777 = vmatpush1.msra.mxu0 0.0
  %1778 = vmatprep.subr.mxu0 0.0
  %1779 = vmatpush1.msra.mxu0 0.0
  %1780 = vmatprep.subr.mxu0 0.0
  %1781 = vmatpush1.msra.mxu0 0.0
  %1782 = vmatprep.subr.mxu0 0.0
  %1783 = vmatpush1.msra.mxu0 0.0
  %1784 = vmatprep.subr.mxu0 0.0
  %1785 = vmatpush1.msra.mxu0 0.0
  %1786 = vmatprep.subr.mxu0 0.0
  %1787 = vmatpush1.msra.mxu0 0.0
  %1788 = vmatprep.subr.mxu0 0.0
  %1789 = vmatpush1.msra.mxu0 0.0
  %1790 = vmatprep.subr.mxu0 0.0
  %1791 = vmatpush1.msra.mxu0 0.0
  %1792 = vmatprep.subr.mxu0 0.0
  %1793 = vmatpush1.msra.mxu0 0.0
  %1794 = vmatprep.subr.mxu0 0.0
  %1795 = vmatpush1.msra.mxu0 0.0
  %1796 = vmatprep.subr.mxu0 0.0
  %1797 = vmatpush1.msra.mxu0 0.0
  %1798 = vmatprep.subr.mxu0 0.0
  %1799 = vmatpush1.msra.mxu0 0.0
  %1800 = vmatprep.mubr.f32.mxu0 0.0
  %1801 = vmatmul.mubr.f32.gmra.mrb[0].mxu0 %v20
  %v1802 = vpop.f32.mrb[0].mxu0
  %v1803 = vadd.f32 %v1418, %v1802
  %v1804 = vpop.f32.mrb[0].mxu0
  %1805 = vmatprep.mubr.f32.mxu0 0.0
  %1806 = vmatmul.mubr.f32.gmra.mrb[0].mxu0 %v27
  %v1807 = vpop.f32.mrb[0].mxu0
  %v1808 = vadd.f32 %v1423, %v1807
  %v1809 = vpop.f32.mrb[0].mxu0
  %1810 = vmatprep.mubr.f32.mxu0 0.0
  %1811 = vmatmul.mubr.f32.gmra.mrb[0].mxu0 %v34
  %v1812 = vpop.f32.mrb[0].mxu0
  %v1813 = vadd.f32 %v1428, %v1812
  %v1814 = vpop.f32.mrb[0].mxu0
  %1815 = vmatprep.mubr.f32.mxu0 0.0
  %1816 = vmatmul.mubr.f32.gmra.mrb[0].mxu0 %v41
  %v1817 = vpop.f32.mrb[0].mxu0
  %v1818 = vadd.f32 %v1433, %v1817
  %v1819 = vpop.f32.mrb[0].mxu0
  %1820 = vmatprep.mubr.f32.mxu0 0.0
  %1821 = vmatmul.mubr.f32.gmra.mrb[0].mxu0 %v48
  %v1822 = vpop.f32.mrb[0].mxu0
  %v1823 = vadd.f32 %v1438, %v1822
  %v1824 = vpop.f32.mrb[0].mxu0
  %1825 = vmatprep.mubr.f32.mxu0 0.0
  %1826 = vmatmul.mubr.f32.gmra.mrb[0].mxu0 %v55
  %v1827 = vpop.f32.mrb[0].mxu0
  %v1828 = vadd.f32 %v1443, %v1827
  %v1829 = vpop.f32.mrb[0].mxu0
  %1830 = vmatprep.mubr.f32.mxu0 0.0
  %1831 = vmatmul.mubr.f32.gmra.mrb[0].mxu0 %v62
  %v1832 = vpop.f32.mrb[0].mxu0
  %v1833 = vadd.f32 %v1448, %v1832
  %v1834 = vpop.f32.mrb[0].mxu0
  %1835 = vmatprep.mubr.f32.mxu0 0.0
  %1836 = vmatmul.mubr.f32.gmra.mrb[0].mxu0 %v69
  %v1837 = vpop.f32.mrb[0].mxu0
  %v1838 = vadd.f32 %v1453, %v1837
  %v1839 = vpop.f32.mrb[0].mxu0
  %1840 = vmatprep.mubr.f32.mxu0 0.0
  %1841 = vmatmul.mubr.f32.gmra.mrb[0].mxu0 %v76
  %v1842 = vpop.f32.mrb[0].mxu0
  %v1843 = vadd.f32 %v1458, %v1842
  %v1844 = vpop.f32.mrb[0].mxu0
  %1845 = vmatprep.mubr.f32.mxu0 0.0
  %1846 = vmatmul.mubr.f32.gmra.mrb[0].mxu0 %v83
  %v1847 = vpop.f32.mrb[0].mxu0
  %v1848 = vadd.f32 %v1463, %v1847
  %v1849 = vpop.f32.mrb[0].mxu0
  %1850 = vmatprep.mubr.f32.mxu0 0.0
  %1851 = vmatmul.mubr.f32.gmra.mrb[0].mxu0 %v90
  %v1852 = vpop.f32.mrb[0].mxu0
  %v1853 = vadd.f32 %v1468, %v1852
  %v1854 = vpop.f32.mrb[0].mxu0
  %1855 = vmatprep.mubr.f32.mxu0 0.0
  %1856 = vmatmul.mubr.f32.gmra.mrb[0].mxu0 %v97
  %v1857 = vpop.f32.mrb[0].mxu0
  %v1858 = vadd.f32 %v1473, %v1857
  %v1859 = vpop.f32.mrb[0].mxu0
  %1860 = vmatprep.mubr.f32.mxu0 0.0
  %1861 = vmatmul.mubr.f32.gmra.mrb[0].mxu0 %v104
  %v1862 = vpop.f32.mrb[0].mxu0
  %v1863 = vadd.f32 %v1478, %v1862
  %v1864 = vpop.f32.mrb[0].mxu0
  %1865 = vmatprep.mubr.f32.mxu0 0.0
  %1866 = vmatmul.mubr.f32.gmra.mrb[0].mxu0 %v111
  %v1867 = vpop.f32.mrb[0].mxu0
  %v1868 = vadd.f32 %v1483, %v1867
  %v1869 = vpop.f32.mrb[0].mxu0
  %1870 = vmatprep.mubr.f32.mxu0 0.0
  %1871 = vmatmul.mubr.f32.gmra.mrb[0].mxu0 %v118
  %v1872 = vpop.f32.mrb[0].mxu0
  %v1873 = vadd.f32 %v1488, %v1872
  %v1874 = vpop.f32.mrb[0].mxu0
  %1875 = vmatprep.mubr.f32.mxu0 0.0
  %1876 = vmatmul.mubr.f32.gmra.mrb[0].mxu0 %v125
  %v1877 = vpop.f32.mrb[0].mxu0
  %v1878 = vadd.f32 %v1493, %v1877
  %v1879 = vpop.f32.mrb[0].mxu0
  %1880 = vmatprep.mubr.f32.mxu0 0.0
  %1881 = vmatmul.mubr.f32.gmra.mrb[0].mxu0 %v132
  %v1882 = vpop.f32.mrb[0].mxu0
  %v1883 = vadd.f32 %v1498, %v1882
  %v1884 = vpop.f32.mrb[0].mxu0
  %1885 = vmatprep.mubr.f32.mxu0 0.0
  %1886 = vmatmul.mubr.f32.gmra.mrb[0].mxu0 %v139
  %v1887 = vpop.f32.mrb[0].mxu0
  %v1888 = vadd.f32 %v1503, %v1887
  %v1889 = vpop.f32.mrb[0].mxu0
  %1890 = vmatprep.mubr.f32.mxu0 0.0
  %1891 = vmatmul.mubr.f32.gmra.mrb[0].mxu0 %v146
  %v1892 = vpop.f32.mrb[0].mxu0
  %v1893 = vadd.f32 %v1508, %v1892
  %v1894 = vpop.f32.mrb[0].mxu0
  %1895 = vmatprep.mubr.f32.mxu0 0.0
  %1896 = vmatmul.mubr.f32.gmra.mrb[0].mxu0 %v153
  %v1897 = vpop.f32.mrb[0].mxu0
  %v1898 = vadd.f32 %v1513, %v1897
  %v1899 = vpop.f32.mrb[0].mxu0
  %1900 = vmatprep.mubr.f32.mxu0 0.0
  %1901 = vmatmul.mubr.f32.gmra.mrb[0].mxu0 %v160
  %v1902 = vpop.f32.mrb[0].mxu0
  %v1903 = vadd.f32 %v1518, %v1902
  %v1904 = vpop.f32.mrb[0].mxu0
  %1905 = vmatprep.mubr.f32.mxu0 0.0
  %1906 = vmatmul.mubr.f32.gmra.mrb[0].mxu0 %v167
  %v1907 = vpop.f32.mrb[0].mxu0
  %v1908 = vadd.f32 %v1523, %v1907
  %v1909 = vpop.f32.mrb[0].mxu0
  %1910 = vmatprep.mubr.f32.mxu0 0.0
  %1911 = vmatmul.mubr.f32.gmra.mrb[0].mxu0 %v174
  %v1912 = vpop.f32.mrb[0].mxu0
  %v1913 = vadd.f32 %v1528, %v1912
  %v1914 = vpop.f32.mrb[0].mxu0
  %1915 = vmatprep.mubr.f32.mxu0 0.0
  %1916 = vmatmul.mubr.f32.gmra.mrb[0].mxu0 %v181
  %v1917 = vpop.f32.mrb[0].mxu0
  %v1918 = vadd.f32 %v1533, %v1917
  %v1919 = vpop.f32.mrb[0].mxu0
  %1920 = vmatprep.mubr.f32.mxu0 0.0
  %1921 = vmatmul.mubr.f32.gmra.mrb[0].mxu0 %v188
  %v1922 = vpop.f32.mrb[0].mxu0
  %v1923 = vadd.f32 %v1538, %v1922
  %v1924 = vpop.f32.mrb[0].mxu0
  %1925 = vmatprep.mubr.f32.mxu0 0.0
  %1926 = vmatmul.mubr.f32.gmra.mrb[0].mxu0 %v195
  %v1927 = vpop.f32.mrb[0].mxu0
  %v1928 = vadd.f32 %v1543, %v1927
  %v1929 = vpop.f32.mrb[0].mxu0
  %1930 = vmatprep.mubr.f32.mxu0 0.0
  %1931 = vmatmul.mubr.f32.gmra.mrb[0].mxu0 %v202
  %v1932 = vpop.f32.mrb[0].mxu0
  %v1933 = vadd.f32 %v1548, %v1932
  %v1934 = vpop.f32.mrb[0].mxu0
  %1935 = vmatprep.mubr.f32.mxu0 0.0
  %1936 = vmatmul.mubr.f32.gmra.mrb[0].mxu0 %v209
  %v1937 = vpop.f32.mrb[0].mxu0
  %v1938 = vadd.f32 %v1553, %v1937
  %v1939 = vpop.f32.mrb[0].mxu0
  %1940 = vmatprep.mubr.f32.mxu0 0.0
  %1941 = vmatmul.mubr.f32.gmra.mrb[0].mxu0 %v216
  %v1942 = vpop.f32.mrb[0].mxu0
  %v1943 = vadd.f32 %v1558, %v1942
  %v1944 = vpop.f32.mrb[0].mxu0
  %1945 = vmatprep.mubr.f32.mxu0 0.0
  %1946 = vmatmul.mubr.f32.gmra.mrb[0].mxu0 %v223
  %v1947 = vpop.f32.mrb[0].mxu0
  %v1948 = vadd.f32 %v1563, %v1947
  %v1949 = vpop.f32.mrb[0].mxu0
  %1950 = vmatprep.mubr.f32.mxu0 0.0
  %1951 = vmatmul.mubr.f32.gmra.mrb[0].mxu0 %v230
  %v1952 = vpop.f32.mrb[0].mxu0
  %v1953 = vadd.f32 %v1568, %v1952
  %v1954 = vpop.f32.mrb[0].mxu0
  %1955 = vmatprep.mubr.f32.mxu0 0.0
  %1956 = vmatmul.mubr.f32.gmra.mrb[0].mxu0 %v237
  %v1957 = vpop.f32.mrb[0].mxu0
  %v1958 = vadd.f32 %v1573, %v1957
  %v1959 = vpop.f32.mrb[0].mxu0
  %1960 = vmatprep.mubr.f32.mxu0 0.0
  %1961 = vmatmul.mubr.f32.gmra.mrb[0].mxu0 %v244
  %v1962 = vpop.f32.mrb[0].mxu0
  %v1963 = vadd.f32 %v1578, %v1962
  %v1964 = vpop.f32.mrb[0].mxu0
  %1965 = vmatprep.mubr.f32.mxu0 0.0
  %1966 = vmatmul.mubr.f32.gmra.mrb[0].mxu0 %v251
  %v1967 = vpop.f32.mrb[0].mxu0
  %v1968 = vadd.f32 %v1583, %v1967
  %v1969 = vpop.f32.mrb[0].mxu0
  %1970 = vmatprep.mubr.f32.mxu0 0.0
  %1971 = vmatmul.mubr.f32.gmra.mrb[0].mxu0 %v258
  %v1972 = vpop.f32.mrb[0].mxu0
  %v1973 = vadd.f32 %v1588, %v1972
  %v1974 = vpop.f32.mrb[0].mxu0
  %1975 = vmatprep.mubr.f32.mxu0 0.0
  %1976 = vmatmul.mubr.f32.gmra.mrb[0].mxu0 %v265
  %v1977 = vpop.f32.mrb[0].mxu0
  %v1978 = vadd.f32 %v1593, %v1977
  %v1979 = vpop.f32.mrb[0].mxu0
  %1980 = vmatprep.mubr.f32.mxu0 0.0
  %1981 = vmatmul.mubr.f32.gmra.mrb[0].mxu0 %v272
  %v1982 = vpop.f32.mrb[0].mxu0
  %v1983 = vadd.f32 %v1598, %v1982
  %v1984 = vpop.f32.mrb[0].mxu0
  %1985 = vmatprep.mubr.f32.mxu0 0.0
  %1986 = vmatmul.mubr.f32.gmra.mrb[0].mxu0 %v279
  %v1987 = vpop.f32.mrb[0].mxu0
  %v1988 = vadd.f32 %v1603, %v1987
  %v1989 = vpop.f32.mrb[0].mxu0
  %1990 = vmatprep.mubr.f32.mxu0 0.0
  %1991 = vmatmul.mubr.f32.gmra.mrb[0].mxu0 %v286
  %v1992 = vpop.f32.mrb[0].mxu0
  %v1993 = vadd.f32 %v1608, %v1992
  %v1994 = vpop.f32.mrb[0].mxu0
  %1995 = vmatprep.mubr.f32.mxu0 0.0
  %1996 = vmatmul.mubr.f32.gmra.mrb[0].mxu0 %v293
  %v1997 = vpop.f32.mrb[0].mxu0
  %v1998 = vadd.f32 %v1613, %v1997
  %v1999 = vpop.f32.mrb[0].mxu0
  %2000 = vmatprep.mubr.f32.mxu0 0.0
  %2001 = vmatmul.mubr.f32.gmra.mrb[0].mxu0 %v300
  %v2002 = vpop.f32.mrb[0].mxu0
  %v2003 = vadd.f32 %v1618, %v2002
  %v2004 = vpop.f32.mrb[0].mxu0
  %2005 = vmatprep.mubr.f32.mxu0 0.0
  %2006 = vmatmul.mubr.f32.gmra.mrb[0].mxu0 %v307
  %v2007 = vpop.f32.mrb[0].mxu0
  %v2008 = vadd.f32 %v1623, %v2007
  %v2009 = vpop.f32.mrb[0].mxu0
  %2010 = vmatprep.mubr.f32.mxu0 0.0
  %2011 = vmatmul.mubr.f32.gmra.mrb[0].mxu0 %v314
  %v2012 = vpop.f32.mrb[0].mxu0
  %v2013 = vadd.f32 %v1628, %v2012
  %v2014 = vpop.f32.mrb[0].mxu0
  %2015 = vmatprep.mubr.f32.mxu0 0.0
  %2016 = vmatmul.mubr.f32.gmra.mrb[0].mxu0 %v321
  %v2017 = vpop.f32.mrb[0].mxu0
  %v2018 = vadd.f32 %v1633, %v2017
  %v2019 = vpop.f32.mrb[0].mxu0
  %2020 = vmatprep.mubr.f32.mxu0 0.0
  %2021 = vmatmul.mubr.f32.gmra.mrb[0].mxu0 %v328
  %v2022 = vpop.f32.mrb[0].mxu0
  %v2023 = vadd.f32 %v1638, %v2022
  %v2024 = vpop.f32.mrb[0].mxu0
  %2025 = vmatprep.mubr.f32.mxu0 0.0
  %2026 = vmatmul.mubr.f32.gmra.mrb[0].mxu0 %v335
  %v2027 = vpop.f32.mrb[0].mxu0
  %v2028 = vadd.f32 %v1643, %v2027
  %v2029 = vpop.f32.mrb[0].mxu0
  %2030 = vmatprep.mubr.f32.mxu0 0.0
  %2031 = vmatmul.mubr.f32.gmra.mrb[0].mxu0 %v342
  %v2032 = vpop.f32.mrb[0].mxu0
  %v2033 = vadd.f32 %v1648, %v2032
  %v2034 = vpop.f32.mrb[0].mxu0
  %2035 = vmatprep.mubr.f32.mxu0 0.0
  %2036 = vmatmul.mubr.f32.gmra.mrb[0].mxu0 %v349
  %v2037 = vpop.f32.mrb[0].mxu0
  %v2038 = vadd.f32 %v1653, %v2037
  %v2039 = vpop.f32.mrb[0].mxu0
  %2040 = vmatprep.mubr.f32.mxu0 0.0
  %2041 = vmatmul.mubr.f32.gmra.mrb[0].mxu0 %v356
  %v2042 = vpop.f32.mrb[0].mxu0
  %v2043 = vadd.f32 %v1658, %v2042
  %v2044 = vpop.f32.mrb[0].mxu0
  %2045 = vmatprep.mubr.f32.mxu0 0.0
  %2046 = vmatmul.mubr.f32.gmra.mrb[0].mxu0 %v363
  %v2047 = vpop.f32.mrb[0].mxu0
  %v2048 = vadd.f32 %v1663, %v2047
  %v2049 = vpop.f32.mrb[0].mxu0
  %2050 = vmatprep.mubr.f32.mxu0 0.0
  %2051 = vmatmul.mubr.f32.gmra.mrb[0].mxu0 %v370
  %v2052 = vpop.f32.mrb[0].mxu0
  %v2053 = vadd.f32 %v1668, %v2052
  %v2054 = vpop.f32.mrb[0].mxu0
  %2055 = vmatprep.mubr.f32.mxu0 0.0
  %2056 = vmatmul.mubr.f32.gmra.mrb[0].mxu0 %v377
  %v2057 = vpop.f32.mrb[0].mxu0
  %v2058 = vadd.f32 %v1673, %v2057
  %v2059 = vpop.f32.mrb[0].mxu0
  %2060 = vmatprep.mubr.f32.mxu0 0.0
  %2061 = vmatmul.mubr.f32.gmra.mrb[0].mxu0 %v384
  %v2062 = vpop.f32.mrb[0].mxu0
  %v2063 = vadd.f32 %v1678, %v2062
  %v2064 = vpop.f32.mrb[0].mxu0
  %2065 = vmatprep.mubr.f32.mxu0 0.0
  %2066 = vmatmul.mubr.f32.gmra.mrb[0].mxu0 %v391
  %v2067 = vpop.f32.mrb[0].mxu0
  %v2068 = vadd.f32 %v1683, %v2067
  %v2069 = vpop.f32.mrb[0].mxu0
  %2070 = vmatprep.mubr.f32.mxu0 0.0
  %2071 = vmatmul.mubr.f32.gmra.mrb[0].mxu0 %v398
  %v2072 = vpop.f32.mrb[0].mxu0
  %v2073 = vadd.f32 %v1688, %v2072
  %v2074 = vpop.f32.mrb[0].mxu0
  %2075 = vmatprep.mubr.f32.mxu0 0.0
  %2076 = vmatmul.mubr.f32.gmra.mrb[0].mxu0 %v405
  %v2077 = vpop.f32.mrb[0].mxu0
  %v2078 = vadd.f32 %v1693, %v2077
  %v2079 = vpop.f32.mrb[0].mxu0
  %2080 = vmatprep.mubr.f32.mxu0 0.0
  %2081 = vmatmul.mubr.f32.gmra.mrb[0].mxu0 %v412
  %v2082 = vpop.f32.mrb[0].mxu0
  %v2083 = vadd.f32 %v1698, %v2082
  %v2084 = vpop.f32.mrb[0].mxu0
  %2085 = vmatprep.mubr.f32.mxu0 0.0
  %2086 = vmatmul.mubr.f32.gmra.mrb[0].mxu0 %v419
  %v2087 = vpop.f32.mrb[0].mxu0
  %v2088 = vadd.f32 %v1703, %v2087
  %v2089 = vpop.f32.mrb[0].mxu0
  %2090 = vmatprep.mubr.f32.mxu0 0.0
  %2091 = vmatmul.mubr.f32.gmra.mrb[0].mxu0 %v426
  %v2092 = vpop.f32.mrb[0].mxu0
  %v2093 = vadd.f32 %v1708, %v2092
  %v2094 = vpop.f32.mrb[0].mxu0
  %2095 = vmatprep.mubr.f32.mxu0 0.0
  %2096 = vmatmul.mubr.f32.gmra.mrb[0].mxu0 %v433
  %v2097 = vpop.f32.mrb[0].mxu0
  %v2098 = vadd.f32 %v1713, %v2097
  %v2099 = vpop.f32.mrb[0].mxu0
  %2100 = vmatprep.mubr.f32.mxu0 0.0
  %2101 = vmatmul.mubr.f32.gmra.mrb[0].mxu0 %v440
  %v2102 = vpop.f32.mrb[0].mxu0
  %v2103 = vadd.f32 %v1718, %v2102
  %v2104 = vpop.f32.mrb[0].mxu0
  %2105 = vmatprep.mubr.f32.mxu0 0.0
  %2106 = vmatmul.mubr.f32.gmra.mrb[0].mxu0 %v447
  %v2107 = vpop.f32.mrb[0].mxu0
  %v2108 = vadd.f32 %v1723, %v2107
  %v2109 = vpop.f32.mrb[0].mxu0
  %2110 = vmatprep.mubr.f32.mxu0 0.0
  %2111 = vmatmul.mubr.f32.gmra.mrb[0].mxu0 %v454
  %v2112 = vpop.f32.mrb[0].mxu0
  %v2113 = vadd.f32 %v1728, %v2112
  %v2114 = vpop.f32.mrb[0].mxu0
  %2115 = vmatprep.mubr.f32.mxu0 0.0
  %2116 = vmatmul.mubr.f32.gmra.mrb[0].mxu0 %v461
  %v2117 = vpop.f32.mrb[0].mxu0
  %v2118 = vadd.f32 %v1733, %v2117
  %v2119 = vpop.f32.mrb[0].mxu0
  %2120 = vdwg.mxu0
  %vm2121 = vcmask 261120
  %2122 = vst.msk [vmem:[%s3] sm:$0xff] %vm2121, %v1803
  %2123 = vst.msk [vmem:[%s3 + $0x8] sm:$0xff] %vm2121, %v1808
  %2124 = vst.msk [vmem:[%s3 + $0x10] sm:$0xff] %vm2121, %v1813
  %2125 = vst.msk [vmem:[%s3 + $0x18] sm:$0xff] %vm2121, %v1818
  %2126 = vst.msk [vmem:[%s3 + $0x20] sm:$0xff] %vm2121, %v1823
  %2127 = vst.msk [vmem:[%s3 + $0x28] sm:$0xff] %vm2121, %v1828
  %2128 = vst.msk [vmem:[%s3 + $0x30] sm:$0xff] %vm2121, %v1833
  %2129 = vst.msk [vmem:[%s3 + $0x38] sm:$0xff] %vm2121, %v1838
  %2130 = vst.msk [vmem:[%s3 + $0x40] sm:$0xff] %vm2121, %v1843
  %2131 = vst.msk [vmem:[%s3 + $0x48] sm:$0xff] %vm2121, %v1848
  %2132 = vst.msk [vmem:[%s3 + $0x50] sm:$0xff] %vm2121, %v1853
  %2133 = vst.msk [vmem:[%s3 + $0x58] sm:$0xff] %vm2121, %v1858
  %2134 = vst.msk [vmem:[%s3 + $0x60] sm:$0xff] %vm2121, %v1863
  %2135 = vst.msk [vmem:[%s3 + $0x68] sm:$0xff] %vm2121, %v1868
  %2136 = vst.msk [vmem:[%s3 + $0x70] sm:$0xff] %vm2121, %v1873
  %2137 = vst.msk [vmem:[%s3 + $0x78] sm:$0xff] %vm2121, %v1878
  %2138 = vst.msk [vmem:[%s3 + $0x80] sm:$0xff] %vm2121, %v1883
  %2139 = vst.msk [vmem:[%s3 + $0x88] sm:$0xff] %vm2121, %v1888
  %2140 = vst.msk [vmem:[%s3 + $0x90] sm:$0xff] %vm2121, %v1893
  %2141 = vst.msk [vmem:[%s3 + $0x98] sm:$0xff] %vm2121, %v1898
  %2142 = vst.msk [vmem:[%s3 + $0xa0] sm:$0xff] %vm2121, %v1903
  %2143 = vst.msk [vmem:[%s3 + $0xa8] sm:$0xff] %vm2121, %v1908
  %2144 = vst.msk [vmem:[%s3 + $0xb0] sm:$0xff] %vm2121, %v1913
  %2145 = vst.msk [vmem:[%s3 + $0xb8] sm:$0xff] %vm2121, %v1918
  %2146 = vst.msk [vmem:[%s3 + $0xc0] sm:$0xff] %vm2121, %v1923
  %2147 = vst.msk [vmem:[%s3 + $0xc8] sm:$0xff] %vm2121, %v1928
  %2148 = vst.msk [vmem:[%s3 + $0xd0] sm:$0xff] %vm2121, %v1933
  %2149 = vst.msk [vmem:[%s3 + $0xd8] sm:$0xff] %vm2121, %v1938
  %2150 = vst.msk [vmem:[%s3 + $0xe0] sm:$0xff] %vm2121, %v1943
  %2151 = vst.msk [vmem:[%s3 + $0xe8] sm:$0xff] %vm2121, %v1948
  %2152 = vst.msk [vmem:[%s3 + $0xf0] sm:$0xff] %vm2121, %v1953
  %2153 = vst.msk [vmem:[%s3 + $0xf8] sm:$0xff] %vm2121, %v1958
  %2154 = vst.msk [vmem:[%s3 + $0x100] sm:$0xff] %vm2121, %v1963
  %2155 = vst.msk [vmem:[%s3 + $0x108] sm:$0xff] %vm2121, %v1968
  %2156 = vst.msk [vmem:[%s3 + $0x110] sm:$0xff] %vm2121, %v1973
  %2157 = vst.msk [vmem:[%s3 + $0x118] sm:$0xff] %vm2121, %v1978
  %2158 = vst.msk [vmem:[%s3 + $0x120] sm:$0xff] %vm2121, %v1983
  %2159 = vst.msk [vmem:[%s3 + $0x128] sm:$0xff] %vm2121, %v1988
  %2160 = vst.msk [vmem:[%s3 + $0x130] sm:$0xff] %vm2121, %v1993
  %2161 = vst.msk [vmem:[%s3 + $0x138] sm:$0xff] %vm2121, %v1998
  %2162 = vst.msk [vmem:[%s3 + $0x140] sm:$0xff] %vm2121, %v2003
  %2163 = vst.msk [vmem:[%s3 + $0x148] sm:$0xff] %vm2121, %v2008
  %2164 = vst.msk [vmem:[%s3 + $0x150] sm:$0xff] %vm2121, %v2013
  %2165 = vst.msk [vmem:[%s3 + $0x158] sm:$0xff] %vm2121, %v2018
  %2166 = vst.msk [vmem:[%s3 + $0x160] sm:$0xff] %vm2121, %v2023
  %2167 = vst.msk [vmem:[%s3 + $0x168] sm:$0xff] %vm2121, %v2028
  %2168 = vst.msk [vmem:[%s3 + $0x170] sm:$0xff] %vm2121, %v2033
  %2169 = vst.msk [vmem:[%s3 + $0x178] sm:$0xff] %vm2121, %v2038
  %2170 = vst.msk [vmem:[%s3 + $0x180] sm:$0xff] %vm2121, %v2043
  %2171 = vst.msk [vmem:[%s3 + $0x188] sm:$0xff] %vm2121, %v2048
  %2172 = vst.msk [vmem:[%s3 + $0x190] sm:$0xff] %vm2121, %v2053
  %2173 = vst.msk [vmem:[%s3 + $0x198] sm:$0xff] %vm2121, %v2058
  %2174 = vst.msk [vmem:[%s3 + $0x1a0] sm:$0xff] %vm2121, %v2063
  %2175 = vst.msk [vmem:[%s3 + $0x1a8] sm:$0xff] %vm2121, %v2068
  %2176 = vst.msk [vmem:[%s3 + $0x1b0] sm:$0xff] %vm2121, %v2073
  %2177 = vst.msk [vmem:[%s3 + $0x1b8] sm:$0xff] %vm2121, %v2078
  %2178 = vst.msk [vmem:[%s3 + $0x1c0] sm:$0xff] %vm2121, %v2083
  %2179 = vst.msk [vmem:[%s3 + $0x1c8] sm:$0xff] %vm2121, %v2088
  %2180 = vst.msk [vmem:[%s3 + $0x1d0] sm:$0xff] %vm2121, %v2093
  %2181 = vst.msk [vmem:[%s3 + $0x1d8] sm:$0xff] %vm2121, %v2098
  %2182 = vst.msk [vmem:[%s3 + $0x1e0] sm:$0xff] %vm2121, %v2103
  %2183 = vst.msk [vmem:[%s3 + $0x1e8] sm:$0xff] %vm2121, %v2108
  %2184 = vst.msk [vmem:[%s3 + $0x1f0] sm:$0xff] %vm2121, %v2113
  %2185 = vst.msk [vmem:[%s3 + $0x1f8] sm:$0xff] %vm2121, %v2118
  // Predicated region
  $region14: #{conv_neural_network_forward.8} parent=0 // pred_check
    _
  $region15: #{conv_neural_network_forward.8} parent=0 // pred_check_branch
    %2187 = sbr.rel (0) target = $region17
  $region16: #{conv_neural_network_forward.8} parent=0 // pred_region
    _
  $region17: #{conv_neural_network_forward.8} parent=0 // pred_fallthru
    _
  // Predicated region
  $region18: #{conv_neural_network_forward.8} parent=0 // pred_check
    _
  $region19: #{conv_neural_network_forward.8} parent=0 // pred_check_branch
    %2189 = sbr.rel (0) target = $region21
  $region20: #{conv_neural_network_forward.8} parent=0 // pred_region
    _
  $region21: #{conv_neural_network_forward.8} parent=0 // pred_fallthru
    _

// kernel: conv_neural_network_forward.9
$region0: #{conv_neural_network_forward.9}
  #allocation0 [shape = 'u32[]', space=smem, size = 0x4, offset = 0x4, fixed_abs, tag = 'smem constant byte address 0x4 - core index']
  #allocation1 [shape = 'u32[144,128]{1,0:T(1,128)}', space=vmem, size = 0x12000, scoped, tag = 'internal scratch']
  %s0 = inlined_call_operand.vmem [shape: f32[2,8,8,32], index: 0, kind: input, shape index: {}]
  %s1 = inlined_call_operand.vmem [shape: f32[2,8,8,32], index: 1, kind: input, shape index: {}]
  %s2 = inlined_call_operand.vmem [shape: f32[2,8,8,32], index: 2, kind: input, shape index: {}]
  %s3 = inlined_call_operand.vmem [shape: f32[2,8,8,32], index: 3, kind: input, shape index: {}]
  %s4 = inlined_call_operand.vmem [shape: f32[2,8,8,32], index: 4, kind: output, shape index: {}]
  %s5 = sld [smem:[#allocation0]]
  $region26: #{conv_neural_network_forward.9} parent=0
    _
  %s7 = ssub.s32 1, %s5
  %s8 = scalar_select 0, %s7, %s5
  // Predicated region
  $region2: #{conv_neural_network_forward.9} parent=0 // pred_check
    _
  $region3: #{conv_neural_network_forward.9} parent=0 // pred_check_branch
    %10 = sbr.rel (0) target = $region5
  $region4: #{conv_neural_network_forward.9} parent=0 // pred_region
    _
  $region5: #{conv_neural_network_forward.9} parent=0 // pred_fallthru
    _
  // Predicated region
  $region6: #{conv_neural_network_forward.9} parent=0 // pred_check
    _
  $region7: #{conv_neural_network_forward.9} parent=0 // pred_check_branch
    %12 = sbr.rel (0) target = $region9
  $region8: #{conv_neural_network_forward.9} parent=0 // pred_region
    _
  $region9: #{conv_neural_network_forward.9} parent=0 // pred_fallthru
    _
  // Predicated region
  $region10: #{conv_neural_network_forward.9} parent=0 // pred_check
    _
  $region11: #{conv_neural_network_forward.9} parent=0 // pred_check_branch
    %14 = sbr.rel (0) target = $region13
  $region12: #{conv_neural_network_forward.9} parent=0 // pred_region
    _
  $region13: #{conv_neural_network_forward.9} parent=0 // pred_fallthru
    _
  // Predicated region
  $region14: #{conv_neural_network_forward.9} parent=0 // pred_check
    _
  $region15: #{conv_neural_network_forward.9} parent=0 // pred_check_branch
    %16 = sbr.rel (0) target = $region17
  $region16: #{conv_neural_network_forward.9} parent=0 // pred_region
    _
  $region17: #{conv_neural_network_forward.9} parent=0 // pred_fallthru
    _
  %v17 = vld [vmem:[%s0] sm:$0xff]
  %v18 = vld [vmem:[%s0 + $0x8] sm:$0xff]
  %v19 = vld [vmem:[%s0 + $0x10] sm:$0xff]
  %v20 = vld [vmem:[%s0 + $0x18] sm:$0xff]
  %v21 = vld [vmem:[%s0 + $0x20] sm:$0xff]
  %v22 = vld [vmem:[%s0 + $0x28] sm:$0xff]
  %v23 = vld [vmem:[%s0 + $0x30] sm:$0xff]
  %v24 = vld [vmem:[%s0 + $0x38] sm:$0xff]
  %v25 = vld [vmem:[%s0 + $0x40] sm:$0xff]
  %v26 = vld [vmem:[%s0 + $0x48] sm:$0xff]
  %v27 = vld [vmem:[%s0 + $0x50] sm:$0xff]
  %v28 = vld [vmem:[%s0 + $0x58] sm:$0xff]
  %v29 = vld [vmem:[%s0 + $0x60] sm:$0xff]
  %v30 = vld [vmem:[%s0 + $0x68] sm:$0xff]
  %v31 = vld [vmem:[%s0 + $0x70] sm:$0xff]
  %v32 = vld [vmem:[%s0 + $0x78] sm:$0xff]
  %v33 = vld [vmem:[%s1] sm:$0xff]
  %v34 = vld [vmem:[%s1 + $0x8] sm:$0xff]
  %v35 = vld [vmem:[%s1 + $0x10] sm:$0xff]
  %v36 = vld [vmem:[%s1 + $0x18] sm:$0xff]
  %v37 = vld [vmem:[%s1 + $0x20] sm:$0xff]
  %v38 = vld [vmem:[%s1 + $0x28] sm:$0xff]
  %v39 = vld [vmem:[%s1 + $0x30] sm:$0xff]
  %v40 = vld [vmem:[%s1 + $0x38] sm:$0xff]
  %v41 = vld [vmem:[%s1 + $0x40] sm:$0xff]
  %v42 = vld [vmem:[%s1 + $0x48] sm:$0xff]
  %v43 = vld [vmem:[%s1 + $0x50] sm:$0xff]
  %v44 = vld [vmem:[%s1 + $0x58] sm:$0xff]
  %v45 = vld [vmem:[%s1 + $0x60] sm:$0xff]
  %v46 = vld [vmem:[%s1 + $0x68] sm:$0xff]
  %v47 = vld [vmem:[%s1 + $0x70] sm:$0xff]
  %v48 = vld [vmem:[%s1 + $0x78] sm:$0xff]
  %v49 = vmax.f32 %v17, %v33
  %v50 = vmax.f32 %v18, %v34
  %v51 = vmax.f32 %v19, %v35
  %v52 = vmax.f32 %v20, %v36
  %v53 = vmax.f32 %v21, %v37
  %v54 = vmax.f32 %v22, %v38
  %v55 = vmax.f32 %v23, %v39
  %v56 = vmax.f32 %v24, %v40
  %v57 = vmax.f32 %v25, %v41
  %v58 = vmax.f32 %v26, %v42
  %v59 = vmax.f32 %v27, %v43
  %v60 = vmax.f32 %v28, %v44
  %v61 = vmax.f32 %v29, %v45
  %v62 = vmax.f32 %v30, %v46
  %v63 = vmax.f32 %v31, %v47
  %v64 = vmax.f32 %v32, %v48
  %v65 = vld [vmem:[%s2] sm:$0xff]
  %v66 = vld [vmem:[%s2 + $0x8] sm:$0xff]
  %v67 = vld [vmem:[%s2 + $0x10] sm:$0xff]
  %v68 = vld [vmem:[%s2 + $0x18] sm:$0xff]
  %v69 = vld [vmem:[%s2 + $0x20] sm:$0xff]
  %v70 = vld [vmem:[%s2 + $0x28] sm:$0xff]
  %v71 = vld [vmem:[%s2 + $0x30] sm:$0xff]
  %v72 = vld [vmem:[%s2 + $0x38] sm:$0xff]
  %v73 = vld [vmem:[%s2 + $0x40] sm:$0xff]
  %v74 = vld [vmem:[%s2 + $0x48] sm:$0xff]
  %v75 = vld [vmem:[%s2 + $0x50] sm:$0xff]
  %v76 = vld [vmem:[%s2 + $0x58] sm:$0xff]
  %v77 = vld [vmem:[%s2 + $0x60] sm:$0xff]
  %v78 = vld [vmem:[%s2 + $0x68] sm:$0xff]
  %v79 = vld [vmem:[%s2 + $0x70] sm:$0xff]
  %v80 = vld [vmem:[%s2 + $0x78] sm:$0xff]
  %v81 = vld [vmem:[%s3] sm:$0xff]
  %v82 = vld [vmem:[%s3 + $0x8] sm:$0xff]
  %v83 = vld [vmem:[%s3 + $0x10] sm:$0xff]
  %v84 = vld [vmem:[%s3 + $0x18] sm:$0xff]
  %v85 = vld [vmem:[%s3 + $0x20] sm:$0xff]
  %v86 = vld [vmem:[%s3 + $0x28] sm:$0xff]
  %v87 = vld [vmem:[%s3 + $0x30] sm:$0xff]
  %v88 = vld [vmem:[%s3 + $0x38] sm:$0xff]
  %v89 = vld [vmem:[%s3 + $0x40] sm:$0xff]
  %v90 = vld [vmem:[%s3 + $0x48] sm:$0xff]
  %v91 = vld [vmem:[%s3 + $0x50] sm:$0xff]
  %v92 = vld [vmem:[%s3 + $0x58] sm:$0xff]
  %v93 = vld [vmem:[%s3 + $0x60] sm:$0xff]
  %v94 = vld [vmem:[%s3 + $0x68] sm:$0xff]
  %v95 = vld [vmem:[%s3 + $0x70] sm:$0xff]
  %v96 = vld [vmem:[%s3 + $0x78] sm:$0xff]
  %v97 = vmax.f32 %v65, %v81
  %v98 = vmax.f32 %v66, %v82
  %v99 = vmax.f32 %v67, %v83
  %v100 = vmax.f32 %v68, %v84
  %v101 = vmax.f32 %v69, %v85
  %v102 = vmax.f32 %v70, %v86
  %v103 = vmax.f32 %v71, %v87
  %v104 = vmax.f32 %v72, %v88
  %v105 = vmax.f32 %v73, %v89
  %v106 = vmax.f32 %v74, %v90
  %v107 = vmax.f32 %v75, %v91
  %v108 = vmax.f32 %v76, %v92
  %v109 = vmax.f32 %v77, %v93
  %v110 = vmax.f32 %v78, %v94
  %v111 = vmax.f32 %v79, %v95
  %v112 = vmax.f32 %v80, %v96
  %v113 = vmax.f32 %v49, %v97
  %v114 = vmax.f32 %v50, %v98
  %v115 = vmax.f32 %v51, %v99
  %v116 = vmax.f32 %v52, %v100
  %v117 = vmax.f32 %v53, %v101
  %v118 = vmax.f32 %v54, %v102
  %v119 = vmax.f32 %v55, %v103
  %v120 = vmax.f32 %v56, %v104
  %v121 = vmax.f32 %v57, %v105
  %v122 = vmax.f32 %v58, %v106
  %v123 = vmax.f32 %v59, %v107
  %v124 = vmax.f32 %v60, %v108
  %v125 = vmax.f32 %v61, %v109
  %v126 = vmax.f32 %v62, %v110
  %v127 = vmax.f32 %v63, %v111
  %v128 = vmax.f32 %v64, %v112
  %vm129 = vcmask 261120
  %130 = vst.msk [vmem:[%s4] sm:$0xff] %vm129, %v113
  %131 = vst.msk [vmem:[%s4 + $0x8] sm:$0xff] %vm129, %v114
  %132 = vst.msk [vmem:[%s4 + $0x10] sm:$0xff] %vm129, %v115
  %133 = vst.msk [vmem:[%s4 + $0x18] sm:$0xff] %vm129, %v116
  %134 = vst.msk [vmem:[%s4 + $0x20] sm:$0xff] %vm129, %v117
  %135 = vst.msk [vmem:[%s4 + $0x28] sm:$0xff] %vm129, %v118
  %136 = vst.msk [vmem:[%s4 + $0x30] sm:$0xff] %vm129, %v119
  %137 = vst.msk [vmem:[%s4 + $0x38] sm:$0xff] %vm129, %v120
  %138 = vst.msk [vmem:[%s4 + $0x40] sm:$0xff] %vm129, %v121
  %139 = vst.msk [vmem:[%s4 + $0x48] sm:$0xff] %vm129, %v122
  %140 = vst.msk [vmem:[%s4 + $0x50] sm:$0xff] %vm129, %v123
  %141 = vst.msk [vmem:[%s4 + $0x58] sm:$0xff] %vm129, %v124
  %142 = vst.msk [vmem:[%s4 + $0x60] sm:$0xff] %vm129, %v125
  %143 = vst.msk [vmem:[%s4 + $0x68] sm:$0xff] %vm129, %v126
  %144 = vst.msk [vmem:[%s4 + $0x70] sm:$0xff] %vm129, %v127
  %145 = vst.msk [vmem:[%s4 + $0x78] sm:$0xff] %vm129, %v128
  // Predicated region
  $region18: #{conv_neural_network_forward.9} parent=0 // pred_check
    _
  $region19: #{conv_neural_network_forward.9} parent=0 // pred_check_branch
    %147 = sbr.rel (0) target = $region21
  $region20: #{conv_neural_network_forward.9} parent=0 // pred_region
    _
  $region21: #{conv_neural_network_forward.9} parent=0 // pred_fallthru
    _
  // Predicated region
  $region22: #{conv_neural_network_forward.9} parent=0 // pred_check
    _
  $region23: #{conv_neural_network_forward.9} parent=0 // pred_check_branch
    %149 = sbr.rel (0) target = $region25
  $region24: #{conv_neural_network_forward.9} parent=0 // pred_region
    _
  $region25: #{conv_neural_network_forward.9} parent=0 // pred_fallthru
    _

// kernel: conv_neural_network_forward.10
$region0: #{conv_neural_network_forward.10}
  #allocation0 [shape = 'u32[]', space=smem, size = 0x4, offset = 0x4, fixed_abs, tag = 'smem constant byte address 0x4 - core index']
  #allocation1 [shape = 'u32[144,128]{1,0:T(1,128)}', space=vmem, size = 0x12000, scoped, tag = 'internal scratch']
  %s0 = inlined_call_operand.vmem [shape: f32[128,1664], index: 0, kind: input, shape index: {}]
  %s1 = inlined_call_operand.vmem [shape: f32[1664,64], index: 1, kind: input, shape index: {}]
  %s2 = inlined_call_operand.vmem [shape: f32[1,64], index: 2, kind: input, shape index: {}]
  %s3 = inlined_call_operand.vmem [shape: f32[128,64], index: 3, kind: output, shape index: {}]
  %s4 = sld [smem:[#allocation0]]
  $region22: #{conv_neural_network_forward.10} parent=0
    _
  %s6 = ssub.s32 1, %s4
  %s7 = scalar_select 0, %s6, %s4
  // Predicated region
  $region2: #{conv_neural_network_forward.10} parent=0 // pred_check
    _
  $region3: #{conv_neural_network_forward.10} parent=0 // pred_check_branch
    %9 = sbr.rel (0) target = $region5
  $region4: #{conv_neural_network_forward.10} parent=0 // pred_region
    _
  $region5: #{conv_neural_network_forward.10} parent=0 // pred_fallthru
    _
  // Predicated region
  $region6: #{conv_neural_network_forward.10} parent=0 // pred_check
    _
  $region7: #{conv_neural_network_forward.10} parent=0 // pred_check_branch
    %11 = sbr.rel (0) target = $region9
  $region8: #{conv_neural_network_forward.10} parent=0 // pred_region
    _
  $region9: #{conv_neural_network_forward.10} parent=0 // pred_fallthru
    _
  // Predicated region
  $region10: #{conv_neural_network_forward.10} parent=0 // pred_check
    _
  $region11: #{conv_neural_network_forward.10} parent=0 // pred_check_branch
    %13 = sbr.rel (0) target = $region13
  $region12: #{conv_neural_network_forward.10} parent=0 // pred_region
    _
  $region13: #{conv_neural_network_forward.10} parent=0 // pred_fallthru
    _
  %v14 = vld [vmem:[%s0] sm:$0xff]
  %v15 = vld [vmem:[%s0 + $0x8] sm:$0xff]
  %v16 = vld [vmem:[%s0 + $0x10] sm:$0xff]
  %v17 = vld [vmem:[%s0 + $0x18] sm:$0xff]
  %v18 = vld [vmem:[%s0 + $0x20] sm:$0xff]
  %v19 = vld [vmem:[%s0 + $0x28] sm:$0xff]
  %v20 = vld [vmem:[%s0 + $0x30] sm:$0xff]
  %v21 = vld [vmem:[%s0 + $0x38] sm:$0xff]
  %v22 = vld [vmem:[%s0 + $0x40] sm:$0xff]
  %v23 = vld [vmem:[%s0 + $0x48] sm:$0xff]
  %v24 = vld [vmem:[%s0 + $0x50] sm:$0xff]
  %v25 = vld [vmem:[%s0 + $0x58] sm:$0xff]
  %v26 = vld [vmem:[%s0 + $0x60] sm:$0xff]
  %v27 = vld [vmem:[%s0 + $0x68] sm:$0xff]
  %v28 = vld [vmem:[%s0 + $0x70] sm:$0xff]
  %v29 = vld [vmem:[%s0 + $0x78] sm:$0xff]
  %v30 = vld [vmem:[%s0 + $0x80] sm:$0xff]
  %v31 = vld [vmem:[%s0 + $0x88] sm:$0xff]
  %v32 = vld [vmem:[%s0 + $0x90] sm:$0xff]
  %v33 = vld [vmem:[%s0 + $0x98] sm:$0xff]
  %v34 = vld [vmem:[%s0 + $0xa0] sm:$0xff]
  %v35 = vld [vmem:[%s0 + $0xa8] sm:$0xff]
  %v36 = vld [vmem:[%s0 + $0xb0] sm:$0xff]
  %v37 = vld [vmem:[%s0 + $0xb8] sm:$0xff]
  %v38 = vld [vmem:[%s0 + $0xc0] sm:$0xff]
  %v39 = vld [vmem:[%s0 + $0xc8] sm:$0xff]
  %v40 = vld [vmem:[%s0 + $0xd0] sm:$0xff]
  %v41 = vld [vmem:[%s0 + $0xd8] sm:$0xff]
  %v42 = vld [vmem:[%s0 + $0xe0] sm:$0xff]
  %v43 = vld [vmem:[%s0 + $0xe8] sm:$0xff]
  %v44 = vld [vmem:[%s0 + $0xf0] sm:$0xff]
  %v45 = vld [vmem:[%s0 + $0xf8] sm:$0xff]
  %v46 = vld [vmem:[%s0 + $0x100] sm:$0xff]
  %v47 = vld [vmem:[%s0 + $0x108] sm:$0xff]
  %v48 = vld [vmem:[%s0 + $0x110] sm:$0xff]
  %v49 = vld [vmem:[%s0 + $0x118] sm:$0xff]
  %v50 = vld [vmem:[%s0 + $0x120] sm:$0xff]
  %v51 = vld [vmem:[%s0 + $0x128] sm:$0xff]
  %v52 = vld [vmem:[%s0 + $0x130] sm:$0xff]
  %v53 = vld [vmem:[%s0 + $0x138] sm:$0xff]
  %v54 = vld [vmem:[%s0 + $0x140] sm:$0xff]
  %v55 = vld [vmem:[%s0 + $0x148] sm:$0xff]
  %v56 = vld [vmem:[%s0 + $0x150] sm:$0xff]
  %v57 = vld [vmem:[%s0 + $0x158] sm:$0xff]
  %v58 = vld [vmem:[%s0 + $0x160] sm:$0xff]
  %v59 = vld [vmem:[%s0 + $0x168] sm:$0xff]
  %v60 = vld [vmem:[%s0 + $0x170] sm:$0xff]
  %v61 = vld [vmem:[%s0 + $0x178] sm:$0xff]
  %v62 = vld [vmem:[%s0 + $0x180] sm:$0xff]
  %v63 = vld [vmem:[%s0 + $0x188] sm:$0xff]
  %v64 = vld [vmem:[%s0 + $0x190] sm:$0xff]
  %v65 = vld [vmem:[%s0 + $0x198] sm:$0xff]
  %v66 = vld [vmem:[%s0 + $0x1a0] sm:$0xff]
  %v67 = vld [vmem:[%s0 + $0x1a8] sm:$0xff]
  %v68 = vld [vmem:[%s0 + $0x1b0] sm:$0xff]
  %v69 = vld [vmem:[%s0 + $0x1b8] sm:$0xff]
  %v70 = vld [vmem:[%s0 + $0x1c0] sm:$0xff]
  %v71 = vld [vmem:[%s0 + $0x1c8] sm:$0xff]
  %v72 = vld [vmem:[%s0 + $0x1d0] sm:$0xff]
  %v73 = vld [vmem:[%s0 + $0x1d8] sm:$0xff]
  %v74 = vld [vmem:[%s0 + $0x1e0] sm:$0xff]
  %v75 = vld [vmem:[%s0 + $0x1e8] sm:$0xff]
  %v76 = vld [vmem:[%s0 + $0x1f0] sm:$0xff]
  %v77 = vld [vmem:[%s0 + $0x1f8] sm:$0xff]
  %v78 = vld [vmem:[%s0 + $0x200] sm:$0xff]
  %v79 = vld [vmem:[%s0 + $0x208] sm:$0xff]
  %v80 = vld [vmem:[%s0 + $0x210] sm:$0xff]
  %v81 = vld [vmem:[%s0 + $0x218] sm:$0xff]
  %v82 = vld [vmem:[%s0 + $0x220] sm:$0xff]
  %v83 = vld [vmem:[%s0 + $0x228] sm:$0xff]
  %v84 = vld [vmem:[%s0 + $0x230] sm:$0xff]
  %v85 = vld [vmem:[%s0 + $0x238] sm:$0xff]
  %v86 = vld [vmem:[%s0 + $0x240] sm:$0xff]
  %v87 = vld [vmem:[%s0 + $0x248] sm:$0xff]
  %v88 = vld [vmem:[%s0 + $0x250] sm:$0xff]
  %v89 = vld [vmem:[%s0 + $0x258] sm:$0xff]
  %v90 = vld [vmem:[%s0 + $0x260] sm:$0xff]
  %v91 = vld [vmem:[%s0 + $0x268] sm:$0xff]
  %v92 = vld [vmem:[%s0 + $0x270] sm:$0xff]
  %v93 = vld [vmem:[%s0 + $0x278] sm:$0xff]
  %v94 = vld [vmem:[%s0 + $0x280] sm:$0xff]
  %v95 = vld [vmem:[%s0 + $0x288] sm:$0xff]
  %v96 = vld [vmem:[%s0 + $0x290] sm:$0xff]
  %v97 = vld [vmem:[%s0 + $0x298] sm:$0xff]
  %v98 = vld [vmem:[%s0 + $0x2a0] sm:$0xff]
  %v99 = vld [vmem:[%s0 + $0x2a8] sm:$0xff]
  %v100 = vld [vmem:[%s0 + $0x2b0] sm:$0xff]
  %v101 = vld [vmem:[%s0 + $0x2b8] sm:$0xff]
  %v102 = vld [vmem:[%s0 + $0x2c0] sm:$0xff]
  %v103 = vld [vmem:[%s0 + $0x2c8] sm:$0xff]
  %v104 = vld [vmem:[%s0 + $0x2d0] sm:$0xff]
  %v105 = vld [vmem:[%s0 + $0x2d8] sm:$0xff]
  %v106 = vld [vmem:[%s0 + $0x2e0] sm:$0xff]
  %v107 = vld [vmem:[%s0 + $0x2e8] sm:$0xff]
  %v108 = vld [vmem:[%s0 + $0x2f0] sm:$0xff]
  %v109 = vld [vmem:[%s0 + $0x2f8] sm:$0xff]
  %v110 = vld [vmem:[%s0 + $0x300] sm:$0xff]
  %v111 = vld [vmem:[%s0 + $0x308] sm:$0xff]
  %v112 = vld [vmem:[%s0 + $0x310] sm:$0xff]
  %v113 = vld [vmem:[%s0 + $0x318] sm:$0xff]
  %v114 = vld [vmem:[%s0 + $0x320] sm:$0xff]
  %v115 = vld [vmem:[%s0 + $0x328] sm:$0xff]
  %v116 = vld [vmem:[%s0 + $0x330] sm:$0xff]
  %v117 = vld [vmem:[%s0 + $0x338] sm:$0xff]
  %v118 = vld [vmem:[%s0 + $0x340] sm:$0xff]
  %v119 = vld [vmem:[%s0 + $0x348] sm:$0xff]
  %v120 = vld [vmem:[%s0 + $0x350] sm:$0xff]
  %v121 = vld [vmem:[%s0 + $0x358] sm:$0xff]
  %v122 = vld [vmem:[%s0 + $0x360] sm:$0xff]
  %v123 = vld [vmem:[%s0 + $0x368] sm:$0xff]
  %v124 = vld [vmem:[%s0 + $0x370] sm:$0xff]
  %v125 = vld [vmem:[%s0 + $0x378] sm:$0xff]
  %v126 = vld [vmem:[%s0 + $0x380] sm:$0xff]
  %v127 = vld [vmem:[%s0 + $0x388] sm:$0xff]
  %v128 = vld [vmem:[%s0 + $0x390] sm:$0xff]
  %v129 = vld [vmem:[%s0 + $0x398] sm:$0xff]
  %v130 = vld [vmem:[%s0 + $0x3a0] sm:$0xff]
  %v131 = vld [vmem:[%s0 + $0x3a8] sm:$0xff]
  %v132 = vld [vmem:[%s0 + $0x3b0] sm:$0xff]
  %v133 = vld [vmem:[%s0 + $0x3b8] sm:$0xff]
  %v134 = vld [vmem:[%s0 + $0x3c0] sm:$0xff]
  %v135 = vld [vmem:[%s0 + $0x3c8] sm:$0xff]
  %v136 = vld [vmem:[%s0 + $0x3d0] sm:$0xff]
  %v137 = vld [vmem:[%s0 + $0x3d8] sm:$0xff]
  %v138 = vld [vmem:[%s0 + $0x3e0] sm:$0xff]
  %v139 = vld [vmem:[%s0 + $0x3e8] sm:$0xff]
  %v140 = vld [vmem:[%s0 + $0x3f0] sm:$0xff]
  %v141 = vld [vmem:[%s0 + $0x3f8] sm:$0xff]
  %v142 = vld [vmem:[%s0 + $0x400] sm:$0xff]
  %v143 = vld [vmem:[%s0 + $0x408] sm:$0xff]
  %v144 = vld [vmem:[%s0 + $0x410] sm:$0xff]
  %v145 = vld [vmem:[%s0 + $0x418] sm:$0xff]
  %v146 = vld [vmem:[%s0 + $0x420] sm:$0xff]
  %v147 = vld [vmem:[%s0 + $0x428] sm:$0xff]
  %v148 = vld [vmem:[%s0 + $0x430] sm:$0xff]
  %v149 = vld [vmem:[%s0 + $0x438] sm:$0xff]
  %v150 = vld [vmem:[%s0 + $0x440] sm:$0xff]
  %v151 = vld [vmem:[%s0 + $0x448] sm:$0xff]
  %v152 = vld [vmem:[%s0 + $0x450] sm:$0xff]
  %v153 = vld [vmem:[%s0 + $0x458] sm:$0xff]
  %v154 = vld [vmem:[%s0 + $0x460] sm:$0xff]
  %v155 = vld [vmem:[%s0 + $0x468] sm:$0xff]
  %v156 = vld [vmem:[%s0 + $0x470] sm:$0xff]
  %v157 = vld [vmem:[%s0 + $0x478] sm:$0xff]
  %v158 = vld [vmem:[%s0 + $0x480] sm:$0xff]
  %v159 = vld [vmem:[%s0 + $0x488] sm:$0xff]
  %v160 = vld [vmem:[%s0 + $0x490] sm:$0xff]
  %v161 = vld [vmem:[%s0 + $0x498] sm:$0xff]
  %v162 = vld [vmem:[%s0 + $0x4a0] sm:$0xff]
  %v163 = vld [vmem:[%s0 + $0x4a8] sm:$0xff]
  %v164 = vld [vmem:[%s0 + $0x4b0] sm:$0xff]
  %v165 = vld [vmem:[%s0 + $0x4b8] sm:$0xff]
  %v166 = vld [vmem:[%s0 + $0x4c0] sm:$0xff]
  %v167 = vld [vmem:[%s0 + $0x4c8] sm:$0xff]
  %v168 = vld [vmem:[%s0 + $0x4d0] sm:$0xff]
  %v169 = vld [vmem:[%s0 + $0x4d8] sm:$0xff]
  %v170 = vld [vmem:[%s0 + $0x4e0] sm:$0xff]
  %v171 = vld [vmem:[%s0 + $0x4e8] sm:$0xff]
  %v172 = vld [vmem:[%s0 + $0x4f0] sm:$0xff]
  %v173 = vld [vmem:[%s0 + $0x4f8] sm:$0xff]
  %v174 = vld [vmem:[%s0 + $0x500] sm:$0xff]
  %v175 = vld [vmem:[%s0 + $0x508] sm:$0xff]
  %v176 = vld [vmem:[%s0 + $0x510] sm:$0xff]
  %v177 = vld [vmem:[%s0 + $0x518] sm:$0xff]
  %v178 = vld [vmem:[%s0 + $0x520] sm:$0xff]
  %v179 = vld [vmem:[%s0 + $0x528] sm:$0xff]
  %v180 = vld [vmem:[%s0 + $0x530] sm:$0xff]
  %v181 = vld [vmem:[%s0 + $0x538] sm:$0xff]
  %v182 = vld [vmem:[%s0 + $0x540] sm:$0xff]
  %v183 = vld [vmem:[%s0 + $0x548] sm:$0xff]
  %v184 = vld [vmem:[%s0 + $0x550] sm:$0xff]
  %v185 = vld [vmem:[%s0 + $0x558] sm:$0xff]
  %v186 = vld [vmem:[%s0 + $0x560] sm:$0xff]
  %v187 = vld [vmem:[%s0 + $0x568] sm:$0xff]
  %v188 = vld [vmem:[%s0 + $0x570] sm:$0xff]
  %v189 = vld [vmem:[%s0 + $0x578] sm:$0xff]
  %v190 = vld [vmem:[%s0 + $0x580] sm:$0xff]
  %v191 = vld [vmem:[%s0 + $0x588] sm:$0xff]
  %v192 = vld [vmem:[%s0 + $0x590] sm:$0xff]
  %v193 = vld [vmem:[%s0 + $0x598] sm:$0xff]
  %v194 = vld [vmem:[%s0 + $0x5a0] sm:$0xff]
  %v195 = vld [vmem:[%s0 + $0x5a8] sm:$0xff]
  %v196 = vld [vmem:[%s0 + $0x5b0] sm:$0xff]
  %v197 = vld [vmem:[%s0 + $0x5b8] sm:$0xff]
  %v198 = vld [vmem:[%s0 + $0x5c0] sm:$0xff]
  %v199 = vld [vmem:[%s0 + $0x5c8] sm:$0xff]
  %v200 = vld [vmem:[%s0 + $0x5d0] sm:$0xff]
  %v201 = vld [vmem:[%s0 + $0x5d8] sm:$0xff]
  %v202 = vld [vmem:[%s0 + $0x5e0] sm:$0xff]
  %v203 = vld [vmem:[%s0 + $0x5e8] sm:$0xff]
  %v204 = vld [vmem:[%s0 + $0x5f0] sm:$0xff]
  %v205 = vld [vmem:[%s0 + $0x5f8] sm:$0xff]
  %v206 = vld [vmem:[%s0 + $0x600] sm:$0xff]
  %v207 = vld [vmem:[%s0 + $0x608] sm:$0xff]
  %v208 = vld [vmem:[%s0 + $0x610] sm:$0xff]
  %v209 = vld [vmem:[%s0 + $0x618] sm:$0xff]
  %v210 = vld [vmem:[%s0 + $0x620] sm:$0xff]
  %v211 = vld [vmem:[%s0 + $0x628] sm:$0xff]
  %v212 = vld [vmem:[%s0 + $0x630] sm:$0xff]
  %v213 = vld [vmem:[%s0 + $0x638] sm:$0xff]
  %v214 = vld [vmem:[%s0 + $0x640] sm:$0xff]
  %v215 = vld [vmem:[%s0 + $0x648] sm:$0xff]
  %v216 = vld [vmem:[%s0 + $0x650] sm:$0xff]
  %v217 = vld [vmem:[%s0 + $0x658] sm:$0xff]
  %v218 = vld [vmem:[%s0 + $0x660] sm:$0xff]
  %v219 = vld [vmem:[%s0 + $0x668] sm:$0xff]
  %v220 = vld [vmem:[%s0 + $0x670] sm:$0xff]
  %v221 = vld [vmem:[%s0 + $0x678] sm:$0xff]
  %v222 = vld [vmem:[%s1] sm:$0xff]
  %v223 = vld [vmem:[%s1 + $0x8] sm:$0xff]
  %v224 = vld [vmem:[%s1 + $0x10] sm:$0xff]
  %v225 = vld [vmem:[%s1 + $0x18] sm:$0xff]
  %v226 = vld [vmem:[%s1 + $0x20] sm:$0xff]
  %v227 = vld [vmem:[%s1 + $0x28] sm:$0xff]
  %v228 = vld [vmem:[%s1 + $0x30] sm:$0xff]
  %v229 = vld [vmem:[%s1 + $0x38] sm:$0xff]
  %v230 = vld [vmem:[%s1 + $0x40] sm:$0xff]
  %v231 = vld [vmem:[%s1 + $0x48] sm:$0xff]
  %v232 = vld [vmem:[%s1 + $0x50] sm:$0xff]
  %v233 = vld [vmem:[%s1 + $0x58] sm:$0xff]
  %v234 = vld [vmem:[%s1 + $0x60] sm:$0xff]
  %v235 = vld [vmem:[%s1 + $0x68] sm:$0xff]
  %v236 = vld [vmem:[%s1 + $0x70] sm:$0xff]
  %v237 = vld [vmem:[%s1 + $0x78] sm:$0xff]
  %v238 = vld [vmem:[%s1 + $0x80] sm:$0xff]
  %v239 = vld [vmem:[%s1 + $0x88] sm:$0xff]
  %v240 = vld [vmem:[%s1 + $0x90] sm:$0xff]
  %v241 = vld [vmem:[%s1 + $0x98] sm:$0xff]
  %v242 = vld [vmem:[%s1 + $0xa0] sm:$0xff]
  %v243 = vld [vmem:[%s1 + $0xa8] sm:$0xff]
  %v244 = vld [vmem:[%s1 + $0xb0] sm:$0xff]
  %v245 = vld [vmem:[%s1 + $0xb8] sm:$0xff]
  %v246 = vld [vmem:[%s1 + $0xc0] sm:$0xff]
  %v247 = vld [vmem:[%s1 + $0xc8] sm:$0xff]
  %v248 = vld [vmem:[%s1 + $0xd0] sm:$0xff]
  %v249 = vld [vmem:[%s1 + $0xd8] sm:$0xff]
  %v250 = vld [vmem:[%s1 + $0xe0] sm:$0xff]
  %v251 = vld [vmem:[%s1 + $0xe8] sm:$0xff]
  %v252 = vld [vmem:[%s1 + $0xf0] sm:$0xff]
  %v253 = vld [vmem:[%s1 + $0xf8] sm:$0xff]
  %v254 = vld [vmem:[%s1 + $0x100] sm:$0xff]
  %v255 = vld [vmem:[%s1 + $0x108] sm:$0xff]
  %v256 = vld [vmem:[%s1 + $0x110] sm:$0xff]
  %v257 = vld [vmem:[%s1 + $0x118] sm:$0xff]
  %v258 = vld [vmem:[%s1 + $0x120] sm:$0xff]
  %v259 = vld [vmem:[%s1 + $0x128] sm:$0xff]
  %v260 = vld [vmem:[%s1 + $0x130] sm:$0xff]
  %v261 = vld [vmem:[%s1 + $0x138] sm:$0xff]
  %v262 = vld [vmem:[%s1 + $0x140] sm:$0xff]
  %v263 = vld [vmem:[%s1 + $0x148] sm:$0xff]
  %v264 = vld [vmem:[%s1 + $0x150] sm:$0xff]
  %v265 = vld [vmem:[%s1 + $0x158] sm:$0xff]
  %v266 = vld [vmem:[%s1 + $0x160] sm:$0xff]
  %v267 = vld [vmem:[%s1 + $0x168] sm:$0xff]
  %v268 = vld [vmem:[%s1 + $0x170] sm:$0xff]
  %v269 = vld [vmem:[%s1 + $0x178] sm:$0xff]
  %v270 = vld [vmem:[%s1 + $0x180] sm:$0xff]
  %v271 = vld [vmem:[%s1 + $0x188] sm:$0xff]
  %v272 = vld [vmem:[%s1 + $0x190] sm:$0xff]
  %v273 = vld [vmem:[%s1 + $0x198] sm:$0xff]
  %v274 = vld [vmem:[%s1 + $0x1a0] sm:$0xff]
  %v275 = vld [vmem:[%s1 + $0x1a8] sm:$0xff]
  %v276 = vld [vmem:[%s1 + $0x1b0] sm:$0xff]
  %v277 = vld [vmem:[%s1 + $0x1b8] sm:$0xff]
  %v278 = vld [vmem:[%s1 + $0x1c0] sm:$0xff]
  %v279 = vld [vmem:[%s1 + $0x1c8] sm:$0xff]
  %v280 = vld [vmem:[%s1 + $0x1d0] sm:$0xff]
  %v281 = vld [vmem:[%s1 + $0x1d8] sm:$0xff]
  %v282 = vld [vmem:[%s1 + $0x1e0] sm:$0xff]
  %v283 = vld [vmem:[%s1 + $0x1e8] sm:$0xff]
  %v284 = vld [vmem:[%s1 + $0x1f0] sm:$0xff]
  %v285 = vld [vmem:[%s1 + $0x1f8] sm:$0xff]
  %v286 = vld [vmem:[%s1 + $0x200] sm:$0xff]
  %v287 = vld [vmem:[%s1 + $0x208] sm:$0xff]
  %v288 = vld [vmem:[%s1 + $0x210] sm:$0xff]
  %v289 = vld [vmem:[%s1 + $0x218] sm:$0xff]
  %v290 = vld [vmem:[%s1 + $0x220] sm:$0xff]
  %v291 = vld [vmem:[%s1 + $0x228] sm:$0xff]
  %v292 = vld [vmem:[%s1 + $0x230] sm:$0xff]
  %v293 = vld [vmem:[%s1 + $0x238] sm:$0xff]
  %v294 = vld [vmem:[%s1 + $0x240] sm:$0xff]
  %v295 = vld [vmem:[%s1 + $0x248] sm:$0xff]
  %v296 = vld [vmem:[%s1 + $0x250] sm:$0xff]
  %v297 = vld [vmem:[%s1 + $0x258] sm:$0xff]
  %v298 = vld [vmem:[%s1 + $0x260] sm:$0xff]
  %v299 = vld [vmem:[%s1 + $0x268] sm:$0xff]
  %v300 = vld [vmem:[%s1 + $0x270] sm:$0xff]
  %v301 = vld [vmem:[%s1 + $0x278] sm:$0xff]
  %v302 = vld [vmem:[%s1 + $0x280] sm:$0xff]
  %v303 = vld [vmem:[%s1 + $0x288] sm:$0xff]
  %v304 = vld [vmem:[%s1 + $0x290] sm:$0xff]
  %v305 = vld [vmem:[%s1 + $0x298] sm:$0xff]
  %v306 = vld [vmem:[%s1 + $0x2a0] sm:$0xff]
  %v307 = vld [vmem:[%s1 + $0x2a8] sm:$0xff]
  %v308 = vld [vmem:[%s1 + $0x2b0] sm:$0xff]
  %v309 = vld [vmem:[%s1 + $0x2b8] sm:$0xff]
  %v310 = vld [vmem:[%s1 + $0x2c0] sm:$0xff]
  %v311 = vld [vmem:[%s1 + $0x2c8] sm:$0xff]
  %v312 = vld [vmem:[%s1 + $0x2d0] sm:$0xff]
  %v313 = vld [vmem:[%s1 + $0x2d8] sm:$0xff]
  %v314 = vld [vmem:[%s1 + $0x2e0] sm:$0xff]
  %v315 = vld [vmem:[%s1 + $0x2e8] sm:$0xff]
  %v316 = vld [vmem:[%s1 + $0x2f0] sm:$0xff]
  %v317 = vld [vmem:[%s1 + $0x2f8] sm:$0xff]
  %v318 = vld [vmem:[%s1 + $0x300] sm:$0xff]
  %v319 = vld [vmem:[%s1 + $0x308] sm:$0xff]
  %v320 = vld [vmem:[%s1 + $0x310] sm:$0xff]
  %v321 = vld [vmem:[%s1 + $0x318] sm:$0xff]
  %v322 = vld [vmem:[%s1 + $0x320] sm:$0xff]
  %v323 = vld [vmem:[%s1 + $0x328] sm:$0xff]
  %v324 = vld [vmem:[%s1 + $0x330] sm:$0xff]
  %v325 = vld [vmem:[%s1 + $0x338] sm:$0xff]
  %v326 = vld [vmem:[%s1 + $0x340] sm:$0xff]
  %v327 = vld [vmem:[%s1 + $0x348] sm:$0xff]
  %v328 = vld [vmem:[%s1 + $0x350] sm:$0xff]
  %v329 = vld [vmem:[%s1 + $0x358] sm:$0xff]
  %v330 = vld [vmem:[%s1 + $0x360] sm:$0xff]
  %v331 = vld [vmem:[%s1 + $0x368] sm:$0xff]
  %v332 = vld [vmem:[%s1 + $0x370] sm:$0xff]
  %v333 = vld [vmem:[%s1 + $0x378] sm:$0xff]
  %v334 = vld [vmem:[%s1 + $0x380] sm:$0xff]
  %v335 = vld [vmem:[%s1 + $0x388] sm:$0xff]
  %v336 = vld [vmem:[%s1 + $0x390] sm:$0xff]
  %v337 = vld [vmem:[%s1 + $0x398] sm:$0xff]
  %v338 = vld [vmem:[%s1 + $0x3a0] sm:$0xff]
  %v339 = vld [vmem:[%s1 + $0x3a8] sm:$0xff]
  %v340 = vld [vmem:[%s1 + $0x3b0] sm:$0xff]
  %v341 = vld [vmem:[%s1 + $0x3b8] sm:$0xff]
  %v342 = vld [vmem:[%s1 + $0x3c0] sm:$0xff]
  %v343 = vld [vmem:[%s1 + $0x3c8] sm:$0xff]
  %v344 = vld [vmem:[%s1 + $0x3d0] sm:$0xff]
  %v345 = vld [vmem:[%s1 + $0x3d8] sm:$0xff]
  %v346 = vld [vmem:[%s1 + $0x3e0] sm:$0xff]
  %v347 = vld [vmem:[%s1 + $0x3e8] sm:$0xff]
  %v348 = vld [vmem:[%s1 + $0x3f0] sm:$0xff]
  %v349 = vld [vmem:[%s1 + $0x3f8] sm:$0xff]
  %v350 = vld [vmem:[%s1 + $0x400] sm:$0xff]
  %v351 = vld [vmem:[%s1 + $0x408] sm:$0xff]
  %v352 = vld [vmem:[%s1 + $0x410] sm:$0xff]
  %v353 = vld [vmem:[%s1 + $0x418] sm:$0xff]
  %v354 = vld [vmem:[%s1 + $0x420] sm:$0xff]
  %v355 = vld [vmem:[%s1 + $0x428] sm:$0xff]
  %v356 = vld [vmem:[%s1 + $0x430] sm:$0xff]
  %v357 = vld [vmem:[%s1 + $0x438] sm:$0xff]
  %v358 = vld [vmem:[%s1 + $0x440] sm:$0xff]
  %v359 = vld [vmem:[%s1 + $0x448] sm:$0xff]
  %v360 = vld [vmem:[%s1 + $0x450] sm:$0xff]
  %v361 = vld [vmem:[%s1 + $0x458] sm:$0xff]
  %v362 = vld [vmem:[%s1 + $0x460] sm:$0xff]
  %v363 = vld [vmem:[%s1 + $0x468] sm:$0xff]
  %v364 = vld [vmem:[%s1 + $0x470] sm:$0xff]
  %v365 = vld [vmem:[%s1 + $0x478] sm:$0xff]
  %v366 = vld [vmem:[%s1 + $0x480] sm:$0xff]
  %v367 = vld [vmem:[%s1 + $0x488] sm:$0xff]
  %v368 = vld [vmem:[%s1 + $0x490] sm:$0xff]
  %v369 = vld [vmem:[%s1 + $0x498] sm:$0xff]
  %v370 = vld [vmem:[%s1 + $0x4a0] sm:$0xff]
  %v371 = vld [vmem:[%s1 + $0x4a8] sm:$0xff]
  %v372 = vld [vmem:[%s1 + $0x4b0] sm:$0xff]
  %v373 = vld [vmem:[%s1 + $0x4b8] sm:$0xff]
  %v374 = vld [vmem:[%s1 + $0x4c0] sm:$0xff]
  %v375 = vld [vmem:[%s1 + $0x4c8] sm:$0xff]
  %v376 = vld [vmem:[%s1 + $0x4d0] sm:$0xff]
  %v377 = vld [vmem:[%s1 + $0x4d8] sm:$0xff]
  %v378 = vld [vmem:[%s1 + $0x4e0] sm:$0xff]
  %v379 = vld [vmem:[%s1 + $0x4e8] sm:$0xff]
  %v380 = vld [vmem:[%s1 + $0x4f0] sm:$0xff]
  %v381 = vld [vmem:[%s1 + $0x4f8] sm:$0xff]
  %v382 = vld [vmem:[%s1 + $0x500] sm:$0xff]
  %v383 = vld [vmem:[%s1 + $0x508] sm:$0xff]
  %v384 = vld [vmem:[%s1 + $0x510] sm:$0xff]
  %v385 = vld [vmem:[%s1 + $0x518] sm:$0xff]
  %v386 = vld [vmem:[%s1 + $0x520] sm:$0xff]
  %v387 = vld [vmem:[%s1 + $0x528] sm:$0xff]
  %v388 = vld [vmem:[%s1 + $0x530] sm:$0xff]
  %v389 = vld [vmem:[%s1 + $0x538] sm:$0xff]
  %v390 = vld [vmem:[%s1 + $0x540] sm:$0xff]
  %v391 = vld [vmem:[%s1 + $0x548] sm:$0xff]
  %v392 = vld [vmem:[%s1 + $0x550] sm:$0xff]
  %v393 = vld [vmem:[%s1 + $0x558] sm:$0xff]
  %v394 = vld [vmem:[%s1 + $0x560] sm:$0xff]
  %v395 = vld [vmem:[%s1 + $0x568] sm:$0xff]
  %v396 = vld [vmem:[%s1 + $0x570] sm:$0xff]
  %v397 = vld [vmem:[%s1 + $0x578] sm:$0xff]
  %v398 = vld [vmem:[%s1 + $0x580] sm:$0xff]
  %v399 = vld [vmem:[%s1 + $0x588] sm:$0xff]
  %v400 = vld [vmem:[%s1 + $0x590] sm:$0xff]
  %v401 = vld [vmem:[%s1 + $0x598] sm:$0xff]
  %v402 = vld [vmem:[%s1 + $0x5a0] sm:$0xff]
  %v403 = vld [vmem:[%s1 + $0x5a8] sm:$0xff]
  %v404 = vld [vmem:[%s1 + $0x5b0] sm:$0xff]
  %v405 = vld [vmem:[%s1 + $0x5b8] sm:$0xff]
  %v406 = vld [vmem:[%s1 + $0x5c0] sm:$0xff]
  %v407 = vld [vmem:[%s1 + $0x5c8] sm:$0xff]
  %v408 = vld [vmem:[%s1 + $0x5d0] sm:$0xff]
  %v409 = vld [vmem:[%s1 + $0x5d8] sm:$0xff]
  %v410 = vld [vmem:[%s1 + $0x5e0] sm:$0xff]
  %v411 = vld [vmem:[%s1 + $0x5e8] sm:$0xff]
  %v412 = vld [vmem:[%s1 + $0x5f0] sm:$0xff]
  %v413 = vld [vmem:[%s1 + $0x5f8] sm:$0xff]
  %v414 = vld [vmem:[%s1 + $0x600] sm:$0xff]
  %v415 = vld [vmem:[%s1 + $0x608] sm:$0xff]
  %v416 = vld [vmem:[%s1 + $0x610] sm:$0xff]
  %v417 = vld [vmem:[%s1 + $0x618] sm:$0xff]
  %v418 = vld [vmem:[%s1 + $0x620] sm:$0xff]
  %v419 = vld [vmem:[%s1 + $0x628] sm:$0xff]
  %v420 = vld [vmem:[%s1 + $0x630] sm:$0xff]
  %v421 = vld [vmem:[%s1 + $0x638] sm:$0xff]
  %v422 = vld [vmem:[%s1 + $0x640] sm:$0xff]
  %v423 = vld [vmem:[%s1 + $0x648] sm:$0xff]
  %v424 = vld [vmem:[%s1 + $0x650] sm:$0xff]
  %v425 = vld [vmem:[%s1 + $0x658] sm:$0xff]
  %v426 = vld [vmem:[%s1 + $0x660] sm:$0xff]
  %v427 = vld [vmem:[%s1 + $0x668] sm:$0xff]
  %v428 = vld [vmem:[%s1 + $0x670] sm:$0xff]
  %v429 = vld [vmem:[%s1 + $0x678] sm:$0xff]
  %v430 = vld [vmem:[%s2] sm:$0x1]
  %v432 = vlaneseq
  %v433 = vshrl.u32 %v432, 7
  %v434 = vsub.s32 0, %v433
  %v435 = vrot.slane %v430, %v434
  %437 = vmatprep.subr.mxu0 0.0
  %438 = vmatpush1.msra.mxu0 %v222
  %439 = vmatprep.subr.mxu0 0.0
  %440 = vmatpush1.msra.mxu0 %v223
  %441 = vmatprep.subr.mxu0 0.0
  %442 = vmatpush1.msra.mxu0 %v224
  %443 = vmatprep.subr.mxu0 0.0
  %444 = vmatpush1.msra.mxu0 %v225
  %445 = vmatprep.subr.mxu0 0.0
  %446 = vmatpush1.msra.mxu0 %v226
  %447 = vmatprep.subr.mxu0 0.0
  %448 = vmatpush1.msra.mxu0 %v227
  %449 = vmatprep.subr.mxu0 0.0
  %450 = vmatpush1.msra.mxu0 %v228
  %451 = vmatprep.subr.mxu0 0.0
  %452 = vmatpush1.msra.mxu0 %v229
  %453 = vmatprep.subr.mxu0 0.0
  %454 = vmatpush1.msra.mxu0 %v230
  %455 = vmatprep.subr.mxu0 0.0
  %456 = vmatpush1.msra.mxu0 %v231
  %457 = vmatprep.subr.mxu0 0.0
  %458 = vmatpush1.msra.mxu0 %v232
  %459 = vmatprep.subr.mxu0 0.0
  %460 = vmatpush1.msra.mxu0 %v233
  %461 = vmatprep.subr.mxu0 0.0
  %462 = vmatpush1.msra.mxu0 %v234
  %463 = vmatprep.subr.mxu0 0.0
  %464 = vmatpush1.msra.mxu0 %v235
  %465 = vmatprep.subr.mxu0 0.0
  %466 = vmatpush1.msra.mxu0 %v236
  %467 = vmatprep.subr.mxu0 0.0
  %468 = vmatpush1.msra.mxu0 %v237
  %469 = vmatprep.subr.mxu0 0.0
  %470 = vmatpush1.msra.mxu0 %v238
  %471 = vmatprep.subr.mxu0 0.0
  %472 = vmatpush1.msra.mxu0 %v239
  %473 = vmatprep.subr.mxu0 0.0
  %474 = vmatpush1.msra.mxu0 %v240
  %475 = vmatprep.subr.mxu0 0.0
  %476 = vmatpush1.msra.mxu0 %v241
  %477 = vmatprep.subr.mxu0 0.0
  %478 = vmatpush1.msra.mxu0 %v242
  %479 = vmatprep.subr.mxu0 0.0
  %480 = vmatpush1.msra.mxu0 %v243
  %481 = vmatprep.subr.mxu0 0.0
  %482 = vmatpush1.msra.mxu0 %v244
  %483 = vmatprep.subr.mxu0 0.0
  %484 = vmatpush1.msra.mxu0 %v245
  %485 = vmatprep.subr.mxu0 0.0
  %486 = vmatpush1.msra.mxu0 %v246
  %487 = vmatprep.subr.mxu0 0.0
  %488 = vmatpush1.msra.mxu0 %v247
  %489 = vmatprep.subr.mxu0 0.0
  %490 = vmatpush1.msra.mxu0 %v248
  %491 = vmatprep.subr.mxu0 0.0
  %492 = vmatpush1.msra.mxu0 %v249
  %493 = vmatprep.subr.mxu0 0.0
  %494 = vmatpush1.msra.mxu0 %v250
  %495 = vmatprep.subr.mxu0 0.0
  %496 = vmatpush1.msra.mxu0 %v251
  %497 = vmatprep.subr.mxu0 0.0
  %498 = vmatpush1.msra.mxu0 %v252
  %499 = vmatprep.subr.mxu0 0.0
  %500 = vmatpush1.msra.mxu0 %v253
  %501 = vmatprep.mubr.f32.mxu0 %v15
  %502 = vmatmul.mubr.f32.gmra.mrb[0].mxu0 %v14
  %v503 = vpop.f32.mrb[0].mxu0
  %v504 = vadd.f32 %v435, %v503
  %v505 = vpop.f32.mrb[0].mxu0
  %506 = vmatprep.mubr.f32.mxu0 %v28
  %507 = vmatmul.mubr.f32.gmra.mrb[0].mxu0 %v27
  %v508 = vpop.f32.mrb[0].mxu0
  %v509 = vadd.f32 %v435, %v508
  %v510 = vpop.f32.mrb[0].mxu0
  %511 = vmatprep.mubr.f32.mxu0 %v41
  %512 = vmatmul.mubr.f32.gmra.mrb[0].mxu0 %v40
  %v513 = vpop.f32.mrb[0].mxu0
  %v514 = vadd.f32 %v435, %v513
  %v515 = vpop.f32.mrb[0].mxu0
  %516 = vmatprep.mubr.f32.mxu0 %v54
  %517 = vmatmul.mubr.f32.gmra.mrb[0].mxu0 %v53
  %v518 = vpop.f32.mrb[0].mxu0
  %v519 = vadd.f32 %v435, %v518
  %v520 = vpop.f32.mrb[0].mxu0
  %521 = vmatprep.mubr.f32.mxu0 %v67
  %522 = vmatmul.mubr.f32.gmra.mrb[0].mxu0 %v66
  %v523 = vpop.f32.mrb[0].mxu0
  %v524 = vadd.f32 %v435, %v523
  %v525 = vpop.f32.mrb[0].mxu0
  %526 = vmatprep.mubr.f32.mxu0 %v80
  %527 = vmatmul.mubr.f32.gmra.mrb[0].mxu0 %v79
  %v528 = vpop.f32.mrb[0].mxu0
  %v529 = vadd.f32 %v435, %v528
  %v530 = vpop.f32.mrb[0].mxu0
  %531 = vmatprep.mubr.f32.mxu0 %v93
  %532 = vmatmul.mubr.f32.gmra.mrb[0].mxu0 %v92
  %v533 = vpop.f32.mrb[0].mxu0
  %v534 = vadd.f32 %v435, %v533
  %v535 = vpop.f32.mrb[0].mxu0
  %536 = vmatprep.mubr.f32.mxu0 %v106
  %537 = vmatmul.mubr.f32.gmra.mrb[0].mxu0 %v105
  %v538 = vpop.f32.mrb[0].mxu0
  %v539 = vadd.f32 %v435, %v538
  %v540 = vpop.f32.mrb[0].mxu0
  %541 = vmatprep.mubr.f32.mxu0 %v119
  %542 = vmatmul.mubr.f32.gmra.mrb[0].mxu0 %v118
  %v543 = vpop.f32.mrb[0].mxu0
  %v544 = vadd.f32 %v435, %v543
  %v545 = vpop.f32.mrb[0].mxu0
  %546 = vmatprep.mubr.f32.mxu0 %v132
  %547 = vmatmul.mubr.f32.gmra.mrb[0].mxu0 %v131
  %v548 = vpop.f32.mrb[0].mxu0
  %v549 = vadd.f32 %v435, %v548
  %v550 = vpop.f32.mrb[0].mxu0
  %551 = vmatprep.mubr.f32.mxu0 %v145
  %552 = vmatmul.mubr.f32.gmra.mrb[0].mxu0 %v144
  %v553 = vpop.f32.mrb[0].mxu0
  %v554 = vadd.f32 %v435, %v553
  %v555 = vpop.f32.mrb[0].mxu0
  %556 = vmatprep.mubr.f32.mxu0 %v158
  %557 = vmatmul.mubr.f32.gmra.mrb[0].mxu0 %v157
  %v558 = vpop.f32.mrb[0].mxu0
  %v559 = vadd.f32 %v435, %v558
  %v560 = vpop.f32.mrb[0].mxu0
  %561 = vmatprep.mubr.f32.mxu0 %v171
  %562 = vmatmul.mubr.f32.gmra.mrb[0].mxu0 %v170
  %v563 = vpop.f32.mrb[0].mxu0
  %v564 = vadd.f32 %v435, %v563
  %v565 = vpop.f32.mrb[0].mxu0
  %566 = vmatprep.mubr.f32.mxu0 %v184
  %567 = vmatmul.mubr.f32.gmra.mrb[0].mxu0 %v183
  %v568 = vpop.f32.mrb[0].mxu0
  %v569 = vadd.f32 %v435, %v568
  %v570 = vpop.f32.mrb[0].mxu0
  %571 = vmatprep.mubr.f32.mxu0 %v197
  %572 = vmatmul.mubr.f32.gmra.mrb[0].mxu0 %v196
  %v573 = vpop.f32.mrb[0].mxu0
  %v574 = vadd.f32 %v435, %v573
  %v575 = vpop.f32.mrb[0].mxu0
  %576 = vmatprep.mubr.f32.mxu0 %v210
  %577 = vmatmul.mubr.f32.gmra.mrb[0].mxu0 %v209
  %v578 = vpop.f32.mrb[0].mxu0
  %v579 = vadd.f32 %v435, %v578
  %v580 = vpop.f32.mrb[0].mxu0
  %581 = vdwg.mxu0
  %582 = vmatprep.subr.mxu0 0.0
  %583 = vmatpush1.msra.mxu0 %v254
  %584 = vmatprep.subr.mxu0 0.0
  %585 = vmatpush1.msra.mxu0 %v255
  %586 = vmatprep.subr.mxu0 0.0
  %587 = vmatpush1.msra.mxu0 %v256
  %588 = vmatprep.subr.mxu0 0.0
  %589 = vmatpush1.msra.mxu0 %v257
  %590 = vmatprep.subr.mxu0 0.0
  %591 = vmatpush1.msra.mxu0 %v258
  %592 = vmatprep.subr.mxu0 0.0
  %593 = vmatpush1.msra.mxu0 %v259
  %594 = vmatprep.subr.mxu0 0.0
  %595 = vmatpush1.msra.mxu0 %v260
  %596 = vmatprep.subr.mxu0 0.0
  %597 = vmatpush1.msra.mxu0 %v261
  %598 = vmatprep.subr.mxu0 0.0
  %599 = vmatpush1.msra.mxu0 %v262
  %600 = vmatprep.subr.mxu0 0.0
  %601 = vmatpush1.msra.mxu0 %v263
  %602 = vmatprep.subr.mxu0 0.0
  %603 = vmatpush1.msra.mxu0 %v264
  %604 = vmatprep.subr.mxu0 0.0
  %605 = vmatpush1.msra.mxu0 %v265
  %606 = vmatprep.subr.mxu0 0.0
  %607 = vmatpush1.msra.mxu0 %v266
  %608 = vmatprep.subr.mxu0 0.0
  %609 = vmatpush1.msra.mxu0 %v267
  %610 = vmatprep.subr.mxu0 0.0
  %611 = vmatpush1.msra.mxu0 %v268
  %612 = vmatprep.subr.mxu0 0.0
  %613 = vmatpush1.msra.mxu0 %v269
  %614 = vmatprep.subr.mxu0 0.0
  %615 = vmatpush1.msra.mxu0 %v270
  %616 = vmatprep.subr.mxu0 0.0
  %617 = vmatpush1.msra.mxu0 %v271
  %618 = vmatprep.subr.mxu0 0.0
  %619 = vmatpush1.msra.mxu0 %v272
  %620 = vmatprep.subr.mxu0 0.0
  %621 = vmatpush1.msra.mxu0 %v273
  %622 = vmatprep.subr.mxu0 0.0
  %623 = vmatpush1.msra.mxu0 %v274
  %624 = vmatprep.subr.mxu0 0.0
  %625 = vmatpush1.msra.mxu0 %v275
  %626 = vmatprep.subr.mxu0 0.0
  %627 = vmatpush1.msra.mxu0 %v276
  %628 = vmatprep.subr.mxu0 0.0
  %629 = vmatpush1.msra.mxu0 %v277
  %630 = vmatprep.subr.mxu0 0.0
  %631 = vmatpush1.msra.mxu0 %v278
  %632 = vmatprep.subr.mxu0 0.0
  %633 = vmatpush1.msra.mxu0 %v279
  %634 = vmatprep.subr.mxu0 0.0
  %635 = vmatpush1.msra.mxu0 %v280
  %636 = vmatprep.subr.mxu0 0.0
  %637 = vmatpush1.msra.mxu0 %v281
  %638 = vmatprep.subr.mxu0 0.0
  %639 = vmatpush1.msra.mxu0 %v282
  %640 = vmatprep.subr.mxu0 0.0
  %641 = vmatpush1.msra.mxu0 %v283
  %642 = vmatprep.subr.mxu0 0.0
  %643 = vmatpush1.msra.mxu0 %v284
  %644 = vmatprep.subr.mxu0 0.0
  %645 = vmatpush1.msra.mxu0 %v285
  %646 = vmatprep.mubr.f32.mxu0 %v17
  %647 = vmatmul.mubr.f32.gmra.mrb[0].mxu0 %v16
  %v648 = vpop.f32.mrb[0].mxu0
  %v649 = vadd.f32 %v504, %v648
  %v650 = vpop.f32.mrb[0].mxu0
  %651 = vmatprep.mubr.f32.mxu0 %v30
  %652 = vmatmul.mubr.f32.gmra.mrb[0].mxu0 %v29
  %v653 = vpop.f32.mrb[0].mxu0
  %v654 = vadd.f32 %v509, %v653
  %v655 = vpop.f32.mrb[0].mxu0
  %656 = vmatprep.mubr.f32.mxu0 %v43
  %657 = vmatmul.mubr.f32.gmra.mrb[0].mxu0 %v42
  %v658 = vpop.f32.mrb[0].mxu0
  %v659 = vadd.f32 %v514, %v658
  %v660 = vpop.f32.mrb[0].mxu0
  %661 = vmatprep.mubr.f32.mxu0 %v56
  %662 = vmatmul.mubr.f32.gmra.mrb[0].mxu0 %v55
  %v663 = vpop.f32.mrb[0].mxu0
  %v664 = vadd.f32 %v519, %v663
  %v665 = vpop.f32.mrb[0].mxu0
  %666 = vmatprep.mubr.f32.mxu0 %v69
  %667 = vmatmul.mubr.f32.gmra.mrb[0].mxu0 %v68
  %v668 = vpop.f32.mrb[0].mxu0
  %v669 = vadd.f32 %v524, %v668
  %v670 = vpop.f32.mrb[0].mxu0
  %671 = vmatprep.mubr.f32.mxu0 %v82
  %672 = vmatmul.mubr.f32.gmra.mrb[0].mxu0 %v81
  %v673 = vpop.f32.mrb[0].mxu0
  %v674 = vadd.f32 %v529, %v673
  %v675 = vpop.f32.mrb[0].mxu0
  %676 = vmatprep.mubr.f32.mxu0 %v95
  %677 = vmatmul.mubr.f32.gmra.mrb[0].mxu0 %v94
  %v678 = vpop.f32.mrb[0].mxu0
  %v679 = vadd.f32 %v534, %v678
  %v680 = vpop.f32.mrb[0].mxu0
  %681 = vmatprep.mubr.f32.mxu0 %v108
  %682 = vmatmul.mubr.f32.gmra.mrb[0].mxu0 %v107
  %v683 = vpop.f32.mrb[0].mxu0
  %v684 = vadd.f32 %v539, %v683
  %v685 = vpop.f32.mrb[0].mxu0
  %686 = vmatprep.mubr.f32.mxu0 %v121
  %687 = vmatmul.mubr.f32.gmra.mrb[0].mxu0 %v120
  %v688 = vpop.f32.mrb[0].mxu0
  %v689 = vadd.f32 %v544, %v688
  %v690 = vpop.f32.mrb[0].mxu0
  %691 = vmatprep.mubr.f32.mxu0 %v134
  %692 = vmatmul.mubr.f32.gmra.mrb[0].mxu0 %v133
  %v693 = vpop.f32.mrb[0].mxu0
  %v694 = vadd.f32 %v549, %v693
  %v695 = vpop.f32.mrb[0].mxu0
  %696 = vmatprep.mubr.f32.mxu0 %v147
  %697 = vmatmul.mubr.f32.gmra.mrb[0].mxu0 %v146
  %v698 = vpop.f32.mrb[0].mxu0
  %v699 = vadd.f32 %v554, %v698
  %v700 = vpop.f32.mrb[0].mxu0
  %701 = vmatprep.mubr.f32.mxu0 %v160
  %702 = vmatmul.mubr.f32.gmra.mrb[0].mxu0 %v159
  %v703 = vpop.f32.mrb[0].mxu0
  %v704 = vadd.f32 %v559, %v703
  %v705 = vpop.f32.mrb[0].mxu0
  %706 = vmatprep.mubr.f32.mxu0 %v173
  %707 = vmatmul.mubr.f32.gmra.mrb[0].mxu0 %v172
  %v708 = vpop.f32.mrb[0].mxu0
  %v709 = vadd.f32 %v564, %v708
  %v710 = vpop.f32.mrb[0].mxu0
  %711 = vmatprep.mubr.f32.mxu0 %v186
  %712 = vmatmul.mubr.f32.gmra.mrb[0].mxu0 %v185
  %v713 = vpop.f32.mrb[0].mxu0
  %v714 = vadd.f32 %v569, %v713
  %v715 = vpop.f32.mrb[0].mxu0
  %716 = vmatprep.mubr.f32.mxu0 %v199
  %717 = vmatmul.mubr.f32.gmra.mrb[0].mxu0 %v198
  %v718 = vpop.f32.mrb[0].mxu0
  %v719 = vadd.f32 %v574, %v718
  %v720 = vpop.f32.mrb[0].mxu0
  %721 = vmatprep.mubr.f32.mxu0 %v212
  %722 = vmatmul.mubr.f32.gmra.mrb[0].mxu0 %v211
  %v723 = vpop.f32.mrb[0].mxu0
  %v724 = vadd.f32 %v579, %v723
  %v725 = vpop.f32.mrb[0].mxu0
  %726 = vdwg.mxu0
  %727 = vmatprep.subr.mxu0 0.0
  %728 = vmatpush1.msra.mxu0 %v286
  %729 = vmatprep.subr.mxu0 0.0
  %730 = vmatpush1.msra.mxu0 %v287
  %731 = vmatprep.subr.mxu0 0.0
  %732 = vmatpush1.msra.mxu0 %v288
  %733 = vmatprep.subr.mxu0 0.0
  %734 = vmatpush1.msra.mxu0 %v289
  %735 = vmatprep.subr.mxu0 0.0
  %736 = vmatpush1.msra.mxu0 %v290
  %737 = vmatprep.subr.mxu0 0.0
  %738 = vmatpush1.msra.mxu0 %v291
  %739 = vmatprep.subr.mxu0 0.0
  %740 = vmatpush1.msra.mxu0 %v292
  %741 = vmatprep.subr.mxu0 0.0
  %742 = vmatpush1.msra.mxu0 %v293
  %743 = vmatprep.subr.mxu0 0.0
  %744 = vmatpush1.msra.mxu0 %v294
  %745 = vmatprep.subr.mxu0 0.0
  %746 = vmatpush1.msra.mxu0 %v295
  %747 = vmatprep.subr.mxu0 0.0
  %748 = vmatpush1.msra.mxu0 %v296
  %749 = vmatprep.subr.mxu0 0.0
  %750 = vmatpush1.msra.mxu0 %v297
  %751 = vmatprep.subr.mxu0 0.0
  %752 = vmatpush1.msra.mxu0 %v298
  %753 = vmatprep.subr.mxu0 0.0
  %754 = vmatpush1.msra.mxu0 %v299
  %755 = vmatprep.subr.mxu0 0.0
  %756 = vmatpush1.msra.mxu0 %v300
  %757 = vmatprep.subr.mxu0 0.0
  %758 = vmatpush1.msra.mxu0 %v301
  %759 = vmatprep.subr.mxu0 0.0
  %760 = vmatpush1.msra.mxu0 %v302
  %761 = vmatprep.subr.mxu0 0.0
  %762 = vmatpush1.msra.mxu0 %v303
  %763 = vmatprep.subr.mxu0 0.0
  %764 = vmatpush1.msra.mxu0 %v304
  %765 = vmatprep.subr.mxu0 0.0
  %766 = vmatpush1.msra.mxu0 %v305
  %767 = vmatprep.subr.mxu0 0.0
  %768 = vmatpush1.msra.mxu0 %v306
  %769 = vmatprep.subr.mxu0 0.0
  %770 = vmatpush1.msra.mxu0 %v307
  %771 = vmatprep.subr.mxu0 0.0
  %772 = vmatpush1.msra.mxu0 %v308
  %773 = vmatprep.subr.mxu0 0.0
  %774 = vmatpush1.msra.mxu0 %v309
  %775 = vmatprep.subr.mxu0 0.0
  %776 = vmatpush1.msra.mxu0 %v310
  %777 = vmatprep.subr.mxu0 0.0
  %778 = vmatpush1.msra.mxu0 %v311
  %779 = vmatprep.subr.mxu0 0.0
  %780 = vmatpush1.msra.mxu0 %v312
  %781 = vmatprep.subr.mxu0 0.0
  %782 = vmatpush1.msra.mxu0 %v313
  %783 = vmatprep.subr.mxu0 0.0
  %784 = vmatpush1.msra.mxu0 %v314
  %785 = vmatprep.subr.mxu0 0.0
  %786 = vmatpush1.msra.mxu0 %v315
  %787 = vmatprep.subr.mxu0 0.0
  %788 = vmatpush1.msra.mxu0 %v316
  %789 = vmatprep.subr.mxu0 0.0
  %790 = vmatpush1.msra.mxu0 %v317
  %791 = vmatprep.mubr.f32.mxu0 %v19
  %792 = vmatmul.mubr.f32.gmra.mrb[0].mxu0 %v18
  %v793 = vpop.f32.mrb[0].mxu0
  %v794 = vadd.f32 %v649, %v793
  %v795 = vpop.f32.mrb[0].mxu0
  %796 = vmatprep.mubr.f32.mxu0 %v32
  %797 = vmatmul.mubr.f32.gmra.mrb[0].mxu0 %v31
  %v798 = vpop.f32.mrb[0].mxu0
  %v799 = vadd.f32 %v654, %v798
  %v800 = vpop.f32.mrb[0].mxu0
  %801 = vmatprep.mubr.f32.mxu0 %v45
  %802 = vmatmul.mubr.f32.gmra.mrb[0].mxu0 %v44
  %v803 = vpop.f32.mrb[0].mxu0
  %v804 = vadd.f32 %v659, %v803
  %v805 = vpop.f32.mrb[0].mxu0
  %806 = vmatprep.mubr.f32.mxu0 %v58
  %807 = vmatmul.mubr.f32.gmra.mrb[0].mxu0 %v57
  %v808 = vpop.f32.mrb[0].mxu0
  %v809 = vadd.f32 %v664, %v808
  %v810 = vpop.f32.mrb[0].mxu0
  %811 = vmatprep.mubr.f32.mxu0 %v71
  %812 = vmatmul.mubr.f32.gmra.mrb[0].mxu0 %v70
  %v813 = vpop.f32.mrb[0].mxu0
  %v814 = vadd.f32 %v669, %v813
  %v815 = vpop.f32.mrb[0].mxu0
  %816 = vmatprep.mubr.f32.mxu0 %v84
  %817 = vmatmul.mubr.f32.gmra.mrb[0].mxu0 %v83
  %v818 = vpop.f32.mrb[0].mxu0
  %v819 = vadd.f32 %v674, %v818
  %v820 = vpop.f32.mrb[0].mxu0
  %821 = vmatprep.mubr.f32.mxu0 %v97
  %822 = vmatmul.mubr.f32.gmra.mrb[0].mxu0 %v96
  %v823 = vpop.f32.mrb[0].mxu0
  %v824 = vadd.f32 %v679, %v823
  %v825 = vpop.f32.mrb[0].mxu0
  %826 = vmatprep.mubr.f32.mxu0 %v110
  %827 = vmatmul.mubr.f32.gmra.mrb[0].mxu0 %v109
  %v828 = vpop.f32.mrb[0].mxu0
  %v829 = vadd.f32 %v684, %v828
  %v830 = vpop.f32.mrb[0].mxu0
  %831 = vmatprep.mubr.f32.mxu0 %v123
  %832 = vmatmul.mubr.f32.gmra.mrb[0].mxu0 %v122
  %v833 = vpop.f32.mrb[0].mxu0
  %v834 = vadd.f32 %v689, %v833
  %v835 = vpop.f32.mrb[0].mxu0
  %836 = vmatprep.mubr.f32.mxu0 %v136
  %837 = vmatmul.mubr.f32.gmra.mrb[0].mxu0 %v135
  %v838 = vpop.f32.mrb[0].mxu0
  %v839 = vadd.f32 %v694, %v838
  %v840 = vpop.f32.mrb[0].mxu0
  %841 = vmatprep.mubr.f32.mxu0 %v149
  %842 = vmatmul.mubr.f32.gmra.mrb[0].mxu0 %v148
  %v843 = vpop.f32.mrb[0].mxu0
  %v844 = vadd.f32 %v699, %v843
  %v845 = vpop.f32.mrb[0].mxu0
  %846 = vmatprep.mubr.f32.mxu0 %v162
  %847 = vmatmul.mubr.f32.gmra.mrb[0].mxu0 %v161
  %v848 = vpop.f32.mrb[0].mxu0
  %v849 = vadd.f32 %v704, %v848
  %v850 = vpop.f32.mrb[0].mxu0
  %851 = vmatprep.mubr.f32.mxu0 %v175
  %852 = vmatmul.mubr.f32.gmra.mrb[0].mxu0 %v174
  %v853 = vpop.f32.mrb[0].mxu0
  %v854 = vadd.f32 %v709, %v853
  %v855 = vpop.f32.mrb[0].mxu0
  %856 = vmatprep.mubr.f32.mxu0 %v188
  %857 = vmatmul.mubr.f32.gmra.mrb[0].mxu0 %v187
  %v858 = vpop.f32.mrb[0].mxu0
  %v859 = vadd.f32 %v714, %v858
  %v860 = vpop.f32.mrb[0].mxu0
  %861 = vmatprep.mubr.f32.mxu0 %v201
  %862 = vmatmul.mubr.f32.gmra.mrb[0].mxu0 %v200
  %v863 = vpop.f32.mrb[0].mxu0
  %v864 = vadd.f32 %v719, %v863
  %v865 = vpop.f32.mrb[0].mxu0
  %866 = vmatprep.mubr.f32.mxu0 %v214
  %867 = vmatmul.mubr.f32.gmra.mrb[0].mxu0 %v213
  %v868 = vpop.f32.mrb[0].mxu0
  %v869 = vadd.f32 %v724, %v868
  %v870 = vpop.f32.mrb[0].mxu0
  %871 = vdwg.mxu0
  %872 = vmatprep.subr.mxu0 0.0
  %873 = vmatpush1.msra.mxu0 %v318
  %874 = vmatprep.subr.mxu0 0.0
  %875 = vmatpush1.msra.mxu0 %v319
  %876 = vmatprep.subr.mxu0 0.0
  %877 = vmatpush1.msra.mxu0 %v320
  %878 = vmatprep.subr.mxu0 0.0
  %879 = vmatpush1.msra.mxu0 %v321
  %880 = vmatprep.subr.mxu0 0.0
  %881 = vmatpush1.msra.mxu0 %v322
  %882 = vmatprep.subr.mxu0 0.0
  %883 = vmatpush1.msra.mxu0 %v323
  %884 = vmatprep.subr.mxu0 0.0
  %885 = vmatpush1.msra.mxu0 %v324
  %886 = vmatprep.subr.mxu0 0.0
  %887 = vmatpush1.msra.mxu0 %v325
  %888 = vmatprep.subr.mxu0 0.0
  %889 = vmatpush1.msra.mxu0 %v326
  %890 = vmatprep.subr.mxu0 0.0
  %891 = vmatpush1.msra.mxu0 %v327
  %892 = vmatprep.subr.mxu0 0.0
  %893 = vmatpush1.msra.mxu0 %v328
  %894 = vmatprep.subr.mxu0 0.0
  %895 = vmatpush1.msra.mxu0 %v329
  %896 = vmatprep.subr.mxu0 0.0
  %897 = vmatpush1.msra.mxu0 %v330
  %898 = vmatprep.subr.mxu0 0.0
  %899 = vmatpush1.msra.mxu0 %v331
  %900 = vmatprep.subr.mxu0 0.0
  %901 = vmatpush1.msra.mxu0 %v332
  %902 = vmatprep.subr.mxu0 0.0
  %903 = vmatpush1.msra.mxu0 %v333
  %904 = vmatprep.subr.mxu0 0.0
  %905 = vmatpush1.msra.mxu0 %v334
  %906 = vmatprep.subr.mxu0 0.0
  %907 = vmatpush1.msra.mxu0 %v335
  %908 = vmatprep.subr.mxu0 0.0
  %909 = vmatpush1.msra.mxu0 %v336
  %910 = vmatprep.subr.mxu0 0.0
  %911 = vmatpush1.msra.mxu0 %v337
  %912 = vmatprep.subr.mxu0 0.0
  %913 = vmatpush1.msra.mxu0 %v338
  %914 = vmatprep.subr.mxu0 0.0
  %915 = vmatpush1.msra.mxu0 %v339
  %916 = vmatprep.subr.mxu0 0.0
  %917 = vmatpush1.msra.mxu0 %v340
  %918 = vmatprep.subr.mxu0 0.0
  %919 = vmatpush1.msra.mxu0 %v341
  %920 = vmatprep.subr.mxu0 0.0
  %921 = vmatpush1.msra.mxu0 %v342
  %922 = vmatprep.subr.mxu0 0.0
  %923 = vmatpush1.msra.mxu0 %v343
  %924 = vmatprep.subr.mxu0 0.0
  %925 = vmatpush1.msra.mxu0 %v344
  %926 = vmatprep.subr.mxu0 0.0
  %927 = vmatpush1.msra.mxu0 %v345
  %928 = vmatprep.subr.mxu0 0.0
  %929 = vmatpush1.msra.mxu0 %v346
  %930 = vmatprep.subr.mxu0 0.0
  %931 = vmatpush1.msra.mxu0 %v347
  %932 = vmatprep.subr.mxu0 0.0
  %933 = vmatpush1.msra.mxu0 %v348
  %934 = vmatprep.subr.mxu0 0.0
  %935 = vmatpush1.msra.mxu0 %v349
  %936 = vmatprep.mubr.f32.mxu0 %v21
  %937 = vmatmul.mubr.f32.gmra.mrb[0].mxu0 %v20
  %v938 = vpop.f32.mrb[0].mxu0
  %v939 = vadd.f32 %v794, %v938
  %v940 = vpop.f32.mrb[0].mxu0
  %941 = vmatprep.mubr.f32.mxu0 %v34
  %942 = vmatmul.mubr.f32.gmra.mrb[0].mxu0 %v33
  %v943 = vpop.f32.mrb[0].mxu0
  %v944 = vadd.f32 %v799, %v943
  %v945 = vpop.f32.mrb[0].mxu0
  %946 = vmatprep.mubr.f32.mxu0 %v47
  %947 = vmatmul.mubr.f32.gmra.mrb[0].mxu0 %v46
  %v948 = vpop.f32.mrb[0].mxu0
  %v949 = vadd.f32 %v804, %v948
  %v950 = vpop.f32.mrb[0].mxu0
  %951 = vmatprep.mubr.f32.mxu0 %v60
  %952 = vmatmul.mubr.f32.gmra.mrb[0].mxu0 %v59
  %v953 = vpop.f32.mrb[0].mxu0
  %v954 = vadd.f32 %v809, %v953
  %v955 = vpop.f32.mrb[0].mxu0
  %956 = vmatprep.mubr.f32.mxu0 %v73
  %957 = vmatmul.mubr.f32.gmra.mrb[0].mxu0 %v72
  %v958 = vpop.f32.mrb[0].mxu0
  %v959 = vadd.f32 %v814, %v958
  %v960 = vpop.f32.mrb[0].mxu0
  %961 = vmatprep.mubr.f32.mxu0 %v86
  %962 = vmatmul.mubr.f32.gmra.mrb[0].mxu0 %v85
  %v963 = vpop.f32.mrb[0].mxu0
  %v964 = vadd.f32 %v819, %v963
  %v965 = vpop.f32.mrb[0].mxu0
  %966 = vmatprep.mubr.f32.mxu0 %v99
  %967 = vmatmul.mubr.f32.gmra.mrb[0].mxu0 %v98
  %v968 = vpop.f32.mrb[0].mxu0
  %v969 = vadd.f32 %v824, %v968
  %v970 = vpop.f32.mrb[0].mxu0
  %971 = vmatprep.mubr.f32.mxu0 %v112
  %972 = vmatmul.mubr.f32.gmra.mrb[0].mxu0 %v111
  %v973 = vpop.f32.mrb[0].mxu0
  %v974 = vadd.f32 %v829, %v973
  %v975 = vpop.f32.mrb[0].mxu0
  %976 = vmatprep.mubr.f32.mxu0 %v125
  %977 = vmatmul.mubr.f32.gmra.mrb[0].mxu0 %v124
  %v978 = vpop.f32.mrb[0].mxu0
  %v979 = vadd.f32 %v834, %v978
  %v980 = vpop.f32.mrb[0].mxu0
  %981 = vmatprep.mubr.f32.mxu0 %v138
  %982 = vmatmul.mubr.f32.gmra.mrb[0].mxu0 %v137
  %v983 = vpop.f32.mrb[0].mxu0
  %v984 = vadd.f32 %v839, %v983
  %v985 = vpop.f32.mrb[0].mxu0
  %986 = vmatprep.mubr.f32.mxu0 %v151
  %987 = vmatmul.mubr.f32.gmra.mrb[0].mxu0 %v150
  %v988 = vpop.f32.mrb[0].mxu0
  %v989 = vadd.f32 %v844, %v988
  %v990 = vpop.f32.mrb[0].mxu0
  %991 = vmatprep.mubr.f32.mxu0 %v164
  %992 = vmatmul.mubr.f32.gmra.mrb[0].mxu0 %v163
  %v993 = vpop.f32.mrb[0].mxu0
  %v994 = vadd.f32 %v849, %v993
  %v995 = vpop.f32.mrb[0].mxu0
  %996 = vmatprep.mubr.f32.mxu0 %v177
  %997 = vmatmul.mubr.f32.gmra.mrb[0].mxu0 %v176
  %v998 = vpop.f32.mrb[0].mxu0
  %v999 = vadd.f32 %v854, %v998
  %v1000 = vpop.f32.mrb[0].mxu0
  %1001 = vmatprep.mubr.f32.mxu0 %v190
  %1002 = vmatmul.mubr.f32.gmra.mrb[0].mxu0 %v189
  %v1003 = vpop.f32.mrb[0].mxu0
  %v1004 = vadd.f32 %v859, %v1003
  %v1005 = vpop.f32.mrb[0].mxu0
  %1006 = vmatprep.mubr.f32.mxu0 %v203
  %1007 = vmatmul.mubr.f32.gmra.mrb[0].mxu0 %v202
  %v1008 = vpop.f32.mrb[0].mxu0
  %v1009 = vadd.f32 %v864, %v1008
  %v1010 = vpop.f32.mrb[0].mxu0
  %1011 = vmatprep.mubr.f32.mxu0 %v216
  %1012 = vmatmul.mubr.f32.gmra.mrb[0].mxu0 %v215
  %v1013 = vpop.f32.mrb[0].mxu0
  %v1014 = vadd.f32 %v869, %v1013
  %v1015 = vpop.f32.mrb[0].mxu0
  %1016 = vdwg.mxu0
  %1017 = vmatprep.subr.mxu0 0.0
  %1018 = vmatpush1.msra.mxu0 %v350
  %1019 = vmatprep.subr.mxu0 0.0
  %1020 = vmatpush1.msra.mxu0 %v351
  %1021 = vmatprep.subr.mxu0 0.0
  %1022 = vmatpush1.msra.mxu0 %v352
  %1023 = vmatprep.subr.mxu0 0.0
  %1024 = vmatpush1.msra.mxu0 %v353
  %1025 = vmatprep.subr.mxu0 0.0
  %1026 = vmatpush1.msra.mxu0 %v354
  %1027 = vmatprep.subr.mxu0 0.0
  %1028 = vmatpush1.msra.mxu0 %v355
  %1029 = vmatprep.subr.mxu0 0.0
  %1030 = vmatpush1.msra.mxu0 %v356
  %1031 = vmatprep.subr.mxu0 0.0
  %1032 = vmatpush1.msra.mxu0 %v357
  %1033 = vmatprep.subr.mxu0 0.0
  %1034 = vmatpush1.msra.mxu0 %v358
  %1035 = vmatprep.subr.mxu0 0.0
  %1036 = vmatpush1.msra.mxu0 %v359
  %1037 = vmatprep.subr.mxu0 0.0
  %1038 = vmatpush1.msra.mxu0 %v360
  %1039 = vmatprep.subr.mxu0 0.0
  %1040 = vmatpush1.msra.mxu0 %v361
  %1041 = vmatprep.subr.mxu0 0.0
  %1042 = vmatpush1.msra.mxu0 %v362
  %1043 = vmatprep.subr.mxu0 0.0
  %1044 = vmatpush1.msra.mxu0 %v363
  %1045 = vmatprep.subr.mxu0 0.0
  %1046 = vmatpush1.msra.mxu0 %v364
  %1047 = vmatprep.subr.mxu0 0.0
  %1048 = vmatpush1.msra.mxu0 %v365
  %1049 = vmatprep.subr.mxu0 0.0
  %1050 = vmatpush1.msra.mxu0 %v366
  %1051 = vmatprep.subr.mxu0 0.0
  %1052 = vmatpush1.msra.mxu0 %v367
  %1053 = vmatprep.subr.mxu0 0.0
  %1054 = vmatpush1.msra.mxu0 %v368
  %1055 = vmatprep.subr.mxu0 0.0
  %1056 = vmatpush1.msra.mxu0 %v369
  %1057 = vmatprep.subr.mxu0 0.0
  %1058 = vmatpush1.msra.mxu0 %v370
  %1059 = vmatprep.subr.mxu0 0.0
  %1060 = vmatpush1.msra.mxu0 %v371
  %1061 = vmatprep.subr.mxu0 0.0
  %1062 = vmatpush1.msra.mxu0 %v372
  %1063 = vmatprep.subr.mxu0 0.0
  %1064 = vmatpush1.msra.mxu0 %v373
  %1065 = vmatprep.subr.mxu0 0.0
  %1066 = vmatpush1.msra.mxu0 %v374
  %1067 = vmatprep.subr.mxu0 0.0
  %1068 = vmatpush1.msra.mxu0 %v375
  %1069 = vmatprep.subr.mxu0 0.0
  %1070 = vmatpush1.msra.mxu0 %v376
  %1071 = vmatprep.subr.mxu0 0.0
  %1072 = vmatpush1.msra.mxu0 %v377
  %1073 = vmatprep.subr.mxu0 0.0
  %1074 = vmatpush1.msra.mxu0 %v378
  %1075 = vmatprep.subr.mxu0 0.0
  %1076 = vmatpush1.msra.mxu0 %v379
  %1077 = vmatprep.subr.mxu0 0.0
  %1078 = vmatpush1.msra.mxu0 %v380
  %1079 = vmatprep.subr.mxu0 0.0
  %1080 = vmatpush1.msra.mxu0 %v381
  %1081 = vmatprep.mubr.f32.mxu0 %v23
  %1082 = vmatmul.mubr.f32.gmra.mrb[0].mxu0 %v22
  %v1083 = vpop.f32.mrb[0].mxu0
  %v1084 = vadd.f32 %v939, %v1083
  %v1085 = vpop.f32.mrb[0].mxu0
  %1086 = vmatprep.mubr.f32.mxu0 %v36
  %1087 = vmatmul.mubr.f32.gmra.mrb[0].mxu0 %v35
  %v1088 = vpop.f32.mrb[0].mxu0
  %v1089 = vadd.f32 %v944, %v1088
  %v1090 = vpop.f32.mrb[0].mxu0
  %1091 = vmatprep.mubr.f32.mxu0 %v49
  %1092 = vmatmul.mubr.f32.gmra.mrb[0].mxu0 %v48
  %v1093 = vpop.f32.mrb[0].mxu0
  %v1094 = vadd.f32 %v949, %v1093
  %v1095 = vpop.f32.mrb[0].mxu0
  %1096 = vmatprep.mubr.f32.mxu0 %v62
  %1097 = vmatmul.mubr.f32.gmra.mrb[0].mxu0 %v61
  %v1098 = vpop.f32.mrb[0].mxu0
  %v1099 = vadd.f32 %v954, %v1098
  %v1100 = vpop.f32.mrb[0].mxu0
  %1101 = vmatprep.mubr.f32.mxu0 %v75
  %1102 = vmatmul.mubr.f32.gmra.mrb[0].mxu0 %v74
  %v1103 = vpop.f32.mrb[0].mxu0
  %v1104 = vadd.f32 %v959, %v1103
  %v1105 = vpop.f32.mrb[0].mxu0
  %1106 = vmatprep.mubr.f32.mxu0 %v88
  %1107 = vmatmul.mubr.f32.gmra.mrb[0].mxu0 %v87
  %v1108 = vpop.f32.mrb[0].mxu0
  %v1109 = vadd.f32 %v964, %v1108
  %v1110 = vpop.f32.mrb[0].mxu0
  %1111 = vmatprep.mubr.f32.mxu0 %v101
  %1112 = vmatmul.mubr.f32.gmra.mrb[0].mxu0 %v100
  %v1113 = vpop.f32.mrb[0].mxu0
  %v1114 = vadd.f32 %v969, %v1113
  %v1115 = vpop.f32.mrb[0].mxu0
  %1116 = vmatprep.mubr.f32.mxu0 %v114
  %1117 = vmatmul.mubr.f32.gmra.mrb[0].mxu0 %v113
  %v1118 = vpop.f32.mrb[0].mxu0
  %v1119 = vadd.f32 %v974, %v1118
  %v1120 = vpop.f32.mrb[0].mxu0
  %1121 = vmatprep.mubr.f32.mxu0 %v127
  %1122 = vmatmul.mubr.f32.gmra.mrb[0].mxu0 %v126
  %v1123 = vpop.f32.mrb[0].mxu0
  %v1124 = vadd.f32 %v979, %v1123
  %v1125 = vpop.f32.mrb[0].mxu0
  %1126 = vmatprep.mubr.f32.mxu0 %v140
  %1127 = vmatmul.mubr.f32.gmra.mrb[0].mxu0 %v139
  %v1128 = vpop.f32.mrb[0].mxu0
  %v1129 = vadd.f32 %v984, %v1128
  %v1130 = vpop.f32.mrb[0].mxu0
  %1131 = vmatprep.mubr.f32.mxu0 %v153
  %1132 = vmatmul.mubr.f32.gmra.mrb[0].mxu0 %v152
  %v1133 = vpop.f32.mrb[0].mxu0
  %v1134 = vadd.f32 %v989, %v1133
  %v1135 = vpop.f32.mrb[0].mxu0
  %1136 = vmatprep.mubr.f32.mxu0 %v166
  %1137 = vmatmul.mubr.f32.gmra.mrb[0].mxu0 %v165
  %v1138 = vpop.f32.mrb[0].mxu0
  %v1139 = vadd.f32 %v994, %v1138
  %v1140 = vpop.f32.mrb[0].mxu0
  %1141 = vmatprep.mubr.f32.mxu0 %v179
  %1142 = vmatmul.mubr.f32.gmra.mrb[0].mxu0 %v178
  %v1143 = vpop.f32.mrb[0].mxu0
  %v1144 = vadd.f32 %v999, %v1143
  %v1145 = vpop.f32.mrb[0].mxu0
  %1146 = vmatprep.mubr.f32.mxu0 %v192
  %1147 = vmatmul.mubr.f32.gmra.mrb[0].mxu0 %v191
  %v1148 = vpop.f32.mrb[0].mxu0
  %v1149 = vadd.f32 %v1004, %v1148
  %v1150 = vpop.f32.mrb[0].mxu0
  %1151 = vmatprep.mubr.f32.mxu0 %v205
  %1152 = vmatmul.mubr.f32.gmra.mrb[0].mxu0 %v204
  %v1153 = vpop.f32.mrb[0].mxu0
  %v1154 = vadd.f32 %v1009, %v1153
  %v1155 = vpop.f32.mrb[0].mxu0
  %1156 = vmatprep.mubr.f32.mxu0 %v218
  %1157 = vmatmul.mubr.f32.gmra.mrb[0].mxu0 %v217
  %v1158 = vpop.f32.mrb[0].mxu0
  %v1159 = vadd.f32 %v1014, %v1158
  %v1160 = vpop.f32.mrb[0].mxu0
  %1161 = vdwg.mxu0
  %1162 = vmatprep.subr.mxu0 0.0
  %1163 = vmatpush1.msra.mxu0 %v382
  %1164 = vmatprep.subr.mxu0 0.0
  %1165 = vmatpush1.msra.mxu0 %v383
  %1166 = vmatprep.subr.mxu0 0.0
  %1167 = vmatpush1.msra.mxu0 %v384
  %1168 = vmatprep.subr.mxu0 0.0
  %1169 = vmatpush1.msra.mxu0 %v385
  %1170 = vmatprep.subr.mxu0 0.0
  %1171 = vmatpush1.msra.mxu0 %v386
  %1172 = vmatprep.subr.mxu0 0.0
  %1173 = vmatpush1.msra.mxu0 %v387
  %1174 = vmatprep.subr.mxu0 0.0
  %1175 = vmatpush1.msra.mxu0 %v388
  %1176 = vmatprep.subr.mxu0 0.0
  %1177 = vmatpush1.msra.mxu0 %v389
  %1178 = vmatprep.subr.mxu0 0.0
  %1179 = vmatpush1.msra.mxu0 %v390
  %1180 = vmatprep.subr.mxu0 0.0
  %1181 = vmatpush1.msra.mxu0 %v391
  %1182 = vmatprep.subr.mxu0 0.0
  %1183 = vmatpush1.msra.mxu0 %v392
  %1184 = vmatprep.subr.mxu0 0.0
  %1185 = vmatpush1.msra.mxu0 %v393
  %1186 = vmatprep.subr.mxu0 0.0
  %1187 = vmatpush1.msra.mxu0 %v394
  %1188 = vmatprep.subr.mxu0 0.0
  %1189 = vmatpush1.msra.mxu0 %v395
  %1190 = vmatprep.subr.mxu0 0.0
  %1191 = vmatpush1.msra.mxu0 %v396
  %1192 = vmatprep.subr.mxu0 0.0
  %1193 = vmatpush1.msra.mxu0 %v397
  %1194 = vmatprep.subr.mxu0 0.0
  %1195 = vmatpush1.msra.mxu0 %v398
  %1196 = vmatprep.subr.mxu0 0.0
  %1197 = vmatpush1.msra.mxu0 %v399
  %1198 = vmatprep.subr.mxu0 0.0
  %1199 = vmatpush1.msra.mxu0 %v400
  %1200 = vmatprep.subr.mxu0 0.0
  %1201 = vmatpush1.msra.mxu0 %v401
  %1202 = vmatprep.subr.mxu0 0.0
  %1203 = vmatpush1.msra.mxu0 %v402
  %1204 = vmatprep.subr.mxu0 0.0
  %1205 = vmatpush1.msra.mxu0 %v403
  %1206 = vmatprep.subr.mxu0 0.0
  %1207 = vmatpush1.msra.mxu0 %v404
  %1208 = vmatprep.subr.mxu0 0.0
  %1209 = vmatpush1.msra.mxu0 %v405
  %1210 = vmatprep.subr.mxu0 0.0
  %1211 = vmatpush1.msra.mxu0 %v406
  %1212 = vmatprep.subr.mxu0 0.0
  %1213 = vmatpush1.msra.mxu0 %v407
  %1214 = vmatprep.subr.mxu0 0.0
  %1215 = vmatpush1.msra.mxu0 %v408
  %1216 = vmatprep.subr.mxu0 0.0
  %1217 = vmatpush1.msra.mxu0 %v409
  %1218 = vmatprep.subr.mxu0 0.0
  %1219 = vmatpush1.msra.mxu0 %v410
  %1220 = vmatprep.subr.mxu0 0.0
  %1221 = vmatpush1.msra.mxu0 %v411
  %1222 = vmatprep.subr.mxu0 0.0
  %1223 = vmatpush1.msra.mxu0 %v412
  %1224 = vmatprep.subr.mxu0 0.0
  %1225 = vmatpush1.msra.mxu0 %v413
  %1226 = vmatprep.mubr.f32.mxu0 %v25
  %1227 = vmatmul.mubr.f32.gmra.mrb[0].mxu0 %v24
  %v1228 = vpop.f32.mrb[0].mxu0
  %v1229 = vadd.f32 %v1084, %v1228
  %v1230 = vpop.f32.mrb[0].mxu0
  %1231 = vmatprep.mubr.f32.mxu0 %v38
  %1232 = vmatmul.mubr.f32.gmra.mrb[0].mxu0 %v37
  %v1233 = vpop.f32.mrb[0].mxu0
  %v1234 = vadd.f32 %v1089, %v1233
  %v1235 = vpop.f32.mrb[0].mxu0
  %1236 = vmatprep.mubr.f32.mxu0 %v51
  %1237 = vmatmul.mubr.f32.gmra.mrb[0].mxu0 %v50
  %v1238 = vpop.f32.mrb[0].mxu0
  %v1239 = vadd.f32 %v1094, %v1238
  %v1240 = vpop.f32.mrb[0].mxu0
  %1241 = vmatprep.mubr.f32.mxu0 %v64
  %1242 = vmatmul.mubr.f32.gmra.mrb[0].mxu0 %v63
  %v1243 = vpop.f32.mrb[0].mxu0
  %v1244 = vadd.f32 %v1099, %v1243
  %v1245 = vpop.f32.mrb[0].mxu0
  %1246 = vmatprep.mubr.f32.mxu0 %v77
  %1247 = vmatmul.mubr.f32.gmra.mrb[0].mxu0 %v76
  %v1248 = vpop.f32.mrb[0].mxu0
  %v1249 = vadd.f32 %v1104, %v1248
  %v1250 = vpop.f32.mrb[0].mxu0
  %1251 = vmatprep.mubr.f32.mxu0 %v90
  %1252 = vmatmul.mubr.f32.gmra.mrb[0].mxu0 %v89
  %v1253 = vpop.f32.mrb[0].mxu0
  %v1254 = vadd.f32 %v1109, %v1253
  %v1255 = vpop.f32.mrb[0].mxu0
  %1256 = vmatprep.mubr.f32.mxu0 %v103
  %1257 = vmatmul.mubr.f32.gmra.mrb[0].mxu0 %v102
  %v1258 = vpop.f32.mrb[0].mxu0
  %v1259 = vadd.f32 %v1114, %v1258
  %v1260 = vpop.f32.mrb[0].mxu0
  %1261 = vmatprep.mubr.f32.mxu0 %v116
  %1262 = vmatmul.mubr.f32.gmra.mrb[0].mxu0 %v115
  %v1263 = vpop.f32.mrb[0].mxu0
  %v1264 = vadd.f32 %v1119, %v1263
  %v1265 = vpop.f32.mrb[0].mxu0
  %1266 = vmatprep.mubr.f32.mxu0 %v129
  %1267 = vmatmul.mubr.f32.gmra.mrb[0].mxu0 %v128
  %v1268 = vpop.f32.mrb[0].mxu0
  %v1269 = vadd.f32 %v1124, %v1268
  %v1270 = vpop.f32.mrb[0].mxu0
  %1271 = vmatprep.mubr.f32.mxu0 %v142
  %1272 = vmatmul.mubr.f32.gmra.mrb[0].mxu0 %v141
  %v1273 = vpop.f32.mrb[0].mxu0
  %v1274 = vadd.f32 %v1129, %v1273
  %v1275 = vpop.f32.mrb[0].mxu0
  %1276 = vmatprep.mubr.f32.mxu0 %v155
  %1277 = vmatmul.mubr.f32.gmra.mrb[0].mxu0 %v154
  %v1278 = vpop.f32.mrb[0].mxu0
  %v1279 = vadd.f32 %v1134, %v1278
  %v1280 = vpop.f32.mrb[0].mxu0
  %1281 = vmatprep.mubr.f32.mxu0 %v168
  %1282 = vmatmul.mubr.f32.gmra.mrb[0].mxu0 %v167
  %v1283 = vpop.f32.mrb[0].mxu0
  %v1284 = vadd.f32 %v1139, %v1283
  %v1285 = vpop.f32.mrb[0].mxu0
  %1286 = vmatprep.mubr.f32.mxu0 %v181
  %1287 = vmatmul.mubr.f32.gmra.mrb[0].mxu0 %v180
  %v1288 = vpop.f32.mrb[0].mxu0
  %v1289 = vadd.f32 %v1144, %v1288
  %v1290 = vpop.f32.mrb[0].mxu0
  %1291 = vmatprep.mubr.f32.mxu0 %v194
  %1292 = vmatmul.mubr.f32.gmra.mrb[0].mxu0 %v193
  %v1293 = vpop.f32.mrb[0].mxu0
  %v1294 = vadd.f32 %v1149, %v1293
  %v1295 = vpop.f32.mrb[0].mxu0
  %1296 = vmatprep.mubr.f32.mxu0 %v207
  %1297 = vmatmul.mubr.f32.gmra.mrb[0].mxu0 %v206
  %v1298 = vpop.f32.mrb[0].mxu0
  %v1299 = vadd.f32 %v1154, %v1298
  %v1300 = vpop.f32.mrb[0].mxu0
  %1301 = vmatprep.mubr.f32.mxu0 %v220
  %1302 = vmatmul.mubr.f32.gmra.mrb[0].mxu0 %v219
  %v1303 = vpop.f32.mrb[0].mxu0
  %v1304 = vadd.f32 %v1159, %v1303
  %v1305 = vpop.f32.mrb[0].mxu0
  %1306 = vdwg.mxu0
  %1307 = vmatprep.subr.mxu0 0.0
  %1308 = vmatpush1.msra.mxu0 %v414
  %1309 = vmatprep.subr.mxu0 0.0
  %1310 = vmatpush1.msra.mxu0 %v415
  %1311 = vmatprep.subr.mxu0 0.0
  %1312 = vmatpush1.msra.mxu0 %v416
  %1313 = vmatprep.subr.mxu0 0.0
  %1314 = vmatpush1.msra.mxu0 %v417
  %1315 = vmatprep.subr.mxu0 0.0
  %1316 = vmatpush1.msra.mxu0 %v418
  %1317 = vmatprep.subr.mxu0 0.0
  %1318 = vmatpush1.msra.mxu0 %v419
  %1319 = vmatprep.subr.mxu0 0.0
  %1320 = vmatpush1.msra.mxu0 %v420
  %1321 = vmatprep.subr.mxu0 0.0
  %1322 = vmatpush1.msra.mxu0 %v421
  %1323 = vmatprep.subr.mxu0 0.0
  %1324 = vmatpush1.msra.mxu0 %v422
  %1325 = vmatprep.subr.mxu0 0.0
  %1326 = vmatpush1.msra.mxu0 %v423
  %1327 = vmatprep.subr.mxu0 0.0
  %1328 = vmatpush1.msra.mxu0 %v424
  %1329 = vmatprep.subr.mxu0 0.0
  %1330 = vmatpush1.msra.mxu0 %v425
  %1331 = vmatprep.subr.mxu0 0.0
  %1332 = vmatpush1.msra.mxu0 %v426
  %1333 = vmatprep.subr.mxu0 0.0
  %1334 = vmatpush1.msra.mxu0 %v427
  %1335 = vmatprep.subr.mxu0 0.0
  %1336 = vmatpush1.msra.mxu0 %v428
  %1337 = vmatprep.subr.mxu0 0.0
  %1338 = vmatpush1.msra.mxu0 %v429
  %1339 = vmatprep.subr.mxu0 0.0
  %1340 = vmatpush1.msra.mxu0 0.0
  %1341 = vmatprep.subr.mxu0 0.0
  %1342 = vmatpush1.msra.mxu0 0.0
  %1343 = vmatprep.subr.mxu0 0.0
  %1344 = vmatpush1.msra.mxu0 0.0
  %1345 = vmatprep.subr.mxu0 0.0
  %1346 = vmatpush1.msra.mxu0 0.0
  %1347 = vmatprep.subr.mxu0 0.0
  %1348 = vmatpush1.msra.mxu0 0.0
  %1349 = vmatprep.subr.mxu0 0.0
  %1350 = vmatpush1.msra.mxu0 0.0
  %1351 = vmatprep.subr.mxu0 0.0
  %1352 = vmatpush1.msra.mxu0 0.0
  %1353 = vmatprep.subr.mxu0 0.0
  %1354 = vmatpush1.msra.mxu0 0.0
  %1355 = vmatprep.subr.mxu0 0.0
  %1356 = vmatpush1.msra.mxu0 0.0
  %1357 = vmatprep.subr.mxu0 0.0
  %1358 = vmatpush1.msra.mxu0 0.0
  %1359 = vmatprep.subr.mxu0 0.0
  %1360 = vmatpush1.msra.mxu0 0.0
  %1361 = vmatprep.subr.mxu0 0.0
  %1362 = vmatpush1.msra.mxu0 0.0
  %1363 = vmatprep.subr.mxu0 0.0
  %1364 = vmatpush1.msra.mxu0 0.0
  %1365 = vmatprep.subr.mxu0 0.0
  %1366 = vmatpush1.msra.mxu0 0.0
  %1367 = vmatprep.subr.mxu0 0.0
  %1368 = vmatpush1.msra.mxu0 0.0
  %1369 = vmatprep.subr.mxu0 0.0
  %1370 = vmatpush1.msra.mxu0 0.0
  %1371 = vmatprep.mubr.f32.mxu0 0.0
  %1372 = vmatmul.mubr.f32.gmra.mrb[0].mxu0 %v26
  %v1373 = vpop.f32.mrb[0].mxu0
  %v1374 = vadd.f32 %v1229, %v1373
  %v1375 = vpop.f32.mrb[0].mxu0
  %1376 = vmatprep.mubr.f32.mxu0 0.0
  %1377 = vmatmul.mubr.f32.gmra.mrb[0].mxu0 %v39
  %v1378 = vpop.f32.mrb[0].mxu0
  %v1379 = vadd.f32 %v1234, %v1378
  %v1380 = vpop.f32.mrb[0].mxu0
  %1381 = vmatprep.mubr.f32.mxu0 0.0
  %1382 = vmatmul.mubr.f32.gmra.mrb[0].mxu0 %v52
  %v1383 = vpop.f32.mrb[0].mxu0
  %v1384 = vadd.f32 %v1239, %v1383
  %v1385 = vpop.f32.mrb[0].mxu0
  %1386 = vmatprep.mubr.f32.mxu0 0.0
  %1387 = vmatmul.mubr.f32.gmra.mrb[0].mxu0 %v65
  %v1388 = vpop.f32.mrb[0].mxu0
  %v1389 = vadd.f32 %v1244, %v1388
  %v1390 = vpop.f32.mrb[0].mxu0
  %1391 = vmatprep.mubr.f32.mxu0 0.0
  %1392 = vmatmul.mubr.f32.gmra.mrb[0].mxu0 %v78
  %v1393 = vpop.f32.mrb[0].mxu0
  %v1394 = vadd.f32 %v1249, %v1393
  %v1395 = vpop.f32.mrb[0].mxu0
  %1396 = vmatprep.mubr.f32.mxu0 0.0
  %1397 = vmatmul.mubr.f32.gmra.mrb[0].mxu0 %v91
  %v1398 = vpop.f32.mrb[0].mxu0
  %v1399 = vadd.f32 %v1254, %v1398
  %v1400 = vpop.f32.mrb[0].mxu0
  %1401 = vmatprep.mubr.f32.mxu0 0.0
  %1402 = vmatmul.mubr.f32.gmra.mrb[0].mxu0 %v104
  %v1403 = vpop.f32.mrb[0].mxu0
  %v1404 = vadd.f32 %v1259, %v1403
  %v1405 = vpop.f32.mrb[0].mxu0
  %1406 = vmatprep.mubr.f32.mxu0 0.0
  %1407 = vmatmul.mubr.f32.gmra.mrb[0].mxu0 %v117
  %v1408 = vpop.f32.mrb[0].mxu0
  %v1409 = vadd.f32 %v1264, %v1408
  %v1410 = vpop.f32.mrb[0].mxu0
  %1411 = vmatprep.mubr.f32.mxu0 0.0
  %1412 = vmatmul.mubr.f32.gmra.mrb[0].mxu0 %v130
  %v1413 = vpop.f32.mrb[0].mxu0
  %v1414 = vadd.f32 %v1269, %v1413
  %v1415 = vpop.f32.mrb[0].mxu0
  %1416 = vmatprep.mubr.f32.mxu0 0.0
  %1417 = vmatmul.mubr.f32.gmra.mrb[0].mxu0 %v143
  %v1418 = vpop.f32.mrb[0].mxu0
  %v1419 = vadd.f32 %v1274, %v1418
  %v1420 = vpop.f32.mrb[0].mxu0
  %1421 = vmatprep.mubr.f32.mxu0 0.0
  %1422 = vmatmul.mubr.f32.gmra.mrb[0].mxu0 %v156
  %v1423 = vpop.f32.mrb[0].mxu0
  %v1424 = vadd.f32 %v1279, %v1423
  %v1425 = vpop.f32.mrb[0].mxu0
  %1426 = vmatprep.mubr.f32.mxu0 0.0
  %1427 = vmatmul.mubr.f32.gmra.mrb[0].mxu0 %v169
  %v1428 = vpop.f32.mrb[0].mxu0
  %v1429 = vadd.f32 %v1284, %v1428
  %v1430 = vpop.f32.mrb[0].mxu0
  %1431 = vmatprep.mubr.f32.mxu0 0.0
  %1432 = vmatmul.mubr.f32.gmra.mrb[0].mxu0 %v182
  %v1433 = vpop.f32.mrb[0].mxu0
  %v1434 = vadd.f32 %v1289, %v1433
  %v1435 = vpop.f32.mrb[0].mxu0
  %1436 = vmatprep.mubr.f32.mxu0 0.0
  %1437 = vmatmul.mubr.f32.gmra.mrb[0].mxu0 %v195
  %v1438 = vpop.f32.mrb[0].mxu0
  %v1439 = vadd.f32 %v1294, %v1438
  %v1440 = vpop.f32.mrb[0].mxu0
  %1441 = vmatprep.mubr.f32.mxu0 0.0
  %1442 = vmatmul.mubr.f32.gmra.mrb[0].mxu0 %v208
  %v1443 = vpop.f32.mrb[0].mxu0
  %v1444 = vadd.f32 %v1299, %v1443
  %v1445 = vpop.f32.mrb[0].mxu0
  %1446 = vmatprep.mubr.f32.mxu0 0.0
  %1447 = vmatmul.mubr.f32.gmra.mrb[0].mxu0 %v221
  %v1448 = vpop.f32.mrb[0].mxu0
  %v1449 = vadd.f32 %v1304, %v1448
  %v1450 = vpop.f32.mrb[0].mxu0
  %1451 = vdwg.mxu0
  %vm1452 = vcmask 523264
  %1453 = vst.msk [vmem:[%s3] sm:$0xff] %vm1452, %v1374
  %1454 = vst.msk [vmem:[%s3 + $0x8] sm:$0xff] %vm1452, %v1379
  %1455 = vst.msk [vmem:[%s3 + $0x10] sm:$0xff] %vm1452, %v1384
  %1456 = vst.msk [vmem:[%s3 + $0x18] sm:$0xff] %vm1452, %v1389
  %1457 = vst.msk [vmem:[%s3 + $0x20] sm:$0xff] %vm1452, %v1394
  %1458 = vst.msk [vmem:[%s3 + $0x28] sm:$0xff] %vm1452, %v1399
  %1459 = vst.msk [vmem:[%s3 + $0x30] sm:$0xff] %vm1452, %v1404
  %1460 = vst.msk [vmem:[%s3 + $0x38] sm:$0xff] %vm1452, %v1409
  %1461 = vst.msk [vmem:[%s3 + $0x40] sm:$0xff] %vm1452, %v1414
  %1462 = vst.msk [vmem:[%s3 + $0x48] sm:$0xff] %vm1452, %v1419
  %1463 = vst.msk [vmem:[%s3 + $0x50] sm:$0xff] %vm1452, %v1424
  %1464 = vst.msk [vmem:[%s3 + $0x58] sm:$0xff] %vm1452, %v1429
  %1465 = vst.msk [vmem:[%s3 + $0x60] sm:$0xff] %vm1452, %v1434
  %1466 = vst.msk [vmem:[%s3 + $0x68] sm:$0xff] %vm1452, %v1439
  %1467 = vst.msk [vmem:[%s3 + $0x70] sm:$0xff] %vm1452, %v1444
  %1468 = vst.msk [vmem:[%s3 + $0x78] sm:$0xff] %vm1452, %v1449
  // Predicated region
  $region14: #{conv_neural_network_forward.10} parent=0 // pred_check
    _
  $region15: #{conv_neural_network_forward.10} parent=0 // pred_check_branch
    %1470 = sbr.rel (0) target = $region17
  $region16: #{conv_neural_network_forward.10} parent=0 // pred_region
    _
  $region17: #{conv_neural_network_forward.10} parent=0 // pred_fallthru
    _
  // Predicated region
  $region18: #{conv_neural_network_forward.10} parent=0 // pred_check
    _
  $region19: #{conv_neural_network_forward.10} parent=0 // pred_check_branch
    %1472 = sbr.rel (0) target = $region21
  $region20: #{conv_neural_network_forward.10} parent=0 // pred_region
    _
  $region21: #{conv_neural_network_forward.10} parent=0 // pred_fallthru
    _

// kernel: conv_neural_network_forward.12
$region0: #{conv_neural_network_forward.12}
  #allocation0 [shape = 'u32[]', space=smem, size = 0x4, offset = 0x4, fixed_abs, tag = 'smem constant byte address 0x4 - core index']
  #allocation1 [shape = 'u32[144,128]{1,0:T(1,128)}', space=vmem, size = 0x12000, scoped, tag = 'internal scratch']
  %s0 = inlined_call_operand.vmem [shape: f32[2,3,3,64], index: 0, kind: input, shape index: {}]
  %s1 = inlined_call_operand.vmem [shape: f32[2,3,3,64], index: 1, kind: input, shape index: {}]
  %s2 = inlined_call_operand.vmem [shape: f32[2,3,3,64], index: 2, kind: input, shape index: {}]
  %s3 = inlined_call_operand.vmem [shape: f32[2,3,3,64], index: 3, kind: input, shape index: {}]
  %s4 = inlined_call_operand.vmem [shape: f32[2,3,3,64], index: 4, kind: output, shape index: {}]
  %s5 = sld [smem:[#allocation0]]
  $region26: #{conv_neural_network_forward.12} parent=0
    _
  %s7 = ssub.s32 1, %s5
  %s8 = scalar_select 0, %s7, %s5
  // Predicated region
  $region2: #{conv_neural_network_forward.12} parent=0 // pred_check
    _
  $region3: #{conv_neural_network_forward.12} parent=0 // pred_check_branch
    %10 = sbr.rel (0) target = $region5
  $region4: #{conv_neural_network_forward.12} parent=0 // pred_region
    _
  $region5: #{conv_neural_network_forward.12} parent=0 // pred_fallthru
    _
  // Predicated region
  $region6: #{conv_neural_network_forward.12} parent=0 // pred_check
    _
  $region7: #{conv_neural_network_forward.12} parent=0 // pred_check_branch
    %12 = sbr.rel (0) target = $region9
  $region8: #{conv_neural_network_forward.12} parent=0 // pred_region
    _
  $region9: #{conv_neural_network_forward.12} parent=0 // pred_fallthru
    _
  // Predicated region
  $region10: #{conv_neural_network_forward.12} parent=0 // pred_check
    _
  $region11: #{conv_neural_network_forward.12} parent=0 // pred_check_branch
    %14 = sbr.rel (0) target = $region13
  $region12: #{conv_neural_network_forward.12} parent=0 // pred_region
    _
  $region13: #{conv_neural_network_forward.12} parent=0 // pred_fallthru
    _
  // Predicated region
  $region14: #{conv_neural_network_forward.12} parent=0 // pred_check
    _
  $region15: #{conv_neural_network_forward.12} parent=0 // pred_check_branch
    %16 = sbr.rel (0) target = $region17
  $region16: #{conv_neural_network_forward.12} parent=0 // pred_region
    _
  $region17: #{conv_neural_network_forward.12} parent=0 // pred_fallthru
    _
  %v17 = vld [vmem:[%s0] sm:$0x7]
  %v18 = vld [vmem:[%s0 + $0x4] sm:$0x7]
  %v19 = vld [vmem:[%s0 + $0x8] sm:$0x7]
  %v20 = vld [vmem:[%s0 + $0xc] sm:$0x7]
  %v21 = vld [vmem:[%s0 + $0x10] sm:$0x7]
  %v22 = vld [vmem:[%s0 + $0x14] sm:$0x7]
  %v23 = vld [vmem:[%s1] sm:$0x7]
  %v24 = vld [vmem:[%s1 + $0x4] sm:$0x7]
  %v25 = vld [vmem:[%s1 + $0x8] sm:$0x7]
  %v26 = vld [vmem:[%s1 + $0xc] sm:$0x7]
  %v27 = vld [vmem:[%s1 + $0x10] sm:$0x7]
  %v28 = vld [vmem:[%s1 + $0x14] sm:$0x7]
  %v29 = vmax.f32 %v17, %v23
  %v30 = vmax.f32 %v18, %v24
  %v31 = vmax.f32 %v19, %v25
  %v32 = vmax.f32 %v20, %v26
  %v33 = vmax.f32 %v21, %v27
  %v34 = vmax.f32 %v22, %v28
  %v35 = vld [vmem:[%s2] sm:$0x7]
  %v36 = vld [vmem:[%s2 + $0x4] sm:$0x7]
  %v37 = vld [vmem:[%s2 + $0x8] sm:$0x7]
  %v38 = vld [vmem:[%s2 + $0xc] sm:$0x7]
  %v39 = vld [vmem:[%s2 + $0x10] sm:$0x7]
  %v40 = vld [vmem:[%s2 + $0x14] sm:$0x7]
  %v41 = vld [vmem:[%s3] sm:$0x7]
  %v42 = vld [vmem:[%s3 + $0x4] sm:$0x7]
  %v43 = vld [vmem:[%s3 + $0x8] sm:$0x7]
  %v44 = vld [vmem:[%s3 + $0xc] sm:$0x7]
  %v45 = vld [vmem:[%s3 + $0x10] sm:$0x7]
  %v46 = vld [vmem:[%s3 + $0x14] sm:$0x7]
  %v47 = vmax.f32 %v35, %v41
  %v48 = vmax.f32 %v36, %v42
  %v49 = vmax.f32 %v37, %v43
  %v50 = vmax.f32 %v38, %v44
  %v51 = vmax.f32 %v39, %v45
  %v52 = vmax.f32 %v40, %v46
  %v53 = vmax.f32 %v29, %v47
  %v54 = vmax.f32 %v30, %v48
  %v55 = vmax.f32 %v31, %v49
  %v56 = vmax.f32 %v32, %v50
  %v57 = vmax.f32 %v33, %v51
  %v58 = vmax.f32 %v34, %v52
  %vm59 = vcmask 518144
  %60 = vst.msk [vmem:[%s4] sm:$0x7] %vm59, %v53
  %61 = vst.msk [vmem:[%s4 + $0x4] sm:$0x7] %vm59, %v54
  %62 = vst.msk [vmem:[%s4 + $0x8] sm:$0x7] %vm59, %v55
  %63 = vst.msk [vmem:[%s4 + $0xc] sm:$0x7] %vm59, %v56
  %64 = vst.msk [vmem:[%s4 + $0x10] sm:$0x7] %vm59, %v57
  %65 = vst.msk [vmem:[%s4 + $0x14] sm:$0x7] %vm59, %v58
  // Predicated region
  $region18: #{conv_neural_network_forward.12} parent=0 // pred_check
    _
  $region19: #{conv_neural_network_forward.12} parent=0 // pred_check_branch
    %67 = sbr.rel (0) target = $region21
  $region20: #{conv_neural_network_forward.12} parent=0 // pred_region
    _
  $region21: #{conv_neural_network_forward.12} parent=0 // pred_fallthru
    _
  // Predicated region
  $region22: #{conv_neural_network_forward.12} parent=0 // pred_check
    _
  $region23: #{conv_neural_network_forward.12} parent=0 // pred_check_branch
    %69 = sbr.rel (0) target = $region25
  $region24: #{conv_neural_network_forward.12} parent=0 // pred_region
    _
  $region25: #{conv_neural_network_forward.12} parent=0 // pred_fallthru
    _

// kernel: conv_neural_network_forward.13
$region0: #{conv_neural_network_forward.13}
  #allocation0 [shape = 'u32[]', space=smem, size = 0x4, offset = 0x4, fixed_abs, tag = 'smem constant byte address 0x4 - core index']
  #allocation1 [shape = 'u32[144,128]{1,0:T(1,128)}', space=vmem, size = 0x12000, scoped, tag = 'internal scratch']
  %s0 = inlined_call_operand.vmem [shape: f32[8,640], index: 0, kind: input, shape index: {}]
  %s1 = inlined_call_operand.vmem [shape: f32[640,128], index: 1, kind: input, shape index: {}]
  %s2 = inlined_call_operand.vmem [shape: f32[1,128], index: 2, kind: input, shape index: {}]
  %s3 = inlined_call_operand.vmem [shape: f32[128,10], index: 3, kind: input, shape index: {}]
  %s4 = inlined_call_operand.vmem [shape: f32[1,10], index: 4, kind: input, shape index: {}]
  %s5 = inlined_call_operand.vmem [shape: f32[8,10], index: 5, kind: output, shape index: {}]
  %s6 = sld [smem:[#allocation0]]
  $region30: #{conv_neural_network_forward.13} parent=0
    _
  %s8 = ssub.s32 1, %s6
  %s9 = scalar_select 0, %s8, %s6
  // Predicated region
  $region2: #{conv_neural_network_forward.13} parent=0 // pred_check
    _
  $region3: #{conv_neural_network_forward.13} parent=0 // pred_check_branch
    %11 = sbr.rel (0) target = $region5
  $region4: #{conv_neural_network_forward.13} parent=0 // pred_region
    _
  $region5: #{conv_neural_network_forward.13} parent=0 // pred_fallthru
    _
  // Predicated region
  $region6: #{conv_neural_network_forward.13} parent=0 // pred_check
    _
  $region7: #{conv_neural_network_forward.13} parent=0 // pred_check_branch
    %13 = sbr.rel (0) target = $region9
  $region8: #{conv_neural_network_forward.13} parent=0 // pred_region
    _
  $region9: #{conv_neural_network_forward.13} parent=0 // pred_fallthru
    _
  // Predicated region
  $region10: #{conv_neural_network_forward.13} parent=0 // pred_check
    _
  $region11: #{conv_neural_network_forward.13} parent=0 // pred_check_branch
    %15 = sbr.rel (0) target = $region13
  $region12: #{conv_neural_network_forward.13} parent=0 // pred_region
    _
  $region13: #{conv_neural_network_forward.13} parent=0 // pred_fallthru
    _
  // Predicated region
  $region14: #{conv_neural_network_forward.13} parent=0 // pred_check
    _
  $region15: #{conv_neural_network_forward.13} parent=0 // pred_check_branch
    %17 = sbr.rel (0) target = $region17
  $region16: #{conv_neural_network_forward.13} parent=0 // pred_region
    _
  $region17: #{conv_neural_network_forward.13} parent=0 // pred_fallthru
    _
  // Predicated region
  $region18: #{conv_neural_network_forward.13} parent=0 // pred_check
    _
  $region19: #{conv_neural_network_forward.13} parent=0 // pred_check_branch
    %19 = sbr.rel (0) target = $region21
  $region20: #{conv_neural_network_forward.13} parent=0 // pred_region
    _
  $region21: #{conv_neural_network_forward.13} parent=0 // pred_fallthru
    _
  %v20 = vld [vmem:[%s0] sm:$0xff]
  %v21 = vld [vmem:[%s0 + $0x8] sm:$0xff]
  %v22 = vld [vmem:[%s0 + $0x10] sm:$0xff]
  %v23 = vld [vmem:[%s0 + $0x18] sm:$0xff]
  %v24 = vld [vmem:[%s0 + $0x20] sm:$0xff]
  %v25 = vld [vmem:[%s1] sm:$0xff]
  %v26 = vld [vmem:[%s1 + $0x8] sm:$0xff]
  %v27 = vld [vmem:[%s1 + $0x10] sm:$0xff]
  %v28 = vld [vmem:[%s1 + $0x18] sm:$0xff]
  %v29 = vld [vmem:[%s1 + $0x20] sm:$0xff]
  %v30 = vld [vmem:[%s1 + $0x28] sm:$0xff]
  %v31 = vld [vmem:[%s1 + $0x30] sm:$0xff]
  %v32 = vld [vmem:[%s1 + $0x38] sm:$0xff]
  %v33 = vld [vmem:[%s1 + $0x40] sm:$0xff]
  %v34 = vld [vmem:[%s1 + $0x48] sm:$0xff]
  %v35 = vld [vmem:[%s1 + $0x50] sm:$0xff]
  %v36 = vld [vmem:[%s1 + $0x58] sm:$0xff]
  %v37 = vld [vmem:[%s1 + $0x60] sm:$0xff]
  %v38 = vld [vmem:[%s1 + $0x68] sm:$0xff]
  %v39 = vld [vmem:[%s1 + $0x70] sm:$0xff]
  %v40 = vld [vmem:[%s1 + $0x78] sm:$0xff]
  %v41 = vld [vmem:[%s1 + $0x80] sm:$0xff]
  %v42 = vld [vmem:[%s1 + $0x88] sm:$0xff]
  %v43 = vld [vmem:[%s1 + $0x90] sm:$0xff]
  %v44 = vld [vmem:[%s1 + $0x98] sm:$0xff]
  %v45 = vld [vmem:[%s1 + $0xa0] sm:$0xff]
  %v46 = vld [vmem:[%s1 + $0xa8] sm:$0xff]
  %v47 = vld [vmem:[%s1 + $0xb0] sm:$0xff]
  %v48 = vld [vmem:[%s1 + $0xb8] sm:$0xff]
  %v49 = vld [vmem:[%s1 + $0xc0] sm:$0xff]
  %v50 = vld [vmem:[%s1 + $0xc8] sm:$0xff]
  %v51 = vld [vmem:[%s1 + $0xd0] sm:$0xff]
  %v52 = vld [vmem:[%s1 + $0xd8] sm:$0xff]
  %v53 = vld [vmem:[%s1 + $0xe0] sm:$0xff]
  %v54 = vld [vmem:[%s1 + $0xe8] sm:$0xff]
  %v55 = vld [vmem:[%s1 + $0xf0] sm:$0xff]
  %v56 = vld [vmem:[%s1 + $0xf8] sm:$0xff]
  %v57 = vld [vmem:[%s1 + $0x100] sm:$0xff]
  %v58 = vld [vmem:[%s1 + $0x108] sm:$0xff]
  %v59 = vld [vmem:[%s1 + $0x110] sm:$0xff]
  %v60 = vld [vmem:[%s1 + $0x118] sm:$0xff]
  %v61 = vld [vmem:[%s1 + $0x120] sm:$0xff]
  %v62 = vld [vmem:[%s1 + $0x128] sm:$0xff]
  %v63 = vld [vmem:[%s1 + $0x130] sm:$0xff]
  %v64 = vld [vmem:[%s1 + $0x138] sm:$0xff]
  %v65 = vld [vmem:[%s1 + $0x140] sm:$0xff]
  %v66 = vld [vmem:[%s1 + $0x148] sm:$0xff]
  %v67 = vld [vmem:[%s1 + $0x150] sm:$0xff]
  %v68 = vld [vmem:[%s1 + $0x158] sm:$0xff]
  %v69 = vld [vmem:[%s1 + $0x160] sm:$0xff]
  %v70 = vld [vmem:[%s1 + $0x168] sm:$0xff]
  %v71 = vld [vmem:[%s1 + $0x170] sm:$0xff]
  %v72 = vld [vmem:[%s1 + $0x178] sm:$0xff]
  %v73 = vld [vmem:[%s1 + $0x180] sm:$0xff]
  %v74 = vld [vmem:[%s1 + $0x188] sm:$0xff]
  %v75 = vld [vmem:[%s1 + $0x190] sm:$0xff]
  %v76 = vld [vmem:[%s1 + $0x198] sm:$0xff]
  %v77 = vld [vmem:[%s1 + $0x1a0] sm:$0xff]
  %v78 = vld [vmem:[%s1 + $0x1a8] sm:$0xff]
  %v79 = vld [vmem:[%s1 + $0x1b0] sm:$0xff]
  %v80 = vld [vmem:[%s1 + $0x1b8] sm:$0xff]
  %v81 = vld [vmem:[%s1 + $0x1c0] sm:$0xff]
  %v82 = vld [vmem:[%s1 + $0x1c8] sm:$0xff]
  %v83 = vld [vmem:[%s1 + $0x1d0] sm:$0xff]
  %v84 = vld [vmem:[%s1 + $0x1d8] sm:$0xff]
  %v85 = vld [vmem:[%s1 + $0x1e0] sm:$0xff]
  %v86 = vld [vmem:[%s1 + $0x1e8] sm:$0xff]
  %v87 = vld [vmem:[%s1 + $0x1f0] sm:$0xff]
  %v88 = vld [vmem:[%s1 + $0x1f8] sm:$0xff]
  %v89 = vld [vmem:[%s1 + $0x200] sm:$0xff]
  %v90 = vld [vmem:[%s1 + $0x208] sm:$0xff]
  %v91 = vld [vmem:[%s1 + $0x210] sm:$0xff]
  %v92 = vld [vmem:[%s1 + $0x218] sm:$0xff]
  %v93 = vld [vmem:[%s1 + $0x220] sm:$0xff]
  %v94 = vld [vmem:[%s1 + $0x228] sm:$0xff]
  %v95 = vld [vmem:[%s1 + $0x230] sm:$0xff]
  %v96 = vld [vmem:[%s1 + $0x238] sm:$0xff]
  %v97 = vld [vmem:[%s1 + $0x240] sm:$0xff]
  %v98 = vld [vmem:[%s1 + $0x248] sm:$0xff]
  %v99 = vld [vmem:[%s1 + $0x250] sm:$0xff]
  %v100 = vld [vmem:[%s1 + $0x258] sm:$0xff]
  %v101 = vld [vmem:[%s1 + $0x260] sm:$0xff]
  %v102 = vld [vmem:[%s1 + $0x268] sm:$0xff]
  %v103 = vld [vmem:[%s1 + $0x270] sm:$0xff]
  %v104 = vld [vmem:[%s1 + $0x278] sm:$0xff]
  %v105 = vld [vmem:[%s2] sm:$0x1]
  %v107 = vlaneseq
  %v108 = vshrl.u32 %v107, 7
  %v109 = vsub.s32 0, %v108
  %v110 = vrot.slane %v105, %v109
  %112 = vmatprep.subr.mxu0 0.0
  %113 = vmatpush1.msra.mxu0 %v25
  %114 = vmatprep.subr.mxu0 0.0
  %115 = vmatpush1.msra.mxu0 %v26
  %116 = vmatprep.subr.mxu0 0.0
  %117 = vmatpush1.msra.mxu0 %v27
  %118 = vmatprep.subr.mxu0 0.0
  %119 = vmatpush1.msra.mxu0 %v28
  %120 = vmatprep.subr.mxu0 0.0
  %121 = vmatpush1.msra.mxu0 %v29
  %122 = vmatprep.subr.mxu0 0.0
  %123 = vmatpush1.msra.mxu0 %v30
  %124 = vmatprep.subr.mxu0 0.0
  %125 = vmatpush1.msra.mxu0 %v31
  %126 = vmatprep.subr.mxu0 0.0
  %127 = vmatpush1.msra.mxu0 %v32
  %128 = vmatprep.subr.mxu0 0.0
  %129 = vmatpush1.msra.mxu0 %v33
  %130 = vmatprep.subr.mxu0 0.0
  %131 = vmatpush1.msra.mxu0 %v34
  %132 = vmatprep.subr.mxu0 0.0
  %133 = vmatpush1.msra.mxu0 %v35
  %134 = vmatprep.subr.mxu0 0.0
  %135 = vmatpush1.msra.mxu0 %v36
  %136 = vmatprep.subr.mxu0 0.0
  %137 = vmatpush1.msra.mxu0 %v37
  %138 = vmatprep.subr.mxu0 0.0
  %139 = vmatpush1.msra.mxu0 %v38
  %140 = vmatprep.subr.mxu0 0.0
  %141 = vmatpush1.msra.mxu0 %v39
  %142 = vmatprep.subr.mxu0 0.0
  %143 = vmatpush1.msra.mxu0 %v40
  %144 = vmatprep.subr.mxu0 0.0
  %145 = vmatpush1.msra.mxu0 %v41
  %146 = vmatprep.subr.mxu0 0.0
  %147 = vmatpush1.msra.mxu0 %v42
  %148 = vmatprep.subr.mxu0 0.0
  %149 = vmatpush1.msra.mxu0 %v43
  %150 = vmatprep.subr.mxu0 0.0
  %151 = vmatpush1.msra.mxu0 %v44
  %152 = vmatprep.subr.mxu0 0.0
  %153 = vmatpush1.msra.mxu0 %v45
  %154 = vmatprep.subr.mxu0 0.0
  %155 = vmatpush1.msra.mxu0 %v46
  %156 = vmatprep.subr.mxu0 0.0
  %157 = vmatpush1.msra.mxu0 %v47
  %158 = vmatprep.subr.mxu0 0.0
  %159 = vmatpush1.msra.mxu0 %v48
  %160 = vmatprep.subr.mxu0 0.0
  %161 = vmatpush1.msra.mxu0 %v49
  %162 = vmatprep.subr.mxu0 0.0
  %163 = vmatpush1.msra.mxu0 %v50
  %164 = vmatprep.subr.mxu0 0.0
  %165 = vmatpush1.msra.mxu0 %v51
  %166 = vmatprep.subr.mxu0 0.0
  %167 = vmatpush1.msra.mxu0 %v52
  %168 = vmatprep.subr.mxu0 0.0
  %169 = vmatpush1.msra.mxu0 %v53
  %170 = vmatprep.subr.mxu0 0.0
  %171 = vmatpush1.msra.mxu0 %v54
  %172 = vmatprep.subr.mxu0 0.0
  %173 = vmatpush1.msra.mxu0 %v55
  %174 = vmatprep.subr.mxu0 0.0
  %175 = vmatpush1.msra.mxu0 %v56
  %176 = vmatprep.mubr.f32.mxu0 %v21
  %177 = vmatmul.mubr.f32.gmra.mrb[0].mxu0 %v20
  %v178 = vpop.f32.mrb[0].mxu0
  %v179 = vadd.f32 %v110, %v178
  %v180 = vpop.f32.mrb[0].mxu0
  %181 = vdwg.mxu0
  %182 = vmatprep.subr.mxu0 0.0
  %183 = vmatpush1.msra.mxu0 %v57
  %184 = vmatprep.subr.mxu0 0.0
  %185 = vmatpush1.msra.mxu0 %v58
  %186 = vmatprep.subr.mxu0 0.0
  %187 = vmatpush1.msra.mxu0 %v59
  %188 = vmatprep.subr.mxu0 0.0
  %189 = vmatpush1.msra.mxu0 %v60
  %190 = vmatprep.subr.mxu0 0.0
  %191 = vmatpush1.msra.mxu0 %v61
  %192 = vmatprep.subr.mxu0 0.0
  %193 = vmatpush1.msra.mxu0 %v62
  %194 = vmatprep.subr.mxu0 0.0
  %195 = vmatpush1.msra.mxu0 %v63
  %196 = vmatprep.subr.mxu0 0.0
  %197 = vmatpush1.msra.mxu0 %v64
  %198 = vmatprep.subr.mxu0 0.0
  %199 = vmatpush1.msra.mxu0 %v65
  %200 = vmatprep.subr.mxu0 0.0
  %201 = vmatpush1.msra.mxu0 %v66
  %202 = vmatprep.subr.mxu0 0.0
  %203 = vmatpush1.msra.mxu0 %v67
  %204 = vmatprep.subr.mxu0 0.0
  %205 = vmatpush1.msra.mxu0 %v68
  %206 = vmatprep.subr.mxu0 0.0
  %207 = vmatpush1.msra.mxu0 %v69
  %208 = vmatprep.subr.mxu0 0.0
  %209 = vmatpush1.msra.mxu0 %v70
  %210 = vmatprep.subr.mxu0 0.0
  %211 = vmatpush1.msra.mxu0 %v71
  %212 = vmatprep.subr.mxu0 0.0
  %213 = vmatpush1.msra.mxu0 %v72
  %214 = vmatprep.subr.mxu0 0.0
  %215 = vmatpush1.msra.mxu0 %v73
  %216 = vmatprep.subr.mxu0 0.0
  %217 = vmatpush1.msra.mxu0 %v74
  %218 = vmatprep.subr.mxu0 0.0
  %219 = vmatpush1.msra.mxu0 %v75
  %220 = vmatprep.subr.mxu0 0.0
  %221 = vmatpush1.msra.mxu0 %v76
  %222 = vmatprep.subr.mxu0 0.0
  %223 = vmatpush1.msra.mxu0 %v77
  %224 = vmatprep.subr.mxu0 0.0
  %225 = vmatpush1.msra.mxu0 %v78
  %226 = vmatprep.subr.mxu0 0.0
  %227 = vmatpush1.msra.mxu0 %v79
  %228 = vmatprep.subr.mxu0 0.0
  %229 = vmatpush1.msra.mxu0 %v80
  %230 = vmatprep.subr.mxu0 0.0
  %231 = vmatpush1.msra.mxu0 %v81
  %232 = vmatprep.subr.mxu0 0.0
  %233 = vmatpush1.msra.mxu0 %v82
  %234 = vmatprep.subr.mxu0 0.0
  %235 = vmatpush1.msra.mxu0 %v83
  %236 = vmatprep.subr.mxu0 0.0
  %237 = vmatpush1.msra.mxu0 %v84
  %238 = vmatprep.subr.mxu0 0.0
  %239 = vmatpush1.msra.mxu0 %v85
  %240 = vmatprep.subr.mxu0 0.0
  %241 = vmatpush1.msra.mxu0 %v86
  %242 = vmatprep.subr.mxu0 0.0
  %243 = vmatpush1.msra.mxu0 %v87
  %244 = vmatprep.subr.mxu0 0.0
  %245 = vmatpush1.msra.mxu0 %v88
  %246 = vmatprep.mubr.f32.mxu0 %v23
  %247 = vmatmul.mubr.f32.gmra.mrb[0].mxu0 %v22
  %v248 = vpop.f32.mrb[0].mxu0
  %v249 = vadd.f32 %v179, %v248
  %v250 = vpop.f32.mrb[0].mxu0
  %251 = vdwg.mxu0
  %252 = vmatprep.subr.mxu0 0.0
  %253 = vmatpush1.msra.mxu0 %v89
  %254 = vmatprep.subr.mxu0 0.0
  %255 = vmatpush1.msra.mxu0 %v90
  %256 = vmatprep.subr.mxu0 0.0
  %257 = vmatpush1.msra.mxu0 %v91
  %258 = vmatprep.subr.mxu0 0.0
  %259 = vmatpush1.msra.mxu0 %v92
  %260 = vmatprep.subr.mxu0 0.0
  %261 = vmatpush1.msra.mxu0 %v93
  %262 = vmatprep.subr.mxu0 0.0
  %263 = vmatpush1.msra.mxu0 %v94
  %264 = vmatprep.subr.mxu0 0.0
  %265 = vmatpush1.msra.mxu0 %v95
  %266 = vmatprep.subr.mxu0 0.0
  %267 = vmatpush1.msra.mxu0 %v96
  %268 = vmatprep.subr.mxu0 0.0
  %269 = vmatpush1.msra.mxu0 %v97
  %270 = vmatprep.subr.mxu0 0.0
  %271 = vmatpush1.msra.mxu0 %v98
  %272 = vmatprep.subr.mxu0 0.0
  %273 = vmatpush1.msra.mxu0 %v99
  %274 = vmatprep.subr.mxu0 0.0
  %275 = vmatpush1.msra.mxu0 %v100
  %276 = vmatprep.subr.mxu0 0.0
  %277 = vmatpush1.msra.mxu0 %v101
  %278 = vmatprep.subr.mxu0 0.0
  %279 = vmatpush1.msra.mxu0 %v102
  %280 = vmatprep.subr.mxu0 0.0
  %281 = vmatpush1.msra.mxu0 %v103
  %282 = vmatprep.subr.mxu0 0.0
  %283 = vmatpush1.msra.mxu0 %v104
  %284 = vmatprep.subr.mxu0 0.0
  %285 = vmatpush1.msra.mxu0 0.0
  %286 = vmatprep.subr.mxu0 0.0
  %287 = vmatpush1.msra.mxu0 0.0
  %288 = vmatprep.subr.mxu0 0.0
  %289 = vmatpush1.msra.mxu0 0.0
  %290 = vmatprep.subr.mxu0 0.0
  %291 = vmatpush1.msra.mxu0 0.0
  %292 = vmatprep.subr.mxu0 0.0
  %293 = vmatpush1.msra.mxu0 0.0
  %294 = vmatprep.subr.mxu0 0.0
  %295 = vmatpush1.msra.mxu0 0.0
  %296 = vmatprep.subr.mxu0 0.0
  %297 = vmatpush1.msra.mxu0 0.0
  %298 = vmatprep.subr.mxu0 0.0
  %299 = vmatpush1.msra.mxu0 0.0
  %300 = vmatprep.subr.mxu0 0.0
  %301 = vmatpush1.msra.mxu0 0.0
  %302 = vmatprep.subr.mxu0 0.0
  %303 = vmatpush1.msra.mxu0 0.0
  %304 = vmatprep.subr.mxu0 0.0
  %305 = vmatpush1.msra.mxu0 0.0
  %306 = vmatprep.subr.mxu0 0.0
  %307 = vmatpush1.msra.mxu0 0.0
  %308 = vmatprep.subr.mxu0 0.0
  %309 = vmatpush1.msra.mxu0 0.0
  %310 = vmatprep.subr.mxu0 0.0
  %311 = vmatpush1.msra.mxu0 0.0
  %312 = vmatprep.subr.mxu0 0.0
  %313 = vmatpush1.msra.mxu0 0.0
  %314 = vmatprep.subr.mxu0 0.0
  %315 = vmatpush1.msra.mxu0 0.0
  %316 = vmatprep.mubr.f32.mxu0 0.0
  %317 = vmatmul.mubr.f32.gmra.mrb[0].mxu0 %v24
  %v318 = vpop.f32.mrb[0].mxu0
  %v319 = vadd.f32 %v249, %v318
  %v320 = vpop.f32.mrb[0].mxu0
  %321 = vdwg.mxu0
  %v322 = vmax.f32 %v319, 0.0
  %v323 = vld [vmem:[%s3] sm:$0xff]
  %v324 = vld [vmem:[%s3 + $0x8] sm:$0xff]
  %v325 = vld [vmem:[%s3 + $0x10] sm:$0xff]
  %v326 = vld [vmem:[%s3 + $0x18] sm:$0xff]
  %v327 = vld [vmem:[%s3 + $0x20] sm:$0xff]
  %v328 = vld [vmem:[%s3 + $0x28] sm:$0xff]
  %v329 = vld [vmem:[%s3 + $0x30] sm:$0xff]
  %v330 = vld [vmem:[%s3 + $0x38] sm:$0xff]
  %v331 = vld [vmem:[%s3 + $0x40] sm:$0xff]
  %v332 = vld [vmem:[%s3 + $0x48] sm:$0xff]
  %v333 = vld [vmem:[%s3 + $0x50] sm:$0xff]
  %v334 = vld [vmem:[%s3 + $0x58] sm:$0xff]
  %v335 = vld [vmem:[%s3 + $0x60] sm:$0xff]
  %v336 = vld [vmem:[%s3 + $0x68] sm:$0xff]
  %v337 = vld [vmem:[%s3 + $0x70] sm:$0xff]
  %v338 = vld [vmem:[%s3 + $0x78] sm:$0xff]
  %v339 = vld [vmem:[%s4] sm:$0x1]
  %v341 = vlaneseq
  %v342 = vshrl.u32 %v341, 7
  %v343 = vsub.s32 0, %v342
  %v344 = vrot.slane %v339, %v343
  %346 = vmatprep.subr.mxu0 0.0
  %347 = vmatpush1.msra.mxu0 %v323
  %348 = vmatprep.subr.mxu0 0.0
  %349 = vmatpush1.msra.mxu0 %v324
  %350 = vmatprep.subr.mxu0 0.0
  %351 = vmatpush1.msra.mxu0 %v325
  %352 = vmatprep.subr.mxu0 0.0
  %353 = vmatpush1.msra.mxu0 %v326
  %354 = vmatprep.subr.mxu0 0.0
  %355 = vmatpush1.msra.mxu0 %v327
  %356 = vmatprep.subr.mxu0 0.0
  %357 = vmatpush1.msra.mxu0 %v328
  %358 = vmatprep.subr.mxu0 0.0
  %359 = vmatpush1.msra.mxu0 %v329
  %360 = vmatprep.subr.mxu0 0.0
  %361 = vmatpush1.msra.mxu0 %v330
  %362 = vmatprep.subr.mxu0 0.0
  %363 = vmatpush1.msra.mxu0 %v331
  %364 = vmatprep.subr.mxu0 0.0
  %365 = vmatpush1.msra.mxu0 %v332
  %366 = vmatprep.subr.mxu0 0.0
  %367 = vmatpush1.msra.mxu0 %v333
  %368 = vmatprep.subr.mxu0 0.0
  %369 = vmatpush1.msra.mxu0 %v334
  %370 = vmatprep.subr.mxu0 0.0
  %371 = vmatpush1.msra.mxu0 %v335
  %372 = vmatprep.subr.mxu0 0.0
  %373 = vmatpush1.msra.mxu0 %v336
  %374 = vmatprep.subr.mxu0 0.0
  %375 = vmatpush1.msra.mxu0 %v337
  %376 = vmatprep.subr.mxu0 0.0
  %377 = vmatpush1.msra.mxu0 %v338
  %378 = vmatprep.subr.mxu0 0.0
  %379 = vmatpush1.msra.mxu0 0.0
  %380 = vmatprep.subr.mxu0 0.0
  %381 = vmatpush1.msra.mxu0 0.0
  %382 = vmatprep.subr.mxu0 0.0
  %383 = vmatpush1.msra.mxu0 0.0
  %384 = vmatprep.subr.mxu0 0.0
  %385 = vmatpush1.msra.mxu0 0.0
  %386 = vmatprep.subr.mxu0 0.0
  %387 = vmatpush1.msra.mxu0 0.0
  %388 = vmatprep.subr.mxu0 0.0
  %389 = vmatpush1.msra.mxu0 0.0
  %390 = vmatprep.subr.mxu0 0.0
  %391 = vmatpush1.msra.mxu0 0.0
  %392 = vmatprep.subr.mxu0 0.0
  %393 = vmatpush1.msra.mxu0 0.0
  %394 = vmatprep.subr.mxu0 0.0
  %395 = vmatpush1.msra.mxu0 0.0
  %396 = vmatprep.subr.mxu0 0.0
  %397 = vmatpush1.msra.mxu0 0.0
  %398 = vmatprep.subr.mxu0 0.0
  %399 = vmatpush1.msra.mxu0 0.0
  %400 = vmatprep.subr.mxu0 0.0
  %401 = vmatpush1.msra.mxu0 0.0
  %402 = vmatprep.subr.mxu0 0.0
  %403 = vmatpush1.msra.mxu0 0.0
  %404 = vmatprep.subr.mxu0 0.0
  %405 = vmatpush1.msra.mxu0 0.0
  %406 = vmatprep.subr.mxu0 0.0
  %407 = vmatpush1.msra.mxu0 0.0
  %408 = vmatprep.subr.mxu0 0.0
  %409 = vmatpush1.msra.mxu0 0.0
  %410 = vmatprep.mubr.f32.mxu0 0.0
  %411 = vmatmul.mubr.f32.gmra.mrb[0].mxu0 %v322
  %v412 = vpop.f32.mrb[0].mxu0
  %v413 = vadd.f32 %v344, %v412
  %v414 = vpop.f32.mrb[0].mxu0
  %415 = vdwg.mxu0
  %vm416 = vcmask 80896
  %417 = vst.msk [vmem:[%s5] sm:$0xff] %vm416, %v413
  // Predicated region
  $region22: #{conv_neural_network_forward.13} parent=0 // pred_check
    _
  $region23: #{conv_neural_network_forward.13} parent=0 // pred_check_branch
    %419 = sbr.rel (0) target = $region25
  $region24: #{conv_neural_network_forward.13} parent=0 // pred_region
    _
  $region25: #{conv_neural_network_forward.13} parent=0 // pred_fallthru
    _
  // Predicated region
  $region26: #{conv_neural_network_forward.13} parent=0 // pred_check
    _
  $region27: #{conv_neural_network_forward.13} parent=0 // pred_check_branch
    %421 = sbr.rel (0) target = $region29
  $region28: #{conv_neural_network_forward.13} parent=0 // pred_region
    _
  $region29: #{conv_neural_network_forward.13} parent=0 // pred_fallthru
    _

// kernel: conv_neural_network_forward.11
$region0: #{conv_neural_network_forward.11}
  #allocation0 [shape = 'u32[]', space=smem, size = 0x4, offset = 0x4, fixed_abs, tag = 'smem constant byte address 0x4 - core index']
  #allocation1 [shape = 'u32[144,128]{1,0:T(1,128)}', space=vmem, size = 0x12000, scoped, tag = 'internal scratch']
  %s0 = inlined_call_operand.vmem [shape: f32[72,7808], index: 0, kind: input, shape index: {}]
  %s1 = inlined_call_operand.vmem [shape: f32[7808,64], index: 1, kind: input, shape index: {}]
  %s2 = inlined_call_operand.vmem [shape: f32[1,64], index: 2, kind: input, shape index: {}]
  %s3 = inlined_call_operand.vmem [shape: f32[72,64], index: 3, kind: output, shape index: {}]
  %s4 = sld [smem:[#allocation0]]
  $region22: #{conv_neural_network_forward.11} parent=0
    _
  %s6 = ssub.s32 1, %s4
  %s7 = scalar_select 0, %s6, %s4
  // Predicated region
  $region2: #{conv_neural_network_forward.11} parent=0 // pred_check
    _
  $region3: #{conv_neural_network_forward.11} parent=0 // pred_check_branch
    %9 = sbr.rel (0) target = $region5
  $region4: #{conv_neural_network_forward.11} parent=0 // pred_region
    _
  $region5: #{conv_neural_network_forward.11} parent=0 // pred_fallthru
    _
  // Predicated region
  $region6: #{conv_neural_network_forward.11} parent=0 // pred_check
    _
  $region7: #{conv_neural_network_forward.11} parent=0 // pred_check_branch
    %11 = sbr.rel (0) target = $region9
  $region8: #{conv_neural_network_forward.11} parent=0 // pred_region
    _
  $region9: #{conv_neural_network_forward.11} parent=0 // pred_fallthru
    _
  // Predicated region
  $region10: #{conv_neural_network_forward.11} parent=0 // pred_check
    _
  $region11: #{conv_neural_network_forward.11} parent=0 // pred_check_branch
    %13 = sbr.rel (0) target = $region13
  $region12: #{conv_neural_network_forward.11} parent=0 // pred_region
    _
  $region13: #{conv_neural_network_forward.11} parent=0 // pred_fallthru
    _
  %v14 = vld [vmem:[%s0] sm:$0xff]
  %v15 = vld [vmem:[%s0 + $0x8] sm:$0xff]
  %v16 = vld [vmem:[%s0 + $0x10] sm:$0xff]
  %v17 = vld [vmem:[%s0 + $0x18] sm:$0xff]
  %v18 = vld [vmem:[%s0 + $0x20] sm:$0xff]
  %v19 = vld [vmem:[%s0 + $0x28] sm:$0xff]
  %v20 = vld [vmem:[%s0 + $0x30] sm:$0xff]
  %v21 = vld [vmem:[%s0 + $0x38] sm:$0xff]
  %v22 = vld [vmem:[%s0 + $0x40] sm:$0xff]
  %v23 = vld [vmem:[%s0 + $0x48] sm:$0xff]
  %v24 = vld [vmem:[%s0 + $0x50] sm:$0xff]
  %v25 = vld [vmem:[%s0 + $0x58] sm:$0xff]
  %v26 = vld [vmem:[%s0 + $0x60] sm:$0xff]
  %v27 = vld [vmem:[%s0 + $0x68] sm:$0xff]
  %v28 = vld [vmem:[%s0 + $0x70] sm:$0xff]
  %v29 = vld [vmem:[%s0 + $0x78] sm:$0xff]
  %v30 = vld [vmem:[%s0 + $0x80] sm:$0xff]
  %v31 = vld [vmem:[%s0 + $0x88] sm:$0xff]
  %v32 = vld [vmem:[%s0 + $0x90] sm:$0xff]
  %v33 = vld [vmem:[%s0 + $0x98] sm:$0xff]
  %v34 = vld [vmem:[%s0 + $0xa0] sm:$0xff]
  %v35 = vld [vmem:[%s0 + $0xa8] sm:$0xff]
  %v36 = vld [vmem:[%s0 + $0xb0] sm:$0xff]
  %v37 = vld [vmem:[%s0 + $0xb8] sm:$0xff]
  %v38 = vld [vmem:[%s0 + $0xc0] sm:$0xff]
  %v39 = vld [vmem:[%s0 + $0xc8] sm:$0xff]
  %v40 = vld [vmem:[%s0 + $0xd0] sm:$0xff]
  %v41 = vld [vmem:[%s0 + $0xd8] sm:$0xff]
  %v42 = vld [vmem:[%s0 + $0xe0] sm:$0xff]
  %v43 = vld [vmem:[%s0 + $0xe8] sm:$0xff]
  %v44 = vld [vmem:[%s0 + $0xf0] sm:$0xff]
  %v45 = vld [vmem:[%s0 + $0xf8] sm:$0xff]
  %v46 = vld [vmem:[%s0 + $0x100] sm:$0xff]
  %v47 = vld [vmem:[%s0 + $0x108] sm:$0xff]
  %v48 = vld [vmem:[%s0 + $0x110] sm:$0xff]
  %v49 = vld [vmem:[%s0 + $0x118] sm:$0xff]
  %v50 = vld [vmem:[%s0 + $0x120] sm:$0xff]
  %v51 = vld [vmem:[%s0 + $0x128] sm:$0xff]
  %v52 = vld [vmem:[%s0 + $0x130] sm:$0xff]
  %v53 = vld [vmem:[%s0 + $0x138] sm:$0xff]
  %v54 = vld [vmem:[%s0 + $0x140] sm:$0xff]
  %v55 = vld [vmem:[%s0 + $0x148] sm:$0xff]
  %v56 = vld [vmem:[%s0 + $0x150] sm:$0xff]
  %v57 = vld [vmem:[%s0 + $0x158] sm:$0xff]
  %v58 = vld [vmem:[%s0 + $0x160] sm:$0xff]
  %v59 = vld [vmem:[%s0 + $0x168] sm:$0xff]
  %v60 = vld [vmem:[%s0 + $0x170] sm:$0xff]
  %v61 = vld [vmem:[%s0 + $0x178] sm:$0xff]
  %v62 = vld [vmem:[%s0 + $0x180] sm:$0xff]
  %v63 = vld [vmem:[%s0 + $0x188] sm:$0xff]
  %v64 = vld [vmem:[%s0 + $0x190] sm:$0xff]
  %v65 = vld [vmem:[%s0 + $0x198] sm:$0xff]
  %v66 = vld [vmem:[%s0 + $0x1a0] sm:$0xff]
  %v67 = vld [vmem:[%s0 + $0x1a8] sm:$0xff]
  %v68 = vld [vmem:[%s0 + $0x1b0] sm:$0xff]
  %v69 = vld [vmem:[%s0 + $0x1b8] sm:$0xff]
  %v70 = vld [vmem:[%s0 + $0x1c0] sm:$0xff]
  %v71 = vld [vmem:[%s0 + $0x1c8] sm:$0xff]
  %v72 = vld [vmem:[%s0 + $0x1d0] sm:$0xff]
  %v73 = vld [vmem:[%s0 + $0x1d8] sm:$0xff]
  %v74 = vld [vmem:[%s0 + $0x1e0] sm:$0xff]
  %v75 = vld [vmem:[%s0 + $0x1e8] sm:$0xff]
  %v76 = vld [vmem:[%s0 + $0x1f0] sm:$0xff]
  %v77 = vld [vmem:[%s0 + $0x1f8] sm:$0xff]
  %v78 = vld [vmem:[%s0 + $0x200] sm:$0xff]
  %v79 = vld [vmem:[%s0 + $0x208] sm:$0xff]
  %v80 = vld [vmem:[%s0 + $0x210] sm:$0xff]
  %v81 = vld [vmem:[%s0 + $0x218] sm:$0xff]
  %v82 = vld [vmem:[%s0 + $0x220] sm:$0xff]
  %v83 = vld [vmem:[%s0 + $0x228] sm:$0xff]
  %v84 = vld [vmem:[%s0 + $0x230] sm:$0xff]
  %v85 = vld [vmem:[%s0 + $0x238] sm:$0xff]
  %v86 = vld [vmem:[%s0 + $0x240] sm:$0xff]
  %v87 = vld [vmem:[%s0 + $0x248] sm:$0xff]
  %v88 = vld [vmem:[%s0 + $0x250] sm:$0xff]
  %v89 = vld [vmem:[%s0 + $0x258] sm:$0xff]
  %v90 = vld [vmem:[%s0 + $0x260] sm:$0xff]
  %v91 = vld [vmem:[%s0 + $0x268] sm:$0xff]
  %v92 = vld [vmem:[%s0 + $0x270] sm:$0xff]
  %v93 = vld [vmem:[%s0 + $0x278] sm:$0xff]
  %v94 = vld [vmem:[%s0 + $0x280] sm:$0xff]
  %v95 = vld [vmem:[%s0 + $0x288] sm:$0xff]
  %v96 = vld [vmem:[%s0 + $0x290] sm:$0xff]
  %v97 = vld [vmem:[%s0 + $0x298] sm:$0xff]
  %v98 = vld [vmem:[%s0 + $0x2a0] sm:$0xff]
  %v99 = vld [vmem:[%s0 + $0x2a8] sm:$0xff]
  %v100 = vld [vmem:[%s0 + $0x2b0] sm:$0xff]
  %v101 = vld [vmem:[%s0 + $0x2b8] sm:$0xff]
  %v102 = vld [vmem:[%s0 + $0x2c0] sm:$0xff]
  %v103 = vld [vmem:[%s0 + $0x2c8] sm:$0xff]
  %v104 = vld [vmem:[%s0 + $0x2d0] sm:$0xff]
  %v105 = vld [vmem:[%s0 + $0x2d8] sm:$0xff]
  %v106 = vld [vmem:[%s0 + $0x2e0] sm:$0xff]
  %v107 = vld [vmem:[%s0 + $0x2e8] sm:$0xff]
  %v108 = vld [vmem:[%s0 + $0x2f0] sm:$0xff]
  %v109 = vld [vmem:[%s0 + $0x2f8] sm:$0xff]
  %v110 = vld [vmem:[%s0 + $0x300] sm:$0xff]
  %v111 = vld [vmem:[%s0 + $0x308] sm:$0xff]
  %v112 = vld [vmem:[%s0 + $0x310] sm:$0xff]
  %v113 = vld [vmem:[%s0 + $0x318] sm:$0xff]
  %v114 = vld [vmem:[%s0 + $0x320] sm:$0xff]
  %v115 = vld [vmem:[%s0 + $0x328] sm:$0xff]
  %v116 = vld [vmem:[%s0 + $0x330] sm:$0xff]
  %v117 = vld [vmem:[%s0 + $0x338] sm:$0xff]
  %v118 = vld [vmem:[%s0 + $0x340] sm:$0xff]
  %v119 = vld [vmem:[%s0 + $0x348] sm:$0xff]
  %v120 = vld [vmem:[%s0 + $0x350] sm:$0xff]
  %v121 = vld [vmem:[%s0 + $0x358] sm:$0xff]
  %v122 = vld [vmem:[%s0 + $0x360] sm:$0xff]
  %v123 = vld [vmem:[%s0 + $0x368] sm:$0xff]
  %v124 = vld [vmem:[%s0 + $0x370] sm:$0xff]
  %v125 = vld [vmem:[%s0 + $0x378] sm:$0xff]
  %v126 = vld [vmem:[%s0 + $0x380] sm:$0xff]
  %v127 = vld [vmem:[%s0 + $0x388] sm:$0xff]
  %v128 = vld [vmem:[%s0 + $0x390] sm:$0xff]
  %v129 = vld [vmem:[%s0 + $0x398] sm:$0xff]
  %v130 = vld [vmem:[%s0 + $0x3a0] sm:$0xff]
  %v131 = vld [vmem:[%s0 + $0x3a8] sm:$0xff]
  %v132 = vld [vmem:[%s0 + $0x3b0] sm:$0xff]
  %v133 = vld [vmem:[%s0 + $0x3b8] sm:$0xff]
  %v134 = vld [vmem:[%s0 + $0x3c0] sm:$0xff]
  %v135 = vld [vmem:[%s0 + $0x3c8] sm:$0xff]
  %v136 = vld [vmem:[%s0 + $0x3d0] sm:$0xff]
  %v137 = vld [vmem:[%s0 + $0x3d8] sm:$0xff]
  %v138 = vld [vmem:[%s0 + $0x3e0] sm:$0xff]
  %v139 = vld [vmem:[%s0 + $0x3e8] sm:$0xff]
  %v140 = vld [vmem:[%s0 + $0x3f0] sm:$0xff]
  %v141 = vld [vmem:[%s0 + $0x3f8] sm:$0xff]
  %v142 = vld [vmem:[%s0 + $0x400] sm:$0xff]
  %v143 = vld [vmem:[%s0 + $0x408] sm:$0xff]
  %v144 = vld [vmem:[%s0 + $0x410] sm:$0xff]
  %v145 = vld [vmem:[%s0 + $0x418] sm:$0xff]
  %v146 = vld [vmem:[%s0 + $0x420] sm:$0xff]
  %v147 = vld [vmem:[%s0 + $0x428] sm:$0xff]
  %v148 = vld [vmem:[%s0 + $0x430] sm:$0xff]
  %v149 = vld [vmem:[%s0 + $0x438] sm:$0xff]
  %v150 = vld [vmem:[%s0 + $0x440] sm:$0xff]
  %v151 = vld [vmem:[%s0 + $0x448] sm:$0xff]
  %v152 = vld [vmem:[%s0 + $0x450] sm:$0xff]
  %v153 = vld [vmem:[%s0 + $0x458] sm:$0xff]
  %v154 = vld [vmem:[%s0 + $0x460] sm:$0xff]
  %v155 = vld [vmem:[%s0 + $0x468] sm:$0xff]
  %v156 = vld [vmem:[%s0 + $0x470] sm:$0xff]
  %v157 = vld [vmem:[%s0 + $0x478] sm:$0xff]
  %v158 = vld [vmem:[%s0 + $0x480] sm:$0xff]
  %v159 = vld [vmem:[%s0 + $0x488] sm:$0xff]
  %v160 = vld [vmem:[%s0 + $0x490] sm:$0xff]
  %v161 = vld [vmem:[%s0 + $0x498] sm:$0xff]
  %v162 = vld [vmem:[%s0 + $0x4a0] sm:$0xff]
  %v163 = vld [vmem:[%s0 + $0x4a8] sm:$0xff]
  %v164 = vld [vmem:[%s0 + $0x4b0] sm:$0xff]
  %v165 = vld [vmem:[%s0 + $0x4b8] sm:$0xff]
  %v166 = vld [vmem:[%s0 + $0x4c0] sm:$0xff]
  %v167 = vld [vmem:[%s0 + $0x4c8] sm:$0xff]
  %v168 = vld [vmem:[%s0 + $0x4d0] sm:$0xff]
  %v169 = vld [vmem:[%s0 + $0x4d8] sm:$0xff]
  %v170 = vld [vmem:[%s0 + $0x4e0] sm:$0xff]
  %v171 = vld [vmem:[%s0 + $0x4e8] sm:$0xff]
  %v172 = vld [vmem:[%s0 + $0x4f0] sm:$0xff]
  %v173 = vld [vmem:[%s0 + $0x4f8] sm:$0xff]
  %v174 = vld [vmem:[%s0 + $0x500] sm:$0xff]
  %v175 = vld [vmem:[%s0 + $0x508] sm:$0xff]
  %v176 = vld [vmem:[%s0 + $0x510] sm:$0xff]
  %v177 = vld [vmem:[%s0 + $0x518] sm:$0xff]
  %v178 = vld [vmem:[%s0 + $0x520] sm:$0xff]
  %v179 = vld [vmem:[%s0 + $0x528] sm:$0xff]
  %v180 = vld [vmem:[%s0 + $0x530] sm:$0xff]
  %v181 = vld [vmem:[%s0 + $0x538] sm:$0xff]
  %v182 = vld [vmem:[%s0 + $0x540] sm:$0xff]
  %v183 = vld [vmem:[%s0 + $0x548] sm:$0xff]
  %v184 = vld [vmem:[%s0 + $0x550] sm:$0xff]
  %v185 = vld [vmem:[%s0 + $0x558] sm:$0xff]
  %v186 = vld [vmem:[%s0 + $0x560] sm:$0xff]
  %v187 = vld [vmem:[%s0 + $0x568] sm:$0xff]
  %v188 = vld [vmem:[%s0 + $0x570] sm:$0xff]
  %v189 = vld [vmem:[%s0 + $0x578] sm:$0xff]
  %v190 = vld [vmem:[%s0 + $0x580] sm:$0xff]
  %v191 = vld [vmem:[%s0 + $0x588] sm:$0xff]
  %v192 = vld [vmem:[%s0 + $0x590] sm:$0xff]
  %v193 = vld [vmem:[%s0 + $0x598] sm:$0xff]
  %v194 = vld [vmem:[%s0 + $0x5a0] sm:$0xff]
  %v195 = vld [vmem:[%s0 + $0x5a8] sm:$0xff]
  %v196 = vld [vmem:[%s0 + $0x5b0] sm:$0xff]
  %v197 = vld [vmem:[%s0 + $0x5b8] sm:$0xff]
  %v198 = vld [vmem:[%s0 + $0x5c0] sm:$0xff]
  %v199 = vld [vmem:[%s0 + $0x5c8] sm:$0xff]
  %v200 = vld [vmem:[%s0 + $0x5d0] sm:$0xff]
  %v201 = vld [vmem:[%s0 + $0x5d8] sm:$0xff]
  %v202 = vld [vmem:[%s0 + $0x5e0] sm:$0xff]
  %v203 = vld [vmem:[%s0 + $0x5e8] sm:$0xff]
  %v204 = vld [vmem:[%s0 + $0x5f0] sm:$0xff]
  %v205 = vld [vmem:[%s0 + $0x5f8] sm:$0xff]
  %v206 = vld [vmem:[%s0 + $0x600] sm:$0xff]
  %v207 = vld [vmem:[%s0 + $0x608] sm:$0xff]
  %v208 = vld [vmem:[%s0 + $0x610] sm:$0xff]
  %v209 = vld [vmem:[%s0 + $0x618] sm:$0xff]
  %v210 = vld [vmem:[%s0 + $0x620] sm:$0xff]
  %v211 = vld [vmem:[%s0 + $0x628] sm:$0xff]
  %v212 = vld [vmem:[%s0 + $0x630] sm:$0xff]
  %v213 = vld [vmem:[%s0 + $0x638] sm:$0xff]
  %v214 = vld [vmem:[%s0 + $0x640] sm:$0xff]
  %v215 = vld [vmem:[%s0 + $0x648] sm:$0xff]
  %v216 = vld [vmem:[%s0 + $0x650] sm:$0xff]
  %v217 = vld [vmem:[%s0 + $0x658] sm:$0xff]
  %v218 = vld [vmem:[%s0 + $0x660] sm:$0xff]
  %v219 = vld [vmem:[%s0 + $0x668] sm:$0xff]
  %v220 = vld [vmem:[%s0 + $0x670] sm:$0xff]
  %v221 = vld [vmem:[%s0 + $0x678] sm:$0xff]
  %v222 = vld [vmem:[%s0 + $0x680] sm:$0xff]
  %v223 = vld [vmem:[%s0 + $0x688] sm:$0xff]
  %v224 = vld [vmem:[%s0 + $0x690] sm:$0xff]
  %v225 = vld [vmem:[%s0 + $0x698] sm:$0xff]
  %v226 = vld [vmem:[%s0 + $0x6a0] sm:$0xff]
  %v227 = vld [vmem:[%s0 + $0x6a8] sm:$0xff]
  %v228 = vld [vmem:[%s0 + $0x6b0] sm:$0xff]
  %v229 = vld [vmem:[%s0 + $0x6b8] sm:$0xff]
  %v230 = vld [vmem:[%s0 + $0x6c0] sm:$0xff]
  %v231 = vld [vmem:[%s0 + $0x6c8] sm:$0xff]
  %v232 = vld [vmem:[%s0 + $0x6d0] sm:$0xff]
  %v233 = vld [vmem:[%s0 + $0x6d8] sm:$0xff]
  %v234 = vld [vmem:[%s0 + $0x6e0] sm:$0xff]
  %v235 = vld [vmem:[%s0 + $0x6e8] sm:$0xff]
  %v236 = vld [vmem:[%s0 + $0x6f0] sm:$0xff]
  %v237 = vld [vmem:[%s0 + $0x6f8] sm:$0xff]
  %v238 = vld [vmem:[%s0 + $0x700] sm:$0xff]
  %v239 = vld [vmem:[%s0 + $0x708] sm:$0xff]
  %v240 = vld [vmem:[%s0 + $0x710] sm:$0xff]
  %v241 = vld [vmem:[%s0 + $0x718] sm:$0xff]
  %v242 = vld [vmem:[%s0 + $0x720] sm:$0xff]
  %v243 = vld [vmem:[%s0 + $0x728] sm:$0xff]
  %v244 = vld [vmem:[%s0 + $0x730] sm:$0xff]
  %v245 = vld [vmem:[%s0 + $0x738] sm:$0xff]
  %v246 = vld [vmem:[%s0 + $0x740] sm:$0xff]
  %v247 = vld [vmem:[%s0 + $0x748] sm:$0xff]
  %v248 = vld [vmem:[%s0 + $0x750] sm:$0xff]
  %v249 = vld [vmem:[%s0 + $0x758] sm:$0xff]
  %v250 = vld [vmem:[%s0 + $0x760] sm:$0xff]
  %v251 = vld [vmem:[%s0 + $0x768] sm:$0xff]
  %v252 = vld [vmem:[%s0 + $0x770] sm:$0xff]
  %v253 = vld [vmem:[%s0 + $0x778] sm:$0xff]
  %v254 = vld [vmem:[%s0 + $0x780] sm:$0xff]
  %v255 = vld [vmem:[%s0 + $0x788] sm:$0xff]
  %v256 = vld [vmem:[%s0 + $0x790] sm:$0xff]
  %v257 = vld [vmem:[%s0 + $0x798] sm:$0xff]
  %v258 = vld [vmem:[%s0 + $0x7a0] sm:$0xff]
  %v259 = vld [vmem:[%s0 + $0x7a8] sm:$0xff]
  %v260 = vld [vmem:[%s0 + $0x7b0] sm:$0xff]
  %v261 = vld [vmem:[%s0 + $0x7b8] sm:$0xff]
  %v262 = vld [vmem:[%s0 + $0x7c0] sm:$0xff]
  %v263 = vld [vmem:[%s0 + $0x7c8] sm:$0xff]
  %v264 = vld [vmem:[%s0 + $0x7d0] sm:$0xff]
  %v265 = vld [vmem:[%s0 + $0x7d8] sm:$0xff]
  %v266 = vld [vmem:[%s0 + $0x7e0] sm:$0xff]
  %v267 = vld [vmem:[%s0 + $0x7e8] sm:$0xff]
  %v268 = vld [vmem:[%s0 + $0x7f0] sm:$0xff]
  %v269 = vld [vmem:[%s0 + $0x7f8] sm:$0xff]
  %v270 = vld [vmem:[%s0 + $0x800] sm:$0xff]
  %v271 = vld [vmem:[%s0 + $0x808] sm:$0xff]
  %v272 = vld [vmem:[%s0 + $0x810] sm:$0xff]
  %v273 = vld [vmem:[%s0 + $0x818] sm:$0xff]
  %v274 = vld [vmem:[%s0 + $0x820] sm:$0xff]
  %v275 = vld [vmem:[%s0 + $0x828] sm:$0xff]
  %v276 = vld [vmem:[%s0 + $0x830] sm:$0xff]
  %v277 = vld [vmem:[%s0 + $0x838] sm:$0xff]
  %v278 = vld [vmem:[%s0 + $0x840] sm:$0xff]
  %v279 = vld [vmem:[%s0 + $0x848] sm:$0xff]
  %v280 = vld [vmem:[%s0 + $0x850] sm:$0xff]
  %v281 = vld [vmem:[%s0 + $0x858] sm:$0xff]
  %v282 = vld [vmem:[%s0 + $0x860] sm:$0xff]
  %v283 = vld [vmem:[%s0 + $0x868] sm:$0xff]
  %v284 = vld [vmem:[%s0 + $0x870] sm:$0xff]
  %v285 = vld [vmem:[%s0 + $0x878] sm:$0xff]
  %v286 = vld [vmem:[%s0 + $0x880] sm:$0xff]
  %v287 = vld [vmem:[%s0 + $0x888] sm:$0xff]
  %v288 = vld [vmem:[%s0 + $0x890] sm:$0xff]
  %v289 = vld [vmem:[%s0 + $0x898] sm:$0xff]
  %v290 = vld [vmem:[%s0 + $0x8a0] sm:$0xff]
  %v291 = vld [vmem:[%s0 + $0x8a8] sm:$0xff]
  %v292 = vld [vmem:[%s0 + $0x8b0] sm:$0xff]
  %v293 = vld [vmem:[%s0 + $0x8b8] sm:$0xff]
  %v294 = vld [vmem:[%s0 + $0x8c0] sm:$0xff]
  %v295 = vld [vmem:[%s0 + $0x8c8] sm:$0xff]
  %v296 = vld [vmem:[%s0 + $0x8d0] sm:$0xff]
  %v297 = vld [vmem:[%s0 + $0x8d8] sm:$0xff]
  %v298 = vld [vmem:[%s0 + $0x8e0] sm:$0xff]
  %v299 = vld [vmem:[%s0 + $0x8e8] sm:$0xff]
  %v300 = vld [vmem:[%s0 + $0x8f0] sm:$0xff]
  %v301 = vld [vmem:[%s0 + $0x8f8] sm:$0xff]
  %v302 = vld [vmem:[%s0 + $0x900] sm:$0xff]
  %v303 = vld [vmem:[%s0 + $0x908] sm:$0xff]
  %v304 = vld [vmem:[%s0 + $0x910] sm:$0xff]
  %v305 = vld [vmem:[%s0 + $0x918] sm:$0xff]
  %v306 = vld [vmem:[%s0 + $0x920] sm:$0xff]
  %v307 = vld [vmem:[%s0 + $0x928] sm:$0xff]
  %v308 = vld [vmem:[%s0 + $0x930] sm:$0xff]
  %v309 = vld [vmem:[%s0 + $0x938] sm:$0xff]
  %v310 = vld [vmem:[%s0 + $0x940] sm:$0xff]
  %v311 = vld [vmem:[%s0 + $0x948] sm:$0xff]
  %v312 = vld [vmem:[%s0 + $0x950] sm:$0xff]
  %v313 = vld [vmem:[%s0 + $0x958] sm:$0xff]
  %v314 = vld [vmem:[%s0 + $0x960] sm:$0xff]
  %v315 = vld [vmem:[%s0 + $0x968] sm:$0xff]
  %v316 = vld [vmem:[%s0 + $0x970] sm:$0xff]
  %v317 = vld [vmem:[%s0 + $0x978] sm:$0xff]
  %v318 = vld [vmem:[%s0 + $0x980] sm:$0xff]
  %v319 = vld [vmem:[%s0 + $0x988] sm:$0xff]
  %v320 = vld [vmem:[%s0 + $0x990] sm:$0xff]
  %v321 = vld [vmem:[%s0 + $0x998] sm:$0xff]
  %v322 = vld [vmem:[%s0 + $0x9a0] sm:$0xff]
  %v323 = vld [vmem:[%s0 + $0x9a8] sm:$0xff]
  %v324 = vld [vmem:[%s0 + $0x9b0] sm:$0xff]
  %v325 = vld [vmem:[%s0 + $0x9b8] sm:$0xff]
  %v326 = vld [vmem:[%s0 + $0x9c0] sm:$0xff]
  %v327 = vld [vmem:[%s0 + $0x9c8] sm:$0xff]
  %v328 = vld [vmem:[%s0 + $0x9d0] sm:$0xff]
  %v329 = vld [vmem:[%s0 + $0x9d8] sm:$0xff]
  %v330 = vld [vmem:[%s0 + $0x9e0] sm:$0xff]
  %v331 = vld [vmem:[%s0 + $0x9e8] sm:$0xff]
  %v332 = vld [vmem:[%s0 + $0x9f0] sm:$0xff]
  %v333 = vld [vmem:[%s0 + $0x9f8] sm:$0xff]
  %v334 = vld [vmem:[%s0 + $0xa00] sm:$0xff]
  %v335 = vld [vmem:[%s0 + $0xa08] sm:$0xff]
  %v336 = vld [vmem:[%s0 + $0xa10] sm:$0xff]
  %v337 = vld [vmem:[%s0 + $0xa18] sm:$0xff]
  %v338 = vld [vmem:[%s0 + $0xa20] sm:$0xff]
  %v339 = vld [vmem:[%s0 + $0xa28] sm:$0xff]
  %v340 = vld [vmem:[%s0 + $0xa30] sm:$0xff]
  %v341 = vld [vmem:[%s0 + $0xa38] sm:$0xff]
  %v342 = vld [vmem:[%s0 + $0xa40] sm:$0xff]
  %v343 = vld [vmem:[%s0 + $0xa48] sm:$0xff]
  %v344 = vld [vmem:[%s0 + $0xa50] sm:$0xff]
  %v345 = vld [vmem:[%s0 + $0xa58] sm:$0xff]
  %v346 = vld [vmem:[%s0 + $0xa60] sm:$0xff]
  %v347 = vld [vmem:[%s0 + $0xa68] sm:$0xff]
  %v348 = vld [vmem:[%s0 + $0xa70] sm:$0xff]
  %v349 = vld [vmem:[%s0 + $0xa78] sm:$0xff]
  %v350 = vld [vmem:[%s0 + $0xa80] sm:$0xff]
  %v351 = vld [vmem:[%s0 + $0xa88] sm:$0xff]
  %v352 = vld [vmem:[%s0 + $0xa90] sm:$0xff]
  %v353 = vld [vmem:[%s0 + $0xa98] sm:$0xff]
  %v354 = vld [vmem:[%s0 + $0xaa0] sm:$0xff]
  %v355 = vld [vmem:[%s0 + $0xaa8] sm:$0xff]
  %v356 = vld [vmem:[%s0 + $0xab0] sm:$0xff]
  %v357 = vld [vmem:[%s0 + $0xab8] sm:$0xff]
  %v358 = vld [vmem:[%s0 + $0xac0] sm:$0xff]
  %v359 = vld [vmem:[%s0 + $0xac8] sm:$0xff]
  %v360 = vld [vmem:[%s0 + $0xad0] sm:$0xff]
  %v361 = vld [vmem:[%s0 + $0xad8] sm:$0xff]
  %v362 = vld [vmem:[%s0 + $0xae0] sm:$0xff]
  %v363 = vld [vmem:[%s0 + $0xae8] sm:$0xff]
  %v364 = vld [vmem:[%s0 + $0xaf0] sm:$0xff]
  %v365 = vld [vmem:[%s0 + $0xaf8] sm:$0xff]
  %v366 = vld [vmem:[%s0 + $0xb00] sm:$0xff]
  %v367 = vld [vmem:[%s0 + $0xb08] sm:$0xff]
  %v368 = vld [vmem:[%s0 + $0xb10] sm:$0xff]
  %v369 = vld [vmem:[%s0 + $0xb18] sm:$0xff]
  %v370 = vld [vmem:[%s0 + $0xb20] sm:$0xff]
  %v371 = vld [vmem:[%s0 + $0xb28] sm:$0xff]
  %v372 = vld [vmem:[%s0 + $0xb30] sm:$0xff]
  %v373 = vld [vmem:[%s0 + $0xb38] sm:$0xff]
  %v374 = vld [vmem:[%s0 + $0xb40] sm:$0xff]
  %v375 = vld [vmem:[%s0 + $0xb48] sm:$0xff]
  %v376 = vld [vmem:[%s0 + $0xb50] sm:$0xff]
  %v377 = vld [vmem:[%s0 + $0xb58] sm:$0xff]
  %v378 = vld [vmem:[%s0 + $0xb60] sm:$0xff]
  %v379 = vld [vmem:[%s0 + $0xb68] sm:$0xff]
  %v380 = vld [vmem:[%s0 + $0xb70] sm:$0xff]
  %v381 = vld [vmem:[%s0 + $0xb78] sm:$0xff]
  %v382 = vld [vmem:[%s0 + $0xb80] sm:$0xff]
  %v383 = vld [vmem:[%s0 + $0xb88] sm:$0xff]
  %v384 = vld [vmem:[%s0 + $0xb90] sm:$0xff]
  %v385 = vld [vmem:[%s0 + $0xb98] sm:$0xff]
  %v386 = vld [vmem:[%s0 + $0xba0] sm:$0xff]
  %v387 = vld [vmem:[%s0 + $0xba8] sm:$0xff]
  %v388 = vld [vmem:[%s0 + $0xbb0] sm:$0xff]
  %v389 = vld [vmem:[%s0 + $0xbb8] sm:$0xff]
  %v390 = vld [vmem:[%s0 + $0xbc0] sm:$0xff]
  %v391 = vld [vmem:[%s0 + $0xbc8] sm:$0xff]
  %v392 = vld [vmem:[%s0 + $0xbd0] sm:$0xff]
  %v393 = vld [vmem:[%s0 + $0xbd8] sm:$0xff]
  %v394 = vld [vmem:[%s0 + $0xbe0] sm:$0xff]
  %v395 = vld [vmem:[%s0 + $0xbe8] sm:$0xff]
  %v396 = vld [vmem:[%s0 + $0xbf0] sm:$0xff]
  %v397 = vld [vmem:[%s0 + $0xbf8] sm:$0xff]
  %v398 = vld [vmem:[%s0 + $0xc00] sm:$0xff]
  %v399 = vld [vmem:[%s0 + $0xc08] sm:$0xff]
  %v400 = vld [vmem:[%s0 + $0xc10] sm:$0xff]
  %v401 = vld [vmem:[%s0 + $0xc18] sm:$0xff]
  %v402 = vld [vmem:[%s0 + $0xc20] sm:$0xff]
  %v403 = vld [vmem:[%s0 + $0xc28] sm:$0xff]
  %v404 = vld [vmem:[%s0 + $0xc30] sm:$0xff]
  %v405 = vld [vmem:[%s0 + $0xc38] sm:$0xff]
  %v406 = vld [vmem:[%s0 + $0xc40] sm:$0xff]
  %v407 = vld [vmem:[%s0 + $0xc48] sm:$0xff]
  %v408 = vld [vmem:[%s0 + $0xc50] sm:$0xff]
  %v409 = vld [vmem:[%s0 + $0xc58] sm:$0xff]
  %v410 = vld [vmem:[%s0 + $0xc60] sm:$0xff]
  %v411 = vld [vmem:[%s0 + $0xc68] sm:$0xff]
  %v412 = vld [vmem:[%s0 + $0xc70] sm:$0xff]
  %v413 = vld [vmem:[%s0 + $0xc78] sm:$0xff]
  %v414 = vld [vmem:[%s0 + $0xc80] sm:$0xff]
  %v415 = vld [vmem:[%s0 + $0xc88] sm:$0xff]
  %v416 = vld [vmem:[%s0 + $0xc90] sm:$0xff]
  %v417 = vld [vmem:[%s0 + $0xc98] sm:$0xff]
  %v418 = vld [vmem:[%s0 + $0xca0] sm:$0xff]
  %v419 = vld [vmem:[%s0 + $0xca8] sm:$0xff]
  %v420 = vld [vmem:[%s0 + $0xcb0] sm:$0xff]
  %v421 = vld [vmem:[%s0 + $0xcb8] sm:$0xff]
  %v422 = vld [vmem:[%s0 + $0xcc0] sm:$0xff]
  %v423 = vld [vmem:[%s0 + $0xcc8] sm:$0xff]
  %v424 = vld [vmem:[%s0 + $0xcd0] sm:$0xff]
  %v425 = vld [vmem:[%s0 + $0xcd8] sm:$0xff]
  %v426 = vld [vmem:[%s0 + $0xce0] sm:$0xff]
  %v427 = vld [vmem:[%s0 + $0xce8] sm:$0xff]
  %v428 = vld [vmem:[%s0 + $0xcf0] sm:$0xff]
  %v429 = vld [vmem:[%s0 + $0xcf8] sm:$0xff]
  %v430 = vld [vmem:[%s0 + $0xd00] sm:$0xff]
  %v431 = vld [vmem:[%s0 + $0xd08] sm:$0xff]
  %v432 = vld [vmem:[%s0 + $0xd10] sm:$0xff]
  %v433 = vld [vmem:[%s0 + $0xd18] sm:$0xff]
  %v434 = vld [vmem:[%s0 + $0xd20] sm:$0xff]
  %v435 = vld [vmem:[%s0 + $0xd28] sm:$0xff]
  %v436 = vld [vmem:[%s0 + $0xd30] sm:$0xff]
  %v437 = vld [vmem:[%s0 + $0xd38] sm:$0xff]
  %v438 = vld [vmem:[%s0 + $0xd40] sm:$0xff]
  %v439 = vld [vmem:[%s0 + $0xd48] sm:$0xff]
  %v440 = vld [vmem:[%s0 + $0xd50] sm:$0xff]
  %v441 = vld [vmem:[%s0 + $0xd58] sm:$0xff]
  %v442 = vld [vmem:[%s0 + $0xd60] sm:$0xff]
  %v443 = vld [vmem:[%s0 + $0xd68] sm:$0xff]
  %v444 = vld [vmem:[%s0 + $0xd70] sm:$0xff]
  %v445 = vld [vmem:[%s0 + $0xd78] sm:$0xff]
  %v446 = vld [vmem:[%s0 + $0xd80] sm:$0xff]
  %v447 = vld [vmem:[%s0 + $0xd88] sm:$0xff]
  %v448 = vld [vmem:[%s0 + $0xd90] sm:$0xff]
  %v449 = vld [vmem:[%s0 + $0xd98] sm:$0xff]
  %v450 = vld [vmem:[%s0 + $0xda0] sm:$0xff]
  %v451 = vld [vmem:[%s0 + $0xda8] sm:$0xff]
  %v452 = vld [vmem:[%s0 + $0xdb0] sm:$0xff]
  %v453 = vld [vmem:[%s0 + $0xdb8] sm:$0xff]
  %v454 = vld [vmem:[%s0 + $0xdc0] sm:$0xff]
  %v455 = vld [vmem:[%s0 + $0xdc8] sm:$0xff]
  %v456 = vld [vmem:[%s0 + $0xdd0] sm:$0xff]
  %v457 = vld [vmem:[%s0 + $0xdd8] sm:$0xff]
  %v458 = vld [vmem:[%s0 + $0xde0] sm:$0xff]
  %v459 = vld [vmem:[%s0 + $0xde8] sm:$0xff]
  %v460 = vld [vmem:[%s0 + $0xdf0] sm:$0xff]
  %v461 = vld [vmem:[%s0 + $0xdf8] sm:$0xff]
  %v462 = vld [vmem:[%s0 + $0xe00] sm:$0xff]
  %v463 = vld [vmem:[%s0 + $0xe08] sm:$0xff]
  %v464 = vld [vmem:[%s0 + $0xe10] sm:$0xff]
  %v465 = vld [vmem:[%s0 + $0xe18] sm:$0xff]
  %v466 = vld [vmem:[%s0 + $0xe20] sm:$0xff]
  %v467 = vld [vmem:[%s0 + $0xe28] sm:$0xff]
  %v468 = vld [vmem:[%s0 + $0xe30] sm:$0xff]
  %v469 = vld [vmem:[%s0 + $0xe38] sm:$0xff]
  %v470 = vld [vmem:[%s0 + $0xe40] sm:$0xff]
  %v471 = vld [vmem:[%s0 + $0xe48] sm:$0xff]
  %v472 = vld [vmem:[%s0 + $0xe50] sm:$0xff]
  %v473 = vld [vmem:[%s0 + $0xe58] sm:$0xff]
  %v474 = vld [vmem:[%s0 + $0xe60] sm:$0xff]
  %v475 = vld [vmem:[%s0 + $0xe68] sm:$0xff]
  %v476 = vld [vmem:[%s0 + $0xe70] sm:$0xff]
  %v477 = vld [vmem:[%s0 + $0xe78] sm:$0xff]
  %v478 = vld [vmem:[%s0 + $0xe80] sm:$0xff]
  %v479 = vld [vmem:[%s0 + $0xe88] sm:$0xff]
  %v480 = vld [vmem:[%s0 + $0xe90] sm:$0xff]
  %v481 = vld [vmem:[%s0 + $0xe98] sm:$0xff]
  %v482 = vld [vmem:[%s0 + $0xea0] sm:$0xff]
  %v483 = vld [vmem:[%s0 + $0xea8] sm:$0xff]
  %v484 = vld [vmem:[%s0 + $0xeb0] sm:$0xff]
  %v485 = vld [vmem:[%s0 + $0xeb8] sm:$0xff]
  %v486 = vld [vmem:[%s0 + $0xec0] sm:$0xff]
  %v487 = vld [vmem:[%s0 + $0xec8] sm:$0xff]
  %v488 = vld [vmem:[%s0 + $0xed0] sm:$0xff]
  %v489 = vld [vmem:[%s0 + $0xed8] sm:$0xff]
  %v490 = vld [vmem:[%s0 + $0xee0] sm:$0xff]
  %v491 = vld [vmem:[%s0 + $0xee8] sm:$0xff]
  %v492 = vld [vmem:[%s0 + $0xef0] sm:$0xff]
  %v493 = vld [vmem:[%s0 + $0xef8] sm:$0xff]
  %v494 = vld [vmem:[%s0 + $0xf00] sm:$0xff]
  %v495 = vld [vmem:[%s0 + $0xf08] sm:$0xff]
  %v496 = vld [vmem:[%s0 + $0xf10] sm:$0xff]
  %v497 = vld [vmem:[%s0 + $0xf18] sm:$0xff]
  %v498 = vld [vmem:[%s0 + $0xf20] sm:$0xff]
  %v499 = vld [vmem:[%s0 + $0xf28] sm:$0xff]
  %v500 = vld [vmem:[%s0 + $0xf30] sm:$0xff]
  %v501 = vld [vmem:[%s0 + $0xf38] sm:$0xff]
  %v502 = vld [vmem:[%s0 + $0xf40] sm:$0xff]
  %v503 = vld [vmem:[%s0 + $0xf48] sm:$0xff]
  %v504 = vld [vmem:[%s0 + $0xf50] sm:$0xff]
  %v505 = vld [vmem:[%s0 + $0xf58] sm:$0xff]
  %v506 = vld [vmem:[%s0 + $0xf60] sm:$0xff]
  %v507 = vld [vmem:[%s0 + $0xf68] sm:$0xff]
  %v508 = vld [vmem:[%s0 + $0xf70] sm:$0xff]
  %v509 = vld [vmem:[%s0 + $0xf78] sm:$0xff]
  %v510 = vld [vmem:[%s0 + $0xf80] sm:$0xff]
  %v511 = vld [vmem:[%s0 + $0xf88] sm:$0xff]
  %v512 = vld [vmem:[%s0 + $0xf90] sm:$0xff]
  %v513 = vld [vmem:[%s0 + $0xf98] sm:$0xff]
  %v514 = vld [vmem:[%s0 + $0xfa0] sm:$0xff]
  %v515 = vld [vmem:[%s0 + $0xfa8] sm:$0xff]
  %v516 = vld [vmem:[%s0 + $0xfb0] sm:$0xff]
  %v517 = vld [vmem:[%s0 + $0xfb8] sm:$0xff]
  %v518 = vld [vmem:[%s0 + $0xfc0] sm:$0xff]
  %v519 = vld [vmem:[%s0 + $0xfc8] sm:$0xff]
  %v520 = vld [vmem:[%s0 + $0xfd0] sm:$0xff]
  %v521 = vld [vmem:[%s0 + $0xfd8] sm:$0xff]
  %v522 = vld [vmem:[%s0 + $0xfe0] sm:$0xff]
  %v523 = vld [vmem:[%s0 + $0xfe8] sm:$0xff]
  %v524 = vld [vmem:[%s0 + $0xff0] sm:$0xff]
  %v525 = vld [vmem:[%s0 + $0xff8] sm:$0xff]
  %v526 = vld [vmem:[%s0 + $0x1000] sm:$0xff]
  %v527 = vld [vmem:[%s0 + $0x1008] sm:$0xff]
  %v528 = vld [vmem:[%s0 + $0x1010] sm:$0xff]
  %v529 = vld [vmem:[%s0 + $0x1018] sm:$0xff]
  %v530 = vld [vmem:[%s0 + $0x1020] sm:$0xff]
  %v531 = vld [vmem:[%s0 + $0x1028] sm:$0xff]
  %v532 = vld [vmem:[%s0 + $0x1030] sm:$0xff]
  %v533 = vld [vmem:[%s0 + $0x1038] sm:$0xff]
  %v534 = vld [vmem:[%s0 + $0x1040] sm:$0xff]
  %v535 = vld [vmem:[%s0 + $0x1048] sm:$0xff]
  %v536 = vld [vmem:[%s0 + $0x1050] sm:$0xff]
  %v537 = vld [vmem:[%s0 + $0x1058] sm:$0xff]
  %v538 = vld [vmem:[%s0 + $0x1060] sm:$0xff]
  %v539 = vld [vmem:[%s0 + $0x1068] sm:$0xff]
  %v540 = vld [vmem:[%s0 + $0x1070] sm:$0xff]
  %v541 = vld [vmem:[%s0 + $0x1078] sm:$0xff]
  %v542 = vld [vmem:[%s0 + $0x1080] sm:$0xff]
  %v543 = vld [vmem:[%s0 + $0x1088] sm:$0xff]
  %v544 = vld [vmem:[%s0 + $0x1090] sm:$0xff]
  %v545 = vld [vmem:[%s0 + $0x1098] sm:$0xff]
  %v546 = vld [vmem:[%s0 + $0x10a0] sm:$0xff]
  %v547 = vld [vmem:[%s0 + $0x10a8] sm:$0xff]
  %v548 = vld [vmem:[%s0 + $0x10b0] sm:$0xff]
  %v549 = vld [vmem:[%s0 + $0x10b8] sm:$0xff]
  %v550 = vld [vmem:[%s0 + $0x10c0] sm:$0xff]
  %v551 = vld [vmem:[%s0 + $0x10c8] sm:$0xff]
  %v552 = vld [vmem:[%s0 + $0x10d0] sm:$0xff]
  %v553 = vld [vmem:[%s0 + $0x10d8] sm:$0xff]
  %v554 = vld [vmem:[%s0 + $0x10e0] sm:$0xff]
  %v555 = vld [vmem:[%s0 + $0x10e8] sm:$0xff]
  %v556 = vld [vmem:[%s0 + $0x10f0] sm:$0xff]
  %v557 = vld [vmem:[%s0 + $0x10f8] sm:$0xff]
  %v558 = vld [vmem:[%s0 + $0x1100] sm:$0xff]
  %v559 = vld [vmem:[%s0 + $0x1108] sm:$0xff]
  %v560 = vld [vmem:[%s0 + $0x1110] sm:$0xff]
  %v561 = vld [vmem:[%s0 + $0x1118] sm:$0xff]
  %v562 = vld [vmem:[%s0 + $0x1120] sm:$0xff]
  %v563 = vld [vmem:[%s1] sm:$0xff]
  %v564 = vld [vmem:[%s1 + $0x8] sm:$0xff]
  %v565 = vld [vmem:[%s1 + $0x10] sm:$0xff]
  %v566 = vld [vmem:[%s1 + $0x18] sm:$0xff]
  %v567 = vld [vmem:[%s1 + $0x20] sm:$0xff]
  %v568 = vld [vmem:[%s1 + $0x28] sm:$0xff]
  %v569 = vld [vmem:[%s1 + $0x30] sm:$0xff]
  %v570 = vld [vmem:[%s1 + $0x38] sm:$0xff]
  %v571 = vld [vmem:[%s1 + $0x40] sm:$0xff]
  %v572 = vld [vmem:[%s1 + $0x48] sm:$0xff]
  %v573 = vld [vmem:[%s1 + $0x50] sm:$0xff]
  %v574 = vld [vmem:[%s1 + $0x58] sm:$0xff]
  %v575 = vld [vmem:[%s1 + $0x60] sm:$0xff]
  %v576 = vld [vmem:[%s1 + $0x68] sm:$0xff]
  %v577 = vld [vmem:[%s1 + $0x70] sm:$0xff]
  %v578 = vld [vmem:[%s1 + $0x78] sm:$0xff]
  %v579 = vld [vmem:[%s1 + $0x80] sm:$0xff]
  %v580 = vld [vmem:[%s1 + $0x88] sm:$0xff]
  %v581 = vld [vmem:[%s1 + $0x90] sm:$0xff]
  %v582 = vld [vmem:[%s1 + $0x98] sm:$0xff]
  %v583 = vld [vmem:[%s1 + $0xa0] sm:$0xff]
  %v584 = vld [vmem:[%s1 + $0xa8] sm:$0xff]
  %v585 = vld [vmem:[%s1 + $0xb0] sm:$0xff]
  %v586 = vld [vmem:[%s1 + $0xb8] sm:$0xff]
  %v587 = vld [vmem:[%s1 + $0xc0] sm:$0xff]
  %v588 = vld [vmem:[%s1 + $0xc8] sm:$0xff]
  %v589 = vld [vmem:[%s1 + $0xd0] sm:$0xff]
  %v590 = vld [vmem:[%s1 + $0xd8] sm:$0xff]
  %v591 = vld [vmem:[%s1 + $0xe0] sm:$0xff]
  %v592 = vld [vmem:[%s1 + $0xe8] sm:$0xff]
  %v593 = vld [vmem:[%s1 + $0xf0] sm:$0xff]
  %v594 = vld [vmem:[%s1 + $0xf8] sm:$0xff]
  %v595 = vld [vmem:[%s1 + $0x100] sm:$0xff]
  %v596 = vld [vmem:[%s1 + $0x108] sm:$0xff]
  %v597 = vld [vmem:[%s1 + $0x110] sm:$0xff]
  %v598 = vld [vmem:[%s1 + $0x118] sm:$0xff]
  %v599 = vld [vmem:[%s1 + $0x120] sm:$0xff]
  %v600 = vld [vmem:[%s1 + $0x128] sm:$0xff]
  %v601 = vld [vmem:[%s1 + $0x130] sm:$0xff]
  %v602 = vld [vmem:[%s1 + $0x138] sm:$0xff]
  %v603 = vld [vmem:[%s1 + $0x140] sm:$0xff]
  %v604 = vld [vmem:[%s1 + $0x148] sm:$0xff]
  %v605 = vld [vmem:[%s1 + $0x150] sm:$0xff]
  %v606 = vld [vmem:[%s1 + $0x158] sm:$0xff]
  %v607 = vld [vmem:[%s1 + $0x160] sm:$0xff]
  %v608 = vld [vmem:[%s1 + $0x168] sm:$0xff]
  %v609 = vld [vmem:[%s1 + $0x170] sm:$0xff]
  %v610 = vld [vmem:[%s1 + $0x178] sm:$0xff]
  %v611 = vld [vmem:[%s1 + $0x180] sm:$0xff]
  %v612 = vld [vmem:[%s1 + $0x188] sm:$0xff]
  %v613 = vld [vmem:[%s1 + $0x190] sm:$0xff]
  %v614 = vld [vmem:[%s1 + $0x198] sm:$0xff]
  %v615 = vld [vmem:[%s1 + $0x1a0] sm:$0xff]
  %v616 = vld [vmem:[%s1 + $0x1a8] sm:$0xff]
  %v617 = vld [vmem:[%s1 + $0x1b0] sm:$0xff]
  %v618 = vld [vmem:[%s1 + $0x1b8] sm:$0xff]
  %v619 = vld [vmem:[%s1 + $0x1c0] sm:$0xff]
  %v620 = vld [vmem:[%s1 + $0x1c8] sm:$0xff]
  %v621 = vld [vmem:[%s1 + $0x1d0] sm:$0xff]
  %v622 = vld [vmem:[%s1 + $0x1d8] sm:$0xff]
  %v623 = vld [vmem:[%s1 + $0x1e0] sm:$0xff]
  %v624 = vld [vmem:[%s1 + $0x1e8] sm:$0xff]
  %v625 = vld [vmem:[%s1 + $0x1f0] sm:$0xff]
  %v626 = vld [vmem:[%s1 + $0x1f8] sm:$0xff]
  %v627 = vld [vmem:[%s1 + $0x200] sm:$0xff]
  %v628 = vld [vmem:[%s1 + $0x208] sm:$0xff]
  %v629 = vld [vmem:[%s1 + $0x210] sm:$0xff]
  %v630 = vld [vmem:[%s1 + $0x218] sm:$0xff]
  %v631 = vld [vmem:[%s1 + $0x220] sm:$0xff]
  %v632 = vld [vmem:[%s1 + $0x228] sm:$0xff]
  %v633 = vld [vmem:[%s1 + $0x230] sm:$0xff]
  %v634 = vld [vmem:[%s1 + $0x238] sm:$0xff]
  %v635 = vld [vmem:[%s1 + $0x240] sm:$0xff]
  %v636 = vld [vmem:[%s1 + $0x248] sm:$0xff]
  %v637 = vld [vmem:[%s1 + $0x250] sm:$0xff]
  %v638 = vld [vmem:[%s1 + $0x258] sm:$0xff]
  %v639 = vld [vmem:[%s1 + $0x260] sm:$0xff]
  %v640 = vld [vmem:[%s1 + $0x268] sm:$0xff]
  %v641 = vld [vmem:[%s1 + $0x270] sm:$0xff]
  %v642 = vld [vmem:[%s1 + $0x278] sm:$0xff]
  %v643 = vld [vmem:[%s1 + $0x280] sm:$0xff]
  %v644 = vld [vmem:[%s1 + $0x288] sm:$0xff]
  %v645 = vld [vmem:[%s1 + $0x290] sm:$0xff]
  %v646 = vld [vmem:[%s1 + $0x298] sm:$0xff]
  %v647 = vld [vmem:[%s1 + $0x2a0] sm:$0xff]
  %v648 = vld [vmem:[%s1 + $0x2a8] sm:$0xff]
  %v649 = vld [vmem:[%s1 + $0x2b0] sm:$0xff]
  %v650 = vld [vmem:[%s1 + $0x2b8] sm:$0xff]
  %v651 = vld [vmem:[%s1 + $0x2c0] sm:$0xff]
  %v652 = vld [vmem:[%s1 + $0x2c8] sm:$0xff]
  %v653 = vld [vmem:[%s1 + $0x2d0] sm:$0xff]
  %v654 = vld [vmem:[%s1 + $0x2d8] sm:$0xff]
  %v655 = vld [vmem:[%s1 + $0x2e0] sm:$0xff]
  %v656 = vld [vmem:[%s1 + $0x2e8] sm:$0xff]
  %v657 = vld [vmem:[%s1 + $0x2f0] sm:$0xff]
  %v658 = vld [vmem:[%s1 + $0x2f8] sm:$0xff]
  %v659 = vld [vmem:[%s1 + $0x300] sm:$0xff]
  %v660 = vld [vmem:[%s1 + $0x308] sm:$0xff]
  %v661 = vld [vmem:[%s1 + $0x310] sm:$0xff]
  %v662 = vld [vmem:[%s1 + $0x318] sm:$0xff]
  %v663 = vld [vmem:[%s1 + $0x320] sm:$0xff]
  %v664 = vld [vmem:[%s1 + $0x328] sm:$0xff]
  %v665 = vld [vmem:[%s1 + $0x330] sm:$0xff]
  %v666 = vld [vmem:[%s1 + $0x338] sm:$0xff]
  %v667 = vld [vmem:[%s1 + $0x340] sm:$0xff]
  %v668 = vld [vmem:[%s1 + $0x348] sm:$0xff]
  %v669 = vld [vmem:[%s1 + $0x350] sm:$0xff]
  %v670 = vld [vmem:[%s1 + $0x358] sm:$0xff]
  %v671 = vld [vmem:[%s1 + $0x360] sm:$0xff]
  %v672 = vld [vmem:[%s1 + $0x368] sm:$0xff]
  %v673 = vld [vmem:[%s1 + $0x370] sm:$0xff]
  %v674 = vld [vmem:[%s1 + $0x378] sm:$0xff]
  %v675 = vld [vmem:[%s1 + $0x380] sm:$0xff]
  %v676 = vld [vmem:[%s1 + $0x388] sm:$0xff]
  %v677 = vld [vmem:[%s1 + $0x390] sm:$0xff]
  %v678 = vld [vmem:[%s1 + $0x398] sm:$0xff]
  %v679 = vld [vmem:[%s1 + $0x3a0] sm:$0xff]
  %v680 = vld [vmem:[%s1 + $0x3a8] sm:$0xff]
  %v681 = vld [vmem:[%s1 + $0x3b0] sm:$0xff]
  %v682 = vld [vmem:[%s1 + $0x3b8] sm:$0xff]
  %v683 = vld [vmem:[%s1 + $0x3c0] sm:$0xff]
  %v684 = vld [vmem:[%s1 + $0x3c8] sm:$0xff]
  %v685 = vld [vmem:[%s1 + $0x3d0] sm:$0xff]
  %v686 = vld [vmem:[%s1 + $0x3d8] sm:$0xff]
  %v687 = vld [vmem:[%s1 + $0x3e0] sm:$0xff]
  %v688 = vld [vmem:[%s1 + $0x3e8] sm:$0xff]
  %v689 = vld [vmem:[%s1 + $0x3f0] sm:$0xff]
  %v690 = vld [vmem:[%s1 + $0x3f8] sm:$0xff]
  %v691 = vld [vmem:[%s1 + $0x400] sm:$0xff]
  %v692 = vld [vmem:[%s1 + $0x408] sm:$0xff]
  %v693 = vld [vmem:[%s1 + $0x410] sm:$0xff]
  %v694 = vld [vmem:[%s1 + $0x418] sm:$0xff]
  %v695 = vld [vmem:[%s1 + $0x420] sm:$0xff]
  %v696 = vld [vmem:[%s1 + $0x428] sm:$0xff]
  %v697 = vld [vmem:[%s1 + $0x430] sm:$0xff]
  %v698 = vld [vmem:[%s1 + $0x438] sm:$0xff]
  %v699 = vld [vmem:[%s1 + $0x440] sm:$0xff]
  %v700 = vld [vmem:[%s1 + $0x448] sm:$0xff]
  %v701 = vld [vmem:[%s1 + $0x450] sm:$0xff]
  %v702 = vld [vmem:[%s1 + $0x458] sm:$0xff]
  %v703 = vld [vmem:[%s1 + $0x460] sm:$0xff]
  %v704 = vld [vmem:[%s1 + $0x468] sm:$0xff]
  %v705 = vld [vmem:[%s1 + $0x470] sm:$0xff]
  %v706 = vld [vmem:[%s1 + $0x478] sm:$0xff]
  %v707 = vld [vmem:[%s1 + $0x480] sm:$0xff]
  %v708 = vld [vmem:[%s1 + $0x488] sm:$0xff]
  %v709 = vld [vmem:[%s1 + $0x490] sm:$0xff]
  %v710 = vld [vmem:[%s1 + $0x498] sm:$0xff]
  %v711 = vld [vmem:[%s1 + $0x4a0] sm:$0xff]
  %v712 = vld [vmem:[%s1 + $0x4a8] sm:$0xff]
  %v713 = vld [vmem:[%s1 + $0x4b0] sm:$0xff]
  %v714 = vld [vmem:[%s1 + $0x4b8] sm:$0xff]
  %v715 = vld [vmem:[%s1 + $0x4c0] sm:$0xff]
  %v716 = vld [vmem:[%s1 + $0x4c8] sm:$0xff]
  %v717 = vld [vmem:[%s1 + $0x4d0] sm:$0xff]
  %v718 = vld [vmem:[%s1 + $0x4d8] sm:$0xff]
  %v719 = vld [vmem:[%s1 + $0x4e0] sm:$0xff]
  %v720 = vld [vmem:[%s1 + $0x4e8] sm:$0xff]
  %v721 = vld [vmem:[%s1 + $0x4f0] sm:$0xff]
  %v722 = vld [vmem:[%s1 + $0x4f8] sm:$0xff]
  %v723 = vld [vmem:[%s1 + $0x500] sm:$0xff]
  %v724 = vld [vmem:[%s1 + $0x508] sm:$0xff]
  %v725 = vld [vmem:[%s1 + $0x510] sm:$0xff]
  %v726 = vld [vmem:[%s1 + $0x518] sm:$0xff]
  %v727 = vld [vmem:[%s1 + $0x520] sm:$0xff]
  %v728 = vld [vmem:[%s1 + $0x528] sm:$0xff]
  %v729 = vld [vmem:[%s1 + $0x530] sm:$0xff]
  %v730 = vld [vmem:[%s1 + $0x538] sm:$0xff]
  %v731 = vld [vmem:[%s1 + $0x540] sm:$0xff]
  %v732 = vld [vmem:[%s1 + $0x548] sm:$0xff]
  %v733 = vld [vmem:[%s1 + $0x550] sm:$0xff]
  %v734 = vld [vmem:[%s1 + $0x558] sm:$0xff]
  %v735 = vld [vmem:[%s1 + $0x560] sm:$0xff]
  %v736 = vld [vmem:[%s1 + $0x568] sm:$0xff]
  %v737 = vld [vmem:[%s1 + $0x570] sm:$0xff]
  %v738 = vld [vmem:[%s1 + $0x578] sm:$0xff]
  %v739 = vld [vmem:[%s1 + $0x580] sm:$0xff]
  %v740 = vld [vmem:[%s1 + $0x588] sm:$0xff]
  %v741 = vld [vmem:[%s1 + $0x590] sm:$0xff]
  %v742 = vld [vmem:[%s1 + $0x598] sm:$0xff]
  %v743 = vld [vmem:[%s1 + $0x5a0] sm:$0xff]
  %v744 = vld [vmem:[%s1 + $0x5a8] sm:$0xff]
  %v745 = vld [vmem:[%s1 + $0x5b0] sm:$0xff]
  %v746 = vld [vmem:[%s1 + $0x5b8] sm:$0xff]
  %v747 = vld [vmem:[%s1 + $0x5c0] sm:$0xff]
  %v748 = vld [vmem:[%s1 + $0x5c8] sm:$0xff]
  %v749 = vld [vmem:[%s1 + $0x5d0] sm:$0xff]
  %v750 = vld [vmem:[%s1 + $0x5d8] sm:$0xff]
  %v751 = vld [vmem:[%s1 + $0x5e0] sm:$0xff]
  %v752 = vld [vmem:[%s1 + $0x5e8] sm:$0xff]
  %v753 = vld [vmem:[%s1 + $0x5f0] sm:$0xff]
  %v754 = vld [vmem:[%s1 + $0x5f8] sm:$0xff]
  %v755 = vld [vmem:[%s1 + $0x600] sm:$0xff]
  %v756 = vld [vmem:[%s1 + $0x608] sm:$0xff]
  %v757 = vld [vmem:[%s1 + $0x610] sm:$0xff]
  %v758 = vld [vmem:[%s1 + $0x618] sm:$0xff]
  %v759 = vld [vmem:[%s1 + $0x620] sm:$0xff]
  %v760 = vld [vmem:[%s1 + $0x628] sm:$0xff]
  %v761 = vld [vmem:[%s1 + $0x630] sm:$0xff]
  %v762 = vld [vmem:[%s1 + $0x638] sm:$0xff]
  %v763 = vld [vmem:[%s1 + $0x640] sm:$0xff]
  %v764 = vld [vmem:[%s1 + $0x648] sm:$0xff]
  %v765 = vld [vmem:[%s1 + $0x650] sm:$0xff]
  %v766 = vld [vmem:[%s1 + $0x658] sm:$0xff]
  %v767 = vld [vmem:[%s1 + $0x660] sm:$0xff]
  %v768 = vld [vmem:[%s1 + $0x668] sm:$0xff]
  %v769 = vld [vmem:[%s1 + $0x670] sm:$0xff]
  %v770 = vld [vmem:[%s1 + $0x678] sm:$0xff]
  %v771 = vld [vmem:[%s1 + $0x680] sm:$0xff]
  %v772 = vld [vmem:[%s1 + $0x688] sm:$0xff]
  %v773 = vld [vmem:[%s1 + $0x690] sm:$0xff]
  %v774 = vld [vmem:[%s1 + $0x698] sm:$0xff]
  %v775 = vld [vmem:[%s1 + $0x6a0] sm:$0xff]
  %v776 = vld [vmem:[%s1 + $0x6a8] sm:$0xff]
  %v777 = vld [vmem:[%s1 + $0x6b0] sm:$0xff]
  %v778 = vld [vmem:[%s1 + $0x6b8] sm:$0xff]
  %v779 = vld [vmem:[%s1 + $0x6c0] sm:$0xff]
  %v780 = vld [vmem:[%s1 + $0x6c8] sm:$0xff]
  %v781 = vld [vmem:[%s1 + $0x6d0] sm:$0xff]
  %v782 = vld [vmem:[%s1 + $0x6d8] sm:$0xff]
  %v783 = vld [vmem:[%s1 + $0x6e0] sm:$0xff]
  %v784 = vld [vmem:[%s1 + $0x6e8] sm:$0xff]
  %v785 = vld [vmem:[%s1 + $0x6f0] sm:$0xff]
  %v786 = vld [vmem:[%s1 + $0x6f8] sm:$0xff]
  %v787 = vld [vmem:[%s1 + $0x700] sm:$0xff]
  %v788 = vld [vmem:[%s1 + $0x708] sm:$0xff]
  %v789 = vld [vmem:[%s1 + $0x710] sm:$0xff]
  %v790 = vld [vmem:[%s1 + $0x718] sm:$0xff]
  %v791 = vld [vmem:[%s1 + $0x720] sm:$0xff]
  %v792 = vld [vmem:[%s1 + $0x728] sm:$0xff]
  %v793 = vld [vmem:[%s1 + $0x730] sm:$0xff]
  %v794 = vld [vmem:[%s1 + $0x738] sm:$0xff]
  %v795 = vld [vmem:[%s1 + $0x740] sm:$0xff]
  %v796 = vld [vmem:[%s1 + $0x748] sm:$0xff]
  %v797 = vld [vmem:[%s1 + $0x750] sm:$0xff]
  %v798 = vld [vmem:[%s1 + $0x758] sm:$0xff]
  %v799 = vld [vmem:[%s1 + $0x760] sm:$0xff]
  %v800 = vld [vmem:[%s1 + $0x768] sm:$0xff]
  %v801 = vld [vmem:[%s1 + $0x770] sm:$0xff]
  %v802 = vld [vmem:[%s1 + $0x778] sm:$0xff]
  %v803 = vld [vmem:[%s1 + $0x780] sm:$0xff]
  %v804 = vld [vmem:[%s1 + $0x788] sm:$0xff]
  %v805 = vld [vmem:[%s1 + $0x790] sm:$0xff]
  %v806 = vld [vmem:[%s1 + $0x798] sm:$0xff]
  %v807 = vld [vmem:[%s1 + $0x7a0] sm:$0xff]
  %v808 = vld [vmem:[%s1 + $0x7a8] sm:$0xff]
  %v809 = vld [vmem:[%s1 + $0x7b0] sm:$0xff]
  %v810 = vld [vmem:[%s1 + $0x7b8] sm:$0xff]
  %v811 = vld [vmem:[%s1 + $0x7c0] sm:$0xff]
  %v812 = vld [vmem:[%s1 + $0x7c8] sm:$0xff]
  %v813 = vld [vmem:[%s1 + $0x7d0] sm:$0xff]
  %v814 = vld [vmem:[%s1 + $0x7d8] sm:$0xff]
  %v815 = vld [vmem:[%s1 + $0x7e0] sm:$0xff]
  %v816 = vld [vmem:[%s1 + $0x7e8] sm:$0xff]
  %v817 = vld [vmem:[%s1 + $0x7f0] sm:$0xff]
  %v818 = vld [vmem:[%s1 + $0x7f8] sm:$0xff]
  %v819 = vld [vmem:[%s1 + $0x800] sm:$0xff]
  %v820 = vld [vmem:[%s1 + $0x808] sm:$0xff]
  %v821 = vld [vmem:[%s1 + $0x810] sm:$0xff]
  %v822 = vld [vmem:[%s1 + $0x818] sm:$0xff]
  %v823 = vld [vmem:[%s1 + $0x820] sm:$0xff]
  %v824 = vld [vmem:[%s1 + $0x828] sm:$0xff]
  %v825 = vld [vmem:[%s1 + $0x830] sm:$0xff]
  %v826 = vld [vmem:[%s1 + $0x838] sm:$0xff]
  %v827 = vld [vmem:[%s1 + $0x840] sm:$0xff]
  %v828 = vld [vmem:[%s1 + $0x848] sm:$0xff]
  %v829 = vld [vmem:[%s1 + $0x850] sm:$0xff]
  %v830 = vld [vmem:[%s1 + $0x858] sm:$0xff]
  %v831 = vld [vmem:[%s1 + $0x860] sm:$0xff]
  %v832 = vld [vmem:[%s1 + $0x868] sm:$0xff]
  %v833 = vld [vmem:[%s1 + $0x870] sm:$0xff]
  %v834 = vld [vmem:[%s1 + $0x878] sm:$0xff]
  %v835 = vld [vmem:[%s1 + $0x880] sm:$0xff]
  %v836 = vld [vmem:[%s1 + $0x888] sm:$0xff]
  %v837 = vld [vmem:[%s1 + $0x890] sm:$0xff]
  %v838 = vld [vmem:[%s1 + $0x898] sm:$0xff]
  %v839 = vld [vmem:[%s1 + $0x8a0] sm:$0xff]
  %v840 = vld [vmem:[%s1 + $0x8a8] sm:$0xff]
  %v841 = vld [vmem:[%s1 + $0x8b0] sm:$0xff]
  %v842 = vld [vmem:[%s1 + $0x8b8] sm:$0xff]
  %v843 = vld [vmem:[%s1 + $0x8c0] sm:$0xff]
  %v844 = vld [vmem:[%s1 + $0x8c8] sm:$0xff]
  %v845 = vld [vmem:[%s1 + $0x8d0] sm:$0xff]
  %v846 = vld [vmem:[%s1 + $0x8d8] sm:$0xff]
  %v847 = vld [vmem:[%s1 + $0x8e0] sm:$0xff]
  %v848 = vld [vmem:[%s1 + $0x8e8] sm:$0xff]
  %v849 = vld [vmem:[%s1 + $0x8f0] sm:$0xff]
  %v850 = vld [vmem:[%s1 + $0x8f8] sm:$0xff]
  %v851 = vld [vmem:[%s1 + $0x900] sm:$0xff]
  %v852 = vld [vmem:[%s1 + $0x908] sm:$0xff]
  %v853 = vld [vmem:[%s1 + $0x910] sm:$0xff]
  %v854 = vld [vmem:[%s1 + $0x918] sm:$0xff]
  %v855 = vld [vmem:[%s1 + $0x920] sm:$0xff]
  %v856 = vld [vmem:[%s1 + $0x928] sm:$0xff]
  %v857 = vld [vmem:[%s1 + $0x930] sm:$0xff]
  %v858 = vld [vmem:[%s1 + $0x938] sm:$0xff]
  %v859 = vld [vmem:[%s1 + $0x940] sm:$0xff]
  %v860 = vld [vmem:[%s1 + $0x948] sm:$0xff]
  %v861 = vld [vmem:[%s1 + $0x950] sm:$0xff]
  %v862 = vld [vmem:[%s1 + $0x958] sm:$0xff]
  %v863 = vld [vmem:[%s1 + $0x960] sm:$0xff]
  %v864 = vld [vmem:[%s1 + $0x968] sm:$0xff]
  %v865 = vld [vmem:[%s1 + $0x970] sm:$0xff]
  %v866 = vld [vmem:[%s1 + $0x978] sm:$0xff]
  %v867 = vld [vmem:[%s1 + $0x980] sm:$0xff]
  %v868 = vld [vmem:[%s1 + $0x988] sm:$0xff]
  %v869 = vld [vmem:[%s1 + $0x990] sm:$0xff]
  %v870 = vld [vmem:[%s1 + $0x998] sm:$0xff]
  %v871 = vld [vmem:[%s1 + $0x9a0] sm:$0xff]
  %v872 = vld [vmem:[%s1 + $0x9a8] sm:$0xff]
  %v873 = vld [vmem:[%s1 + $0x9b0] sm:$0xff]
  %v874 = vld [vmem:[%s1 + $0x9b8] sm:$0xff]
  %v875 = vld [vmem:[%s1 + $0x9c0] sm:$0xff]
  %v876 = vld [vmem:[%s1 + $0x9c8] sm:$0xff]
  %v877 = vld [vmem:[%s1 + $0x9d0] sm:$0xff]
  %v878 = vld [vmem:[%s1 + $0x9d8] sm:$0xff]
  %v879 = vld [vmem:[%s1 + $0x9e0] sm:$0xff]
  %v880 = vld [vmem:[%s1 + $0x9e8] sm:$0xff]
  %v881 = vld [vmem:[%s1 + $0x9f0] sm:$0xff]
  %v882 = vld [vmem:[%s1 + $0x9f8] sm:$0xff]
  %v883 = vld [vmem:[%s1 + $0xa00] sm:$0xff]
  %v884 = vld [vmem:[%s1 + $0xa08] sm:$0xff]
  %v885 = vld [vmem:[%s1 + $0xa10] sm:$0xff]
  %v886 = vld [vmem:[%s1 + $0xa18] sm:$0xff]
  %v887 = vld [vmem:[%s1 + $0xa20] sm:$0xff]
  %v888 = vld [vmem:[%s1 + $0xa28] sm:$0xff]
  %v889 = vld [vmem:[%s1 + $0xa30] sm:$0xff]
  %v890 = vld [vmem:[%s1 + $0xa38] sm:$0xff]
  %v891 = vld [vmem:[%s1 + $0xa40] sm:$0xff]
  %v892 = vld [vmem:[%s1 + $0xa48] sm:$0xff]
  %v893 = vld [vmem:[%s1 + $0xa50] sm:$0xff]
  %v894 = vld [vmem:[%s1 + $0xa58] sm:$0xff]
  %v895 = vld [vmem:[%s1 + $0xa60] sm:$0xff]
  %v896 = vld [vmem:[%s1 + $0xa68] sm:$0xff]
  %v897 = vld [vmem:[%s1 + $0xa70] sm:$0xff]
  %v898 = vld [vmem:[%s1 + $0xa78] sm:$0xff]
  %v899 = vld [vmem:[%s1 + $0xa80] sm:$0xff]
  %v900 = vld [vmem:[%s1 + $0xa88] sm:$0xff]
  %v901 = vld [vmem:[%s1 + $0xa90] sm:$0xff]
  %v902 = vld [vmem:[%s1 + $0xa98] sm:$0xff]
  %v903 = vld [vmem:[%s1 + $0xaa0] sm:$0xff]
  %v904 = vld [vmem:[%s1 + $0xaa8] sm:$0xff]
  %v905 = vld [vmem:[%s1 + $0xab0] sm:$0xff]
  %v906 = vld [vmem:[%s1 + $0xab8] sm:$0xff]
  %v907 = vld [vmem:[%s1 + $0xac0] sm:$0xff]
  %v908 = vld [vmem:[%s1 + $0xac8] sm:$0xff]
  %v909 = vld [vmem:[%s1 + $0xad0] sm:$0xff]
  %v910 = vld [vmem:[%s1 + $0xad8] sm:$0xff]
  %v911 = vld [vmem:[%s1 + $0xae0] sm:$0xff]
  %v912 = vld [vmem:[%s1 + $0xae8] sm:$0xff]
  %v913 = vld [vmem:[%s1 + $0xaf0] sm:$0xff]
  %v914 = vld [vmem:[%s1 + $0xaf8] sm:$0xff]
  %v915 = vld [vmem:[%s1 + $0xb00] sm:$0xff]
  %v916 = vld [vmem:[%s1 + $0xb08] sm:$0xff]
  %v917 = vld [vmem:[%s1 + $0xb10] sm:$0xff]
  %v918 = vld [vmem:[%s1 + $0xb18] sm:$0xff]
  %v919 = vld [vmem:[%s1 + $0xb20] sm:$0xff]
  %v920 = vld [vmem:[%s1 + $0xb28] sm:$0xff]
  %v921 = vld [vmem:[%s1 + $0xb30] sm:$0xff]
  %v922 = vld [vmem:[%s1 + $0xb38] sm:$0xff]
  %v923 = vld [vmem:[%s1 + $0xb40] sm:$0xff]
  %v924 = vld [vmem:[%s1 + $0xb48] sm:$0xff]
  %v925 = vld [vmem:[%s1 + $0xb50] sm:$0xff]
  %v926 = vld [vmem:[%s1 + $0xb58] sm:$0xff]
  %v927 = vld [vmem:[%s1 + $0xb60] sm:$0xff]
  %v928 = vld [vmem:[%s1 + $0xb68] sm:$0xff]
  %v929 = vld [vmem:[%s1 + $0xb70] sm:$0xff]
  %v930 = vld [vmem:[%s1 + $0xb78] sm:$0xff]
  %v931 = vld [vmem:[%s1 + $0xb80] sm:$0xff]
  %v932 = vld [vmem:[%s1 + $0xb88] sm:$0xff]
  %v933 = vld [vmem:[%s1 + $0xb90] sm:$0xff]
  %v934 = vld [vmem:[%s1 + $0xb98] sm:$0xff]
  %v935 = vld [vmem:[%s1 + $0xba0] sm:$0xff]
  %v936 = vld [vmem:[%s1 + $0xba8] sm:$0xff]
  %v937 = vld [vmem:[%s1 + $0xbb0] sm:$0xff]
  %v938 = vld [vmem:[%s1 + $0xbb8] sm:$0xff]
  %v939 = vld [vmem:[%s1 + $0xbc0] sm:$0xff]
  %v940 = vld [vmem:[%s1 + $0xbc8] sm:$0xff]
  %v941 = vld [vmem:[%s1 + $0xbd0] sm:$0xff]
  %v942 = vld [vmem:[%s1 + $0xbd8] sm:$0xff]
  %v943 = vld [vmem:[%s1 + $0xbe0] sm:$0xff]
  %v944 = vld [vmem:[%s1 + $0xbe8] sm:$0xff]
  %v945 = vld [vmem:[%s1 + $0xbf0] sm:$0xff]
  %v946 = vld [vmem:[%s1 + $0xbf8] sm:$0xff]
  %v947 = vld [vmem:[%s1 + $0xc00] sm:$0xff]
  %v948 = vld [vmem:[%s1 + $0xc08] sm:$0xff]
  %v949 = vld [vmem:[%s1 + $0xc10] sm:$0xff]
  %v950 = vld [vmem:[%s1 + $0xc18] sm:$0xff]
  %v951 = vld [vmem:[%s1 + $0xc20] sm:$0xff]
  %v952 = vld [vmem:[%s1 + $0xc28] sm:$0xff]
  %v953 = vld [vmem:[%s1 + $0xc30] sm:$0xff]
  %v954 = vld [vmem:[%s1 + $0xc38] sm:$0xff]
  %v955 = vld [vmem:[%s1 + $0xc40] sm:$0xff]
  %v956 = vld [vmem:[%s1 + $0xc48] sm:$0xff]
  %v957 = vld [vmem:[%s1 + $0xc50] sm:$0xff]
  %v958 = vld [vmem:[%s1 + $0xc58] sm:$0xff]
  %v959 = vld [vmem:[%s1 + $0xc60] sm:$0xff]
  %v960 = vld [vmem:[%s1 + $0xc68] sm:$0xff]
  %v961 = vld [vmem:[%s1 + $0xc70] sm:$0xff]
  %v962 = vld [vmem:[%s1 + $0xc78] sm:$0xff]
  %v963 = vld [vmem:[%s1 + $0xc80] sm:$0xff]
  %v964 = vld [vmem:[%s1 + $0xc88] sm:$0xff]
  %v965 = vld [vmem:[%s1 + $0xc90] sm:$0xff]
  %v966 = vld [vmem:[%s1 + $0xc98] sm:$0xff]
  %v967 = vld [vmem:[%s1 + $0xca0] sm:$0xff]
  %v968 = vld [vmem:[%s1 + $0xca8] sm:$0xff]
  %v969 = vld [vmem:[%s1 + $0xcb0] sm:$0xff]
  %v970 = vld [vmem:[%s1 + $0xcb8] sm:$0xff]
  %v971 = vld [vmem:[%s1 + $0xcc0] sm:$0xff]
  %v972 = vld [vmem:[%s1 + $0xcc8] sm:$0xff]
  %v973 = vld [vmem:[%s1 + $0xcd0] sm:$0xff]
  %v974 = vld [vmem:[%s1 + $0xcd8] sm:$0xff]
  %v975 = vld [vmem:[%s1 + $0xce0] sm:$0xff]
  %v976 = vld [vmem:[%s1 + $0xce8] sm:$0xff]
  %v977 = vld [vmem:[%s1 + $0xcf0] sm:$0xff]
  %v978 = vld [vmem:[%s1 + $0xcf8] sm:$0xff]
  %v979 = vld [vmem:[%s1 + $0xd00] sm:$0xff]
  %v980 = vld [vmem:[%s1 + $0xd08] sm:$0xff]
  %v981 = vld [vmem:[%s1 + $0xd10] sm:$0xff]
  %v982 = vld [vmem:[%s1 + $0xd18] sm:$0xff]
  %v983 = vld [vmem:[%s1 + $0xd20] sm:$0xff]
  %v984 = vld [vmem:[%s1 + $0xd28] sm:$0xff]
  %v985 = vld [vmem:[%s1 + $0xd30] sm:$0xff]
  %v986 = vld [vmem:[%s1 + $0xd38] sm:$0xff]
  %v987 = vld [vmem:[%s1 + $0xd40] sm:$0xff]
  %v988 = vld [vmem:[%s1 + $0xd48] sm:$0xff]
  %v989 = vld [vmem:[%s1 + $0xd50] sm:$0xff]
  %v990 = vld [vmem:[%s1 + $0xd58] sm:$0xff]
  %v991 = vld [vmem:[%s1 + $0xd60] sm:$0xff]
  %v992 = vld [vmem:[%s1 + $0xd68] sm:$0xff]
  %v993 = vld [vmem:[%s1 + $0xd70] sm:$0xff]
  %v994 = vld [vmem:[%s1 + $0xd78] sm:$0xff]
  %v995 = vld [vmem:[%s1 + $0xd80] sm:$0xff]
  %v996 = vld [vmem:[%s1 + $0xd88] sm:$0xff]
  %v997 = vld [vmem:[%s1 + $0xd90] sm:$0xff]
  %v998 = vld [vmem:[%s1 + $0xd98] sm:$0xff]
  %v999 = vld [vmem:[%s1 + $0xda0] sm:$0xff]
  %v1000 = vld [vmem:[%s1 + $0xda8] sm:$0xff]
  %v1001 = vld [vmem:[%s1 + $0xdb0] sm:$0xff]
  %v1002 = vld [vmem:[%s1 + $0xdb8] sm:$0xff]
  %v1003 = vld [vmem:[%s1 + $0xdc0] sm:$0xff]
  %v1004 = vld [vmem:[%s1 + $0xdc8] sm:$0xff]
  %v1005 = vld [vmem:[%s1 + $0xdd0] sm:$0xff]
  %v1006 = vld [vmem:[%s1 + $0xdd8] sm:$0xff]
  %v1007 = vld [vmem:[%s1 + $0xde0] sm:$0xff]
  %v1008 = vld [vmem:[%s1 + $0xde8] sm:$0xff]
  %v1009 = vld [vmem:[%s1 + $0xdf0] sm:$0xff]
  %v1010 = vld [vmem:[%s1 + $0xdf8] sm:$0xff]
  %v1011 = vld [vmem:[%s1 + $0xe00] sm:$0xff]
  %v1012 = vld [vmem:[%s1 + $0xe08] sm:$0xff]
  %v1013 = vld [vmem:[%s1 + $0xe10] sm:$0xff]
  %v1014 = vld [vmem:[%s1 + $0xe18] sm:$0xff]
  %v1015 = vld [vmem:[%s1 + $0xe20] sm:$0xff]
  %v1016 = vld [vmem:[%s1 + $0xe28] sm:$0xff]
  %v1017 = vld [vmem:[%s1 + $0xe30] sm:$0xff]
  %v1018 = vld [vmem:[%s1 + $0xe38] sm:$0xff]
  %v1019 = vld [vmem:[%s1 + $0xe40] sm:$0xff]
  %v1020 = vld [vmem:[%s1 + $0xe48] sm:$0xff]
  %v1021 = vld [vmem:[%s1 + $0xe50] sm:$0xff]
  %v1022 = vld [vmem:[%s1 + $0xe58] sm:$0xff]
  %v1023 = vld [vmem:[%s1 + $0xe60] sm:$0xff]
  %v1024 = vld [vmem:[%s1 + $0xe68] sm:$0xff]
  %v1025 = vld [vmem:[%s1 + $0xe70] sm:$0xff]
  %v1026 = vld [vmem:[%s1 + $0xe78] sm:$0xff]
  %v1027 = vld [vmem:[%s1 + $0xe80] sm:$0xff]
  %v1028 = vld [vmem:[%s1 + $0xe88] sm:$0xff]
  %v1029 = vld [vmem:[%s1 + $0xe90] sm:$0xff]
  %v1030 = vld [vmem:[%s1 + $0xe98] sm:$0xff]
  %v1031 = vld [vmem:[%s1 + $0xea0] sm:$0xff]
  %v1032 = vld [vmem:[%s1 + $0xea8] sm:$0xff]
  %v1033 = vld [vmem:[%s1 + $0xeb0] sm:$0xff]
  %v1034 = vld [vmem:[%s1 + $0xeb8] sm:$0xff]
  %v1035 = vld [vmem:[%s1 + $0xec0] sm:$0xff]
  %v1036 = vld [vmem:[%s1 + $0xec8] sm:$0xff]
  %v1037 = vld [vmem:[%s1 + $0xed0] sm:$0xff]
  %v1038 = vld [vmem:[%s1 + $0xed8] sm:$0xff]
  %v1039 = vld [vmem:[%s1 + $0xee0] sm:$0xff]
  %v1040 = vld [vmem:[%s1 + $0xee8] sm:$0xff]
  %v1041 = vld [vmem:[%s1 + $0xef0] sm:$0xff]
  %v1042 = vld [vmem:[%s1 + $0xef8] sm:$0xff]
  %v1043 = vld [vmem:[%s1 + $0xf00] sm:$0xff]
  %v1044 = vld [vmem:[%s1 + $0xf08] sm:$0xff]
  %v1045 = vld [vmem:[%s1 + $0xf10] sm:$0xff]
  %v1046 = vld [vmem:[%s1 + $0xf18] sm:$0xff]
  %v1047 = vld [vmem:[%s1 + $0xf20] sm:$0xff]
  %v1048 = vld [vmem:[%s1 + $0xf28] sm:$0xff]
  %v1049 = vld [vmem:[%s1 + $0xf30] sm:$0xff]
  %v1050 = vld [vmem:[%s1 + $0xf38] sm:$0xff]
  %v1051 = vld [vmem:[%s1 + $0xf40] sm:$0xff]
  %v1052 = vld [vmem:[%s1 + $0xf48] sm:$0xff]
  %v1053 = vld [vmem:[%s1 + $0xf50] sm:$0xff]
  %v1054 = vld [vmem:[%s1 + $0xf58] sm:$0xff]
  %v1055 = vld [vmem:[%s1 + $0xf60] sm:$0xff]
  %v1056 = vld [vmem:[%s1 + $0xf68] sm:$0xff]
  %v1057 = vld [vmem:[%s1 + $0xf70] sm:$0xff]
  %v1058 = vld [vmem:[%s1 + $0xf78] sm:$0xff]
  %v1059 = vld [vmem:[%s1 + $0xf80] sm:$0xff]
  %v1060 = vld [vmem:[%s1 + $0xf88] sm:$0xff]
  %v1061 = vld [vmem:[%s1 + $0xf90] sm:$0xff]
  %v1062 = vld [vmem:[%s1 + $0xf98] sm:$0xff]
  %v1063 = vld [vmem:[%s1 + $0xfa0] sm:$0xff]
  %v1064 = vld [vmem:[%s1 + $0xfa8] sm:$0xff]
  %v1065 = vld [vmem:[%s1 + $0xfb0] sm:$0xff]
  %v1066 = vld [vmem:[%s1 + $0xfb8] sm:$0xff]
  %v1067 = vld [vmem:[%s1 + $0xfc0] sm:$0xff]
  %v1068 = vld [vmem:[%s1 + $0xfc8] sm:$0xff]
  %v1069 = vld [vmem:[%s1 + $0xfd0] sm:$0xff]
  %v1070 = vld [vmem:[%s1 + $0xfd8] sm:$0xff]
  %v1071 = vld [vmem:[%s1 + $0xfe0] sm:$0xff]
  %v1072 = vld [vmem:[%s1 + $0xfe8] sm:$0xff]
  %v1073 = vld [vmem:[%s1 + $0xff0] sm:$0xff]
  %v1074 = vld [vmem:[%s1 + $0xff8] sm:$0xff]
  %v1075 = vld [vmem:[%s1 + $0x1000] sm:$0xff]
  %v1076 = vld [vmem:[%s1 + $0x1008] sm:$0xff]
  %v1077 = vld [vmem:[%s1 + $0x1010] sm:$0xff]
  %v1078 = vld [vmem:[%s1 + $0x1018] sm:$0xff]
  %v1079 = vld [vmem:[%s1 + $0x1020] sm:$0xff]
  %v1080 = vld [vmem:[%s1 + $0x1028] sm:$0xff]
  %v1081 = vld [vmem:[%s1 + $0x1030] sm:$0xff]
  %v1082 = vld [vmem:[%s1 + $0x1038] sm:$0xff]
  %v1083 = vld [vmem:[%s1 + $0x1040] sm:$0xff]
  %v1084 = vld [vmem:[%s1 + $0x1048] sm:$0xff]
  %v1085 = vld [vmem:[%s1 + $0x1050] sm:$0xff]
  %v1086 = vld [vmem:[%s1 + $0x1058] sm:$0xff]
  %v1087 = vld [vmem:[%s1 + $0x1060] sm:$0xff]
  %v1088 = vld [vmem:[%s1 + $0x1068] sm:$0xff]
  %v1089 = vld [vmem:[%s1 + $0x1070] sm:$0xff]
  %v1090 = vld [vmem:[%s1 + $0x1078] sm:$0xff]
  %v1091 = vld [vmem:[%s1 + $0x1080] sm:$0xff]
  %v1092 = vld [vmem:[%s1 + $0x1088] sm:$0xff]
  %v1093 = vld [vmem:[%s1 + $0x1090] sm:$0xff]
  %v1094 = vld [vmem:[%s1 + $0x1098] sm:$0xff]
  %v1095 = vld [vmem:[%s1 + $0x10a0] sm:$0xff]
  %v1096 = vld [vmem:[%s1 + $0x10a8] sm:$0xff]
  %v1097 = vld [vmem:[%s1 + $0x10b0] sm:$0xff]
  %v1098 = vld [vmem:[%s1 + $0x10b8] sm:$0xff]
  %v1099 = vld [vmem:[%s1 + $0x10c0] sm:$0xff]
  %v1100 = vld [vmem:[%s1 + $0x10c8] sm:$0xff]
  %v1101 = vld [vmem:[%s1 + $0x10d0] sm:$0xff]
  %v1102 = vld [vmem:[%s1 + $0x10d8] sm:$0xff]
  %v1103 = vld [vmem:[%s1 + $0x10e0] sm:$0xff]
  %v1104 = vld [vmem:[%s1 + $0x10e8] sm:$0xff]
  %v1105 = vld [vmem:[%s1 + $0x10f0] sm:$0xff]
  %v1106 = vld [vmem:[%s1 + $0x10f8] sm:$0xff]
  %v1107 = vld [vmem:[%s1 + $0x1100] sm:$0xff]
  %v1108 = vld [vmem:[%s1 + $0x1108] sm:$0xff]
  %v1109 = vld [vmem:[%s1 + $0x1110] sm:$0xff]
  %v1110 = vld [vmem:[%s1 + $0x1118] sm:$0xff]
  %v1111 = vld [vmem:[%s1 + $0x1120] sm:$0xff]
  %v1112 = vld [vmem:[%s1 + $0x1128] sm:$0xff]
  %v1113 = vld [vmem:[%s1 + $0x1130] sm:$0xff]
  %v1114 = vld [vmem:[%s1 + $0x1138] sm:$0xff]
  %v1115 = vld [vmem:[%s1 + $0x1140] sm:$0xff]
  %v1116 = vld [vmem:[%s1 + $0x1148] sm:$0xff]
  %v1117 = vld [vmem:[%s1 + $0x1150] sm:$0xff]
  %v1118 = vld [vmem:[%s1 + $0x1158] sm:$0xff]
  %v1119 = vld [vmem:[%s1 + $0x1160] sm:$0xff]
  %v1120 = vld [vmem:[%s1 + $0x1168] sm:$0xff]
  %v1121 = vld [vmem:[%s1 + $0x1170] sm:$0xff]
  %v1122 = vld [vmem:[%s1 + $0x1178] sm:$0xff]
  %v1123 = vld [vmem:[%s1 + $0x1180] sm:$0xff]
  %v1124 = vld [vmem:[%s1 + $0x1188] sm:$0xff]
  %v1125 = vld [vmem:[%s1 + $0x1190] sm:$0xff]
  %v1126 = vld [vmem:[%s1 + $0x1198] sm:$0xff]
  %v1127 = vld [vmem:[%s1 + $0x11a0] sm:$0xff]
  %v1128 = vld [vmem:[%s1 + $0x11a8] sm:$0xff]
  %v1129 = vld [vmem:[%s1 + $0x11b0] sm:$0xff]
  %v1130 = vld [vmem:[%s1 + $0x11b8] sm:$0xff]
  %v1131 = vld [vmem:[%s1 + $0x11c0] sm:$0xff]
  %v1132 = vld [vmem:[%s1 + $0x11c8] sm:$0xff]
  %v1133 = vld [vmem:[%s1 + $0x11d0] sm:$0xff]
  %v1134 = vld [vmem:[%s1 + $0x11d8] sm:$0xff]
  %v1135 = vld [vmem:[%s1 + $0x11e0] sm:$0xff]
  %v1136 = vld [vmem:[%s1 + $0x11e8] sm:$0xff]
  %v1137 = vld [vmem:[%s1 + $0x11f0] sm:$0xff]
  %v1138 = vld [vmem:[%s1 + $0x11f8] sm:$0xff]
  %v1139 = vld [vmem:[%s1 + $0x1200] sm:$0xff]
  %v1140 = vld [vmem:[%s1 + $0x1208] sm:$0xff]
  %v1141 = vld [vmem:[%s1 + $0x1210] sm:$0xff]
  %v1142 = vld [vmem:[%s1 + $0x1218] sm:$0xff]
  %v1143 = vld [vmem:[%s1 + $0x1220] sm:$0xff]
  %v1144 = vld [vmem:[%s1 + $0x1228] sm:$0xff]
  %v1145 = vld [vmem:[%s1 + $0x1230] sm:$0xff]
  %v1146 = vld [vmem:[%s1 + $0x1238] sm:$0xff]
  %v1147 = vld [vmem:[%s1 + $0x1240] sm:$0xff]
  %v1148 = vld [vmem:[%s1 + $0x1248] sm:$0xff]
  %v1149 = vld [vmem:[%s1 + $0x1250] sm:$0xff]
  %v1150 = vld [vmem:[%s1 + $0x1258] sm:$0xff]
  %v1151 = vld [vmem:[%s1 + $0x1260] sm:$0xff]
  %v1152 = vld [vmem:[%s1 + $0x1268] sm:$0xff]
  %v1153 = vld [vmem:[%s1 + $0x1270] sm:$0xff]
  %v1154 = vld [vmem:[%s1 + $0x1278] sm:$0xff]
  %v1155 = vld [vmem:[%s1 + $0x1280] sm:$0xff]
  %v1156 = vld [vmem:[%s1 + $0x1288] sm:$0xff]
  %v1157 = vld [vmem:[%s1 + $0x1290] sm:$0xff]
  %v1158 = vld [vmem:[%s1 + $0x1298] sm:$0xff]
  %v1159 = vld [vmem:[%s1 + $0x12a0] sm:$0xff]
  %v1160 = vld [vmem:[%s1 + $0x12a8] sm:$0xff]
  %v1161 = vld [vmem:[%s1 + $0x12b0] sm:$0xff]
  %v1162 = vld [vmem:[%s1 + $0x12b8] sm:$0xff]
  %v1163 = vld [vmem:[%s1 + $0x12c0] sm:$0xff]
  %v1164 = vld [vmem:[%s1 + $0x12c8] sm:$0xff]
  %v1165 = vld [vmem:[%s1 + $0x12d0] sm:$0xff]
  %v1166 = vld [vmem:[%s1 + $0x12d8] sm:$0xff]
  %v1167 = vld [vmem:[%s1 + $0x12e0] sm:$0xff]
  %v1168 = vld [vmem:[%s1 + $0x12e8] sm:$0xff]
  %v1169 = vld [vmem:[%s1 + $0x12f0] sm:$0xff]
  %v1170 = vld [vmem:[%s1 + $0x12f8] sm:$0xff]
  %v1171 = vld [vmem:[%s1 + $0x1300] sm:$0xff]
  %v1172 = vld [vmem:[%s1 + $0x1308] sm:$0xff]
  %v1173 = vld [vmem:[%s1 + $0x1310] sm:$0xff]
  %v1174 = vld [vmem:[%s1 + $0x1318] sm:$0xff]
  %v1175 = vld [vmem:[%s1 + $0x1320] sm:$0xff]
  %v1176 = vld [vmem:[%s1 + $0x1328] sm:$0xff]
  %v1177 = vld [vmem:[%s1 + $0x1330] sm:$0xff]
  %v1178 = vld [vmem:[%s1 + $0x1338] sm:$0xff]
  %v1179 = vld [vmem:[%s1 + $0x1340] sm:$0xff]
  %v1180 = vld [vmem:[%s1 + $0x1348] sm:$0xff]
  %v1181 = vld [vmem:[%s1 + $0x1350] sm:$0xff]
  %v1182 = vld [vmem:[%s1 + $0x1358] sm:$0xff]
  %v1183 = vld [vmem:[%s1 + $0x1360] sm:$0xff]
  %v1184 = vld [vmem:[%s1 + $0x1368] sm:$0xff]
  %v1185 = vld [vmem:[%s1 + $0x1370] sm:$0xff]
  %v1186 = vld [vmem:[%s1 + $0x1378] sm:$0xff]
  %v1187 = vld [vmem:[%s1 + $0x1380] sm:$0xff]
  %v1188 = vld [vmem:[%s1 + $0x1388] sm:$0xff]
  %v1189 = vld [vmem:[%s1 + $0x1390] sm:$0xff]
  %v1190 = vld [vmem:[%s1 + $0x1398] sm:$0xff]
  %v1191 = vld [vmem:[%s1 + $0x13a0] sm:$0xff]
  %v1192 = vld [vmem:[%s1 + $0x13a8] sm:$0xff]
  %v1193 = vld [vmem:[%s1 + $0x13b0] sm:$0xff]
  %v1194 = vld [vmem:[%s1 + $0x13b8] sm:$0xff]
  %v1195 = vld [vmem:[%s1 + $0x13c0] sm:$0xff]
  %v1196 = vld [vmem:[%s1 + $0x13c8] sm:$0xff]
  %v1197 = vld [vmem:[%s1 + $0x13d0] sm:$0xff]
  %v1198 = vld [vmem:[%s1 + $0x13d8] sm:$0xff]
  %v1199 = vld [vmem:[%s1 + $0x13e0] sm:$0xff]
  %v1200 = vld [vmem:[%s1 + $0x13e8] sm:$0xff]
  %v1201 = vld [vmem:[%s1 + $0x13f0] sm:$0xff]
  %v1202 = vld [vmem:[%s1 + $0x13f8] sm:$0xff]
  %v1203 = vld [vmem:[%s1 + $0x1400] sm:$0xff]
  %v1204 = vld [vmem:[%s1 + $0x1408] sm:$0xff]
  %v1205 = vld [vmem:[%s1 + $0x1410] sm:$0xff]
  %v1206 = vld [vmem:[%s1 + $0x1418] sm:$0xff]
  %v1207 = vld [vmem:[%s1 + $0x1420] sm:$0xff]
  %v1208 = vld [vmem:[%s1 + $0x1428] sm:$0xff]
  %v1209 = vld [vmem:[%s1 + $0x1430] sm:$0xff]
  %v1210 = vld [vmem:[%s1 + $0x1438] sm:$0xff]
  %v1211 = vld [vmem:[%s1 + $0x1440] sm:$0xff]
  %v1212 = vld [vmem:[%s1 + $0x1448] sm:$0xff]
  %v1213 = vld [vmem:[%s1 + $0x1450] sm:$0xff]
  %v1214 = vld [vmem:[%s1 + $0x1458] sm:$0xff]
  %v1215 = vld [vmem:[%s1 + $0x1460] sm:$0xff]
  %v1216 = vld [vmem:[%s1 + $0x1468] sm:$0xff]
  %v1217 = vld [vmem:[%s1 + $0x1470] sm:$0xff]
  %v1218 = vld [vmem:[%s1 + $0x1478] sm:$0xff]
  %v1219 = vld [vmem:[%s1 + $0x1480] sm:$0xff]
  %v1220 = vld [vmem:[%s1 + $0x1488] sm:$0xff]
  %v1221 = vld [vmem:[%s1 + $0x1490] sm:$0xff]
  %v1222 = vld [vmem:[%s1 + $0x1498] sm:$0xff]
  %v1223 = vld [vmem:[%s1 + $0x14a0] sm:$0xff]
  %v1224 = vld [vmem:[%s1 + $0x14a8] sm:$0xff]
  %v1225 = vld [vmem:[%s1 + $0x14b0] sm:$0xff]
  %v1226 = vld [vmem:[%s1 + $0x14b8] sm:$0xff]
  %v1227 = vld [vmem:[%s1 + $0x14c0] sm:$0xff]
  %v1228 = vld [vmem:[%s1 + $0x14c8] sm:$0xff]
  %v1229 = vld [vmem:[%s1 + $0x14d0] sm:$0xff]
  %v1230 = vld [vmem:[%s1 + $0x14d8] sm:$0xff]
  %v1231 = vld [vmem:[%s1 + $0x14e0] sm:$0xff]
  %v1232 = vld [vmem:[%s1 + $0x14e8] sm:$0xff]
  %v1233 = vld [vmem:[%s1 + $0x14f0] sm:$0xff]
  %v1234 = vld [vmem:[%s1 + $0x14f8] sm:$0xff]
  %v1235 = vld [vmem:[%s1 + $0x1500] sm:$0xff]
  %v1236 = vld [vmem:[%s1 + $0x1508] sm:$0xff]
  %v1237 = vld [vmem:[%s1 + $0x1510] sm:$0xff]
  %v1238 = vld [vmem:[%s1 + $0x1518] sm:$0xff]
  %v1239 = vld [vmem:[%s1 + $0x1520] sm:$0xff]
  %v1240 = vld [vmem:[%s1 + $0x1528] sm:$0xff]
  %v1241 = vld [vmem:[%s1 + $0x1530] sm:$0xff]
  %v1242 = vld [vmem:[%s1 + $0x1538] sm:$0xff]
  %v1243 = vld [vmem:[%s1 + $0x1540] sm:$0xff]
  %v1244 = vld [vmem:[%s1 + $0x1548] sm:$0xff]
  %v1245 = vld [vmem:[%s1 + $0x1550] sm:$0xff]
  %v1246 = vld [vmem:[%s1 + $0x1558] sm:$0xff]
  %v1247 = vld [vmem:[%s1 + $0x1560] sm:$0xff]
  %v1248 = vld [vmem:[%s1 + $0x1568] sm:$0xff]
  %v1249 = vld [vmem:[%s1 + $0x1570] sm:$0xff]
  %v1250 = vld [vmem:[%s1 + $0x1578] sm:$0xff]
  %v1251 = vld [vmem:[%s1 + $0x1580] sm:$0xff]
  %v1252 = vld [vmem:[%s1 + $0x1588] sm:$0xff]
  %v1253 = vld [vmem:[%s1 + $0x1590] sm:$0xff]
  %v1254 = vld [vmem:[%s1 + $0x1598] sm:$0xff]
  %v1255 = vld [vmem:[%s1 + $0x15a0] sm:$0xff]
  %v1256 = vld [vmem:[%s1 + $0x15a8] sm:$0xff]
  %v1257 = vld [vmem:[%s1 + $0x15b0] sm:$0xff]
  %v1258 = vld [vmem:[%s1 + $0x15b8] sm:$0xff]
  %v1259 = vld [vmem:[%s1 + $0x15c0] sm:$0xff]
  %v1260 = vld [vmem:[%s1 + $0x15c8] sm:$0xff]
  %v1261 = vld [vmem:[%s1 + $0x15d0] sm:$0xff]
  %v1262 = vld [vmem:[%s1 + $0x15d8] sm:$0xff]
  %v1263 = vld [vmem:[%s1 + $0x15e0] sm:$0xff]
  %v1264 = vld [vmem:[%s1 + $0x15e8] sm:$0xff]
  %v1265 = vld [vmem:[%s1 + $0x15f0] sm:$0xff]
  %v1266 = vld [vmem:[%s1 + $0x15f8] sm:$0xff]
  %v1267 = vld [vmem:[%s1 + $0x1600] sm:$0xff]
  %v1268 = vld [vmem:[%s1 + $0x1608] sm:$0xff]
  %v1269 = vld [vmem:[%s1 + $0x1610] sm:$0xff]
  %v1270 = vld [vmem:[%s1 + $0x1618] sm:$0xff]
  %v1271 = vld [vmem:[%s1 + $0x1620] sm:$0xff]
  %v1272 = vld [vmem:[%s1 + $0x1628] sm:$0xff]
  %v1273 = vld [vmem:[%s1 + $0x1630] sm:$0xff]
  %v1274 = vld [vmem:[%s1 + $0x1638] sm:$0xff]
  %v1275 = vld [vmem:[%s1 + $0x1640] sm:$0xff]
  %v1276 = vld [vmem:[%s1 + $0x1648] sm:$0xff]
  %v1277 = vld [vmem:[%s1 + $0x1650] sm:$0xff]
  %v1278 = vld [vmem:[%s1 + $0x1658] sm:$0xff]
  %v1279 = vld [vmem:[%s1 + $0x1660] sm:$0xff]
  %v1280 = vld [vmem:[%s1 + $0x1668] sm:$0xff]
  %v1281 = vld [vmem:[%s1 + $0x1670] sm:$0xff]
  %v1282 = vld [vmem:[%s1 + $0x1678] sm:$0xff]
  %v1283 = vld [vmem:[%s1 + $0x1680] sm:$0xff]
  %v1284 = vld [vmem:[%s1 + $0x1688] sm:$0xff]
  %v1285 = vld [vmem:[%s1 + $0x1690] sm:$0xff]
  %v1286 = vld [vmem:[%s1 + $0x1698] sm:$0xff]
  %v1287 = vld [vmem:[%s1 + $0x16a0] sm:$0xff]
  %v1288 = vld [vmem:[%s1 + $0x16a8] sm:$0xff]
  %v1289 = vld [vmem:[%s1 + $0x16b0] sm:$0xff]
  %v1290 = vld [vmem:[%s1 + $0x16b8] sm:$0xff]
  %v1291 = vld [vmem:[%s1 + $0x16c0] sm:$0xff]
  %v1292 = vld [vmem:[%s1 + $0x16c8] sm:$0xff]
  %v1293 = vld [vmem:[%s1 + $0x16d0] sm:$0xff]
  %v1294 = vld [vmem:[%s1 + $0x16d8] sm:$0xff]
  %v1295 = vld [vmem:[%s1 + $0x16e0] sm:$0xff]
  %v1296 = vld [vmem:[%s1 + $0x16e8] sm:$0xff]
  %v1297 = vld [vmem:[%s1 + $0x16f0] sm:$0xff]
  %v1298 = vld [vmem:[%s1 + $0x16f8] sm:$0xff]
  %v1299 = vld [vmem:[%s1 + $0x1700] sm:$0xff]
  %v1300 = vld [vmem:[%s1 + $0x1708] sm:$0xff]
  %v1301 = vld [vmem:[%s1 + $0x1710] sm:$0xff]
  %v1302 = vld [vmem:[%s1 + $0x1718] sm:$0xff]
  %v1303 = vld [vmem:[%s1 + $0x1720] sm:$0xff]
  %v1304 = vld [vmem:[%s1 + $0x1728] sm:$0xff]
  %v1305 = vld [vmem:[%s1 + $0x1730] sm:$0xff]
  %v1306 = vld [vmem:[%s1 + $0x1738] sm:$0xff]
  %v1307 = vld [vmem:[%s1 + $0x1740] sm:$0xff]
  %v1308 = vld [vmem:[%s1 + $0x1748] sm:$0xff]
  %v1309 = vld [vmem:[%s1 + $0x1750] sm:$0xff]
  %v1310 = vld [vmem:[%s1 + $0x1758] sm:$0xff]
  %v1311 = vld [vmem:[%s1 + $0x1760] sm:$0xff]
  %v1312 = vld [vmem:[%s1 + $0x1768] sm:$0xff]
  %v1313 = vld [vmem:[%s1 + $0x1770] sm:$0xff]
  %v1314 = vld [vmem:[%s1 + $0x1778] sm:$0xff]
  %v1315 = vld [vmem:[%s1 + $0x1780] sm:$0xff]
  %v1316 = vld [vmem:[%s1 + $0x1788] sm:$0xff]
  %v1317 = vld [vmem:[%s1 + $0x1790] sm:$0xff]
  %v1318 = vld [vmem:[%s1 + $0x1798] sm:$0xff]
  %v1319 = vld [vmem:[%s1 + $0x17a0] sm:$0xff]
  %v1320 = vld [vmem:[%s1 + $0x17a8] sm:$0xff]
  %v1321 = vld [vmem:[%s1 + $0x17b0] sm:$0xff]
  %v1322 = vld [vmem:[%s1 + $0x17b8] sm:$0xff]
  %v1323 = vld [vmem:[%s1 + $0x17c0] sm:$0xff]
  %v1324 = vld [vmem:[%s1 + $0x17c8] sm:$0xff]
  %v1325 = vld [vmem:[%s1 + $0x17d0] sm:$0xff]
  %v1326 = vld [vmem:[%s1 + $0x17d8] sm:$0xff]
  %v1327 = vld [vmem:[%s1 + $0x17e0] sm:$0xff]
  %v1328 = vld [vmem:[%s1 + $0x17e8] sm:$0xff]
  %v1329 = vld [vmem:[%s1 + $0x17f0] sm:$0xff]
  %v1330 = vld [vmem:[%s1 + $0x17f8] sm:$0xff]
  %v1331 = vld [vmem:[%s1 + $0x1800] sm:$0xff]
  %v1332 = vld [vmem:[%s1 + $0x1808] sm:$0xff]
  %v1333 = vld [vmem:[%s1 + $0x1810] sm:$0xff]
  %v1334 = vld [vmem:[%s1 + $0x1818] sm:$0xff]
  %v1335 = vld [vmem:[%s1 + $0x1820] sm:$0xff]
  %v1336 = vld [vmem:[%s1 + $0x1828] sm:$0xff]
  %v1337 = vld [vmem:[%s1 + $0x1830] sm:$0xff]
  %v1338 = vld [vmem:[%s1 + $0x1838] sm:$0xff]
  %v1339 = vld [vmem:[%s1 + $0x1840] sm:$0xff]
  %v1340 = vld [vmem:[%s1 + $0x1848] sm:$0xff]
  %v1341 = vld [vmem:[%s1 + $0x1850] sm:$0xff]
  %v1342 = vld [vmem:[%s1 + $0x1858] sm:$0xff]
  %v1343 = vld [vmem:[%s1 + $0x1860] sm:$0xff]
  %v1344 = vld [vmem:[%s1 + $0x1868] sm:$0xff]
  %v1345 = vld [vmem:[%s1 + $0x1870] sm:$0xff]
  %v1346 = vld [vmem:[%s1 + $0x1878] sm:$0xff]
  %v1347 = vld [vmem:[%s1 + $0x1880] sm:$0xff]
  %v1348 = vld [vmem:[%s1 + $0x1888] sm:$0xff]
  %v1349 = vld [vmem:[%s1 + $0x1890] sm:$0xff]
  %v1350 = vld [vmem:[%s1 + $0x1898] sm:$0xff]
  %v1351 = vld [vmem:[%s1 + $0x18a0] sm:$0xff]
  %v1352 = vld [vmem:[%s1 + $0x18a8] sm:$0xff]
  %v1353 = vld [vmem:[%s1 + $0x18b0] sm:$0xff]
  %v1354 = vld [vmem:[%s1 + $0x18b8] sm:$0xff]
  %v1355 = vld [vmem:[%s1 + $0x18c0] sm:$0xff]
  %v1356 = vld [vmem:[%s1 + $0x18c8] sm:$0xff]
  %v1357 = vld [vmem:[%s1 + $0x18d0] sm:$0xff]
  %v1358 = vld [vmem:[%s1 + $0x18d8] sm:$0xff]
  %v1359 = vld [vmem:[%s1 + $0x18e0] sm:$0xff]
  %v1360 = vld [vmem:[%s1 + $0x18e8] sm:$0xff]
  %v1361 = vld [vmem:[%s1 + $0x18f0] sm:$0xff]
  %v1362 = vld [vmem:[%s1 + $0x18f8] sm:$0xff]
  %v1363 = vld [vmem:[%s1 + $0x1900] sm:$0xff]
  %v1364 = vld [vmem:[%s1 + $0x1908] sm:$0xff]
  %v1365 = vld [vmem:[%s1 + $0x1910] sm:$0xff]
  %v1366 = vld [vmem:[%s1 + $0x1918] sm:$0xff]
  %v1367 = vld [vmem:[%s1 + $0x1920] sm:$0xff]
  %v1368 = vld [vmem:[%s1 + $0x1928] sm:$0xff]
  %v1369 = vld [vmem:[%s1 + $0x1930] sm:$0xff]
  %v1370 = vld [vmem:[%s1 + $0x1938] sm:$0xff]
  %v1371 = vld [vmem:[%s1 + $0x1940] sm:$0xff]
  %v1372 = vld [vmem:[%s1 + $0x1948] sm:$0xff]
  %v1373 = vld [vmem:[%s1 + $0x1950] sm:$0xff]
  %v1374 = vld [vmem:[%s1 + $0x1958] sm:$0xff]
  %v1375 = vld [vmem:[%s1 + $0x1960] sm:$0xff]
  %v1376 = vld [vmem:[%s1 + $0x1968] sm:$0xff]
  %v1377 = vld [vmem:[%s1 + $0x1970] sm:$0xff]
  %v1378 = vld [vmem:[%s1 + $0x1978] sm:$0xff]
  %v1379 = vld [vmem:[%s1 + $0x1980] sm:$0xff]
  %v1380 = vld [vmem:[%s1 + $0x1988] sm:$0xff]
  %v1381 = vld [vmem:[%s1 + $0x1990] sm:$0xff]
  %v1382 = vld [vmem:[%s1 + $0x1998] sm:$0xff]
  %v1383 = vld [vmem:[%s1 + $0x19a0] sm:$0xff]
  %v1384 = vld [vmem:[%s1 + $0x19a8] sm:$0xff]
  %v1385 = vld [vmem:[%s1 + $0x19b0] sm:$0xff]
  %v1386 = vld [vmem:[%s1 + $0x19b8] sm:$0xff]
  %v1387 = vld [vmem:[%s1 + $0x19c0] sm:$0xff]
  %v1388 = vld [vmem:[%s1 + $0x19c8] sm:$0xff]
  %v1389 = vld [vmem:[%s1 + $0x19d0] sm:$0xff]
  %v1390 = vld [vmem:[%s1 + $0x19d8] sm:$0xff]
  %v1391 = vld [vmem:[%s1 + $0x19e0] sm:$0xff]
  %v1392 = vld [vmem:[%s1 + $0x19e8] sm:$0xff]
  %v1393 = vld [vmem:[%s1 + $0x19f0] sm:$0xff]
  %v1394 = vld [vmem:[%s1 + $0x19f8] sm:$0xff]
  %v1395 = vld [vmem:[%s1 + $0x1a00] sm:$0xff]
  %v1396 = vld [vmem:[%s1 + $0x1a08] sm:$0xff]
  %v1397 = vld [vmem:[%s1 + $0x1a10] sm:$0xff]
  %v1398 = vld [vmem:[%s1 + $0x1a18] sm:$0xff]
  %v1399 = vld [vmem:[%s1 + $0x1a20] sm:$0xff]
  %v1400 = vld [vmem:[%s1 + $0x1a28] sm:$0xff]
  %v1401 = vld [vmem:[%s1 + $0x1a30] sm:$0xff]
  %v1402 = vld [vmem:[%s1 + $0x1a38] sm:$0xff]
  %v1403 = vld [vmem:[%s1 + $0x1a40] sm:$0xff]
  %v1404 = vld [vmem:[%s1 + $0x1a48] sm:$0xff]
  %v1405 = vld [vmem:[%s1 + $0x1a50] sm:$0xff]
  %v1406 = vld [vmem:[%s1 + $0x1a58] sm:$0xff]
  %v1407 = vld [vmem:[%s1 + $0x1a60] sm:$0xff]
  %v1408 = vld [vmem:[%s1 + $0x1a68] sm:$0xff]
  %v1409 = vld [vmem:[%s1 + $0x1a70] sm:$0xff]
  %v1410 = vld [vmem:[%s1 + $0x1a78] sm:$0xff]
  %v1411 = vld [vmem:[%s1 + $0x1a80] sm:$0xff]
  %v1412 = vld [vmem:[%s1 + $0x1a88] sm:$0xff]
  %v1413 = vld [vmem:[%s1 + $0x1a90] sm:$0xff]
  %v1414 = vld [vmem:[%s1 + $0x1a98] sm:$0xff]
  %v1415 = vld [vmem:[%s1 + $0x1aa0] sm:$0xff]
  %v1416 = vld [vmem:[%s1 + $0x1aa8] sm:$0xff]
  %v1417 = vld [vmem:[%s1 + $0x1ab0] sm:$0xff]
  %v1418 = vld [vmem:[%s1 + $0x1ab8] sm:$0xff]
  %v1419 = vld [vmem:[%s1 + $0x1ac0] sm:$0xff]
  %v1420 = vld [vmem:[%s1 + $0x1ac8] sm:$0xff]
  %v1421 = vld [vmem:[%s1 + $0x1ad0] sm:$0xff]
  %v1422 = vld [vmem:[%s1 + $0x1ad8] sm:$0xff]
  %v1423 = vld [vmem:[%s1 + $0x1ae0] sm:$0xff]
  %v1424 = vld [vmem:[%s1 + $0x1ae8] sm:$0xff]
  %v1425 = vld [vmem:[%s1 + $0x1af0] sm:$0xff]
  %v1426 = vld [vmem:[%s1 + $0x1af8] sm:$0xff]
  %v1427 = vld [vmem:[%s1 + $0x1b00] sm:$0xff]
  %v1428 = vld [vmem:[%s1 + $0x1b08] sm:$0xff]
  %v1429 = vld [vmem:[%s1 + $0x1b10] sm:$0xff]
  %v1430 = vld [vmem:[%s1 + $0x1b18] sm:$0xff]
  %v1431 = vld [vmem:[%s1 + $0x1b20] sm:$0xff]
  %v1432 = vld [vmem:[%s1 + $0x1b28] sm:$0xff]
  %v1433 = vld [vmem:[%s1 + $0x1b30] sm:$0xff]
  %v1434 = vld [vmem:[%s1 + $0x1b38] sm:$0xff]
  %v1435 = vld [vmem:[%s1 + $0x1b40] sm:$0xff]
  %v1436 = vld [vmem:[%s1 + $0x1b48] sm:$0xff]
  %v1437 = vld [vmem:[%s1 + $0x1b50] sm:$0xff]
  %v1438 = vld [vmem:[%s1 + $0x1b58] sm:$0xff]
  %v1439 = vld [vmem:[%s1 + $0x1b60] sm:$0xff]
  %v1440 = vld [vmem:[%s1 + $0x1b68] sm:$0xff]
  %v1441 = vld [vmem:[%s1 + $0x1b70] sm:$0xff]
  %v1442 = vld [vmem:[%s1 + $0x1b78] sm:$0xff]
  %v1443 = vld [vmem:[%s1 + $0x1b80] sm:$0xff]
  %v1444 = vld [vmem:[%s1 + $0x1b88] sm:$0xff]
  %v1445 = vld [vmem:[%s1 + $0x1b90] sm:$0xff]
  %v1446 = vld [vmem:[%s1 + $0x1b98] sm:$0xff]
  %v1447 = vld [vmem:[%s1 + $0x1ba0] sm:$0xff]
  %v1448 = vld [vmem:[%s1 + $0x1ba8] sm:$0xff]
  %v1449 = vld [vmem:[%s1 + $0x1bb0] sm:$0xff]
  %v1450 = vld [vmem:[%s1 + $0x1bb8] sm:$0xff]
  %v1451 = vld [vmem:[%s1 + $0x1bc0] sm:$0xff]
  %v1452 = vld [vmem:[%s1 + $0x1bc8] sm:$0xff]
  %v1453 = vld [vmem:[%s1 + $0x1bd0] sm:$0xff]
  %v1454 = vld [vmem:[%s1 + $0x1bd8] sm:$0xff]
  %v1455 = vld [vmem:[%s1 + $0x1be0] sm:$0xff]
  %v1456 = vld [vmem:[%s1 + $0x1be8] sm:$0xff]
  %v1457 = vld [vmem:[%s1 + $0x1bf0] sm:$0xff]
  %v1458 = vld [vmem:[%s1 + $0x1bf8] sm:$0xff]
  %v1459 = vld [vmem:[%s1 + $0x1c00] sm:$0xff]
  %v1460 = vld [vmem:[%s1 + $0x1c08] sm:$0xff]
  %v1461 = vld [vmem:[%s1 + $0x1c10] sm:$0xff]
  %v1462 = vld [vmem:[%s1 + $0x1c18] sm:$0xff]
  %v1463 = vld [vmem:[%s1 + $0x1c20] sm:$0xff]
  %v1464 = vld [vmem:[%s1 + $0x1c28] sm:$0xff]
  %v1465 = vld [vmem:[%s1 + $0x1c30] sm:$0xff]
  %v1466 = vld [vmem:[%s1 + $0x1c38] sm:$0xff]
  %v1467 = vld [vmem:[%s1 + $0x1c40] sm:$0xff]
  %v1468 = vld [vmem:[%s1 + $0x1c48] sm:$0xff]
  %v1469 = vld [vmem:[%s1 + $0x1c50] sm:$0xff]
  %v1470 = vld [vmem:[%s1 + $0x1c58] sm:$0xff]
  %v1471 = vld [vmem:[%s1 + $0x1c60] sm:$0xff]
  %v1472 = vld [vmem:[%s1 + $0x1c68] sm:$0xff]
  %v1473 = vld [vmem:[%s1 + $0x1c70] sm:$0xff]
  %v1474 = vld [vmem:[%s1 + $0x1c78] sm:$0xff]
  %v1475 = vld [vmem:[%s1 + $0x1c80] sm:$0xff]
  %v1476 = vld [vmem:[%s1 + $0x1c88] sm:$0xff]
  %v1477 = vld [vmem:[%s1 + $0x1c90] sm:$0xff]
  %v1478 = vld [vmem:[%s1 + $0x1c98] sm:$0xff]
  %v1479 = vld [vmem:[%s1 + $0x1ca0] sm:$0xff]
  %v1480 = vld [vmem:[%s1 + $0x1ca8] sm:$0xff]
  %v1481 = vld [vmem:[%s1 + $0x1cb0] sm:$0xff]
  %v1482 = vld [vmem:[%s1 + $0x1cb8] sm:$0xff]
  %v1483 = vld [vmem:[%s1 + $0x1cc0] sm:$0xff]
  %v1484 = vld [vmem:[%s1 + $0x1cc8] sm:$0xff]
  %v1485 = vld [vmem:[%s1 + $0x1cd0] sm:$0xff]
  %v1486 = vld [vmem:[%s1 + $0x1cd8] sm:$0xff]
  %v1487 = vld [vmem:[%s1 + $0x1ce0] sm:$0xff]
  %v1488 = vld [vmem:[%s1 + $0x1ce8] sm:$0xff]
  %v1489 = vld [vmem:[%s1 + $0x1cf0] sm:$0xff]
  %v1490 = vld [vmem:[%s1 + $0x1cf8] sm:$0xff]
  %v1491 = vld [vmem:[%s1 + $0x1d00] sm:$0xff]
  %v1492 = vld [vmem:[%s1 + $0x1d08] sm:$0xff]
  %v1493 = vld [vmem:[%s1 + $0x1d10] sm:$0xff]
  %v1494 = vld [vmem:[%s1 + $0x1d18] sm:$0xff]
  %v1495 = vld [vmem:[%s1 + $0x1d20] sm:$0xff]
  %v1496 = vld [vmem:[%s1 + $0x1d28] sm:$0xff]
  %v1497 = vld [vmem:[%s1 + $0x1d30] sm:$0xff]
  %v1498 = vld [vmem:[%s1 + $0x1d38] sm:$0xff]
  %v1499 = vld [vmem:[%s1 + $0x1d40] sm:$0xff]
  %v1500 = vld [vmem:[%s1 + $0x1d48] sm:$0xff]
  %v1501 = vld [vmem:[%s1 + $0x1d50] sm:$0xff]
  %v1502 = vld [vmem:[%s1 + $0x1d58] sm:$0xff]
  %v1503 = vld [vmem:[%s1 + $0x1d60] sm:$0xff]
  %v1504 = vld [vmem:[%s1 + $0x1d68] sm:$0xff]
  %v1505 = vld [vmem:[%s1 + $0x1d70] sm:$0xff]
  %v1506 = vld [vmem:[%s1 + $0x1d78] sm:$0xff]
  %v1507 = vld [vmem:[%s1 + $0x1d80] sm:$0xff]
  %v1508 = vld [vmem:[%s1 + $0x1d88] sm:$0xff]
  %v1509 = vld [vmem:[%s1 + $0x1d90] sm:$0xff]
  %v1510 = vld [vmem:[%s1 + $0x1d98] sm:$0xff]
  %v1511 = vld [vmem:[%s1 + $0x1da0] sm:$0xff]
  %v1512 = vld [vmem:[%s1 + $0x1da8] sm:$0xff]
  %v1513 = vld [vmem:[%s1 + $0x1db0] sm:$0xff]
  %v1514 = vld [vmem:[%s1 + $0x1db8] sm:$0xff]
  %v1515 = vld [vmem:[%s1 + $0x1dc0] sm:$0xff]
  %v1516 = vld [vmem:[%s1 + $0x1dc8] sm:$0xff]
  %v1517 = vld [vmem:[%s1 + $0x1dd0] sm:$0xff]
  %v1518 = vld [vmem:[%s1 + $0x1dd8] sm:$0xff]
  %v1519 = vld [vmem:[%s1 + $0x1de0] sm:$0xff]
  %v1520 = vld [vmem:[%s1 + $0x1de8] sm:$0xff]
  %v1521 = vld [vmem:[%s1 + $0x1df0] sm:$0xff]
  %v1522 = vld [vmem:[%s1 + $0x1df8] sm:$0xff]
  %v1523 = vld [vmem:[%s1 + $0x1e00] sm:$0xff]
  %v1524 = vld [vmem:[%s1 + $0x1e08] sm:$0xff]
  %v1525 = vld [vmem:[%s1 + $0x1e10] sm:$0xff]
  %v1526 = vld [vmem:[%s1 + $0x1e18] sm:$0xff]
  %v1527 = vld [vmem:[%s1 + $0x1e20] sm:$0xff]
  %v1528 = vld [vmem:[%s1 + $0x1e28] sm:$0xff]
  %v1529 = vld [vmem:[%s1 + $0x1e30] sm:$0xff]
  %v1530 = vld [vmem:[%s1 + $0x1e38] sm:$0xff]
  %v1531 = vld [vmem:[%s1 + $0x1e40] sm:$0xff]
  %v1532 = vld [vmem:[%s1 + $0x1e48] sm:$0xff]
  %v1533 = vld [vmem:[%s1 + $0x1e50] sm:$0xff]
  %v1534 = vld [vmem:[%s1 + $0x1e58] sm:$0xff]
  %v1535 = vld [vmem:[%s1 + $0x1e60] sm:$0xff]
  %v1536 = vld [vmem:[%s1 + $0x1e68] sm:$0xff]
  %v1537 = vld [vmem:[%s1 + $0x1e70] sm:$0xff]
  %v1538 = vld [vmem:[%s1 + $0x1e78] sm:$0xff]
  %v1539 = vld [vmem:[%s2] sm:$0x1]
  %v1541 = vlaneseq
  %v1542 = vshrl.u32 %v1541, 7
  %v1543 = vsub.s32 0, %v1542
  %v1544 = vrot.slane %v1539, %v1543
  %1546 = vmatprep.subr.mxu0 0.0
  %1547 = vmatpush1.msra.mxu0 %v563
  %1548 = vmatprep.subr.mxu0 0.0
  %1549 = vmatpush1.msra.mxu0 %v564
  %1550 = vmatprep.subr.mxu0 0.0
  %1551 = vmatpush1.msra.mxu0 %v565
  %1552 = vmatprep.subr.mxu0 0.0
  %1553 = vmatpush1.msra.mxu0 %v566
  %1554 = vmatprep.subr.mxu0 0.0
  %1555 = vmatpush1.msra.mxu0 %v567
  %1556 = vmatprep.subr.mxu0 0.0
  %1557 = vmatpush1.msra.mxu0 %v568
  %1558 = vmatprep.subr.mxu0 0.0
  %1559 = vmatpush1.msra.mxu0 %v569
  %1560 = vmatprep.subr.mxu0 0.0
  %1561 = vmatpush1.msra.mxu0 %v570
  %1562 = vmatprep.subr.mxu0 0.0
  %1563 = vmatpush1.msra.mxu0 %v571
  %1564 = vmatprep.subr.mxu0 0.0
  %1565 = vmatpush1.msra.mxu0 %v572
  %1566 = vmatprep.subr.mxu0 0.0
  %1567 = vmatpush1.msra.mxu0 %v573
  %1568 = vmatprep.subr.mxu0 0.0
  %1569 = vmatpush1.msra.mxu0 %v574
  %1570 = vmatprep.subr.mxu0 0.0
  %1571 = vmatpush1.msra.mxu0 %v575
  %1572 = vmatprep.subr.mxu0 0.0
  %1573 = vmatpush1.msra.mxu0 %v576
  %1574 = vmatprep.subr.mxu0 0.0
  %1575 = vmatpush1.msra.mxu0 %v577
  %1576 = vmatprep.subr.mxu0 0.0
  %1577 = vmatpush1.msra.mxu0 %v578
  %1578 = vmatprep.subr.mxu0 0.0
  %1579 = vmatpush1.msra.mxu0 %v579
  %1580 = vmatprep.subr.mxu0 0.0
  %1581 = vmatpush1.msra.mxu0 %v580
  %1582 = vmatprep.subr.mxu0 0.0
  %1583 = vmatpush1.msra.mxu0 %v581
  %1584 = vmatprep.subr.mxu0 0.0
  %1585 = vmatpush1.msra.mxu0 %v582
  %1586 = vmatprep.subr.mxu0 0.0
  %1587 = vmatpush1.msra.mxu0 %v583
  %1588 = vmatprep.subr.mxu0 0.0
  %1589 = vmatpush1.msra.mxu0 %v584
  %1590 = vmatprep.subr.mxu0 0.0
  %1591 = vmatpush1.msra.mxu0 %v585
  %1592 = vmatprep.subr.mxu0 0.0
  %1593 = vmatpush1.msra.mxu0 %v586
  %1594 = vmatprep.subr.mxu0 0.0
  %1595 = vmatpush1.msra.mxu0 %v587
  %1596 = vmatprep.subr.mxu0 0.0
  %1597 = vmatpush1.msra.mxu0 %v588
  %1598 = vmatprep.subr.mxu0 0.0
  %1599 = vmatpush1.msra.mxu0 %v589
  %1600 = vmatprep.subr.mxu0 0.0
  %1601 = vmatpush1.msra.mxu0 %v590
  %1602 = vmatprep.subr.mxu0 0.0
  %1603 = vmatpush1.msra.mxu0 %v591
  %1604 = vmatprep.subr.mxu0 0.0
  %1605 = vmatpush1.msra.mxu0 %v592
  %1606 = vmatprep.subr.mxu0 0.0
  %1607 = vmatpush1.msra.mxu0 %v593
  %1608 = vmatprep.subr.mxu0 0.0
  %1609 = vmatpush1.msra.mxu0 %v594
  %1610 = vmatprep.mubr.f32.mxu0 %v15
  %1611 = vmatmul.mubr.f32.gmra.mrb[0].mxu0 %v14
  %v1612 = vpop.f32.mrb[0].mxu0
  %v1613 = vadd.f32 %v1544, %v1612
  %v1614 = vpop.f32.mrb[0].mxu0
  %1615 = vmatprep.mubr.f32.mxu0 %v76
  %1616 = vmatmul.mubr.f32.gmra.mrb[0].mxu0 %v75
  %v1617 = vpop.f32.mrb[0].mxu0
  %v1618 = vadd.f32 %v1544, %v1617
  %v1619 = vpop.f32.mrb[0].mxu0
  %1620 = vmatprep.mubr.f32.mxu0 %v137
  %1621 = vmatmul.mubr.f32.gmra.mrb[0].mxu0 %v136
  %v1622 = vpop.f32.mrb[0].mxu0
  %v1623 = vadd.f32 %v1544, %v1622
  %v1624 = vpop.f32.mrb[0].mxu0
  %1625 = vmatprep.mubr.f32.mxu0 %v198
  %1626 = vmatmul.mubr.f32.gmra.mrb[0].mxu0 %v197
  %v1627 = vpop.f32.mrb[0].mxu0
  %v1628 = vadd.f32 %v1544, %v1627
  %v1629 = vpop.f32.mrb[0].mxu0
  %1630 = vmatprep.mubr.f32.mxu0 %v259
  %1631 = vmatmul.mubr.f32.gmra.mrb[0].mxu0 %v258
  %v1632 = vpop.f32.mrb[0].mxu0
  %v1633 = vadd.f32 %v1544, %v1632
  %v1634 = vpop.f32.mrb[0].mxu0
  %1635 = vmatprep.mubr.f32.mxu0 %v320
  %1636 = vmatmul.mubr.f32.gmra.mrb[0].mxu0 %v319
  %v1637 = vpop.f32.mrb[0].mxu0
  %v1638 = vadd.f32 %v1544, %v1637
  %v1639 = vpop.f32.mrb[0].mxu0
  %1640 = vmatprep.mubr.f32.mxu0 %v381
  %1641 = vmatmul.mubr.f32.gmra.mrb[0].mxu0 %v380
  %v1642 = vpop.f32.mrb[0].mxu0
  %v1643 = vadd.f32 %v1544, %v1642
  %v1644 = vpop.f32.mrb[0].mxu0
  %1645 = vmatprep.mubr.f32.mxu0 %v442
  %1646 = vmatmul.mubr.f32.gmra.mrb[0].mxu0 %v441
  %v1647 = vpop.f32.mrb[0].mxu0
  %v1648 = vadd.f32 %v1544, %v1647
  %v1649 = vpop.f32.mrb[0].mxu0
  %1650 = vmatprep.mubr.f32.mxu0 %v503
  %1651 = vmatmul.mubr.f32.gmra.mrb[0].mxu0 %v502
  %v1652 = vpop.f32.mrb[0].mxu0
  %v1653 = vadd.f32 %v1544, %v1652
  %v1654 = vpop.f32.mrb[0].mxu0
  %1655 = vdwg.mxu0
  %1656 = vmatprep.subr.mxu0 0.0
  %1657 = vmatpush1.msra.mxu0 %v595
  %1658 = vmatprep.subr.mxu0 0.0
  %1659 = vmatpush1.msra.mxu0 %v596
  %1660 = vmatprep.subr.mxu0 0.0
  %1661 = vmatpush1.msra.mxu0 %v597
  %1662 = vmatprep.subr.mxu0 0.0
  %1663 = vmatpush1.msra.mxu0 %v598
  %1664 = vmatprep.subr.mxu0 0.0
  %1665 = vmatpush1.msra.mxu0 %v599
  %1666 = vmatprep.subr.mxu0 0.0
  %1667 = vmatpush1.msra.mxu0 %v600
  %1668 = vmatprep.subr.mxu0 0.0
  %1669 = vmatpush1.msra.mxu0 %v601
  %1670 = vmatprep.subr.mxu0 0.0
  %1671 = vmatpush1.msra.mxu0 %v602
  %1672 = vmatprep.subr.mxu0 0.0
  %1673 = vmatpush1.msra.mxu0 %v603
  %1674 = vmatprep.subr.mxu0 0.0
  %1675 = vmatpush1.msra.mxu0 %v604
  %1676 = vmatprep.subr.mxu0 0.0
  %1677 = vmatpush1.msra.mxu0 %v605
  %1678 = vmatprep.subr.mxu0 0.0
  %1679 = vmatpush1.msra.mxu0 %v606
  %1680 = vmatprep.subr.mxu0 0.0
  %1681 = vmatpush1.msra.mxu0 %v607
  %1682 = vmatprep.subr.mxu0 0.0
  %1683 = vmatpush1.msra.mxu0 %v608
  %1684 = vmatprep.subr.mxu0 0.0
  %1685 = vmatpush1.msra.mxu0 %v609
  %1686 = vmatprep.subr.mxu0 0.0
  %1687 = vmatpush1.msra.mxu0 %v610
  %1688 = vmatprep.subr.mxu0 0.0
  %1689 = vmatpush1.msra.mxu0 %v611
  %1690 = vmatprep.subr.mxu0 0.0
  %1691 = vmatpush1.msra.mxu0 %v612
  %1692 = vmatprep.subr.mxu0 0.0
  %1693 = vmatpush1.msra.mxu0 %v613
  %1694 = vmatprep.subr.mxu0 0.0
  %1695 = vmatpush1.msra.mxu0 %v614
  %1696 = vmatprep.subr.mxu0 0.0
  %1697 = vmatpush1.msra.mxu0 %v615
  %1698 = vmatprep.subr.mxu0 0.0
  %1699 = vmatpush1.msra.mxu0 %v616
  %1700 = vmatprep.subr.mxu0 0.0
  %1701 = vmatpush1.msra.mxu0 %v617
  %1702 = vmatprep.subr.mxu0 0.0
  %1703 = vmatpush1.msra.mxu0 %v618
  %1704 = vmatprep.subr.mxu0 0.0
  %1705 = vmatpush1.msra.mxu0 %v619
  %1706 = vmatprep.subr.mxu0 0.0
  %1707 = vmatpush1.msra.mxu0 %v620
  %1708 = vmatprep.subr.mxu0 0.0
  %1709 = vmatpush1.msra.mxu0 %v621
  %1710 = vmatprep.subr.mxu0 0.0
  %1711 = vmatpush1.msra.mxu0 %v622
  %1712 = vmatprep.subr.mxu0 0.0
  %1713 = vmatpush1.msra.mxu0 %v623
  %1714 = vmatprep.subr.mxu0 0.0
  %1715 = vmatpush1.msra.mxu0 %v624
  %1716 = vmatprep.subr.mxu0 0.0
  %1717 = vmatpush1.msra.mxu0 %v625
  %1718 = vmatprep.subr.mxu0 0.0
  %1719 = vmatpush1.msra.mxu0 %v626
  %1720 = vmatprep.mubr.f32.mxu0 %v17
  %1721 = vmatmul.mubr.f32.gmra.mrb[0].mxu0 %v16
  %v1722 = vpop.f32.mrb[0].mxu0
  %v1723 = vadd.f32 %v1613, %v1722
  %v1724 = vpop.f32.mrb[0].mxu0
  %1725 = vmatprep.mubr.f32.mxu0 %v78
  %1726 = vmatmul.mubr.f32.gmra.mrb[0].mxu0 %v77
  %v1727 = vpop.f32.mrb[0].mxu0
  %v1728 = vadd.f32 %v1618, %v1727
  %v1729 = vpop.f32.mrb[0].mxu0
  %1730 = vmatprep.mubr.f32.mxu0 %v139
  %1731 = vmatmul.mubr.f32.gmra.mrb[0].mxu0 %v138
  %v1732 = vpop.f32.mrb[0].mxu0
  %v1733 = vadd.f32 %v1623, %v1732
  %v1734 = vpop.f32.mrb[0].mxu0
  %1735 = vmatprep.mubr.f32.mxu0 %v200
  %1736 = vmatmul.mubr.f32.gmra.mrb[0].mxu0 %v199
  %v1737 = vpop.f32.mrb[0].mxu0
  %v1738 = vadd.f32 %v1628, %v1737
  %v1739 = vpop.f32.mrb[0].mxu0
  %1740 = vmatprep.mubr.f32.mxu0 %v261
  %1741 = vmatmul.mubr.f32.gmra.mrb[0].mxu0 %v260
  %v1742 = vpop.f32.mrb[0].mxu0
  %v1743 = vadd.f32 %v1633, %v1742
  %v1744 = vpop.f32.mrb[0].mxu0
  %1745 = vmatprep.mubr.f32.mxu0 %v322
  %1746 = vmatmul.mubr.f32.gmra.mrb[0].mxu0 %v321
  %v1747 = vpop.f32.mrb[0].mxu0
  %v1748 = vadd.f32 %v1638, %v1747
  %v1749 = vpop.f32.mrb[0].mxu0
  %1750 = vmatprep.mubr.f32.mxu0 %v383
  %1751 = vmatmul.mubr.f32.gmra.mrb[0].mxu0 %v382
  %v1752 = vpop.f32.mrb[0].mxu0
  %v1753 = vadd.f32 %v1643, %v1752
  %v1754 = vpop.f32.mrb[0].mxu0
  %1755 = vmatprep.mubr.f32.mxu0 %v444
  %1756 = vmatmul.mubr.f32.gmra.mrb[0].mxu0 %v443
  %v1757 = vpop.f32.mrb[0].mxu0
  %v1758 = vadd.f32 %v1648, %v1757
  %v1759 = vpop.f32.mrb[0].mxu0
  %1760 = vmatprep.mubr.f32.mxu0 %v505
  %1761 = vmatmul.mubr.f32.gmra.mrb[0].mxu0 %v504
  %v1762 = vpop.f32.mrb[0].mxu0
  %v1763 = vadd.f32 %v1653, %v1762
  %v1764 = vpop.f32.mrb[0].mxu0
  %1765 = vdwg.mxu0
  %1766 = vmatprep.subr.mxu0 0.0
  %1767 = vmatpush1.msra.mxu0 %v627
  %1768 = vmatprep.subr.mxu0 0.0
  %1769 = vmatpush1.msra.mxu0 %v628
  %1770 = vmatprep.subr.mxu0 0.0
  %1771 = vmatpush1.msra.mxu0 %v629
  %1772 = vmatprep.subr.mxu0 0.0
  %1773 = vmatpush1.msra.mxu0 %v630
  %1774 = vmatprep.subr.mxu0 0.0
  %1775 = vmatpush1.msra.mxu0 %v631
  %1776 = vmatprep.subr.mxu0 0.0
  %1777 = vmatpush1.msra.mxu0 %v632
  %1778 = vmatprep.subr.mxu0 0.0
  %1779 = vmatpush1.msra.mxu0 %v633
  %1780 = vmatprep.subr.mxu0 0.0
  %1781 = vmatpush1.msra.mxu0 %v634
  %1782 = vmatprep.subr.mxu0 0.0
  %1783 = vmatpush1.msra.mxu0 %v635
  %1784 = vmatprep.subr.mxu0 0.0
  %1785 = vmatpush1.msra.mxu0 %v636
  %1786 = vmatprep.subr.mxu0 0.0
  %1787 = vmatpush1.msra.mxu0 %v637
  %1788 = vmatprep.subr.mxu0 0.0
  %1789 = vmatpush1.msra.mxu0 %v638
  %1790 = vmatprep.subr.mxu0 0.0
  %1791 = vmatpush1.msra.mxu0 %v639
  %1792 = vmatprep.subr.mxu0 0.0
  %1793 = vmatpush1.msra.mxu0 %v640
  %1794 = vmatprep.subr.mxu0 0.0
  %1795 = vmatpush1.msra.mxu0 %v641
  %1796 = vmatprep.subr.mxu0 0.0
  %1797 = vmatpush1.msra.mxu0 %v642
  %1798 = vmatprep.subr.mxu0 0.0
  %1799 = vmatpush1.msra.mxu0 %v643
  %1800 = vmatprep.subr.mxu0 0.0
  %1801 = vmatpush1.msra.mxu0 %v644
  %1802 = vmatprep.subr.mxu0 0.0
  %1803 = vmatpush1.msra.mxu0 %v645
  %1804 = vmatprep.subr.mxu0 0.0
  %1805 = vmatpush1.msra.mxu0 %v646
  %1806 = vmatprep.subr.mxu0 0.0
  %1807 = vmatpush1.msra.mxu0 %v647
  %1808 = vmatprep.subr.mxu0 0.0
  %1809 = vmatpush1.msra.mxu0 %v648
  %1810 = vmatprep.subr.mxu0 0.0
  %1811 = vmatpush1.msra.mxu0 %v649
  %1812 = vmatprep.subr.mxu0 0.0
  %1813 = vmatpush1.msra.mxu0 %v650
  %1814 = vmatprep.subr.mxu0 0.0
  %1815 = vmatpush1.msra.mxu0 %v651
  %1816 = vmatprep.subr.mxu0 0.0
  %1817 = vmatpush1.msra.mxu0 %v652
  %1818 = vmatprep.subr.mxu0 0.0
  %1819 = vmatpush1.msra.mxu0 %v653
  %1820 = vmatprep.subr.mxu0 0.0
  %1821 = vmatpush1.msra.mxu0 %v654
  %1822 = vmatprep.subr.mxu0 0.0
  %1823 = vmatpush1.msra.mxu0 %v655
  %1824 = vmatprep.subr.mxu0 0.0
  %1825 = vmatpush1.msra.mxu0 %v656
  %1826 = vmatprep.subr.mxu0 0.0
  %1827 = vmatpush1.msra.mxu0 %v657
  %1828 = vmatprep.subr.mxu0 0.0
  %1829 = vmatpush1.msra.mxu0 %v658
  %1830 = vmatprep.mubr.f32.mxu0 %v19
  %1831 = vmatmul.mubr.f32.gmra.mrb[0].mxu0 %v18
  %v1832 = vpop.f32.mrb[0].mxu0
  %v1833 = vadd.f32 %v1723, %v1832
  %v1834 = vpop.f32.mrb[0].mxu0
  %1835 = vmatprep.mubr.f32.mxu0 %v80
  %1836 = vmatmul.mubr.f32.gmra.mrb[0].mxu0 %v79
  %v1837 = vpop.f32.mrb[0].mxu0
  %v1838 = vadd.f32 %v1728, %v1837
  %v1839 = vpop.f32.mrb[0].mxu0
  %1840 = vmatprep.mubr.f32.mxu0 %v141
  %1841 = vmatmul.mubr.f32.gmra.mrb[0].mxu0 %v140
  %v1842 = vpop.f32.mrb[0].mxu0
  %v1843 = vadd.f32 %v1733, %v1842
  %v1844 = vpop.f32.mrb[0].mxu0
  %1845 = vmatprep.mubr.f32.mxu0 %v202
  %1846 = vmatmul.mubr.f32.gmra.mrb[0].mxu0 %v201
  %v1847 = vpop.f32.mrb[0].mxu0
  %v1848 = vadd.f32 %v1738, %v1847
  %v1849 = vpop.f32.mrb[0].mxu0
  %1850 = vmatprep.mubr.f32.mxu0 %v263
  %1851 = vmatmul.mubr.f32.gmra.mrb[0].mxu0 %v262
  %v1852 = vpop.f32.mrb[0].mxu0
  %v1853 = vadd.f32 %v1743, %v1852
  %v1854 = vpop.f32.mrb[0].mxu0
  %1855 = vmatprep.mubr.f32.mxu0 %v324
  %1856 = vmatmul.mubr.f32.gmra.mrb[0].mxu0 %v323
  %v1857 = vpop.f32.mrb[0].mxu0
  %v1858 = vadd.f32 %v1748, %v1857
  %v1859 = vpop.f32.mrb[0].mxu0
  %1860 = vmatprep.mubr.f32.mxu0 %v385
  %1861 = vmatmul.mubr.f32.gmra.mrb[0].mxu0 %v384
  %v1862 = vpop.f32.mrb[0].mxu0
  %v1863 = vadd.f32 %v1753, %v1862
  %v1864 = vpop.f32.mrb[0].mxu0
  %1865 = vmatprep.mubr.f32.mxu0 %v446
  %1866 = vmatmul.mubr.f32.gmra.mrb[0].mxu0 %v445
  %v1867 = vpop.f32.mrb[0].mxu0
  %v1868 = vadd.f32 %v1758, %v1867
  %v1869 = vpop.f32.mrb[0].mxu0
  %1870 = vmatprep.mubr.f32.mxu0 %v507
  %1871 = vmatmul.mubr.f32.gmra.mrb[0].mxu0 %v506
  %v1872 = vpop.f32.mrb[0].mxu0
  %v1873 = vadd.f32 %v1763, %v1872
  %v1874 = vpop.f32.mrb[0].mxu0
  %1875 = vdwg.mxu0
  %1876 = vmatprep.subr.mxu0 0.0
  %1877 = vmatpush1.msra.mxu0 %v659
  %1878 = vmatprep.subr.mxu0 0.0
  %1879 = vmatpush1.msra.mxu0 %v660
  %1880 = vmatprep.subr.mxu0 0.0
  %1881 = vmatpush1.msra.mxu0 %v661
  %1882 = vmatprep.subr.mxu0 0.0
  %1883 = vmatpush1.msra.mxu0 %v662
  %1884 = vmatprep.subr.mxu0 0.0
  %1885 = vmatpush1.msra.mxu0 %v663
  %1886 = vmatprep.subr.mxu0 0.0
  %1887 = vmatpush1.msra.mxu0 %v664
  %1888 = vmatprep.subr.mxu0 0.0
  %1889 = vmatpush1.msra.mxu0 %v665
  %1890 = vmatprep.subr.mxu0 0.0
  %1891 = vmatpush1.msra.mxu0 %v666
  %1892 = vmatprep.subr.mxu0 0.0
  %1893 = vmatpush1.msra.mxu0 %v667
  %1894 = vmatprep.subr.mxu0 0.0
  %1895 = vmatpush1.msra.mxu0 %v668
  %1896 = vmatprep.subr.mxu0 0.0
  %1897 = vmatpush1.msra.mxu0 %v669
  %1898 = vmatprep.subr.mxu0 0.0
  %1899 = vmatpush1.msra.mxu0 %v670
  %1900 = vmatprep.subr.mxu0 0.0
  %1901 = vmatpush1.msra.mxu0 %v671
  %1902 = vmatprep.subr.mxu0 0.0
  %1903 = vmatpush1.msra.mxu0 %v672
  %1904 = vmatprep.subr.mxu0 0.0
  %1905 = vmatpush1.msra.mxu0 %v673
  %1906 = vmatprep.subr.mxu0 0.0
  %1907 = vmatpush1.msra.mxu0 %v674
  %1908 = vmatprep.subr.mxu0 0.0
  %1909 = vmatpush1.msra.mxu0 %v675
  %1910 = vmatprep.subr.mxu0 0.0
  %1911 = vmatpush1.msra.mxu0 %v676
  %1912 = vmatprep.subr.mxu0 0.0
  %1913 = vmatpush1.msra.mxu0 %v677
  %1914 = vmatprep.subr.mxu0 0.0
  %1915 = vmatpush1.msra.mxu0 %v678
  %1916 = vmatprep.subr.mxu0 0.0
  %1917 = vmatpush1.msra.mxu0 %v679
  %1918 = vmatprep.subr.mxu0 0.0
  %1919 = vmatpush1.msra.mxu0 %v680
  %1920 = vmatprep.subr.mxu0 0.0
  %1921 = vmatpush1.msra.mxu0 %v681
  %1922 = vmatprep.subr.mxu0 0.0
  %1923 = vmatpush1.msra.mxu0 %v682
  %1924 = vmatprep.subr.mxu0 0.0
  %1925 = vmatpush1.msra.mxu0 %v683
  %1926 = vmatprep.subr.mxu0 0.0
  %1927 = vmatpush1.msra.mxu0 %v684
  %1928 = vmatprep.subr.mxu0 0.0
  %1929 = vmatpush1.msra.mxu0 %v685
  %1930 = vmatprep.subr.mxu0 0.0
  %1931 = vmatpush1.msra.mxu0 %v686
  %1932 = vmatprep.subr.mxu0 0.0
  %1933 = vmatpush1.msra.mxu0 %v687
  %1934 = vmatprep.subr.mxu0 0.0
  %1935 = vmatpush1.msra.mxu0 %v688
  %1936 = vmatprep.subr.mxu0 0.0
  %1937 = vmatpush1.msra.mxu0 %v689
  %1938 = vmatprep.subr.mxu0 0.0
  %1939 = vmatpush1.msra.mxu0 %v690
  %1940 = vmatprep.mubr.f32.mxu0 %v21
  %1941 = vmatmul.mubr.f32.gmra.mrb[0].mxu0 %v20
  %v1942 = vpop.f32.mrb[0].mxu0
  %v1943 = vadd.f32 %v1833, %v1942
  %v1944 = vpop.f32.mrb[0].mxu0
  %1945 = vmatprep.mubr.f32.mxu0 %v82
  %1946 = vmatmul.mubr.f32.gmra.mrb[0].mxu0 %v81
  %v1947 = vpop.f32.mrb[0].mxu0
  %v1948 = vadd.f32 %v1838, %v1947
  %v1949 = vpop.f32.mrb[0].mxu0
  %1950 = vmatprep.mubr.f32.mxu0 %v143
  %1951 = vmatmul.mubr.f32.gmra.mrb[0].mxu0 %v142
  %v1952 = vpop.f32.mrb[0].mxu0
  %v1953 = vadd.f32 %v1843, %v1952
  %v1954 = vpop.f32.mrb[0].mxu0
  %1955 = vmatprep.mubr.f32.mxu0 %v204
  %1956 = vmatmul.mubr.f32.gmra.mrb[0].mxu0 %v203
  %v1957 = vpop.f32.mrb[0].mxu0
  %v1958 = vadd.f32 %v1848, %v1957
  %v1959 = vpop.f32.mrb[0].mxu0
  %1960 = vmatprep.mubr.f32.mxu0 %v265
  %1961 = vmatmul.mubr.f32.gmra.mrb[0].mxu0 %v264
  %v1962 = vpop.f32.mrb[0].mxu0
  %v1963 = vadd.f32 %v1853, %v1962
  %v1964 = vpop.f32.mrb[0].mxu0
  %1965 = vmatprep.mubr.f32.mxu0 %v326
  %1966 = vmatmul.mubr.f32.gmra.mrb[0].mxu0 %v325
  %v1967 = vpop.f32.mrb[0].mxu0
  %v1968 = vadd.f32 %v1858, %v1967
  %v1969 = vpop.f32.mrb[0].mxu0
  %1970 = vmatprep.mubr.f32.mxu0 %v387
  %1971 = vmatmul.mubr.f32.gmra.mrb[0].mxu0 %v386
  %v1972 = vpop.f32.mrb[0].mxu0
  %v1973 = vadd.f32 %v1863, %v1972
  %v1974 = vpop.f32.mrb[0].mxu0
  %1975 = vmatprep.mubr.f32.mxu0 %v448
  %1976 = vmatmul.mubr.f32.gmra.mrb[0].mxu0 %v447
  %v1977 = vpop.f32.mrb[0].mxu0
  %v1978 = vadd.f32 %v1868, %v1977
  %v1979 = vpop.f32.mrb[0].mxu0
  %1980 = vmatprep.mubr.f32.mxu0 %v509
  %1981 = vmatmul.mubr.f32.gmra.mrb[0].mxu0 %v508
  %v1982 = vpop.f32.mrb[0].mxu0
  %v1983 = vadd.f32 %v1873, %v1982
  %v1984 = vpop.f32.mrb[0].mxu0
  %1985 = vdwg.mxu0
  %1986 = vmatprep.subr.mxu0 0.0
  %1987 = vmatpush1.msra.mxu0 %v691
  %1988 = vmatprep.subr.mxu0 0.0
  %1989 = vmatpush1.msra.mxu0 %v692
  %1990 = vmatprep.subr.mxu0 0.0
  %1991 = vmatpush1.msra.mxu0 %v693
  %1992 = vmatprep.subr.mxu0 0.0
  %1993 = vmatpush1.msra.mxu0 %v694
  %1994 = vmatprep.subr.mxu0 0.0
  %1995 = vmatpush1.msra.mxu0 %v695
  %1996 = vmatprep.subr.mxu0 0.0
  %1997 = vmatpush1.msra.mxu0 %v696
  %1998 = vmatprep.subr.mxu0 0.0
  %1999 = vmatpush1.msra.mxu0 %v697
  %2000 = vmatprep.subr.mxu0 0.0
  %2001 = vmatpush1.msra.mxu0 %v698
  %2002 = vmatprep.subr.mxu0 0.0
  %2003 = vmatpush1.msra.mxu0 %v699
  %2004 = vmatprep.subr.mxu0 0.0
  %2005 = vmatpush1.msra.mxu0 %v700
  %2006 = vmatprep.subr.mxu0 0.0
  %2007 = vmatpush1.msra.mxu0 %v701
  %2008 = vmatprep.subr.mxu0 0.0
  %2009 = vmatpush1.msra.mxu0 %v702
  %2010 = vmatprep.subr.mxu0 0.0
  %2011 = vmatpush1.msra.mxu0 %v703
  %2012 = vmatprep.subr.mxu0 0.0
  %2013 = vmatpush1.msra.mxu0 %v704
  %2014 = vmatprep.subr.mxu0 0.0
  %2015 = vmatpush1.msra.mxu0 %v705
  %2016 = vmatprep.subr.mxu0 0.0
  %2017 = vmatpush1.msra.mxu0 %v706
  %2018 = vmatprep.subr.mxu0 0.0
  %2019 = vmatpush1.msra.mxu0 %v707
  %2020 = vmatprep.subr.mxu0 0.0
  %2021 = vmatpush1.msra.mxu0 %v708
  %2022 = vmatprep.subr.mxu0 0.0
  %2023 = vmatpush1.msra.mxu0 %v709
  %2024 = vmatprep.subr.mxu0 0.0
  %2025 = vmatpush1.msra.mxu0 %v710
  %2026 = vmatprep.subr.mxu0 0.0
  %2027 = vmatpush1.msra.mxu0 %v711
  %2028 = vmatprep.subr.mxu0 0.0
  %2029 = vmatpush1.msra.mxu0 %v712
  %2030 = vmatprep.subr.mxu0 0.0
  %2031 = vmatpush1.msra.mxu0 %v713
  %2032 = vmatprep.subr.mxu0 0.0
  %2033 = vmatpush1.msra.mxu0 %v714
  %2034 = vmatprep.subr.mxu0 0.0
  %2035 = vmatpush1.msra.mxu0 %v715
  %2036 = vmatprep.subr.mxu0 0.0
  %2037 = vmatpush1.msra.mxu0 %v716
  %2038 = vmatprep.subr.mxu0 0.0
  %2039 = vmatpush1.msra.mxu0 %v717
  %2040 = vmatprep.subr.mxu0 0.0
  %2041 = vmatpush1.msra.mxu0 %v718
  %2042 = vmatprep.subr.mxu0 0.0
  %2043 = vmatpush1.msra.mxu0 %v719
  %2044 = vmatprep.subr.mxu0 0.0
  %2045 = vmatpush1.msra.mxu0 %v720
  %2046 = vmatprep.subr.mxu0 0.0
  %2047 = vmatpush1.msra.mxu0 %v721
  %2048 = vmatprep.subr.mxu0 0.0
  %2049 = vmatpush1.msra.mxu0 %v722
  %2050 = vmatprep.mubr.f32.mxu0 %v23
  %2051 = vmatmul.mubr.f32.gmra.mrb[0].mxu0 %v22
  %v2052 = vpop.f32.mrb[0].mxu0
  %v2053 = vadd.f32 %v1943, %v2052
  %v2054 = vpop.f32.mrb[0].mxu0
  %2055 = vmatprep.mubr.f32.mxu0 %v84
  %2056 = vmatmul.mubr.f32.gmra.mrb[0].mxu0 %v83
  %v2057 = vpop.f32.mrb[0].mxu0
  %v2058 = vadd.f32 %v1948, %v2057
  %v2059 = vpop.f32.mrb[0].mxu0
  %2060 = vmatprep.mubr.f32.mxu0 %v145
  %2061 = vmatmul.mubr.f32.gmra.mrb[0].mxu0 %v144
  %v2062 = vpop.f32.mrb[0].mxu0
  %v2063 = vadd.f32 %v1953, %v2062
  %v2064 = vpop.f32.mrb[0].mxu0
  %2065 = vmatprep.mubr.f32.mxu0 %v206
  %2066 = vmatmul.mubr.f32.gmra.mrb[0].mxu0 %v205
  %v2067 = vpop.f32.mrb[0].mxu0
  %v2068 = vadd.f32 %v1958, %v2067
  %v2069 = vpop.f32.mrb[0].mxu0
  %2070 = vmatprep.mubr.f32.mxu0 %v267
  %2071 = vmatmul.mubr.f32.gmra.mrb[0].mxu0 %v266
  %v2072 = vpop.f32.mrb[0].mxu0
  %v2073 = vadd.f32 %v1963, %v2072
  %v2074 = vpop.f32.mrb[0].mxu0
  %2075 = vmatprep.mubr.f32.mxu0 %v328
  %2076 = vmatmul.mubr.f32.gmra.mrb[0].mxu0 %v327
  %v2077 = vpop.f32.mrb[0].mxu0
  %v2078 = vadd.f32 %v1968, %v2077
  %v2079 = vpop.f32.mrb[0].mxu0
  %2080 = vmatprep.mubr.f32.mxu0 %v389
  %2081 = vmatmul.mubr.f32.gmra.mrb[0].mxu0 %v388
  %v2082 = vpop.f32.mrb[0].mxu0
  %v2083 = vadd.f32 %v1973, %v2082
  %v2084 = vpop.f32.mrb[0].mxu0
  %2085 = vmatprep.mubr.f32.mxu0 %v450
  %2086 = vmatmul.mubr.f32.gmra.mrb[0].mxu0 %v449
  %v2087 = vpop.f32.mrb[0].mxu0
  %v2088 = vadd.f32 %v1978, %v2087
  %v2089 = vpop.f32.mrb[0].mxu0
  %2090 = vmatprep.mubr.f32.mxu0 %v511
  %2091 = vmatmul.mubr.f32.gmra.mrb[0].mxu0 %v510
  %v2092 = vpop.f32.mrb[0].mxu0
  %v2093 = vadd.f32 %v1983, %v2092
  %v2094 = vpop.f32.mrb[0].mxu0
  %2095 = vdwg.mxu0
  %2096 = vmatprep.subr.mxu0 0.0
  %2097 = vmatpush1.msra.mxu0 %v723
  %2098 = vmatprep.subr.mxu0 0.0
  %2099 = vmatpush1.msra.mxu0 %v724
  %2100 = vmatprep.subr.mxu0 0.0
  %2101 = vmatpush1.msra.mxu0 %v725
  %2102 = vmatprep.subr.mxu0 0.0
  %2103 = vmatpush1.msra.mxu0 %v726
  %2104 = vmatprep.subr.mxu0 0.0
  %2105 = vmatpush1.msra.mxu0 %v727
  %2106 = vmatprep.subr.mxu0 0.0
  %2107 = vmatpush1.msra.mxu0 %v728
  %2108 = vmatprep.subr.mxu0 0.0
  %2109 = vmatpush1.msra.mxu0 %v729
  %2110 = vmatprep.subr.mxu0 0.0
  %2111 = vmatpush1.msra.mxu0 %v730
  %2112 = vmatprep.subr.mxu0 0.0
  %2113 = vmatpush1.msra.mxu0 %v731
  %2114 = vmatprep.subr.mxu0 0.0
  %2115 = vmatpush1.msra.mxu0 %v732
  %2116 = vmatprep.subr.mxu0 0.0
  %2117 = vmatpush1.msra.mxu0 %v733
  %2118 = vmatprep.subr.mxu0 0.0
  %2119 = vmatpush1.msra.mxu0 %v734
  %2120 = vmatprep.subr.mxu0 0.0
  %2121 = vmatpush1.msra.mxu0 %v735
  %2122 = vmatprep.subr.mxu0 0.0
  %2123 = vmatpush1.msra.mxu0 %v736
  %2124 = vmatprep.subr.mxu0 0.0
  %2125 = vmatpush1.msra.mxu0 %v737
  %2126 = vmatprep.subr.mxu0 0.0
  %2127 = vmatpush1.msra.mxu0 %v738
  %2128 = vmatprep.subr.mxu0 0.0
  %2129 = vmatpush1.msra.mxu0 %v739
  %2130 = vmatprep.subr.mxu0 0.0
  %2131 = vmatpush1.msra.mxu0 %v740
  %2132 = vmatprep.subr.mxu0 0.0
  %2133 = vmatpush1.msra.mxu0 %v741
  %2134 = vmatprep.subr.mxu0 0.0
  %2135 = vmatpush1.msra.mxu0 %v742
  %2136 = vmatprep.subr.mxu0 0.0
  %2137 = vmatpush1.msra.mxu0 %v743
  %2138 = vmatprep.subr.mxu0 0.0
  %2139 = vmatpush1.msra.mxu0 %v744
  %2140 = vmatprep.subr.mxu0 0.0
  %2141 = vmatpush1.msra.mxu0 %v745
  %2142 = vmatprep.subr.mxu0 0.0
  %2143 = vmatpush1.msra.mxu0 %v746
  %2144 = vmatprep.subr.mxu0 0.0
  %2145 = vmatpush1.msra.mxu0 %v747
  %2146 = vmatprep.subr.mxu0 0.0
  %2147 = vmatpush1.msra.mxu0 %v748
  %2148 = vmatprep.subr.mxu0 0.0
  %2149 = vmatpush1.msra.mxu0 %v749
  %2150 = vmatprep.subr.mxu0 0.0
  %2151 = vmatpush1.msra.mxu0 %v750
  %2152 = vmatprep.subr.mxu0 0.0
  %2153 = vmatpush1.msra.mxu0 %v751
  %2154 = vmatprep.subr.mxu0 0.0
  %2155 = vmatpush1.msra.mxu0 %v752
  %2156 = vmatprep.subr.mxu0 0.0
  %2157 = vmatpush1.msra.mxu0 %v753
  %2158 = vmatprep.subr.mxu0 0.0
  %2159 = vmatpush1.msra.mxu0 %v754
  %2160 = vmatprep.mubr.f32.mxu0 %v25
  %2161 = vmatmul.mubr.f32.gmra.mrb[0].mxu0 %v24
  %v2162 = vpop.f32.mrb[0].mxu0
  %v2163 = vadd.f32 %v2053, %v2162
  %v2164 = vpop.f32.mrb[0].mxu0
  %2165 = vmatprep.mubr.f32.mxu0 %v86
  %2166 = vmatmul.mubr.f32.gmra.mrb[0].mxu0 %v85
  %v2167 = vpop.f32.mrb[0].mxu0
  %v2168 = vadd.f32 %v2058, %v2167
  %v2169 = vpop.f32.mrb[0].mxu0
  %2170 = vmatprep.mubr.f32.mxu0 %v147
  %2171 = vmatmul.mubr.f32.gmra.mrb[0].mxu0 %v146
  %v2172 = vpop.f32.mrb[0].mxu0
  %v2173 = vadd.f32 %v2063, %v2172
  %v2174 = vpop.f32.mrb[0].mxu0
  %2175 = vmatprep.mubr.f32.mxu0 %v208
  %2176 = vmatmul.mubr.f32.gmra.mrb[0].mxu0 %v207
  %v2177 = vpop.f32.mrb[0].mxu0
  %v2178 = vadd.f32 %v2068, %v2177
  %v2179 = vpop.f32.mrb[0].mxu0
  %2180 = vmatprep.mubr.f32.mxu0 %v269
  %2181 = vmatmul.mubr.f32.gmra.mrb[0].mxu0 %v268
  %v2182 = vpop.f32.mrb[0].mxu0
  %v2183 = vadd.f32 %v2073, %v2182
  %v2184 = vpop.f32.mrb[0].mxu0
  %2185 = vmatprep.mubr.f32.mxu0 %v330
  %2186 = vmatmul.mubr.f32.gmra.mrb[0].mxu0 %v329
  %v2187 = vpop.f32.mrb[0].mxu0
  %v2188 = vadd.f32 %v2078, %v2187
  %v2189 = vpop.f32.mrb[0].mxu0
  %2190 = vmatprep.mubr.f32.mxu0 %v391
  %2191 = vmatmul.mubr.f32.gmra.mrb[0].mxu0 %v390
  %v2192 = vpop.f32.mrb[0].mxu0
  %v2193 = vadd.f32 %v2083, %v2192
  %v2194 = vpop.f32.mrb[0].mxu0
  %2195 = vmatprep.mubr.f32.mxu0 %v452
  %2196 = vmatmul.mubr.f32.gmra.mrb[0].mxu0 %v451
  %v2197 = vpop.f32.mrb[0].mxu0
  %v2198 = vadd.f32 %v2088, %v2197
  %v2199 = vpop.f32.mrb[0].mxu0
  %2200 = vmatprep.mubr.f32.mxu0 %v513
  %2201 = vmatmul.mubr.f32.gmra.mrb[0].mxu0 %v512
  %v2202 = vpop.f32.mrb[0].mxu0
  %v2203 = vadd.f32 %v2093, %v2202
  %v2204 = vpop.f32.mrb[0].mxu0
  %2205 = vdwg.mxu0
  %2206 = vmatprep.subr.mxu0 0.0
  %2207 = vmatpush1.msra.mxu0 %v755
  %2208 = vmatprep.subr.mxu0 0.0
  %2209 = vmatpush1.msra.mxu0 %v756
  %2210 = vmatprep.subr.mxu0 0.0
  %2211 = vmatpush1.msra.mxu0 %v757
  %2212 = vmatprep.subr.mxu0 0.0
  %2213 = vmatpush1.msra.mxu0 %v758
  %2214 = vmatprep.subr.mxu0 0.0
  %2215 = vmatpush1.msra.mxu0 %v759
  %2216 = vmatprep.subr.mxu0 0.0
  %2217 = vmatpush1.msra.mxu0 %v760
  %2218 = vmatprep.subr.mxu0 0.0
  %2219 = vmatpush1.msra.mxu0 %v761
  %2220 = vmatprep.subr.mxu0 0.0
  %2221 = vmatpush1.msra.mxu0 %v762
  %2222 = vmatprep.subr.mxu0 0.0
  %2223 = vmatpush1.msra.mxu0 %v763
  %2224 = vmatprep.subr.mxu0 0.0
  %2225 = vmatpush1.msra.mxu0 %v764
  %2226 = vmatprep.subr.mxu0 0.0
  %2227 = vmatpush1.msra.mxu0 %v765
  %2228 = vmatprep.subr.mxu0 0.0
  %2229 = vmatpush1.msra.mxu0 %v766
  %2230 = vmatprep.subr.mxu0 0.0
  %2231 = vmatpush1.msra.mxu0 %v767
  %2232 = vmatprep.subr.mxu0 0.0
  %2233 = vmatpush1.msra.mxu0 %v768
  %2234 = vmatprep.subr.mxu0 0.0
  %2235 = vmatpush1.msra.mxu0 %v769
  %2236 = vmatprep.subr.mxu0 0.0
  %2237 = vmatpush1.msra.mxu0 %v770
  %2238 = vmatprep.subr.mxu0 0.0
  %2239 = vmatpush1.msra.mxu0 %v771
  %2240 = vmatprep.subr.mxu0 0.0
  %2241 = vmatpush1.msra.mxu0 %v772
  %2242 = vmatprep.subr.mxu0 0.0
  %2243 = vmatpush1.msra.mxu0 %v773
  %2244 = vmatprep.subr.mxu0 0.0
  %2245 = vmatpush1.msra.mxu0 %v774
  %2246 = vmatprep.subr.mxu0 0.0
  %2247 = vmatpush1.msra.mxu0 %v775
  %2248 = vmatprep.subr.mxu0 0.0
  %2249 = vmatpush1.msra.mxu0 %v776
  %2250 = vmatprep.subr.mxu0 0.0
  %2251 = vmatpush1.msra.mxu0 %v777
  %2252 = vmatprep.subr.mxu0 0.0
  %2253 = vmatpush1.msra.mxu0 %v778
  %2254 = vmatprep.subr.mxu0 0.0
  %2255 = vmatpush1.msra.mxu0 %v779
  %2256 = vmatprep.subr.mxu0 0.0
  %2257 = vmatpush1.msra.mxu0 %v780
  %2258 = vmatprep.subr.mxu0 0.0
  %2259 = vmatpush1.msra.mxu0 %v781
  %2260 = vmatprep.subr.mxu0 0.0
  %2261 = vmatpush1.msra.mxu0 %v782
  %2262 = vmatprep.subr.mxu0 0.0
  %2263 = vmatpush1.msra.mxu0 %v783
  %2264 = vmatprep.subr.mxu0 0.0
  %2265 = vmatpush1.msra.mxu0 %v784
  %2266 = vmatprep.subr.mxu0 0.0
  %2267 = vmatpush1.msra.mxu0 %v785
  %2268 = vmatprep.subr.mxu0 0.0
  %2269 = vmatpush1.msra.mxu0 %v786
  %2270 = vmatprep.mubr.f32.mxu0 %v27
  %2271 = vmatmul.mubr.f32.gmra.mrb[0].mxu0 %v26
  %v2272 = vpop.f32.mrb[0].mxu0
  %v2273 = vadd.f32 %v2163, %v2272
  %v2274 = vpop.f32.mrb[0].mxu0
  %2275 = vmatprep.mubr.f32.mxu0 %v88
  %2276 = vmatmul.mubr.f32.gmra.mrb[0].mxu0 %v87
  %v2277 = vpop.f32.mrb[0].mxu0
  %v2278 = vadd.f32 %v2168, %v2277
  %v2279 = vpop.f32.mrb[0].mxu0
  %2280 = vmatprep.mubr.f32.mxu0 %v149
  %2281 = vmatmul.mubr.f32.gmra.mrb[0].mxu0 %v148
  %v2282 = vpop.f32.mrb[0].mxu0
  %v2283 = vadd.f32 %v2173, %v2282
  %v2284 = vpop.f32.mrb[0].mxu0
  %2285 = vmatprep.mubr.f32.mxu0 %v210
  %2286 = vmatmul.mubr.f32.gmra.mrb[0].mxu0 %v209
  %v2287 = vpop.f32.mrb[0].mxu0
  %v2288 = vadd.f32 %v2178, %v2287
  %v2289 = vpop.f32.mrb[0].mxu0
  %2290 = vmatprep.mubr.f32.mxu0 %v271
  %2291 = vmatmul.mubr.f32.gmra.mrb[0].mxu0 %v270
  %v2292 = vpop.f32.mrb[0].mxu0
  %v2293 = vadd.f32 %v2183, %v2292
  %v2294 = vpop.f32.mrb[0].mxu0
  %2295 = vmatprep.mubr.f32.mxu0 %v332
  %2296 = vmatmul.mubr.f32.gmra.mrb[0].mxu0 %v331
  %v2297 = vpop.f32.mrb[0].mxu0
  %v2298 = vadd.f32 %v2188, %v2297
  %v2299 = vpop.f32.mrb[0].mxu0
  %2300 = vmatprep.mubr.f32.mxu0 %v393
  %2301 = vmatmul.mubr.f32.gmra.mrb[0].mxu0 %v392
  %v2302 = vpop.f32.mrb[0].mxu0
  %v2303 = vadd.f32 %v2193, %v2302
  %v2304 = vpop.f32.mrb[0].mxu0
  %2305 = vmatprep.mubr.f32.mxu0 %v454
  %2306 = vmatmul.mubr.f32.gmra.mrb[0].mxu0 %v453
  %v2307 = vpop.f32.mrb[0].mxu0
  %v2308 = vadd.f32 %v2198, %v2307
  %v2309 = vpop.f32.mrb[0].mxu0
  %2310 = vmatprep.mubr.f32.mxu0 %v515
  %2311 = vmatmul.mubr.f32.gmra.mrb[0].mxu0 %v514
  %v2312 = vpop.f32.mrb[0].mxu0
  %v2313 = vadd.f32 %v2203, %v2312
  %v2314 = vpop.f32.mrb[0].mxu0
  %2315 = vdwg.mxu0
  %2316 = vmatprep.subr.mxu0 0.0
  %2317 = vmatpush1.msra.mxu0 %v787
  %2318 = vmatprep.subr.mxu0 0.0
  %2319 = vmatpush1.msra.mxu0 %v788
  %2320 = vmatprep.subr.mxu0 0.0
  %2321 = vmatpush1.msra.mxu0 %v789
  %2322 = vmatprep.subr.mxu0 0.0
  %2323 = vmatpush1.msra.mxu0 %v790
  %2324 = vmatprep.subr.mxu0 0.0
  %2325 = vmatpush1.msra.mxu0 %v791
  %2326 = vmatprep.subr.mxu0 0.0
  %2327 = vmatpush1.msra.mxu0 %v792
  %2328 = vmatprep.subr.mxu0 0.0
  %2329 = vmatpush1.msra.mxu0 %v793
  %2330 = vmatprep.subr.mxu0 0.0
  %2331 = vmatpush1.msra.mxu0 %v794
  %2332 = vmatprep.subr.mxu0 0.0
  %2333 = vmatpush1.msra.mxu0 %v795
  %2334 = vmatprep.subr.mxu0 0.0
  %2335 = vmatpush1.msra.mxu0 %v796
  %2336 = vmatprep.subr.mxu0 0.0
  %2337 = vmatpush1.msra.mxu0 %v797
  %2338 = vmatprep.subr.mxu0 0.0
  %2339 = vmatpush1.msra.mxu0 %v798
  %2340 = vmatprep.subr.mxu0 0.0
  %2341 = vmatpush1.msra.mxu0 %v799
  %2342 = vmatprep.subr.mxu0 0.0
  %2343 = vmatpush1.msra.mxu0 %v800
  %2344 = vmatprep.subr.mxu0 0.0
  %2345 = vmatpush1.msra.mxu0 %v801
  %2346 = vmatprep.subr.mxu0 0.0
  %2347 = vmatpush1.msra.mxu0 %v802
  %2348 = vmatprep.subr.mxu0 0.0
  %2349 = vmatpush1.msra.mxu0 %v803
  %2350 = vmatprep.subr.mxu0 0.0
  %2351 = vmatpush1.msra.mxu0 %v804
  %2352 = vmatprep.subr.mxu0 0.0
  %2353 = vmatpush1.msra.mxu0 %v805
  %2354 = vmatprep.subr.mxu0 0.0
  %2355 = vmatpush1.msra.mxu0 %v806
  %2356 = vmatprep.subr.mxu0 0.0
  %2357 = vmatpush1.msra.mxu0 %v807
  %2358 = vmatprep.subr.mxu0 0.0
  %2359 = vmatpush1.msra.mxu0 %v808
  %2360 = vmatprep.subr.mxu0 0.0
  %2361 = vmatpush1.msra.mxu0 %v809
  %2362 = vmatprep.subr.mxu0 0.0
  %2363 = vmatpush1.msra.mxu0 %v810
  %2364 = vmatprep.subr.mxu0 0.0
  %2365 = vmatpush1.msra.mxu0 %v811
  %2366 = vmatprep.subr.mxu0 0.0
  %2367 = vmatpush1.msra.mxu0 %v812
  %2368 = vmatprep.subr.mxu0 0.0
  %2369 = vmatpush1.msra.mxu0 %v813
  %2370 = vmatprep.subr.mxu0 0.0
  %2371 = vmatpush1.msra.mxu0 %v814
  %2372 = vmatprep.subr.mxu0 0.0
  %2373 = vmatpush1.msra.mxu0 %v815
  %2374 = vmatprep.subr.mxu0 0.0
  %2375 = vmatpush1.msra.mxu0 %v816
  %2376 = vmatprep.subr.mxu0 0.0
  %2377 = vmatpush1.msra.mxu0 %v817
  %2378 = vmatprep.subr.mxu0 0.0
  %2379 = vmatpush1.msra.mxu0 %v818
  %2380 = vmatprep.mubr.f32.mxu0 %v29
  %2381 = vmatmul.mubr.f32.gmra.mrb[0].mxu0 %v28
  %v2382 = vpop.f32.mrb[0].mxu0
  %v2383 = vadd.f32 %v2273, %v2382
  %v2384 = vpop.f32.mrb[0].mxu0
  %2385 = vmatprep.mubr.f32.mxu0 %v90
  %2386 = vmatmul.mubr.f32.gmra.mrb[0].mxu0 %v89
  %v2387 = vpop.f32.mrb[0].mxu0
  %v2388 = vadd.f32 %v2278, %v2387
  %v2389 = vpop.f32.mrb[0].mxu0
  %2390 = vmatprep.mubr.f32.mxu0 %v151
  %2391 = vmatmul.mubr.f32.gmra.mrb[0].mxu0 %v150
  %v2392 = vpop.f32.mrb[0].mxu0
  %v2393 = vadd.f32 %v2283, %v2392
  %v2394 = vpop.f32.mrb[0].mxu0
  %2395 = vmatprep.mubr.f32.mxu0 %v212
  %2396 = vmatmul.mubr.f32.gmra.mrb[0].mxu0 %v211
  %v2397 = vpop.f32.mrb[0].mxu0
  %v2398 = vadd.f32 %v2288, %v2397
  %v2399 = vpop.f32.mrb[0].mxu0
  %2400 = vmatprep.mubr.f32.mxu0 %v273
  %2401 = vmatmul.mubr.f32.gmra.mrb[0].mxu0 %v272
  %v2402 = vpop.f32.mrb[0].mxu0
  %v2403 = vadd.f32 %v2293, %v2402
  %v2404 = vpop.f32.mrb[0].mxu0
  %2405 = vmatprep.mubr.f32.mxu0 %v334
  %2406 = vmatmul.mubr.f32.gmra.mrb[0].mxu0 %v333
  %v2407 = vpop.f32.mrb[0].mxu0
  %v2408 = vadd.f32 %v2298, %v2407
  %v2409 = vpop.f32.mrb[0].mxu0
  %2410 = vmatprep.mubr.f32.mxu0 %v395
  %2411 = vmatmul.mubr.f32.gmra.mrb[0].mxu0 %v394
  %v2412 = vpop.f32.mrb[0].mxu0
  %v2413 = vadd.f32 %v2303, %v2412
  %v2414 = vpop.f32.mrb[0].mxu0
  %2415 = vmatprep.mubr.f32.mxu0 %v456
  %2416 = vmatmul.mubr.f32.gmra.mrb[0].mxu0 %v455
  %v2417 = vpop.f32.mrb[0].mxu0
  %v2418 = vadd.f32 %v2308, %v2417
  %v2419 = vpop.f32.mrb[0].mxu0
  %2420 = vmatprep.mubr.f32.mxu0 %v517
  %2421 = vmatmul.mubr.f32.gmra.mrb[0].mxu0 %v516
  %v2422 = vpop.f32.mrb[0].mxu0
  %v2423 = vadd.f32 %v2313, %v2422
  %v2424 = vpop.f32.mrb[0].mxu0
  %2425 = vdwg.mxu0
  %2426 = vmatprep.subr.mxu0 0.0
  %2427 = vmatpush1.msra.mxu0 %v819
  %2428 = vmatprep.subr.mxu0 0.0
  %2429 = vmatpush1.msra.mxu0 %v820
  %2430 = vmatprep.subr.mxu0 0.0
  %2431 = vmatpush1.msra.mxu0 %v821
  %2432 = vmatprep.subr.mxu0 0.0
  %2433 = vmatpush1.msra.mxu0 %v822
  %2434 = vmatprep.subr.mxu0 0.0
  %2435 = vmatpush1.msra.mxu0 %v823
  %2436 = vmatprep.subr.mxu0 0.0
  %2437 = vmatpush1.msra.mxu0 %v824
  %2438 = vmatprep.subr.mxu0 0.0
  %2439 = vmatpush1.msra.mxu0 %v825
  %2440 = vmatprep.subr.mxu0 0.0
  %2441 = vmatpush1.msra.mxu0 %v826
  %2442 = vmatprep.subr.mxu0 0.0
  %2443 = vmatpush1.msra.mxu0 %v827
  %2444 = vmatprep.subr.mxu0 0.0
  %2445 = vmatpush1.msra.mxu0 %v828
  %2446 = vmatprep.subr.mxu0 0.0
  %2447 = vmatpush1.msra.mxu0 %v829
  %2448 = vmatprep.subr.mxu0 0.0
  %2449 = vmatpush1.msra.mxu0 %v830
  %2450 = vmatprep.subr.mxu0 0.0
  %2451 = vmatpush1.msra.mxu0 %v831
  %2452 = vmatprep.subr.mxu0 0.0
  %2453 = vmatpush1.msra.mxu0 %v832
  %2454 = vmatprep.subr.mxu0 0.0
  %2455 = vmatpush1.msra.mxu0 %v833
  %2456 = vmatprep.subr.mxu0 0.0
  %2457 = vmatpush1.msra.mxu0 %v834
  %2458 = vmatprep.subr.mxu0 0.0
  %2459 = vmatpush1.msra.mxu0 %v835
  %2460 = vmatprep.subr.mxu0 0.0
  %2461 = vmatpush1.msra.mxu0 %v836
  %2462 = vmatprep.subr.mxu0 0.0
  %2463 = vmatpush1.msra.mxu0 %v837
  %2464 = vmatprep.subr.mxu0 0.0
  %2465 = vmatpush1.msra.mxu0 %v838
  %2466 = vmatprep.subr.mxu0 0.0
  %2467 = vmatpush1.msra.mxu0 %v839
  %2468 = vmatprep.subr.mxu0 0.0
  %2469 = vmatpush1.msra.mxu0 %v840
  %2470 = vmatprep.subr.mxu0 0.0
  %2471 = vmatpush1.msra.mxu0 %v841
  %2472 = vmatprep.subr.mxu0 0.0
  %2473 = vmatpush1.msra.mxu0 %v842
  %2474 = vmatprep.subr.mxu0 0.0
  %2475 = vmatpush1.msra.mxu0 %v843
  %2476 = vmatprep.subr.mxu0 0.0
  %2477 = vmatpush1.msra.mxu0 %v844
  %2478 = vmatprep.subr.mxu0 0.0
  %2479 = vmatpush1.msra.mxu0 %v845
  %2480 = vmatprep.subr.mxu0 0.0
  %2481 = vmatpush1.msra.mxu0 %v846
  %2482 = vmatprep.subr.mxu0 0.0
  %2483 = vmatpush1.msra.mxu0 %v847
  %2484 = vmatprep.subr.mxu0 0.0
  %2485 = vmatpush1.msra.mxu0 %v848
  %2486 = vmatprep.subr.mxu0 0.0
  %2487 = vmatpush1.msra.mxu0 %v849
  %2488 = vmatprep.subr.mxu0 0.0
  %2489 = vmatpush1.msra.mxu0 %v850
  %2490 = vmatprep.mubr.f32.mxu0 %v31
  %2491 = vmatmul.mubr.f32.gmra.mrb[0].mxu0 %v30
  %v2492 = vpop.f32.mrb[0].mxu0
  %v2493 = vadd.f32 %v2383, %v2492
  %v2494 = vpop.f32.mrb[0].mxu0
  %2495 = vmatprep.mubr.f32.mxu0 %v92
  %2496 = vmatmul.mubr.f32.gmra.mrb[0].mxu0 %v91
  %v2497 = vpop.f32.mrb[0].mxu0
  %v2498 = vadd.f32 %v2388, %v2497
  %v2499 = vpop.f32.mrb[0].mxu0
  %2500 = vmatprep.mubr.f32.mxu0 %v153
  %2501 = vmatmul.mubr.f32.gmra.mrb[0].mxu0 %v152
  %v2502 = vpop.f32.mrb[0].mxu0
  %v2503 = vadd.f32 %v2393, %v2502
  %v2504 = vpop.f32.mrb[0].mxu0
  %2505 = vmatprep.mubr.f32.mxu0 %v214
  %2506 = vmatmul.mubr.f32.gmra.mrb[0].mxu0 %v213
  %v2507 = vpop.f32.mrb[0].mxu0
  %v2508 = vadd.f32 %v2398, %v2507
  %v2509 = vpop.f32.mrb[0].mxu0
  %2510 = vmatprep.mubr.f32.mxu0 %v275
  %2511 = vmatmul.mubr.f32.gmra.mrb[0].mxu0 %v274
  %v2512 = vpop.f32.mrb[0].mxu0
  %v2513 = vadd.f32 %v2403, %v2512
  %v2514 = vpop.f32.mrb[0].mxu0
  %2515 = vmatprep.mubr.f32.mxu0 %v336
  %2516 = vmatmul.mubr.f32.gmra.mrb[0].mxu0 %v335
  %v2517 = vpop.f32.mrb[0].mxu0
  %v2518 = vadd.f32 %v2408, %v2517
  %v2519 = vpop.f32.mrb[0].mxu0
  %2520 = vmatprep.mubr.f32.mxu0 %v397
  %2521 = vmatmul.mubr.f32.gmra.mrb[0].mxu0 %v396
  %v2522 = vpop.f32.mrb[0].mxu0
  %v2523 = vadd.f32 %v2413, %v2522
  %v2524 = vpop.f32.mrb[0].mxu0
  %2525 = vmatprep.mubr.f32.mxu0 %v458
  %2526 = vmatmul.mubr.f32.gmra.mrb[0].mxu0 %v457
  %v2527 = vpop.f32.mrb[0].mxu0
  %v2528 = vadd.f32 %v2418, %v2527
  %v2529 = vpop.f32.mrb[0].mxu0
  %2530 = vmatprep.mubr.f32.mxu0 %v519
  %2531 = vmatmul.mubr.f32.gmra.mrb[0].mxu0 %v518
  %v2532 = vpop.f32.mrb[0].mxu0
  %v2533 = vadd.f32 %v2423, %v2532
  %v2534 = vpop.f32.mrb[0].mxu0
  %2535 = vdwg.mxu0
  %2536 = vmatprep.subr.mxu0 0.0
  %2537 = vmatpush1.msra.mxu0 %v851
  %2538 = vmatprep.subr.mxu0 0.0
  %2539 = vmatpush1.msra.mxu0 %v852
  %2540 = vmatprep.subr.mxu0 0.0
  %2541 = vmatpush1.msra.mxu0 %v853
  %2542 = vmatprep.subr.mxu0 0.0
  %2543 = vmatpush1.msra.mxu0 %v854
  %2544 = vmatprep.subr.mxu0 0.0
  %2545 = vmatpush1.msra.mxu0 %v855
  %2546 = vmatprep.subr.mxu0 0.0
  %2547 = vmatpush1.msra.mxu0 %v856
  %2548 = vmatprep.subr.mxu0 0.0
  %2549 = vmatpush1.msra.mxu0 %v857
  %2550 = vmatprep.subr.mxu0 0.0
  %2551 = vmatpush1.msra.mxu0 %v858
  %2552 = vmatprep.subr.mxu0 0.0
  %2553 = vmatpush1.msra.mxu0 %v859
  %2554 = vmatprep.subr.mxu0 0.0
  %2555 = vmatpush1.msra.mxu0 %v860
  %2556 = vmatprep.subr.mxu0 0.0
  %2557 = vmatpush1.msra.mxu0 %v861
  %2558 = vmatprep.subr.mxu0 0.0
  %2559 = vmatpush1.msra.mxu0 %v862
  %2560 = vmatprep.subr.mxu0 0.0
  %2561 = vmatpush1.msra.mxu0 %v863
  %2562 = vmatprep.subr.mxu0 0.0
  %2563 = vmatpush1.msra.mxu0 %v864
  %2564 = vmatprep.subr.mxu0 0.0
  %2565 = vmatpush1.msra.mxu0 %v865
  %2566 = vmatprep.subr.mxu0 0.0
  %2567 = vmatpush1.msra.mxu0 %v866
  %2568 = vmatprep.subr.mxu0 0.0
  %2569 = vmatpush1.msra.mxu0 %v867
  %2570 = vmatprep.subr.mxu0 0.0
  %2571 = vmatpush1.msra.mxu0 %v868
  %2572 = vmatprep.subr.mxu0 0.0
  %2573 = vmatpush1.msra.mxu0 %v869
  %2574 = vmatprep.subr.mxu0 0.0
  %2575 = vmatpush1.msra.mxu0 %v870
  %2576 = vmatprep.subr.mxu0 0.0
  %2577 = vmatpush1.msra.mxu0 %v871
  %2578 = vmatprep.subr.mxu0 0.0
  %2579 = vmatpush1.msra.mxu0 %v872
  %2580 = vmatprep.subr.mxu0 0.0
  %2581 = vmatpush1.msra.mxu0 %v873
  %2582 = vmatprep.subr.mxu0 0.0
  %2583 = vmatpush1.msra.mxu0 %v874
  %2584 = vmatprep.subr.mxu0 0.0
  %2585 = vmatpush1.msra.mxu0 %v875
  %2586 = vmatprep.subr.mxu0 0.0
  %2587 = vmatpush1.msra.mxu0 %v876
  %2588 = vmatprep.subr.mxu0 0.0
  %2589 = vmatpush1.msra.mxu0 %v877
  %2590 = vmatprep.subr.mxu0 0.0
  %2591 = vmatpush1.msra.mxu0 %v878
  %2592 = vmatprep.subr.mxu0 0.0
  %2593 = vmatpush1.msra.mxu0 %v879
  %2594 = vmatprep.subr.mxu0 0.0
  %2595 = vmatpush1.msra.mxu0 %v880
  %2596 = vmatprep.subr.mxu0 0.0
  %2597 = vmatpush1.msra.mxu0 %v881
  %2598 = vmatprep.subr.mxu0 0.0
  %2599 = vmatpush1.msra.mxu0 %v882
  %2600 = vmatprep.mubr.f32.mxu0 %v33
  %2601 = vmatmul.mubr.f32.gmra.mrb[0].mxu0 %v32
  %v2602 = vpop.f32.mrb[0].mxu0
  %v2603 = vadd.f32 %v2493, %v2602
  %v2604 = vpop.f32.mrb[0].mxu0
  %2605 = vmatprep.mubr.f32.mxu0 %v94
  %2606 = vmatmul.mubr.f32.gmra.mrb[0].mxu0 %v93
  %v2607 = vpop.f32.mrb[0].mxu0
  %v2608 = vadd.f32 %v2498, %v2607
  %v2609 = vpop.f32.mrb[0].mxu0
  %2610 = vmatprep.mubr.f32.mxu0 %v155
  %2611 = vmatmul.mubr.f32.gmra.mrb[0].mxu0 %v154
  %v2612 = vpop.f32.mrb[0].mxu0
  %v2613 = vadd.f32 %v2503, %v2612
  %v2614 = vpop.f32.mrb[0].mxu0
  %2615 = vmatprep.mubr.f32.mxu0 %v216
  %2616 = vmatmul.mubr.f32.gmra.mrb[0].mxu0 %v215
  %v2617 = vpop.f32.mrb[0].mxu0
  %v2618 = vadd.f32 %v2508, %v2617
  %v2619 = vpop.f32.mrb[0].mxu0
  %2620 = vmatprep.mubr.f32.mxu0 %v277
  %2621 = vmatmul.mubr.f32.gmra.mrb[0].mxu0 %v276
  %v2622 = vpop.f32.mrb[0].mxu0
  %v2623 = vadd.f32 %v2513, %v2622
  %v2624 = vpop.f32.mrb[0].mxu0
  %2625 = vmatprep.mubr.f32.mxu0 %v338
  %2626 = vmatmul.mubr.f32.gmra.mrb[0].mxu0 %v337
  %v2627 = vpop.f32.mrb[0].mxu0
  %v2628 = vadd.f32 %v2518, %v2627
  %v2629 = vpop.f32.mrb[0].mxu0
  %2630 = vmatprep.mubr.f32.mxu0 %v399
  %2631 = vmatmul.mubr.f32.gmra.mrb[0].mxu0 %v398
  %v2632 = vpop.f32.mrb[0].mxu0
  %v2633 = vadd.f32 %v2523, %v2632
  %v2634 = vpop.f32.mrb[0].mxu0
  %2635 = vmatprep.mubr.f32.mxu0 %v460
  %2636 = vmatmul.mubr.f32.gmra.mrb[0].mxu0 %v459
  %v2637 = vpop.f32.mrb[0].mxu0
  %v2638 = vadd.f32 %v2528, %v2637
  %v2639 = vpop.f32.mrb[0].mxu0
  %2640 = vmatprep.mubr.f32.mxu0 %v521
  %2641 = vmatmul.mubr.f32.gmra.mrb[0].mxu0 %v520
  %v2642 = vpop.f32.mrb[0].mxu0
  %v2643 = vadd.f32 %v2533, %v2642
  %v2644 = vpop.f32.mrb[0].mxu0
  %2645 = vdwg.mxu0
  %2646 = vmatprep.subr.mxu0 0.0
  %2647 = vmatpush1.msra.mxu0 %v883
  %2648 = vmatprep.subr.mxu0 0.0
  %2649 = vmatpush1.msra.mxu0 %v884
  %2650 = vmatprep.subr.mxu0 0.0
  %2651 = vmatpush1.msra.mxu0 %v885
  %2652 = vmatprep.subr.mxu0 0.0
  %2653 = vmatpush1.msra.mxu0 %v886
  %2654 = vmatprep.subr.mxu0 0.0
  %2655 = vmatpush1.msra.mxu0 %v887
  %2656 = vmatprep.subr.mxu0 0.0
  %2657 = vmatpush1.msra.mxu0 %v888
  %2658 = vmatprep.subr.mxu0 0.0
  %2659 = vmatpush1.msra.mxu0 %v889
  %2660 = vmatprep.subr.mxu0 0.0
  %2661 = vmatpush1.msra.mxu0 %v890
  %2662 = vmatprep.subr.mxu0 0.0
  %2663 = vmatpush1.msra.mxu0 %v891
  %2664 = vmatprep.subr.mxu0 0.0
  %2665 = vmatpush1.msra.mxu0 %v892
  %2666 = vmatprep.subr.mxu0 0.0
  %2667 = vmatpush1.msra.mxu0 %v893
  %2668 = vmatprep.subr.mxu0 0.0
  %2669 = vmatpush1.msra.mxu0 %v894
  %2670 = vmatprep.subr.mxu0 0.0
  %2671 = vmatpush1.msra.mxu0 %v895
  %2672 = vmatprep.subr.mxu0 0.0
  %2673 = vmatpush1.msra.mxu0 %v896
  %2674 = vmatprep.subr.mxu0 0.0
  %2675 = vmatpush1.msra.mxu0 %v897
  %2676 = vmatprep.subr.mxu0 0.0
  %2677 = vmatpush1.msra.mxu0 %v898
  %2678 = vmatprep.subr.mxu0 0.0
  %2679 = vmatpush1.msra.mxu0 %v899
  %2680 = vmatprep.subr.mxu0 0.0
  %2681 = vmatpush1.msra.mxu0 %v900
  %2682 = vmatprep.subr.mxu0 0.0
  %2683 = vmatpush1.msra.mxu0 %v901
  %2684 = vmatprep.subr.mxu0 0.0
  %2685 = vmatpush1.msra.mxu0 %v902
  %2686 = vmatprep.subr.mxu0 0.0
  %2687 = vmatpush1.msra.mxu0 %v903
  %2688 = vmatprep.subr.mxu0 0.0
  %2689 = vmatpush1.msra.mxu0 %v904
  %2690 = vmatprep.subr.mxu0 0.0
  %2691 = vmatpush1.msra.mxu0 %v905
  %2692 = vmatprep.subr.mxu0 0.0
  %2693 = vmatpush1.msra.mxu0 %v906
  %2694 = vmatprep.subr.mxu0 0.0
  %2695 = vmatpush1.msra.mxu0 %v907
  %2696 = vmatprep.subr.mxu0 0.0
  %2697 = vmatpush1.msra.mxu0 %v908
  %2698 = vmatprep.subr.mxu0 0.0
  %2699 = vmatpush1.msra.mxu0 %v909
  %2700 = vmatprep.subr.mxu0 0.0
  %2701 = vmatpush1.msra.mxu0 %v910
  %2702 = vmatprep.subr.mxu0 0.0
  %2703 = vmatpush1.msra.mxu0 %v911
  %2704 = vmatprep.subr.mxu0 0.0
  %2705 = vmatpush1.msra.mxu0 %v912
  %2706 = vmatprep.subr.mxu0 0.0
  %2707 = vmatpush1.msra.mxu0 %v913
  %2708 = vmatprep.subr.mxu0 0.0
  %2709 = vmatpush1.msra.mxu0 %v914
  %2710 = vmatprep.mubr.f32.mxu0 %v35
  %2711 = vmatmul.mubr.f32.gmra.mrb[0].mxu0 %v34
  %v2712 = vpop.f32.mrb[0].mxu0
  %v2713 = vadd.f32 %v2603, %v2712
  %v2714 = vpop.f32.mrb[0].mxu0
  %2715 = vmatprep.mubr.f32.mxu0 %v96
  %2716 = vmatmul.mubr.f32.gmra.mrb[0].mxu0 %v95
  %v2717 = vpop.f32.mrb[0].mxu0
  %v2718 = vadd.f32 %v2608, %v2717
  %v2719 = vpop.f32.mrb[0].mxu0
  %2720 = vmatprep.mubr.f32.mxu0 %v157
  %2721 = vmatmul.mubr.f32.gmra.mrb[0].mxu0 %v156
  %v2722 = vpop.f32.mrb[0].mxu0
  %v2723 = vadd.f32 %v2613, %v2722
  %v2724 = vpop.f32.mrb[0].mxu0
  %2725 = vmatprep.mubr.f32.mxu0 %v218
  %2726 = vmatmul.mubr.f32.gmra.mrb[0].mxu0 %v217
  %v2727 = vpop.f32.mrb[0].mxu0
  %v2728 = vadd.f32 %v2618, %v2727
  %v2729 = vpop.f32.mrb[0].mxu0
  %2730 = vmatprep.mubr.f32.mxu0 %v279
  %2731 = vmatmul.mubr.f32.gmra.mrb[0].mxu0 %v278
  %v2732 = vpop.f32.mrb[0].mxu0
  %v2733 = vadd.f32 %v2623, %v2732
  %v2734 = vpop.f32.mrb[0].mxu0
  %2735 = vmatprep.mubr.f32.mxu0 %v340
  %2736 = vmatmul.mubr.f32.gmra.mrb[0].mxu0 %v339
  %v2737 = vpop.f32.mrb[0].mxu0
  %v2738 = vadd.f32 %v2628, %v2737
  %v2739 = vpop.f32.mrb[0].mxu0
  %2740 = vmatprep.mubr.f32.mxu0 %v401
  %2741 = vmatmul.mubr.f32.gmra.mrb[0].mxu0 %v400
  %v2742 = vpop.f32.mrb[0].mxu0
  %v2743 = vadd.f32 %v2633, %v2742
  %v2744 = vpop.f32.mrb[0].mxu0
  %2745 = vmatprep.mubr.f32.mxu0 %v462
  %2746 = vmatmul.mubr.f32.gmra.mrb[0].mxu0 %v461
  %v2747 = vpop.f32.mrb[0].mxu0
  %v2748 = vadd.f32 %v2638, %v2747
  %v2749 = vpop.f32.mrb[0].mxu0
  %2750 = vmatprep.mubr.f32.mxu0 %v523
  %2751 = vmatmul.mubr.f32.gmra.mrb[0].mxu0 %v522
  %v2752 = vpop.f32.mrb[0].mxu0
  %v2753 = vadd.f32 %v2643, %v2752
  %v2754 = vpop.f32.mrb[0].mxu0
  %2755 = vdwg.mxu0
  %2756 = vmatprep.subr.mxu0 0.0
  %2757 = vmatpush1.msra.mxu0 %v915
  %2758 = vmatprep.subr.mxu0 0.0
  %2759 = vmatpush1.msra.mxu0 %v916
  %2760 = vmatprep.subr.mxu0 0.0
  %2761 = vmatpush1.msra.mxu0 %v917
  %2762 = vmatprep.subr.mxu0 0.0
  %2763 = vmatpush1.msra.mxu0 %v918
  %2764 = vmatprep.subr.mxu0 0.0
  %2765 = vmatpush1.msra.mxu0 %v919
  %2766 = vmatprep.subr.mxu0 0.0
  %2767 = vmatpush1.msra.mxu0 %v920
  %2768 = vmatprep.subr.mxu0 0.0
  %2769 = vmatpush1.msra.mxu0 %v921
  %2770 = vmatprep.subr.mxu0 0.0
  %2771 = vmatpush1.msra.mxu0 %v922
  %2772 = vmatprep.subr.mxu0 0.0
  %2773 = vmatpush1.msra.mxu0 %v923
  %2774 = vmatprep.subr.mxu0 0.0
  %2775 = vmatpush1.msra.mxu0 %v924
  %2776 = vmatprep.subr.mxu0 0.0
  %2777 = vmatpush1.msra.mxu0 %v925
  %2778 = vmatprep.subr.mxu0 0.0
  %2779 = vmatpush1.msra.mxu0 %v926
  %2780 = vmatprep.subr.mxu0 0.0
  %2781 = vmatpush1.msra.mxu0 %v927
  %2782 = vmatprep.subr.mxu0 0.0
  %2783 = vmatpush1.msra.mxu0 %v928
  %2784 = vmatprep.subr.mxu0 0.0
  %2785 = vmatpush1.msra.mxu0 %v929
  %2786 = vmatprep.subr.mxu0 0.0
  %2787 = vmatpush1.msra.mxu0 %v930
  %2788 = vmatprep.subr.mxu0 0.0
  %2789 = vmatpush1.msra.mxu0 %v931
  %2790 = vmatprep.subr.mxu0 0.0
  %2791 = vmatpush1.msra.mxu0 %v932
  %2792 = vmatprep.subr.mxu0 0.0
  %2793 = vmatpush1.msra.mxu0 %v933
  %2794 = vmatprep.subr.mxu0 0.0
  %2795 = vmatpush1.msra.mxu0 %v934
  %2796 = vmatprep.subr.mxu0 0.0
  %2797 = vmatpush1.msra.mxu0 %v935
  %2798 = vmatprep.subr.mxu0 0.0
  %2799 = vmatpush1.msra.mxu0 %v936
  %2800 = vmatprep.subr.mxu0 0.0
  %2801 = vmatpush1.msra.mxu0 %v937
  %2802 = vmatprep.subr.mxu0 0.0
  %2803 = vmatpush1.msra.mxu0 %v938
  %2804 = vmatprep.subr.mxu0 0.0
  %2805 = vmatpush1.msra.mxu0 %v939
  %2806 = vmatprep.subr.mxu0 0.0
  %2807 = vmatpush1.msra.mxu0 %v940
  %2808 = vmatprep.subr.mxu0 0.0
  %2809 = vmatpush1.msra.mxu0 %v941
  %2810 = vmatprep.subr.mxu0 0.0
  %2811 = vmatpush1.msra.mxu0 %v942
  %2812 = vmatprep.subr.mxu0 0.0
  %2813 = vmatpush1.msra.mxu0 %v943
  %2814 = vmatprep.subr.mxu0 0.0
  %2815 = vmatpush1.msra.mxu0 %v944
  %2816 = vmatprep.subr.mxu0 0.0
  %2817 = vmatpush1.msra.mxu0 %v945
  %2818 = vmatprep.subr.mxu0 0.0
  %2819 = vmatpush1.msra.mxu0 %v946
  %2820 = vmatprep.mubr.f32.mxu0 %v37
  %2821 = vmatmul.mubr.f32.gmra.mrb[0].mxu0 %v36
  %v2822 = vpop.f32.mrb[0].mxu0
  %v2823 = vadd.f32 %v2713, %v2822
  %v2824 = vpop.f32.mrb[0].mxu0
  %2825 = vmatprep.mubr.f32.mxu0 %v98
  %2826 = vmatmul.mubr.f32.gmra.mrb[0].mxu0 %v97
  %v2827 = vpop.f32.mrb[0].mxu0
  %v2828 = vadd.f32 %v2718, %v2827
  %v2829 = vpop.f32.mrb[0].mxu0
  %2830 = vmatprep.mubr.f32.mxu0 %v159
  %2831 = vmatmul.mubr.f32.gmra.mrb[0].mxu0 %v158
  %v2832 = vpop.f32.mrb[0].mxu0
  %v2833 = vadd.f32 %v2723, %v2832
  %v2834 = vpop.f32.mrb[0].mxu0
  %2835 = vmatprep.mubr.f32.mxu0 %v220
  %2836 = vmatmul.mubr.f32.gmra.mrb[0].mxu0 %v219
  %v2837 = vpop.f32.mrb[0].mxu0
  %v2838 = vadd.f32 %v2728, %v2837
  %v2839 = vpop.f32.mrb[0].mxu0
  %2840 = vmatprep.mubr.f32.mxu0 %v281
  %2841 = vmatmul.mubr.f32.gmra.mrb[0].mxu0 %v280
  %v2842 = vpop.f32.mrb[0].mxu0
  %v2843 = vadd.f32 %v2733, %v2842
  %v2844 = vpop.f32.mrb[0].mxu0
  %2845 = vmatprep.mubr.f32.mxu0 %v342
  %2846 = vmatmul.mubr.f32.gmra.mrb[0].mxu0 %v341
  %v2847 = vpop.f32.mrb[0].mxu0
  %v2848 = vadd.f32 %v2738, %v2847
  %v2849 = vpop.f32.mrb[0].mxu0
  %2850 = vmatprep.mubr.f32.mxu0 %v403
  %2851 = vmatmul.mubr.f32.gmra.mrb[0].mxu0 %v402
  %v2852 = vpop.f32.mrb[0].mxu0
  %v2853 = vadd.f32 %v2743, %v2852
  %v2854 = vpop.f32.mrb[0].mxu0
  %2855 = vmatprep.mubr.f32.mxu0 %v464
  %2856 = vmatmul.mubr.f32.gmra.mrb[0].mxu0 %v463
  %v2857 = vpop.f32.mrb[0].mxu0
  %v2858 = vadd.f32 %v2748, %v2857
  %v2859 = vpop.f32.mrb[0].mxu0
  %2860 = vmatprep.mubr.f32.mxu0 %v525
  %2861 = vmatmul.mubr.f32.gmra.mrb[0].mxu0 %v524
  %v2862 = vpop.f32.mrb[0].mxu0
  %v2863 = vadd.f32 %v2753, %v2862
  %v2864 = vpop.f32.mrb[0].mxu0
  %2865 = vdwg.mxu0
  %2866 = vmatprep.subr.mxu0 0.0
  %2867 = vmatpush1.msra.mxu0 %v947
  %2868 = vmatprep.subr.mxu0 0.0
  %2869 = vmatpush1.msra.mxu0 %v948
  %2870 = vmatprep.subr.mxu0 0.0
  %2871 = vmatpush1.msra.mxu0 %v949
  %2872 = vmatprep.subr.mxu0 0.0
  %2873 = vmatpush1.msra.mxu0 %v950
  %2874 = vmatprep.subr.mxu0 0.0
  %2875 = vmatpush1.msra.mxu0 %v951
  %2876 = vmatprep.subr.mxu0 0.0
  %2877 = vmatpush1.msra.mxu0 %v952
  %2878 = vmatprep.subr.mxu0 0.0
  %2879 = vmatpush1.msra.mxu0 %v953
  %2880 = vmatprep.subr.mxu0 0.0
  %2881 = vmatpush1.msra.mxu0 %v954
  %2882 = vmatprep.subr.mxu0 0.0
  %2883 = vmatpush1.msra.mxu0 %v955
  %2884 = vmatprep.subr.mxu0 0.0
  %2885 = vmatpush1.msra.mxu0 %v956
  %2886 = vmatprep.subr.mxu0 0.0
  %2887 = vmatpush1.msra.mxu0 %v957
  %2888 = vmatprep.subr.mxu0 0.0
  %2889 = vmatpush1.msra.mxu0 %v958
  %2890 = vmatprep.subr.mxu0 0.0
  %2891 = vmatpush1.msra.mxu0 %v959
  %2892 = vmatprep.subr.mxu0 0.0
  %2893 = vmatpush1.msra.mxu0 %v960
  %2894 = vmatprep.subr.mxu0 0.0
  %2895 = vmatpush1.msra.mxu0 %v961
  %2896 = vmatprep.subr.mxu0 0.0
  %2897 = vmatpush1.msra.mxu0 %v962
  %2898 = vmatprep.subr.mxu0 0.0
  %2899 = vmatpush1.msra.mxu0 %v963
  %2900 = vmatprep.subr.mxu0 0.0
  %2901 = vmatpush1.msra.mxu0 %v964
  %2902 = vmatprep.subr.mxu0 0.0
  %2903 = vmatpush1.msra.mxu0 %v965
  %2904 = vmatprep.subr.mxu0 0.0
  %2905 = vmatpush1.msra.mxu0 %v966
  %2906 = vmatprep.subr.mxu0 0.0
  %2907 = vmatpush1.msra.mxu0 %v967
  %2908 = vmatprep.subr.mxu0 0.0
  %2909 = vmatpush1.msra.mxu0 %v968
  %2910 = vmatprep.subr.mxu0 0.0
  %2911 = vmatpush1.msra.mxu0 %v969
  %2912 = vmatprep.subr.mxu0 0.0
  %2913 = vmatpush1.msra.mxu0 %v970
  %2914 = vmatprep.subr.mxu0 0.0
  %2915 = vmatpush1.msra.mxu0 %v971
  %2916 = vmatprep.subr.mxu0 0.0
  %2917 = vmatpush1.msra.mxu0 %v972
  %2918 = vmatprep.subr.mxu0 0.0
  %2919 = vmatpush1.msra.mxu0 %v973
  %2920 = vmatprep.subr.mxu0 0.0
  %2921 = vmatpush1.msra.mxu0 %v974
  %2922 = vmatprep.subr.mxu0 0.0
  %2923 = vmatpush1.msra.mxu0 %v975
  %2924 = vmatprep.subr.mxu0 0.0
  %2925 = vmatpush1.msra.mxu0 %v976
  %2926 = vmatprep.subr.mxu0 0.0
  %2927 = vmatpush1.msra.mxu0 %v977
  %2928 = vmatprep.subr.mxu0 0.0
  %2929 = vmatpush1.msra.mxu0 %v978
  %2930 = vmatprep.mubr.f32.mxu0 %v39
  %2931 = vmatmul.mubr.f32.gmra.mrb[0].mxu0 %v38
  %v2932 = vpop.f32.mrb[0].mxu0
  %v2933 = vadd.f32 %v2823, %v2932
  %v2934 = vpop.f32.mrb[0].mxu0
  %2935 = vmatprep.mubr.f32.mxu0 %v100
  %2936 = vmatmul.mubr.f32.gmra.mrb[0].mxu0 %v99
  %v2937 = vpop.f32.mrb[0].mxu0
  %v2938 = vadd.f32 %v2828, %v2937
  %v2939 = vpop.f32.mrb[0].mxu0
  %2940 = vmatprep.mubr.f32.mxu0 %v161
  %2941 = vmatmul.mubr.f32.gmra.mrb[0].mxu0 %v160
  %v2942 = vpop.f32.mrb[0].mxu0
  %v2943 = vadd.f32 %v2833, %v2942
  %v2944 = vpop.f32.mrb[0].mxu0
  %2945 = vmatprep.mubr.f32.mxu0 %v222
  %2946 = vmatmul.mubr.f32.gmra.mrb[0].mxu0 %v221
  %v2947 = vpop.f32.mrb[0].mxu0
  %v2948 = vadd.f32 %v2838, %v2947
  %v2949 = vpop.f32.mrb[0].mxu0
  %2950 = vmatprep.mubr.f32.mxu0 %v283
  %2951 = vmatmul.mubr.f32.gmra.mrb[0].mxu0 %v282
  %v2952 = vpop.f32.mrb[0].mxu0
  %v2953 = vadd.f32 %v2843, %v2952
  %v2954 = vpop.f32.mrb[0].mxu0
  %2955 = vmatprep.mubr.f32.mxu0 %v344
  %2956 = vmatmul.mubr.f32.gmra.mrb[0].mxu0 %v343
  %v2957 = vpop.f32.mrb[0].mxu0
  %v2958 = vadd.f32 %v2848, %v2957
  %v2959 = vpop.f32.mrb[0].mxu0
  %2960 = vmatprep.mubr.f32.mxu0 %v405
  %2961 = vmatmul.mubr.f32.gmra.mrb[0].mxu0 %v404
  %v2962 = vpop.f32.mrb[0].mxu0
  %v2963 = vadd.f32 %v2853, %v2962
  %v2964 = vpop.f32.mrb[0].mxu0
  %2965 = vmatprep.mubr.f32.mxu0 %v466
  %2966 = vmatmul.mubr.f32.gmra.mrb[0].mxu0 %v465
  %v2967 = vpop.f32.mrb[0].mxu0
  %v2968 = vadd.f32 %v2858, %v2967
  %v2969 = vpop.f32.mrb[0].mxu0
  %2970 = vmatprep.mubr.f32.mxu0 %v527
  %2971 = vmatmul.mubr.f32.gmra.mrb[0].mxu0 %v526
  %v2972 = vpop.f32.mrb[0].mxu0
  %v2973 = vadd.f32 %v2863, %v2972
  %v2974 = vpop.f32.mrb[0].mxu0
  %2975 = vdwg.mxu0
  %2976 = vmatprep.subr.mxu0 0.0
  %2977 = vmatpush1.msra.mxu0 %v979
  %2978 = vmatprep.subr.mxu0 0.0
  %2979 = vmatpush1.msra.mxu0 %v980
  %2980 = vmatprep.subr.mxu0 0.0
  %2981 = vmatpush1.msra.mxu0 %v981
  %2982 = vmatprep.subr.mxu0 0.0
  %2983 = vmatpush1.msra.mxu0 %v982
  %2984 = vmatprep.subr.mxu0 0.0
  %2985 = vmatpush1.msra.mxu0 %v983
  %2986 = vmatprep.subr.mxu0 0.0
  %2987 = vmatpush1.msra.mxu0 %v984
  %2988 = vmatprep.subr.mxu0 0.0
  %2989 = vmatpush1.msra.mxu0 %v985
  %2990 = vmatprep.subr.mxu0 0.0
  %2991 = vmatpush1.msra.mxu0 %v986
  %2992 = vmatprep.subr.mxu0 0.0
  %2993 = vmatpush1.msra.mxu0 %v987
  %2994 = vmatprep.subr.mxu0 0.0
  %2995 = vmatpush1.msra.mxu0 %v988
  %2996 = vmatprep.subr.mxu0 0.0
  %2997 = vmatpush1.msra.mxu0 %v989
  %2998 = vmatprep.subr.mxu0 0.0
  %2999 = vmatpush1.msra.mxu0 %v990
  %3000 = vmatprep.subr.mxu0 0.0
  %3001 = vmatpush1.msra.mxu0 %v991
  %3002 = vmatprep.subr.mxu0 0.0
  %3003 = vmatpush1.msra.mxu0 %v992
  %3004 = vmatprep.subr.mxu0 0.0
  %3005 = vmatpush1.msra.mxu0 %v993
  %3006 = vmatprep.subr.mxu0 0.0
  %3007 = vmatpush1.msra.mxu0 %v994
  %3008 = vmatprep.subr.mxu0 0.0
  %3009 = vmatpush1.msra.mxu0 %v995
  %3010 = vmatprep.subr.mxu0 0.0
  %3011 = vmatpush1.msra.mxu0 %v996
  %3012 = vmatprep.subr.mxu0 0.0
  %3013 = vmatpush1.msra.mxu0 %v997
  %3014 = vmatprep.subr.mxu0 0.0
  %3015 = vmatpush1.msra.mxu0 %v998
  %3016 = vmatprep.subr.mxu0 0.0
  %3017 = vmatpush1.msra.mxu0 %v999
  %3018 = vmatprep.subr.mxu0 0.0
  %3019 = vmatpush1.msra.mxu0 %v1000
  %3020 = vmatprep.subr.mxu0 0.0
  %3021 = vmatpush1.msra.mxu0 %v1001
  %3022 = vmatprep.subr.mxu0 0.0
  %3023 = vmatpush1.msra.mxu0 %v1002
  %3024 = vmatprep.subr.mxu0 0.0
  %3025 = vmatpush1.msra.mxu0 %v1003
  %3026 = vmatprep.subr.mxu0 0.0
  %3027 = vmatpush1.msra.mxu0 %v1004
  %3028 = vmatprep.subr.mxu0 0.0
  %3029 = vmatpush1.msra.mxu0 %v1005
  %3030 = vmatprep.subr.mxu0 0.0
  %3031 = vmatpush1.msra.mxu0 %v1006
  %3032 = vmatprep.subr.mxu0 0.0
  %3033 = vmatpush1.msra.mxu0 %v1007
  %3034 = vmatprep.subr.mxu0 0.0
  %3035 = vmatpush1.msra.mxu0 %v1008
  %3036 = vmatprep.subr.mxu0 0.0
  %3037 = vmatpush1.msra.mxu0 %v1009
  %3038 = vmatprep.subr.mxu0 0.0
  %3039 = vmatpush1.msra.mxu0 %v1010
  %3040 = vmatprep.mubr.f32.mxu0 %v41
  %3041 = vmatmul.mubr.f32.gmra.mrb[0].mxu0 %v40
  %v3042 = vpop.f32.mrb[0].mxu0
  %v3043 = vadd.f32 %v2933, %v3042
  %v3044 = vpop.f32.mrb[0].mxu0
  %3045 = vmatprep.mubr.f32.mxu0 %v102
  %3046 = vmatmul.mubr.f32.gmra.mrb[0].mxu0 %v101
  %v3047 = vpop.f32.mrb[0].mxu0
  %v3048 = vadd.f32 %v2938, %v3047
  %v3049 = vpop.f32.mrb[0].mxu0
  %3050 = vmatprep.mubr.f32.mxu0 %v163
  %3051 = vmatmul.mubr.f32.gmra.mrb[0].mxu0 %v162
  %v3052 = vpop.f32.mrb[0].mxu0
  %v3053 = vadd.f32 %v2943, %v3052
  %v3054 = vpop.f32.mrb[0].mxu0
  %3055 = vmatprep.mubr.f32.mxu0 %v224
  %3056 = vmatmul.mubr.f32.gmra.mrb[0].mxu0 %v223
  %v3057 = vpop.f32.mrb[0].mxu0
  %v3058 = vadd.f32 %v2948, %v3057
  %v3059 = vpop.f32.mrb[0].mxu0
  %3060 = vmatprep.mubr.f32.mxu0 %v285
  %3061 = vmatmul.mubr.f32.gmra.mrb[0].mxu0 %v284
  %v3062 = vpop.f32.mrb[0].mxu0
  %v3063 = vadd.f32 %v2953, %v3062
  %v3064 = vpop.f32.mrb[0].mxu0
  %3065 = vmatprep.mubr.f32.mxu0 %v346
  %3066 = vmatmul.mubr.f32.gmra.mrb[0].mxu0 %v345
  %v3067 = vpop.f32.mrb[0].mxu0
  %v3068 = vadd.f32 %v2958, %v3067
  %v3069 = vpop.f32.mrb[0].mxu0
  %3070 = vmatprep.mubr.f32.mxu0 %v407
  %3071 = vmatmul.mubr.f32.gmra.mrb[0].mxu0 %v406
  %v3072 = vpop.f32.mrb[0].mxu0
  %v3073 = vadd.f32 %v2963, %v3072
  %v3074 = vpop.f32.mrb[0].mxu0
  %3075 = vmatprep.mubr.f32.mxu0 %v468
  %3076 = vmatmul.mubr.f32.gmra.mrb[0].mxu0 %v467
  %v3077 = vpop.f32.mrb[0].mxu0
  %v3078 = vadd.f32 %v2968, %v3077
  %v3079 = vpop.f32.mrb[0].mxu0
  %3080 = vmatprep.mubr.f32.mxu0 %v529
  %3081 = vmatmul.mubr.f32.gmra.mrb[0].mxu0 %v528
  %v3082 = vpop.f32.mrb[0].mxu0
  %v3083 = vadd.f32 %v2973, %v3082
  %v3084 = vpop.f32.mrb[0].mxu0
  %3085 = vdwg.mxu0
  %3086 = vmatprep.subr.mxu0 0.0
  %3087 = vmatpush1.msra.mxu0 %v1011
  %3088 = vmatprep.subr.mxu0 0.0
  %3089 = vmatpush1.msra.mxu0 %v1012
  %3090 = vmatprep.subr.mxu0 0.0
  %3091 = vmatpush1.msra.mxu0 %v1013
  %3092 = vmatprep.subr.mxu0 0.0
  %3093 = vmatpush1.msra.mxu0 %v1014
  %3094 = vmatprep.subr.mxu0 0.0
  %3095 = vmatpush1.msra.mxu0 %v1015
  %3096 = vmatprep.subr.mxu0 0.0
  %3097 = vmatpush1.msra.mxu0 %v1016
  %3098 = vmatprep.subr.mxu0 0.0
  %3099 = vmatpush1.msra.mxu0 %v1017
  %3100 = vmatprep.subr.mxu0 0.0
  %3101 = vmatpush1.msra.mxu0 %v1018
  %3102 = vmatprep.subr.mxu0 0.0
  %3103 = vmatpush1.msra.mxu0 %v1019
  %3104 = vmatprep.subr.mxu0 0.0
  %3105 = vmatpush1.msra.mxu0 %v1020
  %3106 = vmatprep.subr.mxu0 0.0
  %3107 = vmatpush1.msra.mxu0 %v1021
  %3108 = vmatprep.subr.mxu0 0.0
  %3109 = vmatpush1.msra.mxu0 %v1022
  %3110 = vmatprep.subr.mxu0 0.0
  %3111 = vmatpush1.msra.mxu0 %v1023
  %3112 = vmatprep.subr.mxu0 0.0
  %3113 = vmatpush1.msra.mxu0 %v1024
  %3114 = vmatprep.subr.mxu0 0.0
  %3115 = vmatpush1.msra.mxu0 %v1025
  %3116 = vmatprep.subr.mxu0 0.0
  %3117 = vmatpush1.msra.mxu0 %v1026
  %3118 = vmatprep.subr.mxu0 0.0
  %3119 = vmatpush1.msra.mxu0 %v1027
  %3120 = vmatprep.subr.mxu0 0.0
  %3121 = vmatpush1.msra.mxu0 %v1028
  %3122 = vmatprep.subr.mxu0 0.0
  %3123 = vmatpush1.msra.mxu0 %v1029
  %3124 = vmatprep.subr.mxu0 0.0
  %3125 = vmatpush1.msra.mxu0 %v1030
  %3126 = vmatprep.subr.mxu0 0.0
  %3127 = vmatpush1.msra.mxu0 %v1031
  %3128 = vmatprep.subr.mxu0 0.0
  %3129 = vmatpush1.msra.mxu0 %v1032
  %3130 = vmatprep.subr.mxu0 0.0
  %3131 = vmatpush1.msra.mxu0 %v1033
  %3132 = vmatprep.subr.mxu0 0.0
  %3133 = vmatpush1.msra.mxu0 %v1034
  %3134 = vmatprep.subr.mxu0 0.0
  %3135 = vmatpush1.msra.mxu0 %v1035
  %3136 = vmatprep.subr.mxu0 0.0
  %3137 = vmatpush1.msra.mxu0 %v1036
  %3138 = vmatprep.subr.mxu0 0.0
  %3139 = vmatpush1.msra.mxu0 %v1037
  %3140 = vmatprep.subr.mxu0 0.0
  %3141 = vmatpush1.msra.mxu0 %v1038
  %3142 = vmatprep.subr.mxu0 0.0
  %3143 = vmatpush1.msra.mxu0 %v1039
  %3144 = vmatprep.subr.mxu0 0.0
  %3145 = vmatpush1.msra.mxu0 %v1040
  %3146 = vmatprep.subr.mxu0 0.0
  %3147 = vmatpush1.msra.mxu0 %v1041
  %3148 = vmatprep.subr.mxu0 0.0
  %3149 = vmatpush1.msra.mxu0 %v1042
  %3150 = vmatprep.mubr.f32.mxu0 %v43
  %3151 = vmatmul.mubr.f32.gmra.mrb[0].mxu0 %v42
  %v3152 = vpop.f32.mrb[0].mxu0
  %v3153 = vadd.f32 %v3043, %v3152
  %v3154 = vpop.f32.mrb[0].mxu0
  %3155 = vmatprep.mubr.f32.mxu0 %v104
  %3156 = vmatmul.mubr.f32.gmra.mrb[0].mxu0 %v103
  %v3157 = vpop.f32.mrb[0].mxu0
  %v3158 = vadd.f32 %v3048, %v3157
  %v3159 = vpop.f32.mrb[0].mxu0
  %3160 = vmatprep.mubr.f32.mxu0 %v165
  %3161 = vmatmul.mubr.f32.gmra.mrb[0].mxu0 %v164
  %v3162 = vpop.f32.mrb[0].mxu0
  %v3163 = vadd.f32 %v3053, %v3162
  %v3164 = vpop.f32.mrb[0].mxu0
  %3165 = vmatprep.mubr.f32.mxu0 %v226
  %3166 = vmatmul.mubr.f32.gmra.mrb[0].mxu0 %v225
  %v3167 = vpop.f32.mrb[0].mxu0
  %v3168 = vadd.f32 %v3058, %v3167
  %v3169 = vpop.f32.mrb[0].mxu0
  %3170 = vmatprep.mubr.f32.mxu0 %v287
  %3171 = vmatmul.mubr.f32.gmra.mrb[0].mxu0 %v286
  %v3172 = vpop.f32.mrb[0].mxu0
  %v3173 = vadd.f32 %v3063, %v3172
  %v3174 = vpop.f32.mrb[0].mxu0
  %3175 = vmatprep.mubr.f32.mxu0 %v348
  %3176 = vmatmul.mubr.f32.gmra.mrb[0].mxu0 %v347
  %v3177 = vpop.f32.mrb[0].mxu0
  %v3178 = vadd.f32 %v3068, %v3177
  %v3179 = vpop.f32.mrb[0].mxu0
  %3180 = vmatprep.mubr.f32.mxu0 %v409
  %3181 = vmatmul.mubr.f32.gmra.mrb[0].mxu0 %v408
  %v3182 = vpop.f32.mrb[0].mxu0
  %v3183 = vadd.f32 %v3073, %v3182
  %v3184 = vpop.f32.mrb[0].mxu0
  %3185 = vmatprep.mubr.f32.mxu0 %v470
  %3186 = vmatmul.mubr.f32.gmra.mrb[0].mxu0 %v469
  %v3187 = vpop.f32.mrb[0].mxu0
  %v3188 = vadd.f32 %v3078, %v3187
  %v3189 = vpop.f32.mrb[0].mxu0
  %3190 = vmatprep.mubr.f32.mxu0 %v531
  %3191 = vmatmul.mubr.f32.gmra.mrb[0].mxu0 %v530
  %v3192 = vpop.f32.mrb[0].mxu0
  %v3193 = vadd.f32 %v3083, %v3192
  %v3194 = vpop.f32.mrb[0].mxu0
  %3195 = vdwg.mxu0
  %3196 = vmatprep.subr.mxu0 0.0
  %3197 = vmatpush1.msra.mxu0 %v1043
  %3198 = vmatprep.subr.mxu0 0.0
  %3199 = vmatpush1.msra.mxu0 %v1044
  %3200 = vmatprep.subr.mxu0 0.0
  %3201 = vmatpush1.msra.mxu0 %v1045
  %3202 = vmatprep.subr.mxu0 0.0
  %3203 = vmatpush1.msra.mxu0 %v1046
  %3204 = vmatprep.subr.mxu0 0.0
  %3205 = vmatpush1.msra.mxu0 %v1047
  %3206 = vmatprep.subr.mxu0 0.0
  %3207 = vmatpush1.msra.mxu0 %v1048
  %3208 = vmatprep.subr.mxu0 0.0
  %3209 = vmatpush1.msra.mxu0 %v1049
  %3210 = vmatprep.subr.mxu0 0.0
  %3211 = vmatpush1.msra.mxu0 %v1050
  %3212 = vmatprep.subr.mxu0 0.0
  %3213 = vmatpush1.msra.mxu0 %v1051
  %3214 = vmatprep.subr.mxu0 0.0
  %3215 = vmatpush1.msra.mxu0 %v1052
  %3216 = vmatprep.subr.mxu0 0.0
  %3217 = vmatpush1.msra.mxu0 %v1053
  %3218 = vmatprep.subr.mxu0 0.0
  %3219 = vmatpush1.msra.mxu0 %v1054
  %3220 = vmatprep.subr.mxu0 0.0
  %3221 = vmatpush1.msra.mxu0 %v1055
  %3222 = vmatprep.subr.mxu0 0.0
  %3223 = vmatpush1.msra.mxu0 %v1056
  %3224 = vmatprep.subr.mxu0 0.0
  %3225 = vmatpush1.msra.mxu0 %v1057
  %3226 = vmatprep.subr.mxu0 0.0
  %3227 = vmatpush1.msra.mxu0 %v1058
  %3228 = vmatprep.subr.mxu0 0.0
  %3229 = vmatpush1.msra.mxu0 %v1059
  %3230 = vmatprep.subr.mxu0 0.0
  %3231 = vmatpush1.msra.mxu0 %v1060
  %3232 = vmatprep.subr.mxu0 0.0
  %3233 = vmatpush1.msra.mxu0 %v1061
  %3234 = vmatprep.subr.mxu0 0.0
  %3235 = vmatpush1.msra.mxu0 %v1062
  %3236 = vmatprep.subr.mxu0 0.0
  %3237 = vmatpush1.msra.mxu0 %v1063
  %3238 = vmatprep.subr.mxu0 0.0
  %3239 = vmatpush1.msra.mxu0 %v1064
  %3240 = vmatprep.subr.mxu0 0.0
  %3241 = vmatpush1.msra.mxu0 %v1065
  %3242 = vmatprep.subr.mxu0 0.0
  %3243 = vmatpush1.msra.mxu0 %v1066
  %3244 = vmatprep.subr.mxu0 0.0
  %3245 = vmatpush1.msra.mxu0 %v1067
  %3246 = vmatprep.subr.mxu0 0.0
  %3247 = vmatpush1.msra.mxu0 %v1068
  %3248 = vmatprep.subr.mxu0 0.0
  %3249 = vmatpush1.msra.mxu0 %v1069
  %3250 = vmatprep.subr.mxu0 0.0
  %3251 = vmatpush1.msra.mxu0 %v1070
  %3252 = vmatprep.subr.mxu0 0.0
  %3253 = vmatpush1.msra.mxu0 %v1071
  %3254 = vmatprep.subr.mxu0 0.0
  %3255 = vmatpush1.msra.mxu0 %v1072
  %3256 = vmatprep.subr.mxu0 0.0
  %3257 = vmatpush1.msra.mxu0 %v1073
  %3258 = vmatprep.subr.mxu0 0.0
  %3259 = vmatpush1.msra.mxu0 %v1074
  %3260 = vmatprep.mubr.f32.mxu0 %v45
  %3261 = vmatmul.mubr.f32.gmra.mrb[0].mxu0 %v44
  %v3262 = vpop.f32.mrb[0].mxu0
  %v3263 = vadd.f32 %v3153, %v3262
  %v3264 = vpop.f32.mrb[0].mxu0
  %3265 = vmatprep.mubr.f32.mxu0 %v106
  %3266 = vmatmul.mubr.f32.gmra.mrb[0].mxu0 %v105
  %v3267 = vpop.f32.mrb[0].mxu0
  %v3268 = vadd.f32 %v3158, %v3267
  %v3269 = vpop.f32.mrb[0].mxu0
  %3270 = vmatprep.mubr.f32.mxu0 %v167
  %3271 = vmatmul.mubr.f32.gmra.mrb[0].mxu0 %v166
  %v3272 = vpop.f32.mrb[0].mxu0
  %v3273 = vadd.f32 %v3163, %v3272
  %v3274 = vpop.f32.mrb[0].mxu0
  %3275 = vmatprep.mubr.f32.mxu0 %v228
  %3276 = vmatmul.mubr.f32.gmra.mrb[0].mxu0 %v227
  %v3277 = vpop.f32.mrb[0].mxu0
  %v3278 = vadd.f32 %v3168, %v3277
  %v3279 = vpop.f32.mrb[0].mxu0
  %3280 = vmatprep.mubr.f32.mxu0 %v289
  %3281 = vmatmul.mubr.f32.gmra.mrb[0].mxu0 %v288
  %v3282 = vpop.f32.mrb[0].mxu0
  %v3283 = vadd.f32 %v3173, %v3282
  %v3284 = vpop.f32.mrb[0].mxu0
  %3285 = vmatprep.mubr.f32.mxu0 %v350
  %3286 = vmatmul.mubr.f32.gmra.mrb[0].mxu0 %v349
  %v3287 = vpop.f32.mrb[0].mxu0
  %v3288 = vadd.f32 %v3178, %v3287
  %v3289 = vpop.f32.mrb[0].mxu0
  %3290 = vmatprep.mubr.f32.mxu0 %v411
  %3291 = vmatmul.mubr.f32.gmra.mrb[0].mxu0 %v410
  %v3292 = vpop.f32.mrb[0].mxu0
  %v3293 = vadd.f32 %v3183, %v3292
  %v3294 = vpop.f32.mrb[0].mxu0
  %3295 = vmatprep.mubr.f32.mxu0 %v472
  %3296 = vmatmul.mubr.f32.gmra.mrb[0].mxu0 %v471
  %v3297 = vpop.f32.mrb[0].mxu0
  %v3298 = vadd.f32 %v3188, %v3297
  %v3299 = vpop.f32.mrb[0].mxu0
  %3300 = vmatprep.mubr.f32.mxu0 %v533
  %3301 = vmatmul.mubr.f32.gmra.mrb[0].mxu0 %v532
  %v3302 = vpop.f32.mrb[0].mxu0
  %v3303 = vadd.f32 %v3193, %v3302
  %v3304 = vpop.f32.mrb[0].mxu0
  %3305 = vdwg.mxu0
  %3306 = vmatprep.subr.mxu0 0.0
  %3307 = vmatpush1.msra.mxu0 %v1075
  %3308 = vmatprep.subr.mxu0 0.0
  %3309 = vmatpush1.msra.mxu0 %v1076
  %3310 = vmatprep.subr.mxu0 0.0
  %3311 = vmatpush1.msra.mxu0 %v1077
  %3312 = vmatprep.subr.mxu0 0.0
  %3313 = vmatpush1.msra.mxu0 %v1078
  %3314 = vmatprep.subr.mxu0 0.0
  %3315 = vmatpush1.msra.mxu0 %v1079
  %3316 = vmatprep.subr.mxu0 0.0
  %3317 = vmatpush1.msra.mxu0 %v1080
  %3318 = vmatprep.subr.mxu0 0.0
  %3319 = vmatpush1.msra.mxu0 %v1081
  %3320 = vmatprep.subr.mxu0 0.0
  %3321 = vmatpush1.msra.mxu0 %v1082
  %3322 = vmatprep.subr.mxu0 0.0
  %3323 = vmatpush1.msra.mxu0 %v1083
  %3324 = vmatprep.subr.mxu0 0.0
  %3325 = vmatpush1.msra.mxu0 %v1084
  %3326 = vmatprep.subr.mxu0 0.0
  %3327 = vmatpush1.msra.mxu0 %v1085
  %3328 = vmatprep.subr.mxu0 0.0
  %3329 = vmatpush1.msra.mxu0 %v1086
  %3330 = vmatprep.subr.mxu0 0.0
  %3331 = vmatpush1.msra.mxu0 %v1087
  %3332 = vmatprep.subr.mxu0 0.0
  %3333 = vmatpush1.msra.mxu0 %v1088
  %3334 = vmatprep.subr.mxu0 0.0
  %3335 = vmatpush1.msra.mxu0 %v1089
  %3336 = vmatprep.subr.mxu0 0.0
  %3337 = vmatpush1.msra.mxu0 %v1090
  %3338 = vmatprep.subr.mxu0 0.0
  %3339 = vmatpush1.msra.mxu0 %v1091
  %3340 = vmatprep.subr.mxu0 0.0
  %3341 = vmatpush1.msra.mxu0 %v1092
  %3342 = vmatprep.subr.mxu0 0.0
  %3343 = vmatpush1.msra.mxu0 %v1093
  %3344 = vmatprep.subr.mxu0 0.0
  %3345 = vmatpush1.msra.mxu0 %v1094
  %3346 = vmatprep.subr.mxu0 0.0
  %3347 = vmatpush1.msra.mxu0 %v1095
  %3348 = vmatprep.subr.mxu0 0.0
  %3349 = vmatpush1.msra.mxu0 %v1096
  %3350 = vmatprep.subr.mxu0 0.0
  %3351 = vmatpush1.msra.mxu0 %v1097
  %3352 = vmatprep.subr.mxu0 0.0
  %3353 = vmatpush1.msra.mxu0 %v1098
  %3354 = vmatprep.subr.mxu0 0.0
  %3355 = vmatpush1.msra.mxu0 %v1099
  %3356 = vmatprep.subr.mxu0 0.0
  %3357 = vmatpush1.msra.mxu0 %v1100
  %3358 = vmatprep.subr.mxu0 0.0
  %3359 = vmatpush1.msra.mxu0 %v1101
  %3360 = vmatprep.subr.mxu0 0.0
  %3361 = vmatpush1.msra.mxu0 %v1102
  %3362 = vmatprep.subr.mxu0 0.0
  %3363 = vmatpush1.msra.mxu0 %v1103
  %3364 = vmatprep.subr.mxu0 0.0
  %3365 = vmatpush1.msra.mxu0 %v1104
  %3366 = vmatprep.subr.mxu0 0.0
  %3367 = vmatpush1.msra.mxu0 %v1105
  %3368 = vmatprep.subr.mxu0 0.0
  %3369 = vmatpush1.msra.mxu0 %v1106
  %3370 = vmatprep.mubr.f32.mxu0 %v47
  %3371 = vmatmul.mubr.f32.gmra.mrb[0].mxu0 %v46
  %v3372 = vpop.f32.mrb[0].mxu0
  %v3373 = vadd.f32 %v3263, %v3372
  %v3374 = vpop.f32.mrb[0].mxu0
  %3375 = vmatprep.mubr.f32.mxu0 %v108
  %3376 = vmatmul.mubr.f32.gmra.mrb[0].mxu0 %v107
  %v3377 = vpop.f32.mrb[0].mxu0
  %v3378 = vadd.f32 %v3268, %v3377
  %v3379 = vpop.f32.mrb[0].mxu0
  %3380 = vmatprep.mubr.f32.mxu0 %v169
  %3381 = vmatmul.mubr.f32.gmra.mrb[0].mxu0 %v168
  %v3382 = vpop.f32.mrb[0].mxu0
  %v3383 = vadd.f32 %v3273, %v3382
  %v3384 = vpop.f32.mrb[0].mxu0
  %3385 = vmatprep.mubr.f32.mxu0 %v230
  %3386 = vmatmul.mubr.f32.gmra.mrb[0].mxu0 %v229
  %v3387 = vpop.f32.mrb[0].mxu0
  %v3388 = vadd.f32 %v3278, %v3387
  %v3389 = vpop.f32.mrb[0].mxu0
  %3390 = vmatprep.mubr.f32.mxu0 %v291
  %3391 = vmatmul.mubr.f32.gmra.mrb[0].mxu0 %v290
  %v3392 = vpop.f32.mrb[0].mxu0
  %v3393 = vadd.f32 %v3283, %v3392
  %v3394 = vpop.f32.mrb[0].mxu0
  %3395 = vmatprep.mubr.f32.mxu0 %v352
  %3396 = vmatmul.mubr.f32.gmra.mrb[0].mxu0 %v351
  %v3397 = vpop.f32.mrb[0].mxu0
  %v3398 = vadd.f32 %v3288, %v3397
  %v3399 = vpop.f32.mrb[0].mxu0
  %3400 = vmatprep.mubr.f32.mxu0 %v413
  %3401 = vmatmul.mubr.f32.gmra.mrb[0].mxu0 %v412
  %v3402 = vpop.f32.mrb[0].mxu0
  %v3403 = vadd.f32 %v3293, %v3402
  %v3404 = vpop.f32.mrb[0].mxu0
  %3405 = vmatprep.mubr.f32.mxu0 %v474
  %3406 = vmatmul.mubr.f32.gmra.mrb[0].mxu0 %v473
  %v3407 = vpop.f32.mrb[0].mxu0
  %v3408 = vadd.f32 %v3298, %v3407
  %v3409 = vpop.f32.mrb[0].mxu0
  %3410 = vmatprep.mubr.f32.mxu0 %v535
  %3411 = vmatmul.mubr.f32.gmra.mrb[0].mxu0 %v534
  %v3412 = vpop.f32.mrb[0].mxu0
  %v3413 = vadd.f32 %v3303, %v3412
  %v3414 = vpop.f32.mrb[0].mxu0
  %3415 = vdwg.mxu0
  %3416 = vmatprep.subr.mxu0 0.0
  %3417 = vmatpush1.msra.mxu0 %v1107
  %3418 = vmatprep.subr.mxu0 0.0
  %3419 = vmatpush1.msra.mxu0 %v1108
  %3420 = vmatprep.subr.mxu0 0.0
  %3421 = vmatpush1.msra.mxu0 %v1109
  %3422 = vmatprep.subr.mxu0 0.0
  %3423 = vmatpush1.msra.mxu0 %v1110
  %3424 = vmatprep.subr.mxu0 0.0
  %3425 = vmatpush1.msra.mxu0 %v1111
  %3426 = vmatprep.subr.mxu0 0.0
  %3427 = vmatpush1.msra.mxu0 %v1112
  %3428 = vmatprep.subr.mxu0 0.0
  %3429 = vmatpush1.msra.mxu0 %v1113
  %3430 = vmatprep.subr.mxu0 0.0
  %3431 = vmatpush1.msra.mxu0 %v1114
  %3432 = vmatprep.subr.mxu0 0.0
  %3433 = vmatpush1.msra.mxu0 %v1115
  %3434 = vmatprep.subr.mxu0 0.0
  %3435 = vmatpush1.msra.mxu0 %v1116
  %3436 = vmatprep.subr.mxu0 0.0
  %3437 = vmatpush1.msra.mxu0 %v1117
  %3438 = vmatprep.subr.mxu0 0.0
  %3439 = vmatpush1.msra.mxu0 %v1118
  %3440 = vmatprep.subr.mxu0 0.0
  %3441 = vmatpush1.msra.mxu0 %v1119
  %3442 = vmatprep.subr.mxu0 0.0
  %3443 = vmatpush1.msra.mxu0 %v1120
  %3444 = vmatprep.subr.mxu0 0.0
  %3445 = vmatpush1.msra.mxu0 %v1121
  %3446 = vmatprep.subr.mxu0 0.0
  %3447 = vmatpush1.msra.mxu0 %v1122
  %3448 = vmatprep.subr.mxu0 0.0
  %3449 = vmatpush1.msra.mxu0 %v1123
  %3450 = vmatprep.subr.mxu0 0.0
  %3451 = vmatpush1.msra.mxu0 %v1124
  %3452 = vmatprep.subr.mxu0 0.0
  %3453 = vmatpush1.msra.mxu0 %v1125
  %3454 = vmatprep.subr.mxu0 0.0
  %3455 = vmatpush1.msra.mxu0 %v1126
  %3456 = vmatprep.subr.mxu0 0.0
  %3457 = vmatpush1.msra.mxu0 %v1127
  %3458 = vmatprep.subr.mxu0 0.0
  %3459 = vmatpush1.msra.mxu0 %v1128
  %3460 = vmatprep.subr.mxu0 0.0
  %3461 = vmatpush1.msra.mxu0 %v1129
  %3462 = vmatprep.subr.mxu0 0.0
  %3463 = vmatpush1.msra.mxu0 %v1130
  %3464 = vmatprep.subr.mxu0 0.0
  %3465 = vmatpush1.msra.mxu0 %v1131
  %3466 = vmatprep.subr.mxu0 0.0
  %3467 = vmatpush1.msra.mxu0 %v1132
  %3468 = vmatprep.subr.mxu0 0.0
  %3469 = vmatpush1.msra.mxu0 %v1133
  %3470 = vmatprep.subr.mxu0 0.0
  %3471 = vmatpush1.msra.mxu0 %v1134
  %3472 = vmatprep.subr.mxu0 0.0
  %3473 = vmatpush1.msra.mxu0 %v1135
  %3474 = vmatprep.subr.mxu0 0.0
  %3475 = vmatpush1.msra.mxu0 %v1136
  %3476 = vmatprep.subr.mxu0 0.0
  %3477 = vmatpush1.msra.mxu0 %v1137
  %3478 = vmatprep.subr.mxu0 0.0
  %3479 = vmatpush1.msra.mxu0 %v1138
  %3480 = vmatprep.mubr.f32.mxu0 %v49
  %3481 = vmatmul.mubr.f32.gmra.mrb[0].mxu0 %v48
  %v3482 = vpop.f32.mrb[0].mxu0
  %v3483 = vadd.f32 %v3373, %v3482
  %v3484 = vpop.f32.mrb[0].mxu0
  %3485 = vmatprep.mubr.f32.mxu0 %v110
  %3486 = vmatmul.mubr.f32.gmra.mrb[0].mxu0 %v109
  %v3487 = vpop.f32.mrb[0].mxu0
  %v3488 = vadd.f32 %v3378, %v3487
  %v3489 = vpop.f32.mrb[0].mxu0
  %3490 = vmatprep.mubr.f32.mxu0 %v171
  %3491 = vmatmul.mubr.f32.gmra.mrb[0].mxu0 %v170
  %v3492 = vpop.f32.mrb[0].mxu0
  %v3493 = vadd.f32 %v3383, %v3492
  %v3494 = vpop.f32.mrb[0].mxu0
  %3495 = vmatprep.mubr.f32.mxu0 %v232
  %3496 = vmatmul.mubr.f32.gmra.mrb[0].mxu0 %v231
  %v3497 = vpop.f32.mrb[0].mxu0
  %v3498 = vadd.f32 %v3388, %v3497
  %v3499 = vpop.f32.mrb[0].mxu0
  %3500 = vmatprep.mubr.f32.mxu0 %v293
  %3501 = vmatmul.mubr.f32.gmra.mrb[0].mxu0 %v292
  %v3502 = vpop.f32.mrb[0].mxu0
  %v3503 = vadd.f32 %v3393, %v3502
  %v3504 = vpop.f32.mrb[0].mxu0
  %3505 = vmatprep.mubr.f32.mxu0 %v354
  %3506 = vmatmul.mubr.f32.gmra.mrb[0].mxu0 %v353
  %v3507 = vpop.f32.mrb[0].mxu0
  %v3508 = vadd.f32 %v3398, %v3507
  %v3509 = vpop.f32.mrb[0].mxu0
  %3510 = vmatprep.mubr.f32.mxu0 %v415
  %3511 = vmatmul.mubr.f32.gmra.mrb[0].mxu0 %v414
  %v3512 = vpop.f32.mrb[0].mxu0
  %v3513 = vadd.f32 %v3403, %v3512
  %v3514 = vpop.f32.mrb[0].mxu0
  %3515 = vmatprep.mubr.f32.mxu0 %v476
  %3516 = vmatmul.mubr.f32.gmra.mrb[0].mxu0 %v475
  %v3517 = vpop.f32.mrb[0].mxu0
  %v3518 = vadd.f32 %v3408, %v3517
  %v3519 = vpop.f32.mrb[0].mxu0
  %3520 = vmatprep.mubr.f32.mxu0 %v537
  %3521 = vmatmul.mubr.f32.gmra.mrb[0].mxu0 %v536
  %v3522 = vpop.f32.mrb[0].mxu0
  %v3523 = vadd.f32 %v3413, %v3522
  %v3524 = vpop.f32.mrb[0].mxu0
  %3525 = vdwg.mxu0
  %3526 = vmatprep.subr.mxu0 0.0
  %3527 = vmatpush1.msra.mxu0 %v1139
  %3528 = vmatprep.subr.mxu0 0.0
  %3529 = vmatpush1.msra.mxu0 %v1140
  %3530 = vmatprep.subr.mxu0 0.0
  %3531 = vmatpush1.msra.mxu0 %v1141
  %3532 = vmatprep.subr.mxu0 0.0
  %3533 = vmatpush1.msra.mxu0 %v1142
  %3534 = vmatprep.subr.mxu0 0.0
  %3535 = vmatpush1.msra.mxu0 %v1143
  %3536 = vmatprep.subr.mxu0 0.0
  %3537 = vmatpush1.msra.mxu0 %v1144
  %3538 = vmatprep.subr.mxu0 0.0
  %3539 = vmatpush1.msra.mxu0 %v1145
  %3540 = vmatprep.subr.mxu0 0.0
  %3541 = vmatpush1.msra.mxu0 %v1146
  %3542 = vmatprep.subr.mxu0 0.0
  %3543 = vmatpush1.msra.mxu0 %v1147
  %3544 = vmatprep.subr.mxu0 0.0
  %3545 = vmatpush1.msra.mxu0 %v1148
  %3546 = vmatprep.subr.mxu0 0.0
  %3547 = vmatpush1.msra.mxu0 %v1149
  %3548 = vmatprep.subr.mxu0 0.0
  %3549 = vmatpush1.msra.mxu0 %v1150
  %3550 = vmatprep.subr.mxu0 0.0
  %3551 = vmatpush1.msra.mxu0 %v1151
  %3552 = vmatprep.subr.mxu0 0.0
  %3553 = vmatpush1.msra.mxu0 %v1152
  %3554 = vmatprep.subr.mxu0 0.0
  %3555 = vmatpush1.msra.mxu0 %v1153
  %3556 = vmatprep.subr.mxu0 0.0
  %3557 = vmatpush1.msra.mxu0 %v1154
  %3558 = vmatprep.subr.mxu0 0.0
  %3559 = vmatpush1.msra.mxu0 %v1155
  %3560 = vmatprep.subr.mxu0 0.0
  %3561 = vmatpush1.msra.mxu0 %v1156
  %3562 = vmatprep.subr.mxu0 0.0
  %3563 = vmatpush1.msra.mxu0 %v1157
  %3564 = vmatprep.subr.mxu0 0.0
  %3565 = vmatpush1.msra.mxu0 %v1158
  %3566 = vmatprep.subr.mxu0 0.0
  %3567 = vmatpush1.msra.mxu0 %v1159
  %3568 = vmatprep.subr.mxu0 0.0
  %3569 = vmatpush1.msra.mxu0 %v1160
  %3570 = vmatprep.subr.mxu0 0.0
  %3571 = vmatpush1.msra.mxu0 %v1161
  %3572 = vmatprep.subr.mxu0 0.0
  %3573 = vmatpush1.msra.mxu0 %v1162
  %3574 = vmatprep.subr.mxu0 0.0
  %3575 = vmatpush1.msra.mxu0 %v1163
  %3576 = vmatprep.subr.mxu0 0.0
  %3577 = vmatpush1.msra.mxu0 %v1164
  %3578 = vmatprep.subr.mxu0 0.0
  %3579 = vmatpush1.msra.mxu0 %v1165
  %3580 = vmatprep.subr.mxu0 0.0
  %3581 = vmatpush1.msra.mxu0 %v1166
  %3582 = vmatprep.subr.mxu0 0.0
  %3583 = vmatpush1.msra.mxu0 %v1167
  %3584 = vmatprep.subr.mxu0 0.0
  %3585 = vmatpush1.msra.mxu0 %v1168
  %3586 = vmatprep.subr.mxu0 0.0
  %3587 = vmatpush1.msra.mxu0 %v1169
  %3588 = vmatprep.subr.mxu0 0.0
  %3589 = vmatpush1.msra.mxu0 %v1170
  %3590 = vmatprep.mubr.f32.mxu0 %v51
  %3591 = vmatmul.mubr.f32.gmra.mrb[0].mxu0 %v50
  %v3592 = vpop.f32.mrb[0].mxu0
  %v3593 = vadd.f32 %v3483, %v3592
  %v3594 = vpop.f32.mrb[0].mxu0
  %3595 = vmatprep.mubr.f32.mxu0 %v112
  %3596 = vmatmul.mubr.f32.gmra.mrb[0].mxu0 %v111
  %v3597 = vpop.f32.mrb[0].mxu0
  %v3598 = vadd.f32 %v3488, %v3597
  %v3599 = vpop.f32.mrb[0].mxu0
  %3600 = vmatprep.mubr.f32.mxu0 %v173
  %3601 = vmatmul.mubr.f32.gmra.mrb[0].mxu0 %v172
  %v3602 = vpop.f32.mrb[0].mxu0
  %v3603 = vadd.f32 %v3493, %v3602
  %v3604 = vpop.f32.mrb[0].mxu0
  %3605 = vmatprep.mubr.f32.mxu0 %v234
  %3606 = vmatmul.mubr.f32.gmra.mrb[0].mxu0 %v233
  %v3607 = vpop.f32.mrb[0].mxu0
  %v3608 = vadd.f32 %v3498, %v3607
  %v3609 = vpop.f32.mrb[0].mxu0
  %3610 = vmatprep.mubr.f32.mxu0 %v295
  %3611 = vmatmul.mubr.f32.gmra.mrb[0].mxu0 %v294
  %v3612 = vpop.f32.mrb[0].mxu0
  %v3613 = vadd.f32 %v3503, %v3612
  %v3614 = vpop.f32.mrb[0].mxu0
  %3615 = vmatprep.mubr.f32.mxu0 %v356
  %3616 = vmatmul.mubr.f32.gmra.mrb[0].mxu0 %v355
  %v3617 = vpop.f32.mrb[0].mxu0
  %v3618 = vadd.f32 %v3508, %v3617
  %v3619 = vpop.f32.mrb[0].mxu0
  %3620 = vmatprep.mubr.f32.mxu0 %v417
  %3621 = vmatmul.mubr.f32.gmra.mrb[0].mxu0 %v416
  %v3622 = vpop.f32.mrb[0].mxu0
  %v3623 = vadd.f32 %v3513, %v3622
  %v3624 = vpop.f32.mrb[0].mxu0
  %3625 = vmatprep.mubr.f32.mxu0 %v478
  %3626 = vmatmul.mubr.f32.gmra.mrb[0].mxu0 %v477
  %v3627 = vpop.f32.mrb[0].mxu0
  %v3628 = vadd.f32 %v3518, %v3627
  %v3629 = vpop.f32.mrb[0].mxu0
  %3630 = vmatprep.mubr.f32.mxu0 %v539
  %3631 = vmatmul.mubr.f32.gmra.mrb[0].mxu0 %v538
  %v3632 = vpop.f32.mrb[0].mxu0
  %v3633 = vadd.f32 %v3523, %v3632
  %v3634 = vpop.f32.mrb[0].mxu0
  %3635 = vdwg.mxu0
  %3636 = vmatprep.subr.mxu0 0.0
  %3637 = vmatpush1.msra.mxu0 %v1171
  %3638 = vmatprep.subr.mxu0 0.0
  %3639 = vmatpush1.msra.mxu0 %v1172
  %3640 = vmatprep.subr.mxu0 0.0
  %3641 = vmatpush1.msra.mxu0 %v1173
  %3642 = vmatprep.subr.mxu0 0.0
  %3643 = vmatpush1.msra.mxu0 %v1174
  %3644 = vmatprep.subr.mxu0 0.0
  %3645 = vmatpush1.msra.mxu0 %v1175
  %3646 = vmatprep.subr.mxu0 0.0
  %3647 = vmatpush1.msra.mxu0 %v1176
  %3648 = vmatprep.subr.mxu0 0.0
  %3649 = vmatpush1.msra.mxu0 %v1177
  %3650 = vmatprep.subr.mxu0 0.0
  %3651 = vmatpush1.msra.mxu0 %v1178
  %3652 = vmatprep.subr.mxu0 0.0
  %3653 = vmatpush1.msra.mxu0 %v1179
  %3654 = vmatprep.subr.mxu0 0.0
  %3655 = vmatpush1.msra.mxu0 %v1180
  %3656 = vmatprep.subr.mxu0 0.0
  %3657 = vmatpush1.msra.mxu0 %v1181
  %3658 = vmatprep.subr.mxu0 0.0
  %3659 = vmatpush1.msra.mxu0 %v1182
  %3660 = vmatprep.subr.mxu0 0.0
  %3661 = vmatpush1.msra.mxu0 %v1183
  %3662 = vmatprep.subr.mxu0 0.0
  %3663 = vmatpush1.msra.mxu0 %v1184
  %3664 = vmatprep.subr.mxu0 0.0
  %3665 = vmatpush1.msra.mxu0 %v1185
  %3666 = vmatprep.subr.mxu0 0.0
  %3667 = vmatpush1.msra.mxu0 %v1186
  %3668 = vmatprep.subr.mxu0 0.0
  %3669 = vmatpush1.msra.mxu0 %v1187
  %3670 = vmatprep.subr.mxu0 0.0
  %3671 = vmatpush1.msra.mxu0 %v1188
  %3672 = vmatprep.subr.mxu0 0.0
  %3673 = vmatpush1.msra.mxu0 %v1189
  %3674 = vmatprep.subr.mxu0 0.0
  %3675 = vmatpush1.msra.mxu0 %v1190
  %3676 = vmatprep.subr.mxu0 0.0
  %3677 = vmatpush1.msra.mxu0 %v1191
  %3678 = vmatprep.subr.mxu0 0.0
  %3679 = vmatpush1.msra.mxu0 %v1192
  %3680 = vmatprep.subr.mxu0 0.0
  %3681 = vmatpush1.msra.mxu0 %v1193
  %3682 = vmatprep.subr.mxu0 0.0
  %3683 = vmatpush1.msra.mxu0 %v1194
  %3684 = vmatprep.subr.mxu0 0.0
  %3685 = vmatpush1.msra.mxu0 %v1195
  %3686 = vmatprep.subr.mxu0 0.0
  %3687 = vmatpush1.msra.mxu0 %v1196
  %3688 = vmatprep.subr.mxu0 0.0
  %3689 = vmatpush1.msra.mxu0 %v1197
  %3690 = vmatprep.subr.mxu0 0.0
  %3691 = vmatpush1.msra.mxu0 %v1198
  %3692 = vmatprep.subr.mxu0 0.0
  %3693 = vmatpush1.msra.mxu0 %v1199
  %3694 = vmatprep.subr.mxu0 0.0
  %3695 = vmatpush1.msra.mxu0 %v1200
  %3696 = vmatprep.subr.mxu0 0.0
  %3697 = vmatpush1.msra.mxu0 %v1201
  %3698 = vmatprep.subr.mxu0 0.0
  %3699 = vmatpush1.msra.mxu0 %v1202
  %3700 = vmatprep.mubr.f32.mxu0 %v53
  %3701 = vmatmul.mubr.f32.gmra.mrb[0].mxu0 %v52
  %v3702 = vpop.f32.mrb[0].mxu0
  %v3703 = vadd.f32 %v3593, %v3702
  %v3704 = vpop.f32.mrb[0].mxu0
  %3705 = vmatprep.mubr.f32.mxu0 %v114
  %3706 = vmatmul.mubr.f32.gmra.mrb[0].mxu0 %v113
  %v3707 = vpop.f32.mrb[0].mxu0
  %v3708 = vadd.f32 %v3598, %v3707
  %v3709 = vpop.f32.mrb[0].mxu0
  %3710 = vmatprep.mubr.f32.mxu0 %v175
  %3711 = vmatmul.mubr.f32.gmra.mrb[0].mxu0 %v174
  %v3712 = vpop.f32.mrb[0].mxu0
  %v3713 = vadd.f32 %v3603, %v3712
  %v3714 = vpop.f32.mrb[0].mxu0
  %3715 = vmatprep.mubr.f32.mxu0 %v236
  %3716 = vmatmul.mubr.f32.gmra.mrb[0].mxu0 %v235
  %v3717 = vpop.f32.mrb[0].mxu0
  %v3718 = vadd.f32 %v3608, %v3717
  %v3719 = vpop.f32.mrb[0].mxu0
  %3720 = vmatprep.mubr.f32.mxu0 %v297
  %3721 = vmatmul.mubr.f32.gmra.mrb[0].mxu0 %v296
  %v3722 = vpop.f32.mrb[0].mxu0
  %v3723 = vadd.f32 %v3613, %v3722
  %v3724 = vpop.f32.mrb[0].mxu0
  %3725 = vmatprep.mubr.f32.mxu0 %v358
  %3726 = vmatmul.mubr.f32.gmra.mrb[0].mxu0 %v357
  %v3727 = vpop.f32.mrb[0].mxu0
  %v3728 = vadd.f32 %v3618, %v3727
  %v3729 = vpop.f32.mrb[0].mxu0
  %3730 = vmatprep.mubr.f32.mxu0 %v419
  %3731 = vmatmul.mubr.f32.gmra.mrb[0].mxu0 %v418
  %v3732 = vpop.f32.mrb[0].mxu0
  %v3733 = vadd.f32 %v3623, %v3732
  %v3734 = vpop.f32.mrb[0].mxu0
  %3735 = vmatprep.mubr.f32.mxu0 %v480
  %3736 = vmatmul.mubr.f32.gmra.mrb[0].mxu0 %v479
  %v3737 = vpop.f32.mrb[0].mxu0
  %v3738 = vadd.f32 %v3628, %v3737
  %v3739 = vpop.f32.mrb[0].mxu0
  %3740 = vmatprep.mubr.f32.mxu0 %v541
  %3741 = vmatmul.mubr.f32.gmra.mrb[0].mxu0 %v540
  %v3742 = vpop.f32.mrb[0].mxu0
  %v3743 = vadd.f32 %v3633, %v3742
  %v3744 = vpop.f32.mrb[0].mxu0
  %3745 = vdwg.mxu0
  %3746 = vmatprep.subr.mxu0 0.0
  %3747 = vmatpush1.msra.mxu0 %v1203
  %3748 = vmatprep.subr.mxu0 0.0
  %3749 = vmatpush1.msra.mxu0 %v1204
  %3750 = vmatprep.subr.mxu0 0.0
  %3751 = vmatpush1.msra.mxu0 %v1205
  %3752 = vmatprep.subr.mxu0 0.0
  %3753 = vmatpush1.msra.mxu0 %v1206
  %3754 = vmatprep.subr.mxu0 0.0
  %3755 = vmatpush1.msra.mxu0 %v1207
  %3756 = vmatprep.subr.mxu0 0.0
  %3757 = vmatpush1.msra.mxu0 %v1208
  %3758 = vmatprep.subr.mxu0 0.0
  %3759 = vmatpush1.msra.mxu0 %v1209
  %3760 = vmatprep.subr.mxu0 0.0
  %3761 = vmatpush1.msra.mxu0 %v1210
  %3762 = vmatprep.subr.mxu0 0.0
  %3763 = vmatpush1.msra.mxu0 %v1211
  %3764 = vmatprep.subr.mxu0 0.0
  %3765 = vmatpush1.msra.mxu0 %v1212
  %3766 = vmatprep.subr.mxu0 0.0
  %3767 = vmatpush1.msra.mxu0 %v1213
  %3768 = vmatprep.subr.mxu0 0.0
  %3769 = vmatpush1.msra.mxu0 %v1214
  %3770 = vmatprep.subr.mxu0 0.0
  %3771 = vmatpush1.msra.mxu0 %v1215
  %3772 = vmatprep.subr.mxu0 0.0
  %3773 = vmatpush1.msra.mxu0 %v1216
  %3774 = vmatprep.subr.mxu0 0.0
  %3775 = vmatpush1.msra.mxu0 %v1217
  %3776 = vmatprep.subr.mxu0 0.0
  %3777 = vmatpush1.msra.mxu0 %v1218
  %3778 = vmatprep.subr.mxu0 0.0
  %3779 = vmatpush1.msra.mxu0 %v1219
  %3780 = vmatprep.subr.mxu0 0.0
  %3781 = vmatpush1.msra.mxu0 %v1220
  %3782 = vmatprep.subr.mxu0 0.0
  %3783 = vmatpush1.msra.mxu0 %v1221
  %3784 = vmatprep.subr.mxu0 0.0
  %3785 = vmatpush1.msra.mxu0 %v1222
  %3786 = vmatprep.subr.mxu0 0.0
  %3787 = vmatpush1.msra.mxu0 %v1223
  %3788 = vmatprep.subr.mxu0 0.0
  %3789 = vmatpush1.msra.mxu0 %v1224
  %3790 = vmatprep.subr.mxu0 0.0
  %3791 = vmatpush1.msra.mxu0 %v1225
  %3792 = vmatprep.subr.mxu0 0.0
  %3793 = vmatpush1.msra.mxu0 %v1226
  %3794 = vmatprep.subr.mxu0 0.0
  %3795 = vmatpush1.msra.mxu0 %v1227
  %3796 = vmatprep.subr.mxu0 0.0
  %3797 = vmatpush1.msra.mxu0 %v1228
  %3798 = vmatprep.subr.mxu0 0.0
  %3799 = vmatpush1.msra.mxu0 %v1229
  %3800 = vmatprep.subr.mxu0 0.0
  %3801 = vmatpush1.msra.mxu0 %v1230
  %3802 = vmatprep.subr.mxu0 0.0
  %3803 = vmatpush1.msra.mxu0 %v1231
  %3804 = vmatprep.subr.mxu0 0.0
  %3805 = vmatpush1.msra.mxu0 %v1232
  %3806 = vmatprep.subr.mxu0 0.0
  %3807 = vmatpush1.msra.mxu0 %v1233
  %3808 = vmatprep.subr.mxu0 0.0
  %3809 = vmatpush1.msra.mxu0 %v1234
  %3810 = vmatprep.mubr.f32.mxu0 %v55
  %3811 = vmatmul.mubr.f32.gmra.mrb[0].mxu0 %v54
  %v3812 = vpop.f32.mrb[0].mxu0
  %v3813 = vadd.f32 %v3703, %v3812
  %v3814 = vpop.f32.mrb[0].mxu0
  %3815 = vmatprep.mubr.f32.mxu0 %v116
  %3816 = vmatmul.mubr.f32.gmra.mrb[0].mxu0 %v115
  %v3817 = vpop.f32.mrb[0].mxu0
  %v3818 = vadd.f32 %v3708, %v3817
  %v3819 = vpop.f32.mrb[0].mxu0
  %3820 = vmatprep.mubr.f32.mxu0 %v177
  %3821 = vmatmul.mubr.f32.gmra.mrb[0].mxu0 %v176
  %v3822 = vpop.f32.mrb[0].mxu0
  %v3823 = vadd.f32 %v3713, %v3822
  %v3824 = vpop.f32.mrb[0].mxu0
  %3825 = vmatprep.mubr.f32.mxu0 %v238
  %3826 = vmatmul.mubr.f32.gmra.mrb[0].mxu0 %v237
  %v3827 = vpop.f32.mrb[0].mxu0
  %v3828 = vadd.f32 %v3718, %v3827
  %v3829 = vpop.f32.mrb[0].mxu0
  %3830 = vmatprep.mubr.f32.mxu0 %v299
  %3831 = vmatmul.mubr.f32.gmra.mrb[0].mxu0 %v298
  %v3832 = vpop.f32.mrb[0].mxu0
  %v3833 = vadd.f32 %v3723, %v3832
  %v3834 = vpop.f32.mrb[0].mxu0
  %3835 = vmatprep.mubr.f32.mxu0 %v360
  %3836 = vmatmul.mubr.f32.gmra.mrb[0].mxu0 %v359
  %v3837 = vpop.f32.mrb[0].mxu0
  %v3838 = vadd.f32 %v3728, %v3837
  %v3839 = vpop.f32.mrb[0].mxu0
  %3840 = vmatprep.mubr.f32.mxu0 %v421
  %3841 = vmatmul.mubr.f32.gmra.mrb[0].mxu0 %v420
  %v3842 = vpop.f32.mrb[0].mxu0
  %v3843 = vadd.f32 %v3733, %v3842
  %v3844 = vpop.f32.mrb[0].mxu0
  %3845 = vmatprep.mubr.f32.mxu0 %v482
  %3846 = vmatmul.mubr.f32.gmra.mrb[0].mxu0 %v481
  %v3847 = vpop.f32.mrb[0].mxu0
  %v3848 = vadd.f32 %v3738, %v3847
  %v3849 = vpop.f32.mrb[0].mxu0
  %3850 = vmatprep.mubr.f32.mxu0 %v543
  %3851 = vmatmul.mubr.f32.gmra.mrb[0].mxu0 %v542
  %v3852 = vpop.f32.mrb[0].mxu0
  %v3853 = vadd.f32 %v3743, %v3852
  %v3854 = vpop.f32.mrb[0].mxu0
  %3855 = vdwg.mxu0
  %3856 = vmatprep.subr.mxu0 0.0
  %3857 = vmatpush1.msra.mxu0 %v1235
  %3858 = vmatprep.subr.mxu0 0.0
  %3859 = vmatpush1.msra.mxu0 %v1236
  %3860 = vmatprep.subr.mxu0 0.0
  %3861 = vmatpush1.msra.mxu0 %v1237
  %3862 = vmatprep.subr.mxu0 0.0
  %3863 = vmatpush1.msra.mxu0 %v1238
  %3864 = vmatprep.subr.mxu0 0.0
  %3865 = vmatpush1.msra.mxu0 %v1239
  %3866 = vmatprep.subr.mxu0 0.0
  %3867 = vmatpush1.msra.mxu0 %v1240
  %3868 = vmatprep.subr.mxu0 0.0
  %3869 = vmatpush1.msra.mxu0 %v1241
  %3870 = vmatprep.subr.mxu0 0.0
  %3871 = vmatpush1.msra.mxu0 %v1242
  %3872 = vmatprep.subr.mxu0 0.0
  %3873 = vmatpush1.msra.mxu0 %v1243
  %3874 = vmatprep.subr.mxu0 0.0
  %3875 = vmatpush1.msra.mxu0 %v1244
  %3876 = vmatprep.subr.mxu0 0.0
  %3877 = vmatpush1.msra.mxu0 %v1245
  %3878 = vmatprep.subr.mxu0 0.0
  %3879 = vmatpush1.msra.mxu0 %v1246
  %3880 = vmatprep.subr.mxu0 0.0
  %3881 = vmatpush1.msra.mxu0 %v1247
  %3882 = vmatprep.subr.mxu0 0.0
  %3883 = vmatpush1.msra.mxu0 %v1248
  %3884 = vmatprep.subr.mxu0 0.0
  %3885 = vmatpush1.msra.mxu0 %v1249
  %3886 = vmatprep.subr.mxu0 0.0
  %3887 = vmatpush1.msra.mxu0 %v1250
  %3888 = vmatprep.subr.mxu0 0.0
  %3889 = vmatpush1.msra.mxu0 %v1251
  %3890 = vmatprep.subr.mxu0 0.0
  %3891 = vmatpush1.msra.mxu0 %v1252
  %3892 = vmatprep.subr.mxu0 0.0
  %3893 = vmatpush1.msra.mxu0 %v1253
  %3894 = vmatprep.subr.mxu0 0.0
  %3895 = vmatpush1.msra.mxu0 %v1254
  %3896 = vmatprep.subr.mxu0 0.0
  %3897 = vmatpush1.msra.mxu0 %v1255
  %3898 = vmatprep.subr.mxu0 0.0
  %3899 = vmatpush1.msra.mxu0 %v1256
  %3900 = vmatprep.subr.mxu0 0.0
  %3901 = vmatpush1.msra.mxu0 %v1257
  %3902 = vmatprep.subr.mxu0 0.0
  %3903 = vmatpush1.msra.mxu0 %v1258
  %3904 = vmatprep.subr.mxu0 0.0
  %3905 = vmatpush1.msra.mxu0 %v1259
  %3906 = vmatprep.subr.mxu0 0.0
  %3907 = vmatpush1.msra.mxu0 %v1260
  %3908 = vmatprep.subr.mxu0 0.0
  %3909 = vmatpush1.msra.mxu0 %v1261
  %3910 = vmatprep.subr.mxu0 0.0
  %3911 = vmatpush1.msra.mxu0 %v1262
  %3912 = vmatprep.subr.mxu0 0.0
  %3913 = vmatpush1.msra.mxu0 %v1263
  %3914 = vmatprep.subr.mxu0 0.0
  %3915 = vmatpush1.msra.mxu0 %v1264
  %3916 = vmatprep.subr.mxu0 0.0
  %3917 = vmatpush1.msra.mxu0 %v1265
  %3918 = vmatprep.subr.mxu0 0.0
  %3919 = vmatpush1.msra.mxu0 %v1266
  %3920 = vmatprep.mubr.f32.mxu0 %v57
  %3921 = vmatmul.mubr.f32.gmra.mrb[0].mxu0 %v56
  %v3922 = vpop.f32.mrb[0].mxu0
  %v3923 = vadd.f32 %v3813, %v3922
  %v3924 = vpop.f32.mrb[0].mxu0
  %3925 = vmatprep.mubr.f32.mxu0 %v118
  %3926 = vmatmul.mubr.f32.gmra.mrb[0].mxu0 %v117
  %v3927 = vpop.f32.mrb[0].mxu0
  %v3928 = vadd.f32 %v3818, %v3927
  %v3929 = vpop.f32.mrb[0].mxu0
  %3930 = vmatprep.mubr.f32.mxu0 %v179
  %3931 = vmatmul.mubr.f32.gmra.mrb[0].mxu0 %v178
  %v3932 = vpop.f32.mrb[0].mxu0
  %v3933 = vadd.f32 %v3823, %v3932
  %v3934 = vpop.f32.mrb[0].mxu0
  %3935 = vmatprep.mubr.f32.mxu0 %v240
  %3936 = vmatmul.mubr.f32.gmra.mrb[0].mxu0 %v239
  %v3937 = vpop.f32.mrb[0].mxu0
  %v3938 = vadd.f32 %v3828, %v3937
  %v3939 = vpop.f32.mrb[0].mxu0
  %3940 = vmatprep.mubr.f32.mxu0 %v301
  %3941 = vmatmul.mubr.f32.gmra.mrb[0].mxu0 %v300
  %v3942 = vpop.f32.mrb[0].mxu0
  %v3943 = vadd.f32 %v3833, %v3942
  %v3944 = vpop.f32.mrb[0].mxu0
  %3945 = vmatprep.mubr.f32.mxu0 %v362
  %3946 = vmatmul.mubr.f32.gmra.mrb[0].mxu0 %v361
  %v3947 = vpop.f32.mrb[0].mxu0
  %v3948 = vadd.f32 %v3838, %v3947
  %v3949 = vpop.f32.mrb[0].mxu0
  %3950 = vmatprep.mubr.f32.mxu0 %v423
  %3951 = vmatmul.mubr.f32.gmra.mrb[0].mxu0 %v422
  %v3952 = vpop.f32.mrb[0].mxu0
  %v3953 = vadd.f32 %v3843, %v3952
  %v3954 = vpop.f32.mrb[0].mxu0
  %3955 = vmatprep.mubr.f32.mxu0 %v484
  %3956 = vmatmul.mubr.f32.gmra.mrb[0].mxu0 %v483
  %v3957 = vpop.f32.mrb[0].mxu0
  %v3958 = vadd.f32 %v3848, %v3957
  %v3959 = vpop.f32.mrb[0].mxu0
  %3960 = vmatprep.mubr.f32.mxu0 %v545
  %3961 = vmatmul.mubr.f32.gmra.mrb[0].mxu0 %v544
  %v3962 = vpop.f32.mrb[0].mxu0
  %v3963 = vadd.f32 %v3853, %v3962
  %v3964 = vpop.f32.mrb[0].mxu0
  %3965 = vdwg.mxu0
  %3966 = vmatprep.subr.mxu0 0.0
  %3967 = vmatpush1.msra.mxu0 %v1267
  %3968 = vmatprep.subr.mxu0 0.0
  %3969 = vmatpush1.msra.mxu0 %v1268
  %3970 = vmatprep.subr.mxu0 0.0
  %3971 = vmatpush1.msra.mxu0 %v1269
  %3972 = vmatprep.subr.mxu0 0.0
  %3973 = vmatpush1.msra.mxu0 %v1270
  %3974 = vmatprep.subr.mxu0 0.0
  %3975 = vmatpush1.msra.mxu0 %v1271
  %3976 = vmatprep.subr.mxu0 0.0
  %3977 = vmatpush1.msra.mxu0 %v1272
  %3978 = vmatprep.subr.mxu0 0.0
  %3979 = vmatpush1.msra.mxu0 %v1273
  %3980 = vmatprep.subr.mxu0 0.0
  %3981 = vmatpush1.msra.mxu0 %v1274
  %3982 = vmatprep.subr.mxu0 0.0
  %3983 = vmatpush1.msra.mxu0 %v1275
  %3984 = vmatprep.subr.mxu0 0.0
  %3985 = vmatpush1.msra.mxu0 %v1276
  %3986 = vmatprep.subr.mxu0 0.0
  %3987 = vmatpush1.msra.mxu0 %v1277
  %3988 = vmatprep.subr.mxu0 0.0
  %3989 = vmatpush1.msra.mxu0 %v1278
  %3990 = vmatprep.subr.mxu0 0.0
  %3991 = vmatpush1.msra.mxu0 %v1279
  %3992 = vmatprep.subr.mxu0 0.0
  %3993 = vmatpush1.msra.mxu0 %v1280
  %3994 = vmatprep.subr.mxu0 0.0
  %3995 = vmatpush1.msra.mxu0 %v1281
  %3996 = vmatprep.subr.mxu0 0.0
  %3997 = vmatpush1.msra.mxu0 %v1282
  %3998 = vmatprep.subr.mxu0 0.0
  %3999 = vmatpush1.msra.mxu0 %v1283
  %4000 = vmatprep.subr.mxu0 0.0
  %4001 = vmatpush1.msra.mxu0 %v1284
  %4002 = vmatprep.subr.mxu0 0.0
  %4003 = vmatpush1.msra.mxu0 %v1285
  %4004 = vmatprep.subr.mxu0 0.0
  %4005 = vmatpush1.msra.mxu0 %v1286
  %4006 = vmatprep.subr.mxu0 0.0
  %4007 = vmatpush1.msra.mxu0 %v1287
  %4008 = vmatprep.subr.mxu0 0.0
  %4009 = vmatpush1.msra.mxu0 %v1288
  %4010 = vmatprep.subr.mxu0 0.0
  %4011 = vmatpush1.msra.mxu0 %v1289
  %4012 = vmatprep.subr.mxu0 0.0
  %4013 = vmatpush1.msra.mxu0 %v1290
  %4014 = vmatprep.subr.mxu0 0.0
  %4015 = vmatpush1.msra.mxu0 %v1291
  %4016 = vmatprep.subr.mxu0 0.0
  %4017 = vmatpush1.msra.mxu0 %v1292
  %4018 = vmatprep.subr.mxu0 0.0
  %4019 = vmatpush1.msra.mxu0 %v1293
  %4020 = vmatprep.subr.mxu0 0.0
  %4021 = vmatpush1.msra.mxu0 %v1294
  %4022 = vmatprep.subr.mxu0 0.0
  %4023 = vmatpush1.msra.mxu0 %v1295
  %4024 = vmatprep.subr.mxu0 0.0
  %4025 = vmatpush1.msra.mxu0 %v1296
  %4026 = vmatprep.subr.mxu0 0.0
  %4027 = vmatpush1.msra.mxu0 %v1297
  %4028 = vmatprep.subr.mxu0 0.0
  %4029 = vmatpush1.msra.mxu0 %v1298
  %4030 = vmatprep.mubr.f32.mxu0 %v59
  %4031 = vmatmul.mubr.f32.gmra.mrb[0].mxu0 %v58
  %v4032 = vpop.f32.mrb[0].mxu0
  %v4033 = vadd.f32 %v3923, %v4032
  %v4034 = vpop.f32.mrb[0].mxu0
  %4035 = vmatprep.mubr.f32.mxu0 %v120
  %4036 = vmatmul.mubr.f32.gmra.mrb[0].mxu0 %v119
  %v4037 = vpop.f32.mrb[0].mxu0
  %v4038 = vadd.f32 %v3928, %v4037
  %v4039 = vpop.f32.mrb[0].mxu0
  %4040 = vmatprep.mubr.f32.mxu0 %v181
  %4041 = vmatmul.mubr.f32.gmra.mrb[0].mxu0 %v180
  %v4042 = vpop.f32.mrb[0].mxu0
  %v4043 = vadd.f32 %v3933, %v4042
  %v4044 = vpop.f32.mrb[0].mxu0
  %4045 = vmatprep.mubr.f32.mxu0 %v242
  %4046 = vmatmul.mubr.f32.gmra.mrb[0].mxu0 %v241
  %v4047 = vpop.f32.mrb[0].mxu0
  %v4048 = vadd.f32 %v3938, %v4047
  %v4049 = vpop.f32.mrb[0].mxu0
  %4050 = vmatprep.mubr.f32.mxu0 %v303
  %4051 = vmatmul.mubr.f32.gmra.mrb[0].mxu0 %v302
  %v4052 = vpop.f32.mrb[0].mxu0
  %v4053 = vadd.f32 %v3943, %v4052
  %v4054 = vpop.f32.mrb[0].mxu0
  %4055 = vmatprep.mubr.f32.mxu0 %v364
  %4056 = vmatmul.mubr.f32.gmra.mrb[0].mxu0 %v363
  %v4057 = vpop.f32.mrb[0].mxu0
  %v4058 = vadd.f32 %v3948, %v4057
  %v4059 = vpop.f32.mrb[0].mxu0
  %4060 = vmatprep.mubr.f32.mxu0 %v425
  %4061 = vmatmul.mubr.f32.gmra.mrb[0].mxu0 %v424
  %v4062 = vpop.f32.mrb[0].mxu0
  %v4063 = vadd.f32 %v3953, %v4062
  %v4064 = vpop.f32.mrb[0].mxu0
  %4065 = vmatprep.mubr.f32.mxu0 %v486
  %4066 = vmatmul.mubr.f32.gmra.mrb[0].mxu0 %v485
  %v4067 = vpop.f32.mrb[0].mxu0
  %v4068 = vadd.f32 %v3958, %v4067
  %v4069 = vpop.f32.mrb[0].mxu0
  %4070 = vmatprep.mubr.f32.mxu0 %v547
  %4071 = vmatmul.mubr.f32.gmra.mrb[0].mxu0 %v546
  %v4072 = vpop.f32.mrb[0].mxu0
  %v4073 = vadd.f32 %v3963, %v4072
  %v4074 = vpop.f32.mrb[0].mxu0
  %4075 = vdwg.mxu0
  %4076 = vmatprep.subr.mxu0 0.0
  %4077 = vmatpush1.msra.mxu0 %v1299
  %4078 = vmatprep.subr.mxu0 0.0
  %4079 = vmatpush1.msra.mxu0 %v1300
  %4080 = vmatprep.subr.mxu0 0.0
  %4081 = vmatpush1.msra.mxu0 %v1301
  %4082 = vmatprep.subr.mxu0 0.0
  %4083 = vmatpush1.msra.mxu0 %v1302
  %4084 = vmatprep.subr.mxu0 0.0
  %4085 = vmatpush1.msra.mxu0 %v1303
  %4086 = vmatprep.subr.mxu0 0.0
  %4087 = vmatpush1.msra.mxu0 %v1304
  %4088 = vmatprep.subr.mxu0 0.0
  %4089 = vmatpush1.msra.mxu0 %v1305
  %4090 = vmatprep.subr.mxu0 0.0
  %4091 = vmatpush1.msra.mxu0 %v1306
  %4092 = vmatprep.subr.mxu0 0.0
  %4093 = vmatpush1.msra.mxu0 %v1307
  %4094 = vmatprep.subr.mxu0 0.0
  %4095 = vmatpush1.msra.mxu0 %v1308
  %4096 = vmatprep.subr.mxu0 0.0
  %4097 = vmatpush1.msra.mxu0 %v1309
  %4098 = vmatprep.subr.mxu0 0.0
  %4099 = vmatpush1.msra.mxu0 %v1310
  %4100 = vmatprep.subr.mxu0 0.0
  %4101 = vmatpush1.msra.mxu0 %v1311
  %4102 = vmatprep.subr.mxu0 0.0
  %4103 = vmatpush1.msra.mxu0 %v1312
  %4104 = vmatprep.subr.mxu0 0.0
  %4105 = vmatpush1.msra.mxu0 %v1313
  %4106 = vmatprep.subr.mxu0 0.0
  %4107 = vmatpush1.msra.mxu0 %v1314
  %4108 = vmatprep.subr.mxu0 0.0
  %4109 = vmatpush1.msra.mxu0 %v1315
  %4110 = vmatprep.subr.mxu0 0.0
  %4111 = vmatpush1.msra.mxu0 %v1316
  %4112 = vmatprep.subr.mxu0 0.0
  %4113 = vmatpush1.msra.mxu0 %v1317
  %4114 = vmatprep.subr.mxu0 0.0
  %4115 = vmatpush1.msra.mxu0 %v1318
  %4116 = vmatprep.subr.mxu0 0.0
  %4117 = vmatpush1.msra.mxu0 %v1319
  %4118 = vmatprep.subr.mxu0 0.0
  %4119 = vmatpush1.msra.mxu0 %v1320
  %4120 = vmatprep.subr.mxu0 0.0
  %4121 = vmatpush1.msra.mxu0 %v1321
  %4122 = vmatprep.subr.mxu0 0.0
  %4123 = vmatpush1.msra.mxu0 %v1322
  %4124 = vmatprep.subr.mxu0 0.0
  %4125 = vmatpush1.msra.mxu0 %v1323
  %4126 = vmatprep.subr.mxu0 0.0
  %4127 = vmatpush1.msra.mxu0 %v1324
  %4128 = vmatprep.subr.mxu0 0.0
  %4129 = vmatpush1.msra.mxu0 %v1325
  %4130 = vmatprep.subr.mxu0 0.0
  %4131 = vmatpush1.msra.mxu0 %v1326
  %4132 = vmatprep.subr.mxu0 0.0
  %4133 = vmatpush1.msra.mxu0 %v1327
  %4134 = vmatprep.subr.mxu0 0.0
  %4135 = vmatpush1.msra.mxu0 %v1328
  %4136 = vmatprep.subr.mxu0 0.0
  %4137 = vmatpush1.msra.mxu0 %v1329
  %4138 = vmatprep.subr.mxu0 0.0
  %4139 = vmatpush1.msra.mxu0 %v1330
  %4140 = vmatprep.mubr.f32.mxu0 %v61
  %4141 = vmatmul.mubr.f32.gmra.mrb[0].mxu0 %v60
  %v4142 = vpop.f32.mrb[0].mxu0
  %v4143 = vadd.f32 %v4033, %v4142
  %v4144 = vpop.f32.mrb[0].mxu0
  %4145 = vmatprep.mubr.f32.mxu0 %v122
  %4146 = vmatmul.mubr.f32.gmra.mrb[0].mxu0 %v121
  %v4147 = vpop.f32.mrb[0].mxu0
  %v4148 = vadd.f32 %v4038, %v4147
  %v4149 = vpop.f32.mrb[0].mxu0
  %4150 = vmatprep.mubr.f32.mxu0 %v183
  %4151 = vmatmul.mubr.f32.gmra.mrb[0].mxu0 %v182
  %v4152 = vpop.f32.mrb[0].mxu0
  %v4153 = vadd.f32 %v4043, %v4152
  %v4154 = vpop.f32.mrb[0].mxu0
  %4155 = vmatprep.mubr.f32.mxu0 %v244
  %4156 = vmatmul.mubr.f32.gmra.mrb[0].mxu0 %v243
  %v4157 = vpop.f32.mrb[0].mxu0
  %v4158 = vadd.f32 %v4048, %v4157
  %v4159 = vpop.f32.mrb[0].mxu0
  %4160 = vmatprep.mubr.f32.mxu0 %v305
  %4161 = vmatmul.mubr.f32.gmra.mrb[0].mxu0 %v304
  %v4162 = vpop.f32.mrb[0].mxu0
  %v4163 = vadd.f32 %v4053, %v4162
  %v4164 = vpop.f32.mrb[0].mxu0
  %4165 = vmatprep.mubr.f32.mxu0 %v366
  %4166 = vmatmul.mubr.f32.gmra.mrb[0].mxu0 %v365
  %v4167 = vpop.f32.mrb[0].mxu0
  %v4168 = vadd.f32 %v4058, %v4167
  %v4169 = vpop.f32.mrb[0].mxu0
  %4170 = vmatprep.mubr.f32.mxu0 %v427
  %4171 = vmatmul.mubr.f32.gmra.mrb[0].mxu0 %v426
  %v4172 = vpop.f32.mrb[0].mxu0
  %v4173 = vadd.f32 %v4063, %v4172
  %v4174 = vpop.f32.mrb[0].mxu0
  %4175 = vmatprep.mubr.f32.mxu0 %v488
  %4176 = vmatmul.mubr.f32.gmra.mrb[0].mxu0 %v487
  %v4177 = vpop.f32.mrb[0].mxu0
  %v4178 = vadd.f32 %v4068, %v4177
  %v4179 = vpop.f32.mrb[0].mxu0
  %4180 = vmatprep.mubr.f32.mxu0 %v549
  %4181 = vmatmul.mubr.f32.gmra.mrb[0].mxu0 %v548
  %v4182 = vpop.f32.mrb[0].mxu0
  %v4183 = vadd.f32 %v4073, %v4182
  %v4184 = vpop.f32.mrb[0].mxu0
  %4185 = vdwg.mxu0
  %4186 = vmatprep.subr.mxu0 0.0
  %4187 = vmatpush1.msra.mxu0 %v1331
  %4188 = vmatprep.subr.mxu0 0.0
  %4189 = vmatpush1.msra.mxu0 %v1332
  %4190 = vmatprep.subr.mxu0 0.0
  %4191 = vmatpush1.msra.mxu0 %v1333
  %4192 = vmatprep.subr.mxu0 0.0
  %4193 = vmatpush1.msra.mxu0 %v1334
  %4194 = vmatprep.subr.mxu0 0.0
  %4195 = vmatpush1.msra.mxu0 %v1335
  %4196 = vmatprep.subr.mxu0 0.0
  %4197 = vmatpush1.msra.mxu0 %v1336
  %4198 = vmatprep.subr.mxu0 0.0
  %4199 = vmatpush1.msra.mxu0 %v1337
  %4200 = vmatprep.subr.mxu0 0.0
  %4201 = vmatpush1.msra.mxu0 %v1338
  %4202 = vmatprep.subr.mxu0 0.0
  %4203 = vmatpush1.msra.mxu0 %v1339
  %4204 = vmatprep.subr.mxu0 0.0
  %4205 = vmatpush1.msra.mxu0 %v1340
  %4206 = vmatprep.subr.mxu0 0.0
  %4207 = vmatpush1.msra.mxu0 %v1341
  %4208 = vmatprep.subr.mxu0 0.0
  %4209 = vmatpush1.msra.mxu0 %v1342
  %4210 = vmatprep.subr.mxu0 0.0
  %4211 = vmatpush1.msra.mxu0 %v1343
  %4212 = vmatprep.subr.mxu0 0.0
  %4213 = vmatpush1.msra.mxu0 %v1344
  %4214 = vmatprep.subr.mxu0 0.0
  %4215 = vmatpush1.msra.mxu0 %v1345
  %4216 = vmatprep.subr.mxu0 0.0
  %4217 = vmatpush1.msra.mxu0 %v1346
  %4218 = vmatprep.subr.mxu0 0.0
  %4219 = vmatpush1.msra.mxu0 %v1347
  %4220 = vmatprep.subr.mxu0 0.0
  %4221 = vmatpush1.msra.mxu0 %v1348
  %4222 = vmatprep.subr.mxu0 0.0
  %4223 = vmatpush1.msra.mxu0 %v1349
  %4224 = vmatprep.subr.mxu0 0.0
  %4225 = vmatpush1.msra.mxu0 %v1350
  %4226 = vmatprep.subr.mxu0 0.0
  %4227 = vmatpush1.msra.mxu0 %v1351
  %4228 = vmatprep.subr.mxu0 0.0
  %4229 = vmatpush1.msra.mxu0 %v1352
  %4230 = vmatprep.subr.mxu0 0.0
  %4231 = vmatpush1.msra.mxu0 %v1353
  %4232 = vmatprep.subr.mxu0 0.0
  %4233 = vmatpush1.msra.mxu0 %v1354
  %4234 = vmatprep.subr.mxu0 0.0
  %4235 = vmatpush1.msra.mxu0 %v1355
  %4236 = vmatprep.subr.mxu0 0.0
  %4237 = vmatpush1.msra.mxu0 %v1356
  %4238 = vmatprep.subr.mxu0 0.0
  %4239 = vmatpush1.msra.mxu0 %v1357
  %4240 = vmatprep.subr.mxu0 0.0
  %4241 = vmatpush1.msra.mxu0 %v1358
  %4242 = vmatprep.subr.mxu0 0.0
  %4243 = vmatpush1.msra.mxu0 %v1359
  %4244 = vmatprep.subr.mxu0 0.0
  %4245 = vmatpush1.msra.mxu0 %v1360
  %4246 = vmatprep.subr.mxu0 0.0
  %4247 = vmatpush1.msra.mxu0 %v1361
  %4248 = vmatprep.subr.mxu0 0.0
  %4249 = vmatpush1.msra.mxu0 %v1362
  %4250 = vmatprep.mubr.f32.mxu0 %v63
  %4251 = vmatmul.mubr.f32.gmra.mrb[0].mxu0 %v62
  %v4252 = vpop.f32.mrb[0].mxu0
  %v4253 = vadd.f32 %v4143, %v4252
  %v4254 = vpop.f32.mrb[0].mxu0
  %4255 = vmatprep.mubr.f32.mxu0 %v124
  %4256 = vmatmul.mubr.f32.gmra.mrb[0].mxu0 %v123
  %v4257 = vpop.f32.mrb[0].mxu0
  %v4258 = vadd.f32 %v4148, %v4257
  %v4259 = vpop.f32.mrb[0].mxu0
  %4260 = vmatprep.mubr.f32.mxu0 %v185
  %4261 = vmatmul.mubr.f32.gmra.mrb[0].mxu0 %v184
  %v4262 = vpop.f32.mrb[0].mxu0
  %v4263 = vadd.f32 %v4153, %v4262
  %v4264 = vpop.f32.mrb[0].mxu0
  %4265 = vmatprep.mubr.f32.mxu0 %v246
  %4266 = vmatmul.mubr.f32.gmra.mrb[0].mxu0 %v245
  %v4267 = vpop.f32.mrb[0].mxu0
  %v4268 = vadd.f32 %v4158, %v4267
  %v4269 = vpop.f32.mrb[0].mxu0
  %4270 = vmatprep.mubr.f32.mxu0 %v307
  %4271 = vmatmul.mubr.f32.gmra.mrb[0].mxu0 %v306
  %v4272 = vpop.f32.mrb[0].mxu0
  %v4273 = vadd.f32 %v4163, %v4272
  %v4274 = vpop.f32.mrb[0].mxu0
  %4275 = vmatprep.mubr.f32.mxu0 %v368
  %4276 = vmatmul.mubr.f32.gmra.mrb[0].mxu0 %v367
  %v4277 = vpop.f32.mrb[0].mxu0
  %v4278 = vadd.f32 %v4168, %v4277
  %v4279 = vpop.f32.mrb[0].mxu0
  %4280 = vmatprep.mubr.f32.mxu0 %v429
  %4281 = vmatmul.mubr.f32.gmra.mrb[0].mxu0 %v428
  %v4282 = vpop.f32.mrb[0].mxu0
  %v4283 = vadd.f32 %v4173, %v4282
  %v4284 = vpop.f32.mrb[0].mxu0
  %4285 = vmatprep.mubr.f32.mxu0 %v490
  %4286 = vmatmul.mubr.f32.gmra.mrb[0].mxu0 %v489
  %v4287 = vpop.f32.mrb[0].mxu0
  %v4288 = vadd.f32 %v4178, %v4287
  %v4289 = vpop.f32.mrb[0].mxu0
  %4290 = vmatprep.mubr.f32.mxu0 %v551
  %4291 = vmatmul.mubr.f32.gmra.mrb[0].mxu0 %v550
  %v4292 = vpop.f32.mrb[0].mxu0
  %v4293 = vadd.f32 %v4183, %v4292
  %v4294 = vpop.f32.mrb[0].mxu0
  %4295 = vdwg.mxu0
  %4296 = vmatprep.subr.mxu0 0.0
  %4297 = vmatpush1.msra.mxu0 %v1363
  %4298 = vmatprep.subr.mxu0 0.0
  %4299 = vmatpush1.msra.mxu0 %v1364
  %4300 = vmatprep.subr.mxu0 0.0
  %4301 = vmatpush1.msra.mxu0 %v1365
  %4302 = vmatprep.subr.mxu0 0.0
  %4303 = vmatpush1.msra.mxu0 %v1366
  %4304 = vmatprep.subr.mxu0 0.0
  %4305 = vmatpush1.msra.mxu0 %v1367
  %4306 = vmatprep.subr.mxu0 0.0
  %4307 = vmatpush1.msra.mxu0 %v1368
  %4308 = vmatprep.subr.mxu0 0.0
  %4309 = vmatpush1.msra.mxu0 %v1369
  %4310 = vmatprep.subr.mxu0 0.0
  %4311 = vmatpush1.msra.mxu0 %v1370
  %4312 = vmatprep.subr.mxu0 0.0
  %4313 = vmatpush1.msra.mxu0 %v1371
  %4314 = vmatprep.subr.mxu0 0.0
  %4315 = vmatpush1.msra.mxu0 %v1372
  %4316 = vmatprep.subr.mxu0 0.0
  %4317 = vmatpush1.msra.mxu0 %v1373
  %4318 = vmatprep.subr.mxu0 0.0
  %4319 = vmatpush1.msra.mxu0 %v1374
  %4320 = vmatprep.subr.mxu0 0.0
  %4321 = vmatpush1.msra.mxu0 %v1375
  %4322 = vmatprep.subr.mxu0 0.0
  %4323 = vmatpush1.msra.mxu0 %v1376
  %4324 = vmatprep.subr.mxu0 0.0
  %4325 = vmatpush1.msra.mxu0 %v1377
  %4326 = vmatprep.subr.mxu0 0.0
  %4327 = vmatpush1.msra.mxu0 %v1378
  %4328 = vmatprep.subr.mxu0 0.0
  %4329 = vmatpush1.msra.mxu0 %v1379
  %4330 = vmatprep.subr.mxu0 0.0
  %4331 = vmatpush1.msra.mxu0 %v1380
  %4332 = vmatprep.subr.mxu0 0.0
  %4333 = vmatpush1.msra.mxu0 %v1381
  %4334 = vmatprep.subr.mxu0 0.0
  %4335 = vmatpush1.msra.mxu0 %v1382
  %4336 = vmatprep.subr.mxu0 0.0
  %4337 = vmatpush1.msra.mxu0 %v1383
  %4338 = vmatprep.subr.mxu0 0.0
  %4339 = vmatpush1.msra.mxu0 %v1384
  %4340 = vmatprep.subr.mxu0 0.0
  %4341 = vmatpush1.msra.mxu0 %v1385
  %4342 = vmatprep.subr.mxu0 0.0
  %4343 = vmatpush1.msra.mxu0 %v1386
  %4344 = vmatprep.subr.mxu0 0.0
  %4345 = vmatpush1.msra.mxu0 %v1387
  %4346 = vmatprep.subr.mxu0 0.0
  %4347 = vmatpush1.msra.mxu0 %v1388
  %4348 = vmatprep.subr.mxu0 0.0
  %4349 = vmatpush1.msra.mxu0 %v1389
  %4350 = vmatprep.subr.mxu0 0.0
  %4351 = vmatpush1.msra.mxu0 %v1390
  %4352 = vmatprep.subr.mxu0 0.0
  %4353 = vmatpush1.msra.mxu0 %v1391
  %4354 = vmatprep.subr.mxu0 0.0
  %4355 = vmatpush1.msra.mxu0 %v1392
  %4356 = vmatprep.subr.mxu0 0.0
  %4357 = vmatpush1.msra.mxu0 %v1393
  %4358 = vmatprep.subr.mxu0 0.0
  %4359 = vmatpush1.msra.mxu0 %v1394
  %4360 = vmatprep.mubr.f32.mxu0 %v65
  %4361 = vmatmul.mubr.f32.gmra.mrb[0].mxu0 %v64
  %v4362 = vpop.f32.mrb[0].mxu0
  %v4363 = vadd.f32 %v4253, %v4362
  %v4364 = vpop.f32.mrb[0].mxu0
  %4365 = vmatprep.mubr.f32.mxu0 %v126
  %4366 = vmatmul.mubr.f32.gmra.mrb[0].mxu0 %v125
  %v4367 = vpop.f32.mrb[0].mxu0
  %v4368 = vadd.f32 %v4258, %v4367
  %v4369 = vpop.f32.mrb[0].mxu0
  %4370 = vmatprep.mubr.f32.mxu0 %v187
  %4371 = vmatmul.mubr.f32.gmra.mrb[0].mxu0 %v186
  %v4372 = vpop.f32.mrb[0].mxu0
  %v4373 = vadd.f32 %v4263, %v4372
  %v4374 = vpop.f32.mrb[0].mxu0
  %4375 = vmatprep.mubr.f32.mxu0 %v248
  %4376 = vmatmul.mubr.f32.gmra.mrb[0].mxu0 %v247
  %v4377 = vpop.f32.mrb[0].mxu0
  %v4378 = vadd.f32 %v4268, %v4377
  %v4379 = vpop.f32.mrb[0].mxu0
  %4380 = vmatprep.mubr.f32.mxu0 %v309
  %4381 = vmatmul.mubr.f32.gmra.mrb[0].mxu0 %v308
  %v4382 = vpop.f32.mrb[0].mxu0
  %v4383 = vadd.f32 %v4273, %v4382
  %v4384 = vpop.f32.mrb[0].mxu0
  %4385 = vmatprep.mubr.f32.mxu0 %v370
  %4386 = vmatmul.mubr.f32.gmra.mrb[0].mxu0 %v369
  %v4387 = vpop.f32.mrb[0].mxu0
  %v4388 = vadd.f32 %v4278, %v4387
  %v4389 = vpop.f32.mrb[0].mxu0
  %4390 = vmatprep.mubr.f32.mxu0 %v431
  %4391 = vmatmul.mubr.f32.gmra.mrb[0].mxu0 %v430
  %v4392 = vpop.f32.mrb[0].mxu0
  %v4393 = vadd.f32 %v4283, %v4392
  %v4394 = vpop.f32.mrb[0].mxu0
  %4395 = vmatprep.mubr.f32.mxu0 %v492
  %4396 = vmatmul.mubr.f32.gmra.mrb[0].mxu0 %v491
  %v4397 = vpop.f32.mrb[0].mxu0
  %v4398 = vadd.f32 %v4288, %v4397
  %v4399 = vpop.f32.mrb[0].mxu0
  %4400 = vmatprep.mubr.f32.mxu0 %v553
  %4401 = vmatmul.mubr.f32.gmra.mrb[0].mxu0 %v552
  %v4402 = vpop.f32.mrb[0].mxu0
  %v4403 = vadd.f32 %v4293, %v4402
  %v4404 = vpop.f32.mrb[0].mxu0
  %4405 = vdwg.mxu0
  %4406 = vmatprep.subr.mxu0 0.0
  %4407 = vmatpush1.msra.mxu0 %v1395
  %4408 = vmatprep.subr.mxu0 0.0
  %4409 = vmatpush1.msra.mxu0 %v1396
  %4410 = vmatprep.subr.mxu0 0.0
  %4411 = vmatpush1.msra.mxu0 %v1397
  %4412 = vmatprep.subr.mxu0 0.0
  %4413 = vmatpush1.msra.mxu0 %v1398
  %4414 = vmatprep.subr.mxu0 0.0
  %4415 = vmatpush1.msra.mxu0 %v1399
  %4416 = vmatprep.subr.mxu0 0.0
  %4417 = vmatpush1.msra.mxu0 %v1400
  %4418 = vmatprep.subr.mxu0 0.0
  %4419 = vmatpush1.msra.mxu0 %v1401
  %4420 = vmatprep.subr.mxu0 0.0
  %4421 = vmatpush1.msra.mxu0 %v1402
  %4422 = vmatprep.subr.mxu0 0.0
  %4423 = vmatpush1.msra.mxu0 %v1403
  %4424 = vmatprep.subr.mxu0 0.0
  %4425 = vmatpush1.msra.mxu0 %v1404
  %4426 = vmatprep.subr.mxu0 0.0
  %4427 = vmatpush1.msra.mxu0 %v1405
  %4428 = vmatprep.subr.mxu0 0.0
  %4429 = vmatpush1.msra.mxu0 %v1406
  %4430 = vmatprep.subr.mxu0 0.0
  %4431 = vmatpush1.msra.mxu0 %v1407
  %4432 = vmatprep.subr.mxu0 0.0
  %4433 = vmatpush1.msra.mxu0 %v1408
  %4434 = vmatprep.subr.mxu0 0.0
  %4435 = vmatpush1.msra.mxu0 %v1409
  %4436 = vmatprep.subr.mxu0 0.0
  %4437 = vmatpush1.msra.mxu0 %v1410
  %4438 = vmatprep.subr.mxu0 0.0
  %4439 = vmatpush1.msra.mxu0 %v1411
  %4440 = vmatprep.subr.mxu0 0.0
  %4441 = vmatpush1.msra.mxu0 %v1412
  %4442 = vmatprep.subr.mxu0 0.0
  %4443 = vmatpush1.msra.mxu0 %v1413
  %4444 = vmatprep.subr.mxu0 0.0
  %4445 = vmatpush1.msra.mxu0 %v1414
  %4446 = vmatprep.subr.mxu0 0.0
  %4447 = vmatpush1.msra.mxu0 %v1415
  %4448 = vmatprep.subr.mxu0 0.0
  %4449 = vmatpush1.msra.mxu0 %v1416
  %4450 = vmatprep.subr.mxu0 0.0
  %4451 = vmatpush1.msra.mxu0 %v1417
  %4452 = vmatprep.subr.mxu0 0.0
  %4453 = vmatpush1.msra.mxu0 %v1418
  %4454 = vmatprep.subr.mxu0 0.0
  %4455 = vmatpush1.msra.mxu0 %v1419
  %4456 = vmatprep.subr.mxu0 0.0
  %4457 = vmatpush1.msra.mxu0 %v1420
  %4458 = vmatprep.subr.mxu0 0.0
  %4459 = vmatpush1.msra.mxu0 %v1421
  %4460 = vmatprep.subr.mxu0 0.0
  %4461 = vmatpush1.msra.mxu0 %v1422
  %4462 = vmatprep.subr.mxu0 0.0
  %4463 = vmatpush1.msra.mxu0 %v1423
  %4464 = vmatprep.subr.mxu0 0.0
  %4465 = vmatpush1.msra.mxu0 %v1424
  %4466 = vmatprep.subr.mxu0 0.0
  %4467 = vmatpush1.msra.mxu0 %v1425
  %4468 = vmatprep.subr.mxu0 0.0
  %4469 = vmatpush1.msra.mxu0 %v1426
  %4470 = vmatprep.mubr.f32.mxu0 %v67
  %4471 = vmatmul.mubr.f32.gmra.mrb[0].mxu0 %v66
  %v4472 = vpop.f32.mrb[0].mxu0
  %v4473 = vadd.f32 %v4363, %v4472
  %v4474 = vpop.f32.mrb[0].mxu0
  %4475 = vmatprep.mubr.f32.mxu0 %v128
  %4476 = vmatmul.mubr.f32.gmra.mrb[0].mxu0 %v127
  %v4477 = vpop.f32.mrb[0].mxu0
  %v4478 = vadd.f32 %v4368, %v4477
  %v4479 = vpop.f32.mrb[0].mxu0
  %4480 = vmatprep.mubr.f32.mxu0 %v189
  %4481 = vmatmul.mubr.f32.gmra.mrb[0].mxu0 %v188
  %v4482 = vpop.f32.mrb[0].mxu0
  %v4483 = vadd.f32 %v4373, %v4482
  %v4484 = vpop.f32.mrb[0].mxu0
  %4485 = vmatprep.mubr.f32.mxu0 %v250
  %4486 = vmatmul.mubr.f32.gmra.mrb[0].mxu0 %v249
  %v4487 = vpop.f32.mrb[0].mxu0
  %v4488 = vadd.f32 %v4378, %v4487
  %v4489 = vpop.f32.mrb[0].mxu0
  %4490 = vmatprep.mubr.f32.mxu0 %v311
  %4491 = vmatmul.mubr.f32.gmra.mrb[0].mxu0 %v310
  %v4492 = vpop.f32.mrb[0].mxu0
  %v4493 = vadd.f32 %v4383, %v4492
  %v4494 = vpop.f32.mrb[0].mxu0
  %4495 = vmatprep.mubr.f32.mxu0 %v372
  %4496 = vmatmul.mubr.f32.gmra.mrb[0].mxu0 %v371
  %v4497 = vpop.f32.mrb[0].mxu0
  %v4498 = vadd.f32 %v4388, %v4497
  %v4499 = vpop.f32.mrb[0].mxu0
  %4500 = vmatprep.mubr.f32.mxu0 %v433
  %4501 = vmatmul.mubr.f32.gmra.mrb[0].mxu0 %v432
  %v4502 = vpop.f32.mrb[0].mxu0
  %v4503 = vadd.f32 %v4393, %v4502
  %v4504 = vpop.f32.mrb[0].mxu0
  %4505 = vmatprep.mubr.f32.mxu0 %v494
  %4506 = vmatmul.mubr.f32.gmra.mrb[0].mxu0 %v493
  %v4507 = vpop.f32.mrb[0].mxu0
  %v4508 = vadd.f32 %v4398, %v4507
  %v4509 = vpop.f32.mrb[0].mxu0
  %4510 = vmatprep.mubr.f32.mxu0 %v555
  %4511 = vmatmul.mubr.f32.gmra.mrb[0].mxu0 %v554
  %v4512 = vpop.f32.mrb[0].mxu0
  %v4513 = vadd.f32 %v4403, %v4512
  %v4514 = vpop.f32.mrb[0].mxu0
  %4515 = vdwg.mxu0
  %4516 = vmatprep.subr.mxu0 0.0
  %4517 = vmatpush1.msra.mxu0 %v1427
  %4518 = vmatprep.subr.mxu0 0.0
  %4519 = vmatpush1.msra.mxu0 %v1428
  %4520 = vmatprep.subr.mxu0 0.0
  %4521 = vmatpush1.msra.mxu0 %v1429
  %4522 = vmatprep.subr.mxu0 0.0
  %4523 = vmatpush1.msra.mxu0 %v1430
  %4524 = vmatprep.subr.mxu0 0.0
  %4525 = vmatpush1.msra.mxu0 %v1431
  %4526 = vmatprep.subr.mxu0 0.0
  %4527 = vmatpush1.msra.mxu0 %v1432
  %4528 = vmatprep.subr.mxu0 0.0
  %4529 = vmatpush1.msra.mxu0 %v1433
  %4530 = vmatprep.subr.mxu0 0.0
  %4531 = vmatpush1.msra.mxu0 %v1434
  %4532 = vmatprep.subr.mxu0 0.0
  %4533 = vmatpush1.msra.mxu0 %v1435
  %4534 = vmatprep.subr.mxu0 0.0
  %4535 = vmatpush1.msra.mxu0 %v1436
  %4536 = vmatprep.subr.mxu0 0.0
  %4537 = vmatpush1.msra.mxu0 %v1437
  %4538 = vmatprep.subr.mxu0 0.0
  %4539 = vmatpush1.msra.mxu0 %v1438
  %4540 = vmatprep.subr.mxu0 0.0
  %4541 = vmatpush1.msra.mxu0 %v1439
  %4542 = vmatprep.subr.mxu0 0.0
  %4543 = vmatpush1.msra.mxu0 %v1440
  %4544 = vmatprep.subr.mxu0 0.0
  %4545 = vmatpush1.msra.mxu0 %v1441
  %4546 = vmatprep.subr.mxu0 0.0
  %4547 = vmatpush1.msra.mxu0 %v1442
  %4548 = vmatprep.subr.mxu0 0.0
  %4549 = vmatpush1.msra.mxu0 %v1443
  %4550 = vmatprep.subr.mxu0 0.0
  %4551 = vmatpush1.msra.mxu0 %v1444
  %4552 = vmatprep.subr.mxu0 0.0
  %4553 = vmatpush1.msra.mxu0 %v1445
  %4554 = vmatprep.subr.mxu0 0.0
  %4555 = vmatpush1.msra.mxu0 %v1446
  %4556 = vmatprep.subr.mxu0 0.0
  %4557 = vmatpush1.msra.mxu0 %v1447
  %4558 = vmatprep.subr.mxu0 0.0
  %4559 = vmatpush1.msra.mxu0 %v1448
  %4560 = vmatprep.subr.mxu0 0.0
  %4561 = vmatpush1.msra.mxu0 %v1449
  %4562 = vmatprep.subr.mxu0 0.0
  %4563 = vmatpush1.msra.mxu0 %v1450
  %4564 = vmatprep.subr.mxu0 0.0
  %4565 = vmatpush1.msra.mxu0 %v1451
  %4566 = vmatprep.subr.mxu0 0.0
  %4567 = vmatpush1.msra.mxu0 %v1452
  %4568 = vmatprep.subr.mxu0 0.0
  %4569 = vmatpush1.msra.mxu0 %v1453
  %4570 = vmatprep.subr.mxu0 0.0
  %4571 = vmatpush1.msra.mxu0 %v1454
  %4572 = vmatprep.subr.mxu0 0.0
  %4573 = vmatpush1.msra.mxu0 %v1455
  %4574 = vmatprep.subr.mxu0 0.0
  %4575 = vmatpush1.msra.mxu0 %v1456
  %4576 = vmatprep.subr.mxu0 0.0
  %4577 = vmatpush1.msra.mxu0 %v1457
  %4578 = vmatprep.subr.mxu0 0.0
  %4579 = vmatpush1.msra.mxu0 %v1458
  %4580 = vmatprep.mubr.f32.mxu0 %v69
  %4581 = vmatmul.mubr.f32.gmra.mrb[0].mxu0 %v68
  %v4582 = vpop.f32.mrb[0].mxu0
  %v4583 = vadd.f32 %v4473, %v4582
  %v4584 = vpop.f32.mrb[0].mxu0
  %4585 = vmatprep.mubr.f32.mxu0 %v130
  %4586 = vmatmul.mubr.f32.gmra.mrb[0].mxu0 %v129
  %v4587 = vpop.f32.mrb[0].mxu0
  %v4588 = vadd.f32 %v4478, %v4587
  %v4589 = vpop.f32.mrb[0].mxu0
  %4590 = vmatprep.mubr.f32.mxu0 %v191
  %4591 = vmatmul.mubr.f32.gmra.mrb[0].mxu0 %v190
  %v4592 = vpop.f32.mrb[0].mxu0
  %v4593 = vadd.f32 %v4483, %v4592
  %v4594 = vpop.f32.mrb[0].mxu0
  %4595 = vmatprep.mubr.f32.mxu0 %v252
  %4596 = vmatmul.mubr.f32.gmra.mrb[0].mxu0 %v251
  %v4597 = vpop.f32.mrb[0].mxu0
  %v4598 = vadd.f32 %v4488, %v4597
  %v4599 = vpop.f32.mrb[0].mxu0
  %4600 = vmatprep.mubr.f32.mxu0 %v313
  %4601 = vmatmul.mubr.f32.gmra.mrb[0].mxu0 %v312
  %v4602 = vpop.f32.mrb[0].mxu0
  %v4603 = vadd.f32 %v4493, %v4602
  %v4604 = vpop.f32.mrb[0].mxu0
  %4605 = vmatprep.mubr.f32.mxu0 %v374
  %4606 = vmatmul.mubr.f32.gmra.mrb[0].mxu0 %v373
  %v4607 = vpop.f32.mrb[0].mxu0
  %v4608 = vadd.f32 %v4498, %v4607
  %v4609 = vpop.f32.mrb[0].mxu0
  %4610 = vmatprep.mubr.f32.mxu0 %v435
  %4611 = vmatmul.mubr.f32.gmra.mrb[0].mxu0 %v434
  %v4612 = vpop.f32.mrb[0].mxu0
  %v4613 = vadd.f32 %v4503, %v4612
  %v4614 = vpop.f32.mrb[0].mxu0
  %4615 = vmatprep.mubr.f32.mxu0 %v496
  %4616 = vmatmul.mubr.f32.gmra.mrb[0].mxu0 %v495
  %v4617 = vpop.f32.mrb[0].mxu0
  %v4618 = vadd.f32 %v4508, %v4617
  %v4619 = vpop.f32.mrb[0].mxu0
  %4620 = vmatprep.mubr.f32.mxu0 %v557
  %4621 = vmatmul.mubr.f32.gmra.mrb[0].mxu0 %v556
  %v4622 = vpop.f32.mrb[0].mxu0
  %v4623 = vadd.f32 %v4513, %v4622
  %v4624 = vpop.f32.mrb[0].mxu0
  %4625 = vdwg.mxu0
  %4626 = vmatprep.subr.mxu0 0.0
  %4627 = vmatpush1.msra.mxu0 %v1459
  %4628 = vmatprep.subr.mxu0 0.0
  %4629 = vmatpush1.msra.mxu0 %v1460
  %4630 = vmatprep.subr.mxu0 0.0
  %4631 = vmatpush1.msra.mxu0 %v1461
  %4632 = vmatprep.subr.mxu0 0.0
  %4633 = vmatpush1.msra.mxu0 %v1462
  %4634 = vmatprep.subr.mxu0 0.0
  %4635 = vmatpush1.msra.mxu0 %v1463
  %4636 = vmatprep.subr.mxu0 0.0
  %4637 = vmatpush1.msra.mxu0 %v1464
  %4638 = vmatprep.subr.mxu0 0.0
  %4639 = vmatpush1.msra.mxu0 %v1465
  %4640 = vmatprep.subr.mxu0 0.0
  %4641 = vmatpush1.msra.mxu0 %v1466
  %4642 = vmatprep.subr.mxu0 0.0
  %4643 = vmatpush1.msra.mxu0 %v1467
  %4644 = vmatprep.subr.mxu0 0.0
  %4645 = vmatpush1.msra.mxu0 %v1468
  %4646 = vmatprep.subr.mxu0 0.0
  %4647 = vmatpush1.msra.mxu0 %v1469
  %4648 = vmatprep.subr.mxu0 0.0
  %4649 = vmatpush1.msra.mxu0 %v1470
  %4650 = vmatprep.subr.mxu0 0.0
  %4651 = vmatpush1.msra.mxu0 %v1471
  %4652 = vmatprep.subr.mxu0 0.0
  %4653 = vmatpush1.msra.mxu0 %v1472
  %4654 = vmatprep.subr.mxu0 0.0
  %4655 = vmatpush1.msra.mxu0 %v1473
  %4656 = vmatprep.subr.mxu0 0.0
  %4657 = vmatpush1.msra.mxu0 %v1474
  %4658 = vmatprep.subr.mxu0 0.0
  %4659 = vmatpush1.msra.mxu0 %v1475
  %4660 = vmatprep.subr.mxu0 0.0
  %4661 = vmatpush1.msra.mxu0 %v1476
  %4662 = vmatprep.subr.mxu0 0.0
  %4663 = vmatpush1.msra.mxu0 %v1477
  %4664 = vmatprep.subr.mxu0 0.0
  %4665 = vmatpush1.msra.mxu0 %v1478
  %4666 = vmatprep.subr.mxu0 0.0
  %4667 = vmatpush1.msra.mxu0 %v1479
  %4668 = vmatprep.subr.mxu0 0.0
  %4669 = vmatpush1.msra.mxu0 %v1480
  %4670 = vmatprep.subr.mxu0 0.0
  %4671 = vmatpush1.msra.mxu0 %v1481
  %4672 = vmatprep.subr.mxu0 0.0
  %4673 = vmatpush1.msra.mxu0 %v1482
  %4674 = vmatprep.subr.mxu0 0.0
  %4675 = vmatpush1.msra.mxu0 %v1483
  %4676 = vmatprep.subr.mxu0 0.0
  %4677 = vmatpush1.msra.mxu0 %v1484
  %4678 = vmatprep.subr.mxu0 0.0
  %4679 = vmatpush1.msra.mxu0 %v1485
  %4680 = vmatprep.subr.mxu0 0.0
  %4681 = vmatpush1.msra.mxu0 %v1486
  %4682 = vmatprep.subr.mxu0 0.0
  %4683 = vmatpush1.msra.mxu0 %v1487
  %4684 = vmatprep.subr.mxu0 0.0
  %4685 = vmatpush1.msra.mxu0 %v1488
  %4686 = vmatprep.subr.mxu0 0.0
  %4687 = vmatpush1.msra.mxu0 %v1489
  %4688 = vmatprep.subr.mxu0 0.0
  %4689 = vmatpush1.msra.mxu0 %v1490
  %4690 = vmatprep.mubr.f32.mxu0 %v71
  %4691 = vmatmul.mubr.f32.gmra.mrb[0].mxu0 %v70
  %v4692 = vpop.f32.mrb[0].mxu0
  %v4693 = vadd.f32 %v4583, %v4692
  %v4694 = vpop.f32.mrb[0].mxu0
  %4695 = vmatprep.mubr.f32.mxu0 %v132
  %4696 = vmatmul.mubr.f32.gmra.mrb[0].mxu0 %v131
  %v4697 = vpop.f32.mrb[0].mxu0
  %v4698 = vadd.f32 %v4588, %v4697
  %v4699 = vpop.f32.mrb[0].mxu0
  %4700 = vmatprep.mubr.f32.mxu0 %v193
  %4701 = vmatmul.mubr.f32.gmra.mrb[0].mxu0 %v192
  %v4702 = vpop.f32.mrb[0].mxu0
  %v4703 = vadd.f32 %v4593, %v4702
  %v4704 = vpop.f32.mrb[0].mxu0
  %4705 = vmatprep.mubr.f32.mxu0 %v254
  %4706 = vmatmul.mubr.f32.gmra.mrb[0].mxu0 %v253
  %v4707 = vpop.f32.mrb[0].mxu0
  %v4708 = vadd.f32 %v4598, %v4707
  %v4709 = vpop.f32.mrb[0].mxu0
  %4710 = vmatprep.mubr.f32.mxu0 %v315
  %4711 = vmatmul.mubr.f32.gmra.mrb[0].mxu0 %v314
  %v4712 = vpop.f32.mrb[0].mxu0
  %v4713 = vadd.f32 %v4603, %v4712
  %v4714 = vpop.f32.mrb[0].mxu0
  %4715 = vmatprep.mubr.f32.mxu0 %v376
  %4716 = vmatmul.mubr.f32.gmra.mrb[0].mxu0 %v375
  %v4717 = vpop.f32.mrb[0].mxu0
  %v4718 = vadd.f32 %v4608, %v4717
  %v4719 = vpop.f32.mrb[0].mxu0
  %4720 = vmatprep.mubr.f32.mxu0 %v437
  %4721 = vmatmul.mubr.f32.gmra.mrb[0].mxu0 %v436
  %v4722 = vpop.f32.mrb[0].mxu0
  %v4723 = vadd.f32 %v4613, %v4722
  %v4724 = vpop.f32.mrb[0].mxu0
  %4725 = vmatprep.mubr.f32.mxu0 %v498
  %4726 = vmatmul.mubr.f32.gmra.mrb[0].mxu0 %v497
  %v4727 = vpop.f32.mrb[0].mxu0
  %v4728 = vadd.f32 %v4618, %v4727
  %v4729 = vpop.f32.mrb[0].mxu0
  %4730 = vmatprep.mubr.f32.mxu0 %v559
  %4731 = vmatmul.mubr.f32.gmra.mrb[0].mxu0 %v558
  %v4732 = vpop.f32.mrb[0].mxu0
  %v4733 = vadd.f32 %v4623, %v4732
  %v4734 = vpop.f32.mrb[0].mxu0
  %4735 = vdwg.mxu0
  %4736 = vmatprep.subr.mxu0 0.0
  %4737 = vmatpush1.msra.mxu0 %v1491
  %4738 = vmatprep.subr.mxu0 0.0
  %4739 = vmatpush1.msra.mxu0 %v1492
  %4740 = vmatprep.subr.mxu0 0.0
  %4741 = vmatpush1.msra.mxu0 %v1493
  %4742 = vmatprep.subr.mxu0 0.0
  %4743 = vmatpush1.msra.mxu0 %v1494
  %4744 = vmatprep.subr.mxu0 0.0
  %4745 = vmatpush1.msra.mxu0 %v1495
  %4746 = vmatprep.subr.mxu0 0.0
  %4747 = vmatpush1.msra.mxu0 %v1496
  %4748 = vmatprep.subr.mxu0 0.0
  %4749 = vmatpush1.msra.mxu0 %v1497
  %4750 = vmatprep.subr.mxu0 0.0
  %4751 = vmatpush1.msra.mxu0 %v1498
  %4752 = vmatprep.subr.mxu0 0.0
  %4753 = vmatpush1.msra.mxu0 %v1499
  %4754 = vmatprep.subr.mxu0 0.0
  %4755 = vmatpush1.msra.mxu0 %v1500
  %4756 = vmatprep.subr.mxu0 0.0
  %4757 = vmatpush1.msra.mxu0 %v1501
  %4758 = vmatprep.subr.mxu0 0.0
  %4759 = vmatpush1.msra.mxu0 %v1502
  %4760 = vmatprep.subr.mxu0 0.0
  %4761 = vmatpush1.msra.mxu0 %v1503
  %4762 = vmatprep.subr.mxu0 0.0
  %4763 = vmatpush1.msra.mxu0 %v1504
  %4764 = vmatprep.subr.mxu0 0.0
  %4765 = vmatpush1.msra.mxu0 %v1505
  %4766 = vmatprep.subr.mxu0 0.0
  %4767 = vmatpush1.msra.mxu0 %v1506
  %4768 = vmatprep.subr.mxu0 0.0
  %4769 = vmatpush1.msra.mxu0 %v1507
  %4770 = vmatprep.subr.mxu0 0.0
  %4771 = vmatpush1.msra.mxu0 %v1508
  %4772 = vmatprep.subr.mxu0 0.0
  %4773 = vmatpush1.msra.mxu0 %v1509
  %4774 = vmatprep.subr.mxu0 0.0
  %4775 = vmatpush1.msra.mxu0 %v1510
  %4776 = vmatprep.subr.mxu0 0.0
  %4777 = vmatpush1.msra.mxu0 %v1511
  %4778 = vmatprep.subr.mxu0 0.0
  %4779 = vmatpush1.msra.mxu0 %v1512
  %4780 = vmatprep.subr.mxu0 0.0
  %4781 = vmatpush1.msra.mxu0 %v1513
  %4782 = vmatprep.subr.mxu0 0.0
  %4783 = vmatpush1.msra.mxu0 %v1514
  %4784 = vmatprep.subr.mxu0 0.0
  %4785 = vmatpush1.msra.mxu0 %v1515
  %4786 = vmatprep.subr.mxu0 0.0
  %4787 = vmatpush1.msra.mxu0 %v1516
  %4788 = vmatprep.subr.mxu0 0.0
  %4789 = vmatpush1.msra.mxu0 %v1517
  %4790 = vmatprep.subr.mxu0 0.0
  %4791 = vmatpush1.msra.mxu0 %v1518
  %4792 = vmatprep.subr.mxu0 0.0
  %4793 = vmatpush1.msra.mxu0 %v1519
  %4794 = vmatprep.subr.mxu0 0.0
  %4795 = vmatpush1.msra.mxu0 %v1520
  %4796 = vmatprep.subr.mxu0 0.0
  %4797 = vmatpush1.msra.mxu0 %v1521
  %4798 = vmatprep.subr.mxu0 0.0
  %4799 = vmatpush1.msra.mxu0 %v1522
  %4800 = vmatprep.mubr.f32.mxu0 %v73
  %4801 = vmatmul.mubr.f32.gmra.mrb[0].mxu0 %v72
  %v4802 = vpop.f32.mrb[0].mxu0
  %v4803 = vadd.f32 %v4693, %v4802
  %v4804 = vpop.f32.mrb[0].mxu0
  %4805 = vmatprep.mubr.f32.mxu0 %v134
  %4806 = vmatmul.mubr.f32.gmra.mrb[0].mxu0 %v133
  %v4807 = vpop.f32.mrb[0].mxu0
  %v4808 = vadd.f32 %v4698, %v4807
  %v4809 = vpop.f32.mrb[0].mxu0
  %4810 = vmatprep.mubr.f32.mxu0 %v195
  %4811 = vmatmul.mubr.f32.gmra.mrb[0].mxu0 %v194
  %v4812 = vpop.f32.mrb[0].mxu0
  %v4813 = vadd.f32 %v4703, %v4812
  %v4814 = vpop.f32.mrb[0].mxu0
  %4815 = vmatprep.mubr.f32.mxu0 %v256
  %4816 = vmatmul.mubr.f32.gmra.mrb[0].mxu0 %v255
  %v4817 = vpop.f32.mrb[0].mxu0
  %v4818 = vadd.f32 %v4708, %v4817
  %v4819 = vpop.f32.mrb[0].mxu0
  %4820 = vmatprep.mubr.f32.mxu0 %v317
  %4821 = vmatmul.mubr.f32.gmra.mrb[0].mxu0 %v316
  %v4822 = vpop.f32.mrb[0].mxu0
  %v4823 = vadd.f32 %v4713, %v4822
  %v4824 = vpop.f32.mrb[0].mxu0
  %4825 = vmatprep.mubr.f32.mxu0 %v378
  %4826 = vmatmul.mubr.f32.gmra.mrb[0].mxu0 %v377
  %v4827 = vpop.f32.mrb[0].mxu0
  %v4828 = vadd.f32 %v4718, %v4827
  %v4829 = vpop.f32.mrb[0].mxu0
  %4830 = vmatprep.mubr.f32.mxu0 %v439
  %4831 = vmatmul.mubr.f32.gmra.mrb[0].mxu0 %v438
  %v4832 = vpop.f32.mrb[0].mxu0
  %v4833 = vadd.f32 %v4723, %v4832
  %v4834 = vpop.f32.mrb[0].mxu0
  %4835 = vmatprep.mubr.f32.mxu0 %v500
  %4836 = vmatmul.mubr.f32.gmra.mrb[0].mxu0 %v499
  %v4837 = vpop.f32.mrb[0].mxu0
  %v4838 = vadd.f32 %v4728, %v4837
  %v4839 = vpop.f32.mrb[0].mxu0
  %4840 = vmatprep.mubr.f32.mxu0 %v561
  %4841 = vmatmul.mubr.f32.gmra.mrb[0].mxu0 %v560
  %v4842 = vpop.f32.mrb[0].mxu0
  %v4843 = vadd.f32 %v4733, %v4842
  %v4844 = vpop.f32.mrb[0].mxu0
  %4845 = vdwg.mxu0
  %4846 = vmatprep.subr.mxu0 0.0
  %4847 = vmatpush1.msra.mxu0 %v1523
  %4848 = vmatprep.subr.mxu0 0.0
  %4849 = vmatpush1.msra.mxu0 %v1524
  %4850 = vmatprep.subr.mxu0 0.0
  %4851 = vmatpush1.msra.mxu0 %v1525
  %4852 = vmatprep.subr.mxu0 0.0
  %4853 = vmatpush1.msra.mxu0 %v1526
  %4854 = vmatprep.subr.mxu0 0.0
  %4855 = vmatpush1.msra.mxu0 %v1527
  %4856 = vmatprep.subr.mxu0 0.0
  %4857 = vmatpush1.msra.mxu0 %v1528
  %4858 = vmatprep.subr.mxu0 0.0
  %4859 = vmatpush1.msra.mxu0 %v1529
  %4860 = vmatprep.subr.mxu0 0.0
  %4861 = vmatpush1.msra.mxu0 %v1530
  %4862 = vmatprep.subr.mxu0 0.0
  %4863 = vmatpush1.msra.mxu0 %v1531
  %4864 = vmatprep.subr.mxu0 0.0
  %4865 = vmatpush1.msra.mxu0 %v1532
  %4866 = vmatprep.subr.mxu0 0.0
  %4867 = vmatpush1.msra.mxu0 %v1533
  %4868 = vmatprep.subr.mxu0 0.0
  %4869 = vmatpush1.msra.mxu0 %v1534
  %4870 = vmatprep.subr.mxu0 0.0
  %4871 = vmatpush1.msra.mxu0 %v1535
  %4872 = vmatprep.subr.mxu0 0.0
  %4873 = vmatpush1.msra.mxu0 %v1536
  %4874 = vmatprep.subr.mxu0 0.0
  %4875 = vmatpush1.msra.mxu0 %v1537
  %4876 = vmatprep.subr.mxu0 0.0
  %4877 = vmatpush1.msra.mxu0 %v1538
  %4878 = vmatprep.subr.mxu0 0.0
  %4879 = vmatpush1.msra.mxu0 0.0
  %4880 = vmatprep.subr.mxu0 0.0
  %4881 = vmatpush1.msra.mxu0 0.0
  %4882 = vmatprep.subr.mxu0 0.0
  %4883 = vmatpush1.msra.mxu0 0.0
  %4884 = vmatprep.subr.mxu0 0.0
  %4885 = vmatpush1.msra.mxu0 0.0
  %4886 = vmatprep.subr.mxu0 0.0
  %4887 = vmatpush1.msra.mxu0 0.0
  %4888 = vmatprep.subr.mxu0 0.0
  %4889 = vmatpush1.msra.mxu0 0.0
  %4890 = vmatprep.subr.mxu0 0.0
  %4891 = vmatpush1.msra.mxu0 0.0
  %4892 = vmatprep.subr.mxu0 0.0
  %4893 = vmatpush1.msra.mxu0 0.0
  %4894 = vmatprep.subr.mxu0 0.0
  %4895 = vmatpush1.msra.mxu0 0.0
  %4896 = vmatprep.subr.mxu0 0.0
  %4897 = vmatpush1.msra.mxu0 0.0
  %4898 = vmatprep.subr.mxu0 0.0
  %4899 = vmatpush1.msra.mxu0 0.0
  %4900 = vmatprep.subr.mxu0 0.0
  %4901 = vmatpush1.msra.mxu0 0.0
  %4902 = vmatprep.subr.mxu0 0.0
  %4903 = vmatpush1.msra.mxu0 0.0
  %4904 = vmatprep.subr.mxu0 0.0
  %4905 = vmatpush1.msra.mxu0 0.0
  %4906 = vmatprep.subr.mxu0 0.0
  %4907 = vmatpush1.msra.mxu0 0.0
  %4908 = vmatprep.subr.mxu0 0.0
  %4909 = vmatpush1.msra.mxu0 0.0
  %4910 = vmatprep.mubr.f32.mxu0 0.0
  %4911 = vmatmul.mubr.f32.gmra.mrb[0].mxu0 %v74
  %v4912 = vpop.f32.mrb[0].mxu0
  %v4913 = vadd.f32 %v4803, %v4912
  %v4914 = vpop.f32.mrb[0].mxu0
  %4915 = vmatprep.mubr.f32.mxu0 0.0
  %4916 = vmatmul.mubr.f32.gmra.mrb[0].mxu0 %v135
  %v4917 = vpop.f32.mrb[0].mxu0
  %v4918 = vadd.f32 %v4808, %v4917
  %v4919 = vpop.f32.mrb[0].mxu0
  %4920 = vmatprep.mubr.f32.mxu0 0.0
  %4921 = vmatmul.mubr.f32.gmra.mrb[0].mxu0 %v196
  %v4922 = vpop.f32.mrb[0].mxu0
  %v4923 = vadd.f32 %v4813, %v4922
  %v4924 = vpop.f32.mrb[0].mxu0
  %4925 = vmatprep.mubr.f32.mxu0 0.0
  %4926 = vmatmul.mubr.f32.gmra.mrb[0].mxu0 %v257
  %v4927 = vpop.f32.mrb[0].mxu0
  %v4928 = vadd.f32 %v4818, %v4927
  %v4929 = vpop.f32.mrb[0].mxu0
  %4930 = vmatprep.mubr.f32.mxu0 0.0
  %4931 = vmatmul.mubr.f32.gmra.mrb[0].mxu0 %v318
  %v4932 = vpop.f32.mrb[0].mxu0
  %v4933 = vadd.f32 %v4823, %v4932
  %v4934 = vpop.f32.mrb[0].mxu0
  %4935 = vmatprep.mubr.f32.mxu0 0.0
  %4936 = vmatmul.mubr.f32.gmra.mrb[0].mxu0 %v379
  %v4937 = vpop.f32.mrb[0].mxu0
  %v4938 = vadd.f32 %v4828, %v4937
  %v4939 = vpop.f32.mrb[0].mxu0
  %4940 = vmatprep.mubr.f32.mxu0 0.0
  %4941 = vmatmul.mubr.f32.gmra.mrb[0].mxu0 %v440
  %v4942 = vpop.f32.mrb[0].mxu0
  %v4943 = vadd.f32 %v4833, %v4942
  %v4944 = vpop.f32.mrb[0].mxu0
  %4945 = vmatprep.mubr.f32.mxu0 0.0
  %4946 = vmatmul.mubr.f32.gmra.mrb[0].mxu0 %v501
  %v4947 = vpop.f32.mrb[0].mxu0
  %v4948 = vadd.f32 %v4838, %v4947
  %v4949 = vpop.f32.mrb[0].mxu0
  %4950 = vmatprep.mubr.f32.mxu0 0.0
  %4951 = vmatmul.mubr.f32.gmra.mrb[0].mxu0 %v562
  %v4952 = vpop.f32.mrb[0].mxu0
  %v4953 = vadd.f32 %v4843, %v4952
  %v4954 = vpop.f32.mrb[0].mxu0
  %4955 = vdwg.mxu0
  %vm4956 = vcmask 523264
  %4957 = vst.msk [vmem:[%s3] sm:$0xff] %vm4956, %v4913
  %4958 = vst.msk [vmem:[%s3 + $0x8] sm:$0xff] %vm4956, %v4918
  %4959 = vst.msk [vmem:[%s3 + $0x10] sm:$0xff] %vm4956, %v4923
  %4960 = vst.msk [vmem:[%s3 + $0x18] sm:$0xff] %vm4956, %v4928
  %4961 = vst.msk [vmem:[%s3 + $0x20] sm:$0xff] %vm4956, %v4933
  %4962 = vst.msk [vmem:[%s3 + $0x28] sm:$0xff] %vm4956, %v4938
  %4963 = vst.msk [vmem:[%s3 + $0x30] sm:$0xff] %vm4956, %v4943
  %4964 = vst.msk [vmem:[%s3 + $0x38] sm:$0xff] %vm4956, %v4948
  %4965 = vst.msk [vmem:[%s3 + $0x40] sm:$0xff] %vm4956, %v4953
  // Predicated region
  $region14: #{conv_neural_network_forward.11} parent=0 // pred_check
    _
  $region15: #{conv_neural_network_forward.11} parent=0 // pred_check_branch
    %4967 = sbr.rel (0) target = $region17
  $region16: #{conv_neural_network_forward.11} parent=0 // pred_region
    _
  $region17: #{conv_neural_network_forward.11} parent=0 // pred_fallthru
    _
  // Predicated region
  $region18: #{conv_neural_network_forward.11} parent=0 // pred_check
    _
  $region19: #{conv_neural_network_forward.11} parent=0 // pred_check_branch
    %4969 = sbr.rel (0) target = $region21
  $region20: #{conv_neural_network_forward.11} parent=0 // pred_region
    _
  $region21: #{conv_neural_network_forward.11} parent=0 // pred_fallthru
    _

</llo_original>
